<compile_context>
chip_gen: v5e
topology: v5e:2x2
jax: 0.10.0
libtpu: 0.0.40
codegen_flags: <defaults>
</compile_context>

<pallas_src>
import functools

import numpy as np
import jax
import jax.numpy as jnp
from jax.experimental import pallas as pl
from jax.experimental.pallas import tpu as pltpu


# ---------------- deterministic parameter construction ----------------
def _orthogonal(rng, shape):
    a = rng.standard_normal(shape)
    if shape[0] < shape[1]:
        q, _ = np.linalg.qr(a.T)
        q = q.T
    else:
        q, _ = np.linalg.qr(a)
    return q[: shape[0], : shape[1]].astype(np.float32)


def _block_orthogonal(rng, shape, split):
    out = np.zeros(shape, np.float32)
    br, bc = split
    for r in range(0, shape[0], br):
        for c in range(0, shape[1], bc):
            out[r:r + br, c:c + bc] = _orthogonal(rng, (br, bc))
    return out


def make_params(input_size, hidden_size, cell_size, num_layers, seed=0):
    """Mirrors _LstmCellWithProjection.__init__/reset_parameters shapes."""
    rng = np.random.default_rng(seed)
    fwd, bwd = [], []
    lstm_in = input_size
    for _ in range(num_layers):
        for store in (fwd, bwd):
            w_in = _block_orthogonal(rng, (4 * cell_size, lstm_in),
                                     (cell_size, lstm_in))          # (4C, D)
            w_st = _block_orthogonal(rng, (4 * cell_size, hidden_size),
                                     (cell_size, hidden_size))      # (4C, H)
            bias = np.zeros((4 * cell_size,), np.float32)
            bias[cell_size:2 * cell_size] = 1.0                     # forget-gate bias
            bound = 1.0 / np.sqrt(cell_size)
            w_pr = rng.uniform(-bound, bound,
                               (hidden_size, cell_size)).astype(np.float32)  # (H, C)
            store.append(dict(
                wi=jnp.asarray(w_in.T),        # (D, 4C)   x @ wi
                wh=jnp.asarray(w_st.T),        # (H, 4C)   h @ wh
                b=jnp.asarray(bias[None, :]),  # (1, 4C)
                wp=jnp.asarray(w_pr.T),        # (C, H)    (o*tanh(c)) @ wp
            ))
        lstm_in = hidden_size
    return fwd, bwd


# ------------- Pallas kernel: one layer, BOTH directions fused ---------------
def _bilstm_kernel(xf_ref, xb_ref,
                   wif_ref, whf_ref, wpf_ref, bf_ref,
                   wib_ref, whb_ref, wpb_ref, bb_ref,
                   len_ref,
                   yf_ref, yb_ref,
                   hf_scr, cf_scr, hb_scr, cb_scr, *,
                   t_chunk, t_total, cell_size,
                   memory_cell_clip, hidden_state_clip):
    # grid = (time_chunk,).  The forward direction reads/writes chunk t; the
    # backward direction reads/writes chunk (n_chunks-1-t) via its index_maps
    # and walks timesteps in reverse within the chunk -- no jnp.flip needed.
    t = pl.program_id(0)

    @pl.when(t == 0)
    def _():
        hf_scr[...] = jnp.zeros_like(hf_scr)
        cf_scr[...] = jnp.zeros_like(cf_scr)
        hb_scr[...] = jnp.zeros_like(hb_scr)
        cb_scr[...] = jnp.zeros_like(cb_scr)

    C = cell_size
    TC, Bp, D = xf_ref.shape

    # ---- chunk-level input projection: one big bf16 MXU matmul per direction
    xf = xf_ref[...].reshape(TC * Bp, D).astype(jnp.bfloat16)
    xb = xb_ref[...].reshape(TC * Bp, D).astype(jnp.bfloat16)
    gxf = (jnp.dot(xf, wif_ref[...], preferred_element_type=jnp.float32)
           + bf_ref[...]).reshape(TC, Bp, 4 * C)
    gxb = (jnp.dot(xb, wib_ref[...], preferred_element_type=jnp.float32)
           + bb_ref[...]).reshape(TC, Bp, 4 * C)

    whf = whf_ref[...]          # (H, 4C) bf16
    whb = whb_ref[...]
    wpf = wpf_ref[...]          # (C, H)  bf16
    wpb = wpb_ref[...]

    lens = len_ref[...]         # (Bp, 1) int32 (0 = padded row)
    base = t * t_chunk
    bwd_base = t_total - t_chunk - base   # original timestep of bwd-chunk row 0

    # ---- hoisted per-chunk activity masks (length > original timestep)
    step_idx = jax.lax.broadcasted_iota(jnp.int32, (t_chunk, Bp, 1), 0)
    act_f = lens[None, :, :] > (base + step_idx)          # (t_chunk, Bp, 1)
    act_b = lens[None, :, :] > (bwd_base + step_idx)      # indexed by chunk row

    hf = hf_scr[...]
    cf = cf_scr[...]
    hb = hb_scr[...]
    cb = cb_scr[...]

    def cell(gates, c_prev, wp):
        ig = jax.nn.sigmoid(gates[:, 0 * C:1 * C])
        fg = jax.nn.sigmoid(gates[:, 1 * C:2 * C])
        gg = jnp.tanh(gates[:, 2 * C:3 * C])
        og = jax.nn.sigmoid(gates[:, 3 * C:4 * C])
        c_new = ig * gg + fg * c_prev
        if memory_cell_clip:
            c_new = jnp.clip(c_new, -memory_cell_clip, memory_cell_clip)
        h_new = jnp.dot((og * jnp.tanh(c_new)).astype(jnp.bfloat16), wp,
                        preferred_element_type=jnp.float32)
        if hidden_state_clip:
            h_new = jnp.clip(h_new, -hidden_state_clip, hidden_state_clip)
        return h_new, c_new

    for s in range(t_chunk):          # static unroll over the chunk
        sb = t_chunk - 1 - s          # backward within-chunk row (reverse walk)

        # interleave the two independent recurrences (fills MXU/EUP bubbles)
        gates_f = gxf[s] + jnp.dot(hf.astype(jnp.bfloat16), whf,
                                   preferred_element_type=jnp.float32)
        gates_b = gxb[sb] + jnp.dot(hb.astype(jnp.bfloat16), whb,
                                    preferred_element_type=jnp.float32)
        hf_new, cf_new = cell(gates_f, cf, wpf)
        hb_new, cb_new = cell(gates_b, cb, wpb)

        af = act_f[s]
        ab = act_b[sb]
        cf = jnp.where(af, cf_new, cf)
        hf = jnp.where(af, hf_new, hf)
        yf_ref[s] = jnp.where(af, hf_new, 0.0)
        cb = jnp.where(ab, cb_new, cb)
        hb = jnp.where(ab, hb_new, hb)
        yb_ref[sb] = jnp.where(ab, hb_new, 0.0)

    hf_scr[...] = hf
    cf_scr[...] = cf
    hb_scr[...] = hb
    cb_scr[...] = cb


def pallas_bilstm_layer(fwd_x, bwd_x, lengths_col, pf, pb, *, t_chunk,
                        memory_cell_clip=None, hidden_state_clip=None):
    """fwd_x/bwd_x: (Tp, Bp, D) f32 time-major (Bp % 8 == 0, Tp % t_chunk == 0);
    lengths_col: (Bp, 1) int32.  Returns (fwd_out, bwd_out), each (Tp, Bp, H)."""
    Tp, Bp, D = fwd_x.shape
    C, H = pf["wp"].shape
    assert Tp % t_chunk == 0 and Bp % 8 == 0
    n_chunks = Tp // t_chunk

    wif = pf["wi"].astype(jnp.bfloat16)
    wib = pb["wi"].astype(jnp.bfloat16)
    whf = pf["wh"].astype(jnp.bfloat16)
    whb = pb["wh"].astype(jnp.bfloat16)
    wpf = pf["wp"].astype(jnp.bfloat16)
    wpb = pb["wp"].astype(jnp.bfloat16)
    bf = pf["b"]
    bb = pb["b"]

    kernel = functools.partial(
        _bilstm_kernel, t_chunk=t_chunk, t_total=Tp, cell_size=C,
        memory_cell_clip=memory_cell_clip, hidden_state_clip=hidden_state_clip)

    def full(shape):
        return pl.BlockSpec(shape, lambda t, _s=shape: (0,) * len(_s))

    yf, yb = pl.pallas_call(
        kernel,
        out_shape=(jax.ShapeDtypeStruct((Tp, Bp, H), jnp.float32),
                   jax.ShapeDtypeStruct((Tp, Bp, H), jnp.float32)),
        grid_spec=pltpu.PrefetchScalarGridSpec(
            num_scalar_prefetch=0,
            grid=(n_chunks,),
            in_specs=[
                # raw inputs: fwd chunk t, bwd chunk (n_chunks-1-t)  (flip-free)
                pl.BlockSpec((t_chunk, Bp, D), lambda t: (t, 0, 0)),
                pl.BlockSpec((t_chunk, Bp, D), lambda t: (n_chunks - 1 - t, 0, 0)),
                # weights / bias: constant blocks, stay resident across chunks
                full((D, 4 * C)), full((H, 4 * C)), full((C, H)), full((1, 4 * C)),
                full((D, 4 * C)), full((H, 4 * C)), full((C, H)), full((1, 4 * C)),
                full((Bp, 1)),
            ],
            out_specs=[
                pl.BlockSpec((t_chunk, Bp, H), lambda t: (t, 0, 0)),
                pl.BlockSpec((t_chunk, Bp, H), lambda t: (n_chunks - 1 - t, 0, 0)),
            ],
            scratch_shapes=[
                pltpu.VMEM((Bp, H), jnp.float32),   # fwd hidden carry
                pltpu.VMEM((Bp, C), jnp.float32),   # fwd memory carry
                pltpu.VMEM((Bp, H), jnp.float32),   # bwd hidden carry
                pltpu.VMEM((Bp, C), jnp.float32),   # bwd memory carry
            ],
        ),
        compiler_params=pltpu.CompilerParams(
            dimension_semantics=("arbitrary",),       # time is a recurrence
            vmem_limit_bytes=48 * 1024 * 1024),
    )(fwd_x, bwd_x, wif, whf, wpf, bf, wib, whb, wpb, bb, lengths_col)

    return yf, yb


# ---------------- pure-JAX reference with identical numerics ----------------
def ref_bilstm_layer(fwd_x, bwd_x, lengths_col, pf, pb, *, t_chunk=None,
                     memory_cell_clip=None, hidden_state_clip=None):
    del t_chunk

    def run(x_tbd, p, go_forward):
        Tp, Bp, D = x_tbd.shape
        C, H = p["wp"].shape
        wi = p["wi"].astype(jnp.bfloat16)
        wh = p["wh"].astype(jnp.bfloat16)
        wp = p["wp"].astype(jnp.bfloat16)
        gx = (jnp.dot(x_tbd.reshape(Tp * Bp, D).astype(jnp.bfloat16), wi,
                      preferred_element_type=jnp.float32)
              .reshape(Tp, Bp, 4 * C) + p["b"])
        h = jnp.zeros((Bp, H), jnp.float32)
        c = jnp.zeros((Bp, C), jnp.float32)
        out = jnp.zeros((Tp, Bp, H), jnp.float32)
        for step in range(Tp):
            idx = step if go_forward else Tp - 1 - step
            gates = gx[idx] + jnp.dot(h.astype(jnp.bfloat16), wh,
                                      preferred_element_type=jnp.float32)
            ig = jax.nn.sigmoid(gates[:, :C])
            fg = jax.nn.sigmoid(gates[:, C:2 * C])
            gg = jnp.tanh(gates[:, 2 * C:3 * C])
            og = jax.nn.sigmoid(gates[:, 3 * C:4 * C])
            c_new = ig * gg + fg * c
            if memory_cell_clip:
                c_new = jnp.clip(c_new, -memory_cell_clip, memory_cell_clip)
            h_new = jnp.dot((og * jnp.tanh(c_new)).astype(jnp.bfloat16), wp,
                            preferred_element_type=jnp.float32)
            if hidden_state_clip:
                h_new = jnp.clip(h_new, -hidden_state_clip, hidden_state_clip)
            m = lengths_col > idx
            c = jnp.where(m, c_new, c)
            h = jnp.where(m, h_new, h)
            out = out.at[idx].set(jnp.where(m, h_new, 0.0))
        return out

    return run(fwd_x, pf, True), run(bwd_x, pb, False)


# ---------------- _ElmoLSTM.forward glue (sort / pack / stack / restore) ----
def elmo_forward(layer_fn, params_fwd, params_bwd, inputs, mask, *, t_chunk=8):
    """inputs: (B, T, D) f32, mask: (B, T) f32 (left-aligned).
    Returns (num_layers, B, T, 2H) f32, same semantics as _ElmoLSTM.forward."""
    mask_np = np.asarray(mask)
    B, T_total = mask_np.shape
    lengths = mask_np.sum(-1).astype(np.int64)
    num_valid = int(mask_np[:, 0].sum())
    sorting = np.argsort(-lengths, kind="stable")        # sort_batch_by_length
    restoration = np.argsort(sorting, kind="stable")
    sorted_inputs = jnp.asarray(inputs)[sorting]
    sorted_lengths = lengths[sorting]
    returned_T = int(sorted_lengths[:num_valid].max())   # pack/pad_packed_sequence

    # Pad batch to a multiple of 16 (bf16 sublane packing) and time to a chunk
    # multiple; padded rows get length 0 and padded timesteps exceed every
    # length, so both are permanently inactive and trimmed afterwards.
    Bp = max(16, -(-num_valid // 16) * 16)
    Tp = -(-returned_T // t_chunk) * t_chunk

    x = sorted_inputs[:num_valid, :returned_T, :]
    x = jnp.pad(x, ((0, Bp - num_valid), (0, Tp - returned_T), (0, 0)))
    x_tbd = jnp.transpose(x, (1, 0, 2))                   # time-major (Tp, Bp, D)
    lens_pad = np.zeros((Bp,), np.int32)
    lens_pad[:num_valid] = sorted_lengths[:num_valid]
    lengths_col = jnp.asarray(lens_pad[:, None])          # (Bp, 1) int32

    fwd_seq = x_tbd
    bwd_seq = x_tbd
    seq_outputs = []
    for i, (pf, pb) in enumerate(zip(params_fwd, params_bwd)):
        fout, bout = layer_fn(fwd_seq, bwd_seq, lengths_col, pf, pb,
                              t_chunk=t_chunk)
        if i != 0:                                        # residual after layer 0
            fout = fout + fwd_seq
            bout = bout + bwd_seq
        fwd_seq, bwd_seq = fout, bout
        seq_outputs.append(jnp.concatenate([fout, bout], axis=-1))
    stacked = jnp.stack(seq_outputs)                      # (L, Tp, Bp, 2H)
    stacked = stacked[:, :returned_T, :num_valid]         # drop padding
    stacked = jnp.transpose(stacked, (0, 2, 1, 3))        # (L, Bv, Tr, 2H)

    L, _, _, twoH = stacked.shape
    if num_valid < B:
        stacked = jnp.concatenate(
            [stacked,
             jnp.zeros((L, B - num_valid, returned_T, twoH), stacked.dtype)],
            axis=1)
    if T_total > returned_T:
        stacked = jnp.concatenate(
            [stacked,
             jnp.zeros((L, B, T_total - returned_T, twoH), stacked.dtype)],
            axis=2)
    # TODO(synk): cross-call state caching (_update_states / _get_initial_states)
    # is not replicated; this implements a single stateless forward pass.
    return stacked[:, restoration, :, :]


if __name__ == "__main__":
    # small shapes: batch=4, seq=12, input=64, hidden=64, cell=128, layers=2
    B, T, D, H, C, L = 4, 12, 64, 64, 128, 2
    key = jax.random.PRNGKey(0)
    inputs = jax.random.normal(key, (B, T, D), jnp.float32)
    lengths = np.array([5, 12, 3, 9], np.int32)            # variable lengths
    mask = jnp.asarray(
        (np.arange(T)[None, :] < lengths[:, None]).astype(np.float32))

    params_fwd, params_bwd = make_params(D, H, C, L, seed=0)

    out = elmo_forward(pallas_bilstm_layer, params_fwd, params_bwd,
                       inputs, mask, t_chunk=8)
    out = jax.block_until_ready(out)

    ref = jax.block_until_ready(
        elmo_forward(ref_bilstm_layer, params_fwd, params_bwd,
                     inputs, mask, t_chunk=8))

    assert out.shape == (L, B, T, 2 * H)
    np.testing.assert_allclose(np.asarray(out), np.asarray(ref),
                               rtol=2e-3, atol=2e-3)
    print("KERNEL_OK")
</pallas_src>

<mosaic_0001>
module attributes {stable_mosaic.version = 11 : i64} {
  func.func @_bilstm_kernel(%arg0: i32, %arg1: memref<8x16x64xf32, #tpu.memory_space<vmem>>, %arg2: memref<8x16x64xf32, #tpu.memory_space<vmem>>, %arg3: memref<64x512xbf16, #tpu.memory_space<vmem>>, %arg4: memref<64x512xbf16, #tpu.memory_space<vmem>>, %arg5: memref<128x64xbf16, #tpu.memory_space<vmem>>, %arg6: memref<1x512xf32, #tpu.memory_space<vmem>>, %arg7: memref<64x512xbf16, #tpu.memory_space<vmem>>, %arg8: memref<64x512xbf16, #tpu.memory_space<vmem>>, %arg9: memref<128x64xbf16, #tpu.memory_space<vmem>>, %arg10: memref<1x512xf32, #tpu.memory_space<vmem>>, %arg11: memref<16x1xi32, #tpu.memory_space<vmem>>, %arg12: memref<8x16x64xf32, #tpu.memory_space<vmem>>, %arg13: memref<8x16x64xf32, #tpu.memory_space<vmem>>, %arg14: memref<16x64xf32, #tpu.memory_space<vmem>>, %arg15: memref<16x128xf32, #tpu.memory_space<vmem>>, %arg16: memref<16x64xf32, #tpu.memory_space<vmem>>, %arg17: memref<16x128xf32, #tpu.memory_space<vmem>>) attributes {dimension_semantics = [#tpu.dimension_semantics<arbitrary>], iteration_bounds = array<i64: 2>, scalar_prefetch = 0 : i64, scratch_operands = 4 : i64, tpu.core_type = #tpu.core_type<tc>, window_params = [{transform_indices = @transform_0, window_bounds = array<i64: 8, 16, 64>}, {transform_indices = @transform_1, window_bounds = array<i64: 8, 16, 64>}, {pipeline_mode = #tpu.pipeline_mode<synchronous>, transform_indices = @transform_2, window_bounds = array<i64: 64, 512>}, {pipeline_mode = #tpu.pipeline_mode<synchronous>, transform_indices = @transform_3, window_bounds = array<i64: 64, 512>}, {pipeline_mode = #tpu.pipeline_mode<synchronous>, transform_indices = @transform_4, window_bounds = array<i64: 128, 64>}, {pipeline_mode = #tpu.pipeline_mode<synchronous>, transform_indices = @transform_5, window_bounds = array<i64: 1, 512>}, {pipeline_mode = #tpu.pipeline_mode<synchronous>, transform_indices = @transform_6, window_bounds = array<i64: 64, 512>}, {pipeline_mode = #tpu.pipeline_mode<synchronous>, transform_indices = @transform_7, window_bounds = array<i64: 64, 512>}, {pipeline_mode = #tpu.pipeline_mode<synchronous>, transform_indices = @transform_8, window_bounds = array<i64: 128, 64>}, {pipeline_mode = #tpu.pipeline_mode<synchronous>, transform_indices = @transform_9, window_bounds = array<i64: 1, 512>}, {pipeline_mode = #tpu.pipeline_mode<synchronous>, transform_indices = @transform_10, window_bounds = array<i64: 16, 1>}, {transform_indices = @transform_11, window_bounds = array<i64: 8, 16, 64>}, {transform_indices = @transform_12, window_bounds = array<i64: 8, 16, 64>}]} {
    %c0_i32 = arith.constant 0 : i32
    %0 = arith.cmpi eq, %arg0, %c0_i32 : i32
    %1 = arith.extui %0 : i1 to i32
    %c0_i32_0 = arith.constant 0 : i32
    %2 = arith.cmpi ne, %1, %c0_i32_0 : i32
    scf.if %2 {
      %cst_179 = arith.constant 0.000000e+00 : f32
      %799 = vector.broadcast %cst_179 : f32 to vector<16x64xf32>
      %c0_180 = arith.constant 0 : index
      %c0_181 = arith.constant 0 : index
      %800 = vector.load %arg14[%c0_180, %c0_181] : memref<16x64xf32, #tpu.memory_space<vmem>>, vector<16x64xf32>
      tpu.vector_store %arg14[%c0_180, %c0_181], %799 {strides = array<i32>} : memref<16x64xf32, #tpu.memory_space<vmem>>, vector<16x64xf32>,
      %cst_182 = arith.constant 0.000000e+00 : f32
      %801 = vector.broadcast %cst_182 : f32 to vector<16x128xf32>
      %c0_183 = arith.constant 0 : index
      %c0_184 = arith.constant 0 : index
      %802 = vector.load %arg15[%c0_183, %c0_184] : memref<16x128xf32, #tpu.memory_space<vmem>>, vector<16x128xf32>
      tpu.vector_store %arg15[%c0_183, %c0_184], %801 {strides = array<i32>} : memref<16x128xf32, #tpu.memory_space<vmem>>, vector<16x128xf32>,
      %cst_185 = arith.constant 0.000000e+00 : f32
      %803 = vector.broadcast %cst_185 : f32 to vector<16x64xf32>
      %c0_186 = arith.constant 0 : index
      %c0_187 = arith.constant 0 : index
      %804 = vector.load %arg16[%c0_186, %c0_187] : memref<16x64xf32, #tpu.memory_space<vmem>>, vector<16x64xf32>
      tpu.vector_store %arg16[%c0_186, %c0_187], %803 {strides = array<i32>} : memref<16x64xf32, #tpu.memory_space<vmem>>, vector<16x64xf32>,
      %cst_188 = arith.constant 0.000000e+00 : f32
      %805 = vector.broadcast %cst_188 : f32 to vector<16x128xf32>
      %c0_189 = arith.constant 0 : index
      %c0_190 = arith.constant 0 : index
      %806 = vector.load %arg17[%c0_189, %c0_190] : memref<16x128xf32, #tpu.memory_space<vmem>>, vector<16x128xf32>
      tpu.vector_store %arg17[%c0_189, %c0_190], %805 {strides = array<i32>} : memref<16x128xf32, #tpu.memory_space<vmem>>, vector<16x128xf32>,
    } else {
    }
    %c0 = arith.constant 0 : index
    %c0_1 = arith.constant 0 : index
    %c0_2 = arith.constant 0 : index
    %3 = vector.load %arg1[%c0, %c0_1, %c0_2] : memref<8x16x64xf32, #tpu.memory_space<vmem>>, vector<8x16x64xf32>
    %4 = vector.shape_cast %3 : vector<8x16x64xf32> to vector<128x64xf32>
    %5 = arith.truncf %4 : vector<128x64xf32> to vector<128x64xbf16>
    %c0_3 = arith.constant 0 : index
    %c0_4 = arith.constant 0 : index
    %c0_5 = arith.constant 0 : index
    %6 = vector.load %arg2[%c0_3, %c0_4, %c0_5] : memref<8x16x64xf32, #tpu.memory_space<vmem>>, vector<8x16x64xf32>
    %7 = vector.shape_cast %6 : vector<8x16x64xf32> to vector<128x64xf32>
    %8 = arith.truncf %7 : vector<128x64xf32> to vector<128x64xbf16>
    %c0_6 = arith.constant 0 : index
    %c0_7 = arith.constant 0 : index
    %9 = vector.load %arg3[%c0_6, %c0_7] : memref<64x512xbf16, #tpu.memory_space<vmem>>, vector<64x512xbf16>
    %cst = arith.constant dense<0.000000e+00> : vector<128x512xf32>
    %10 = tpu.matmul %5, %9, %cst {dimension_numbers = #tpu.dot_dimension_numbers<[1], [0], [0], [1], [0, 0, 1, 1], [], []>} : vector<128x64xbf16>, vector<64x512xbf16>, vector<128x512xf32> -> vector<128x512xf32>
    %c0_8 = arith.constant 0 : index
    %c0_9 = arith.constant 0 : index
    %11 = vector.load %arg6[%c0_8, %c0_9] : memref<1x512xf32, #tpu.memory_space<vmem>>, vector<1x512xf32>
    %12 = vector.broadcast %11 : vector<1x512xf32> to vector<128x512xf32>
    %13 = arith.addf %10, %12 : vector<128x512xf32>
    %14 = vector.shape_cast %13 : vector<128x512xf32> to vector<8x16x512xf32>
    %c0_10 = arith.constant 0 : index
    %c0_11 = arith.constant 0 : index
    %15 = vector.load %arg7[%c0_10, %c0_11] : memref<64x512xbf16, #tpu.memory_space<vmem>>, vector<64x512xbf16>
    %cst_12 = arith.constant dense<0.000000e+00> : vector<128x512xf32>
    %16 = tpu.matmul %8, %15, %cst_12 {dimension_numbers = #tpu.dot_dimension_numbers<[1], [0], [0], [1], [0, 0, 1, 1], [], []>} : vector<128x64xbf16>, vector<64x512xbf16>, vector<128x512xf32> -> vector<128x512xf32>
    %c0_13 = arith.constant 0 : index
    %c0_14 = arith.constant 0 : index
    %17 = vector.load %arg10[%c0_13, %c0_14] : memref<1x512xf32, #tpu.memory_space<vmem>>, vector<1x512xf32>
    %18 = vector.broadcast %17 : vector<1x512xf32> to vector<128x512xf32>
    %19 = arith.addf %16, %18 : vector<128x512xf32>
    %20 = vector.shape_cast %19 : vector<128x512xf32> to vector<8x16x512xf32>
    %c0_15 = arith.constant 0 : index
    %c0_16 = arith.constant 0 : index
    %21 = vector.load %arg4[%c0_15, %c0_16] : memref<64x512xbf16, #tpu.memory_space<vmem>>, vector<64x512xbf16>
    %c0_17 = arith.constant 0 : index
    %c0_18 = arith.constant 0 : index
    %22 = vector.load %arg8[%c0_17, %c0_18] : memref<64x512xbf16, #tpu.memory_space<vmem>>, vector<64x512xbf16>
    %c0_19 = arith.constant 0 : index
    %c0_20 = arith.constant 0 : index
    %23 = vector.load %arg5[%c0_19, %c0_20] : memref<128x64xbf16, #tpu.memory_space<vmem>>, vector<128x64xbf16>
    %c0_21 = arith.constant 0 : index
    %c0_22 = arith.constant 0 : index
    %24 = vector.load %arg9[%c0_21, %c0_22] : memref<128x64xbf16, #tpu.memory_space<vmem>>, vector<128x64xbf16>
    %c0_23 = arith.constant 0 : index
    %c0_24 = arith.constant 0 : index
    %25 = vector.load %arg11[%c0_23, %c0_24] : memref<16x1xi32, #tpu.memory_space<vmem>>, vector<16x1xi32>
    %c8_i32 = arith.constant 8 : i32
    %26 = arith.muli %arg0, %c8_i32 : i32
    %c8_i32_25 = arith.constant 8 : i32
    %27 = arith.subi %c8_i32_25, %26 : i32
    %28 = tpu.iota {dimensions = array<i32: 0>} : vector<8x16x1xi32>
    %29 = vector.shape_cast %25 : vector<16x1xi32> to vector<1x16x1xi32>
    %30 = vector.broadcast %26 : i32 to vector<8x16x1xi32>
    %31 = arith.addi %30, %28 : vector<8x16x1xi32>
    %32 = vector.broadcast %29 : vector<1x16x1xi32> to vector<8x16x1xi32>
    %33 = arith.cmpi sgt, %32, %31 : vector<8x16x1xi32>
    %34 = vector.shape_cast %25 : vector<16x1xi32> to vector<1x16x1xi32>
    %35 = vector.broadcast %27 : i32 to vector<8x16x1xi32>
    %36 = arith.addi %35, %28 : vector<8x16x1xi32>
    %37 = vector.broadcast %34 : vector<1x16x1xi32> to vector<8x16x1xi32>
    %38 = arith.cmpi sgt, %37, %36 : vector<8x16x1xi32>
    %c0_26 = arith.constant 0 : index
    %c0_27 = arith.constant 0 : index
    %39 = vector.load %arg14[%c0_26, %c0_27] : memref<16x64xf32, #tpu.memory_space<vmem>>, vector<16x64xf32>
    %c0_28 = arith.constant 0 : index
    %c0_29 = arith.constant 0 : index
    %40 = vector.load %arg15[%c0_28, %c0_29] : memref<16x128xf32, #tpu.memory_space<vmem>>, vector<16x128xf32>
    %c0_30 = arith.constant 0 : index
    %c0_31 = arith.constant 0 : index
    %41 = vector.load %arg16[%c0_30, %c0_31] : memref<16x64xf32, #tpu.memory_space<vmem>>, vector<16x64xf32>
    %c0_32 = arith.constant 0 : index
    %c0_33 = arith.constant 0 : index
    %42 = vector.load %arg17[%c0_32, %c0_33] : memref<16x128xf32, #tpu.memory_space<vmem>>, vector<16x128xf32>
    %43 = vector.extract_strided_slice %14 {offsets = [0, 0, 0], sizes = [1, 16, 512], strides = [1, 1, 1]} : vector<8x16x512xf32> to vector<1x16x512xf32>
    %44 = vector.shape_cast %43 : vector<1x16x512xf32> to vector<16x512xf32>
    %45 = arith.truncf %39 : vector<16x64xf32> to vector<16x64xbf16>
    %cst_34 = arith.constant dense<0.000000e+00> : vector<16x512xf32>
    %46 = tpu.matmul %45, %21, %cst_34 {dimension_numbers = #tpu.dot_dimension_numbers<[1], [0], [0], [1], [0, 0, 1, 1], [], []>} : vector<16x64xbf16>, vector<64x512xbf16>, vector<16x512xf32> -> vector<16x512xf32>
    %47 = arith.addf %44, %46 : vector<16x512xf32>
    %48 = vector.extract_strided_slice %20 {offsets = [7, 0, 0], sizes = [1, 16, 512], strides = [1, 1, 1]} : vector<8x16x512xf32> to vector<1x16x512xf32>
    %49 = vector.shape_cast %48 : vector<1x16x512xf32> to vector<16x512xf32>
    %50 = arith.truncf %41 : vector<16x64xf32> to vector<16x64xbf16>
    %cst_35 = arith.constant dense<0.000000e+00> : vector<16x512xf32>
    %51 = tpu.matmul %50, %22, %cst_35 {dimension_numbers = #tpu.dot_dimension_numbers<[1], [0], [0], [1], [0, 0, 1, 1], [], []>} : vector<16x64xbf16>, vector<64x512xbf16>, vector<16x512xf32> -> vector<16x512xf32>
    %52 = arith.addf %49, %51 : vector<16x512xf32>
    %53 = vector.extract_strided_slice %47 {offsets = [0, 0], sizes = [16, 128], strides = [1, 1]} : vector<16x512xf32> to vector<16x128xf32>
    %54 = arith.negf %53 : vector<16x128xf32>
    %55 = math.exp %54 : vector<16x128xf32>
    %cst_36 = arith.constant 1.000000e+00 : f32
    %56 = vector.broadcast %cst_36 : f32 to vector<16x128xf32>
    %57 = arith.addf %56, %55 : vector<16x128xf32>
    %58 = arith.divf %56, %57 : vector<16x128xf32>
    %59 = vector.extract_strided_slice %47 {offsets = [0, 128], sizes = [16, 128], strides = [1, 1]} : vector<16x512xf32> to vector<16x128xf32>
    %60 = arith.negf %59 : vector<16x128xf32>
    %61 = math.exp %60 : vector<16x128xf32>
    %cst_37 = arith.constant 1.000000e+00 : f32
    %62 = vector.broadcast %cst_37 : f32 to vector<16x128xf32>
    %63 = arith.addf %62, %61 : vector<16x128xf32>
    %64 = arith.divf %62, %63 : vector<16x128xf32>
    %65 = vector.extract_strided_slice %47 {offsets = [0, 256], sizes = [16, 128], strides = [1, 1]} : vector<16x512xf32> to vector<16x128xf32>
    %66 = math.tanh %65 : vector<16x128xf32>
    %67 = vector.extract_strided_slice %47 {offsets = [0, 384], sizes = [16, 128], strides = [1, 1]} : vector<16x512xf32> to vector<16x128xf32>
    %68 = arith.negf %67 : vector<16x128xf32>
    %69 = math.exp %68 : vector<16x128xf32>
    %cst_38 = arith.constant 1.000000e+00 : f32
    %70 = vector.broadcast %cst_38 : f32 to vector<16x128xf32>
    %71 = arith.addf %70, %69 : vector<16x128xf32>
    %72 = arith.divf %70, %71 : vector<16x128xf32>
    %73 = arith.mulf %58, %66 : vector<16x128xf32>
    %74 = arith.mulf %64, %40 : vector<16x128xf32>
    %75 = arith.addf %73, %74 : vector<16x128xf32>
    %76 = math.tanh %75 : vector<16x128xf32>
    %77 = arith.mulf %72, %76 : vector<16x128xf32>
    %78 = arith.truncf %77 : vector<16x128xf32> to vector<16x128xbf16>
    %cst_39 = arith.constant dense<0.000000e+00> : vector<16x64xf32>
    %79 = tpu.matmul %78, %23, %cst_39 {dimension_numbers = #tpu.dot_dimension_numbers<[1], [0], [0], [1], [0, 0, 1, 1], [], []>} : vector<16x128xbf16>, vector<128x64xbf16>, vector<16x64xf32> -> vector<16x64xf32>
    %80 = vector.extract_strided_slice %52 {offsets = [0, 0], sizes = [16, 128], strides = [1, 1]} : vector<16x512xf32> to vector<16x128xf32>
    %81 = arith.negf %80 : vector<16x128xf32>
    %82 = math.exp %81 : vector<16x128xf32>
    %cst_40 = arith.constant 1.000000e+00 : f32
    %83 = vector.broadcast %cst_40 : f32 to vector<16x128xf32>
    %84 = arith.addf %83, %82 : vector<16x128xf32>
    %85 = arith.divf %83, %84 : vector<16x128xf32>
    %86 = vector.extract_strided_slice %52 {offsets = [0, 128], sizes = [16, 128], strides = [1, 1]} : vector<16x512xf32> to vector<16x128xf32>
    %87 = arith.negf %86 : vector<16x128xf32>
    %88 = math.exp %87 : vector<16x128xf32>
    %cst_41 = arith.constant 1.000000e+00 : f32
    %89 = vector.broadcast %cst_41 : f32 to vector<16x128xf32>
    %90 = arith.addf %89, %88 : vector<16x128xf32>
    %91 = arith.divf %89, %90 : vector<16x128xf32>
    %92 = vector.extract_strided_slice %52 {offsets = [0, 256], sizes = [16, 128], strides = [1, 1]} : vector<16x512xf32> to vector<16x128xf32>
    %93 = math.tanh %92 : vector<16x128xf32>
    %94 = vector.extract_strided_slice %52 {offsets = [0, 384], sizes = [16, 128], strides = [1, 1]} : vector<16x512xf32> to vector<16x128xf32>
    %95 = arith.negf %94 : vector<16x128xf32>
    %96 = math.exp %95 : vector<16x128xf32>
    %cst_42 = arith.constant 1.000000e+00 : f32
    %97 = vector.broadcast %cst_42 : f32 to vector<16x128xf32>
    %98 = arith.addf %97, %96 : vector<16x128xf32>
    %99 = arith.divf %97, %98 : vector<16x128xf32>
    %100 = arith.mulf %85, %93 : vector<16x128xf32>
    %101 = arith.mulf %91, %42 : vector<16x128xf32>
    %102 = arith.addf %100, %101 : vector<16x128xf32>
    %103 = math.tanh %102 : vector<16x128xf32>
    %104 = arith.mulf %99, %103 : vector<16x128xf32>
    %105 = arith.truncf %104 : vector<16x128xf32> to vector<16x128xbf16>
    %cst_43 = arith.constant dense<0.000000e+00> : vector<16x64xf32>
    %106 = tpu.matmul %105, %24, %cst_43 {dimension_numbers = #tpu.dot_dimension_numbers<[1], [0], [0], [1], [0, 0, 1, 1], [], []>} : vector<16x128xbf16>, vector<128x64xbf16>, vector<16x64xf32> -> vector<16x64xf32>
    %107 = vector.extract_strided_slice %33 {offsets = [0, 0, 0], sizes = [1, 16, 1], strides = [1, 1, 1]} : vector<8x16x1xi1> to vector<1x16x1xi1>
    %108 = vector.shape_cast %107 : vector<1x16x1xi1> to vector<16x1xi1>
    %109 = vector.extract_strided_slice %38 {offsets = [7, 0, 0], sizes = [1, 16, 1], strides = [1, 1, 1]} : vector<8x16x1xi1> to vector<1x16x1xi1>
    %110 = vector.shape_cast %109 : vector<1x16x1xi1> to vector<16x1xi1>
    %111 = vector.shape_cast %108 : vector<16x1xi1> to vector<16x1xi1>
    %112 = vector.broadcast %111 : vector<16x1xi1> to vector<16x128xi1>
    %113 = arith.select %112, %75, %40 : vector<16x128xi1>, vector<16x128xf32>
    %114 = vector.shape_cast %108 : vector<16x1xi1> to vector<16x1xi1>
    %115 = vector.broadcast %114 : vector<16x1xi1> to vector<16x64xi1>
    %116 = arith.select %115, %79, %39 : vector<16x64xi1>, vector<16x64xf32>
    %cst_44 = arith.constant 0.000000e+00 : f32
    %117 = vector.shape_cast %108 : vector<16x1xi1> to vector<16x1xi1>
    %118 = vector.broadcast %117 : vector<16x1xi1> to vector<16x64xi1>
    %119 = vector.broadcast %cst_44 : f32 to vector<16x64xf32>
    %120 = arith.select %118, %79, %119 : vector<16x64xi1>, vector<16x64xf32>
    %c0_45 = arith.constant 0 : index
    %c0_46 = arith.constant 0 : index
    %c0_47 = arith.constant 0 : index
    %121 = vector.load %arg12[%c0_45, %c0_46, %c0_47] : memref<8x16x64xf32, #tpu.memory_space<vmem>>, vector<1x16x64xf32>
    %122 = vector.shape_cast %121 : vector<1x16x64xf32> to vector<16x64xf32>
    %123 = vector.shape_cast %120 : vector<16x64xf32> to vector<1x16x64xf32>
    tpu.vector_store %arg12[%c0_45, %c0_46, %c0_47], %123 {strides = array<i32>} : memref<8x16x64xf32, #tpu.memory_space<vmem>>, vector<1x16x64xf32>,
    %124 = vector.shape_cast %110 : vector<16x1xi1> to vector<16x1xi1>
    %125 = vector.broadcast %124 : vector<16x1xi1> to vector<16x128xi1>
    %126 = arith.select %125, %102, %42 : vector<16x128xi1>, vector<16x128xf32>
    %127 = vector.shape_cast %110 : vector<16x1xi1> to vector<16x1xi1>
    %128 = vector.broadcast %127 : vector<16x1xi1> to vector<16x64xi1>
    %129 = arith.select %128, %106, %41 : vector<16x64xi1>, vector<16x64xf32>
    %cst_48 = arith.constant 0.000000e+00 : f32
    %130 = vector.shape_cast %110 : vector<16x1xi1> to vector<16x1xi1>
    %131 = vector.broadcast %130 : vector<16x1xi1> to vector<16x64xi1>
    %132 = vector.broadcast %cst_48 : f32 to vector<16x64xf32>
    %133 = arith.select %131, %106, %132 : vector<16x64xi1>, vector<16x64xf32>
    %c7 = arith.constant 7 : index
    %c0_49 = arith.constant 0 : index
    %c0_50 = arith.constant 0 : index
    %134 = vector.load %arg13[%c7, %c0_49, %c0_50] : memref<8x16x64xf32, #tpu.memory_space<vmem>>, vector<1x16x64xf32>
    %135 = vector.shape_cast %134 : vector<1x16x64xf32> to vector<16x64xf32>
    %136 = vector.shape_cast %133 : vector<16x64xf32> to vector<1x16x64xf32>
    tpu.vector_store %arg13[%c7, %c0_49, %c0_50], %136 {strides = array<i32>} : memref<8x16x64xf32, #tpu.memory_space<vmem>>, vector<1x16x64xf32>,
    %137 = vector.extract_strided_slice %14 {offsets = [1, 0, 0], sizes = [1, 16, 512], strides = [1, 1, 1]} : vector<8x16x512xf32> to vector<1x16x512xf32>
    %138 = vector.shape_cast %137 : vector<1x16x512xf32> to vector<16x512xf32>
    %139 = arith.truncf %116 : vector<16x64xf32> to vector<16x64xbf16>
    %cst_51 = arith.constant dense<0.000000e+00> : vector<16x512xf32>
    %140 = tpu.matmul %139, %21, %cst_51 {dimension_numbers = #tpu.dot_dimension_numbers<[1], [0], [0], [1], [0, 0, 1, 1], [], []>} : vector<16x64xbf16>, vector<64x512xbf16>, vector<16x512xf32> -> vector<16x512xf32>
    %141 = arith.addf %138, %140 : vector<16x512xf32>
    %142 = vector.extract_strided_slice %20 {offsets = [6, 0, 0], sizes = [1, 16, 512], strides = [1, 1, 1]} : vector<8x16x512xf32> to vector<1x16x512xf32>
    %143 = vector.shape_cast %142 : vector<1x16x512xf32> to vector<16x512xf32>
    %144 = arith.truncf %129 : vector<16x64xf32> to vector<16x64xbf16>
    %cst_52 = arith.constant dense<0.000000e+00> : vector<16x512xf32>
    %145 = tpu.matmul %144, %22, %cst_52 {dimension_numbers = #tpu.dot_dimension_numbers<[1], [0], [0], [1], [0, 0, 1, 1], [], []>} : vector<16x64xbf16>, vector<64x512xbf16>, vector<16x512xf32> -> vector<16x512xf32>
    %146 = arith.addf %143, %145 : vector<16x512xf32>
    %147 = vector.extract_strided_slice %141 {offsets = [0, 0], sizes = [16, 128], strides = [1, 1]} : vector<16x512xf32> to vector<16x128xf32>
    %148 = arith.negf %147 : vector<16x128xf32>
    %149 = math.exp %148 : vector<16x128xf32>
    %cst_53 = arith.constant 1.000000e+00 : f32
    %150 = vector.broadcast %cst_53 : f32 to vector<16x128xf32>
    %151 = arith.addf %150, %149 : vector<16x128xf32>
    %152 = arith.divf %150, %151 : vector<16x128xf32>
    %153 = vector.extract_strided_slice %141 {offsets = [0, 128], sizes = [16, 128], strides = [1, 1]} : vector<16x512xf32> to vector<16x128xf32>
    %154 = arith.negf %153 : vector<16x128xf32>
    %155 = math.exp %154 : vector<16x128xf32>
    %cst_54 = arith.constant 1.000000e+00 : f32
    %156 = vector.broadcast %cst_54 : f32 to vector<16x128xf32>
    %157 = arith.addf %156, %155 : vector<16x128xf32>
    %158 = arith.divf %156, %157 : vector<16x128xf32>
    %159 = vector.extract_strided_slice %141 {offsets = [0, 256], sizes = [16, 128], strides = [1, 1]} : vector<16x512xf32> to vector<16x128xf32>
    %160 = math.tanh %159 : vector<16x128xf32>
    %161 = vector.extract_strided_slice %141 {offsets = [0, 384], sizes = [16, 128], strides = [1, 1]} : vector<16x512xf32> to vector<16x128xf32>
    %162 = arith.negf %161 : vector<16x128xf32>
    %163 = math.exp %162 : vector<16x128xf32>
    %cst_55 = arith.constant 1.000000e+00 : f32
    %164 = vector.broadcast %cst_55 : f32 to vector<16x128xf32>
    %165 = arith.addf %164, %163 : vector<16x128xf32>
    %166 = arith.divf %164, %165 : vector<16x128xf32>
    %167 = arith.mulf %152, %160 : vector<16x128xf32>
    %168 = arith.mulf %158, %113 : vector<16x128xf32>
    %169 = arith.addf %167, %168 : vector<16x128xf32>
    %170 = math.tanh %169 : vector<16x128xf32>
    %171 = arith.mulf %166, %170 : vector<16x128xf32>
    %172 = arith.truncf %171 : vector<16x128xf32> to vector<16x128xbf16>
    %cst_56 = arith.constant dense<0.000000e+00> : vector<16x64xf32>
    %173 = tpu.matmul %172, %23, %cst_56 {dimension_numbers = #tpu.dot_dimension_numbers<[1], [0], [0], [1], [0, 0, 1, 1], [], []>} : vector<16x128xbf16>, vector<128x64xbf16>, vector<16x64xf32> -> vector<16x64xf32>
    %174 = vector.extract_strided_slice %146 {offsets = [0, 0], sizes = [16, 128], strides = [1, 1]} : vector<16x512xf32> to vector<16x128xf32>
    %175 = arith.negf %174 : vector<16x128xf32>
    %176 = math.exp %175 : vector<16x128xf32>
    %cst_57 = arith.constant 1.000000e+00 : f32
    %177 = vector.broadcast %cst_57 : f32 to vector<16x128xf32>
    %178 = arith.addf %177, %176 : vector<16x128xf32>
    %179 = arith.divf %177, %178 : vector<16x128xf32>
    %180 = vector.extract_strided_slice %146 {offsets = [0, 128], sizes = [16, 128], strides = [1, 1]} : vector<16x512xf32> to vector<16x128xf32>
    %181 = arith.negf %180 : vector<16x128xf32>
    %182 = math.exp %181 : vector<16x128xf32>
    %cst_58 = arith.constant 1.000000e+00 : f32
    %183 = vector.broadcast %cst_58 : f32 to vector<16x128xf32>
    %184 = arith.addf %183, %182 : vector<16x128xf32>
    %185 = arith.divf %183, %184 : vector<16x128xf32>
    %186 = vector.extract_strided_slice %146 {offsets = [0, 256], sizes = [16, 128], strides = [1, 1]} : vector<16x512xf32> to vector<16x128xf32>
    %187 = math.tanh %186 : vector<16x128xf32>
    %188 = vector.extract_strided_slice %146 {offsets = [0, 384], sizes = [16, 128], strides = [1, 1]} : vector<16x512xf32> to vector<16x128xf32>
    %189 = arith.negf %188 : vector<16x128xf32>
    %190 = math.exp %189 : vector<16x128xf32>
    %cst_59 = arith.constant 1.000000e+00 : f32
    %191 = vector.broadcast %cst_59 : f32 to vector<16x128xf32>
    %192 = arith.addf %191, %190 : vector<16x128xf32>
    %193 = arith.divf %191, %192 : vector<16x128xf32>
    %194 = arith.mulf %179, %187 : vector<16x128xf32>
    %195 = arith.mulf %185, %126 : vector<16x128xf32>
    %196 = arith.addf %194, %195 : vector<16x128xf32>
    %197 = math.tanh %196 : vector<16x128xf32>
    %198 = arith.mulf %193, %197 : vector<16x128xf32>
    %199 = arith.truncf %198 : vector<16x128xf32> to vector<16x128xbf16>
    %cst_60 = arith.constant dense<0.000000e+00> : vector<16x64xf32>
    %200 = tpu.matmul %199, %24, %cst_60 {dimension_numbers = #tpu.dot_dimension_numbers<[1], [0], [0], [1], [0, 0, 1, 1], [], []>} : vector<16x128xbf16>, vector<128x64xbf16>, vector<16x64xf32> -> vector<16x64xf32>
    %201 = vector.extract_strided_slice %33 {offsets = [1, 0, 0], sizes = [1, 16, 1], strides = [1, 1, 1]} : vector<8x16x1xi1> to vector<1x16x1xi1>
    %202 = vector.shape_cast %201 : vector<1x16x1xi1> to vector<16x1xi1>
    %203 = vector.extract_strided_slice %38 {offsets = [6, 0, 0], sizes = [1, 16, 1], strides = [1, 1, 1]} : vector<8x16x1xi1> to vector<1x16x1xi1>
    %204 = vector.shape_cast %203 : vector<1x16x1xi1> to vector<16x1xi1>
    %205 = vector.shape_cast %202 : vector<16x1xi1> to vector<16x1xi1>
    %206 = vector.broadcast %205 : vector<16x1xi1> to vector<16x128xi1>
    %207 = arith.select %206, %169, %113 : vector<16x128xi1>, vector<16x128xf32>
    %208 = vector.shape_cast %202 : vector<16x1xi1> to vector<16x1xi1>
    %209 = vector.broadcast %208 : vector<16x1xi1> to vector<16x64xi1>
    %210 = arith.select %209, %173, %116 : vector<16x64xi1>, vector<16x64xf32>
    %cst_61 = arith.constant 0.000000e+00 : f32
    %211 = vector.shape_cast %202 : vector<16x1xi1> to vector<16x1xi1>
    %212 = vector.broadcast %211 : vector<16x1xi1> to vector<16x64xi1>
    %213 = vector.broadcast %cst_61 : f32 to vector<16x64xf32>
    %214 = arith.select %212, %173, %213 : vector<16x64xi1>, vector<16x64xf32>
    %c1 = arith.constant 1 : index
    %c0_62 = arith.constant 0 : index
    %c0_63 = arith.constant 0 : index
    %215 = vector.load %arg12[%c1, %c0_62, %c0_63] : memref<8x16x64xf32, #tpu.memory_space<vmem>>, vector<1x16x64xf32>
    %216 = vector.shape_cast %215 : vector<1x16x64xf32> to vector<16x64xf32>
    %217 = vector.shape_cast %214 : vector<16x64xf32> to vector<1x16x64xf32>
    tpu.vector_store %arg12[%c1, %c0_62, %c0_63], %217 {strides = array<i32>} : memref<8x16x64xf32, #tpu.memory_space<vmem>>, vector<1x16x64xf32>,
    %218 = vector.shape_cast %204 : vector<16x1xi1> to vector<16x1xi1>
    %219 = vector.broadcast %218 : vector<16x1xi1> to vector<16x128xi1>
    %220 = arith.select %219, %196, %126 : vector<16x128xi1>, vector<16x128xf32>
    %221 = vector.shape_cast %204 : vector<16x1xi1> to vector<16x1xi1>
    %222 = vector.broadcast %221 : vector<16x1xi1> to vector<16x64xi1>
    %223 = arith.select %222, %200, %129 : vector<16x64xi1>, vector<16x64xf32>
    %cst_64 = arith.constant 0.000000e+00 : f32
    %224 = vector.shape_cast %204 : vector<16x1xi1> to vector<16x1xi1>
    %225 = vector.broadcast %224 : vector<16x1xi1> to vector<16x64xi1>
    %226 = vector.broadcast %cst_64 : f32 to vector<16x64xf32>
    %227 = arith.select %225, %200, %226 : vector<16x64xi1>, vector<16x64xf32>
    %c6 = arith.constant 6 : index
    %c0_65 = arith.constant 0 : index
    %c0_66 = arith.constant 0 : index
    %228 = vector.load %arg13[%c6, %c0_65, %c0_66] : memref<8x16x64xf32, #tpu.memory_space<vmem>>, vector<1x16x64xf32>
    %229 = vector.shape_cast %228 : vector<1x16x64xf32> to vector<16x64xf32>
    %230 = vector.shape_cast %227 : vector<16x64xf32> to vector<1x16x64xf32>
    tpu.vector_store %arg13[%c6, %c0_65, %c0_66], %230 {strides = array<i32>} : memref<8x16x64xf32, #tpu.memory_space<vmem>>, vector<1x16x64xf32>,
    %231 = vector.extract_strided_slice %14 {offsets = [2, 0, 0], sizes = [1, 16, 512], strides = [1, 1, 1]} : vector<8x16x512xf32> to vector<1x16x512xf32>
    %232 = vector.shape_cast %231 : vector<1x16x512xf32> to vector<16x512xf32>
    %233 = arith.truncf %210 : vector<16x64xf32> to vector<16x64xbf16>
    %cst_67 = arith.constant dense<0.000000e+00> : vector<16x512xf32>
    %234 = tpu.matmul %233, %21, %cst_67 {dimension_numbers = #tpu.dot_dimension_numbers<[1], [0], [0], [1], [0, 0, 1, 1], [], []>} : vector<16x64xbf16>, vector<64x512xbf16>, vector<16x512xf32> -> vector<16x512xf32>
    %235 = arith.addf %232, %234 : vector<16x512xf32>
    %236 = vector.extract_strided_slice %20 {offsets = [5, 0, 0], sizes = [1, 16, 512], strides = [1, 1, 1]} : vector<8x16x512xf32> to vector<1x16x512xf32>
    %237 = vector.shape_cast %236 : vector<1x16x512xf32> to vector<16x512xf32>
    %238 = arith.truncf %223 : vector<16x64xf32> to vector<16x64xbf16>
    %cst_68 = arith.constant dense<0.000000e+00> : vector<16x512xf32>
    %239 = tpu.matmul %238, %22, %cst_68 {dimension_numbers = #tpu.dot_dimension_numbers<[1], [0], [0], [1], [0, 0, 1, 1], [], []>} : vector<16x64xbf16>, vector<64x512xbf16>, vector<16x512xf32> -> vector<16x512xf32>
    %240 = arith.addf %237, %239 : vector<16x512xf32>
    %241 = vector.extract_strided_slice %235 {offsets = [0, 0], sizes = [16, 128], strides = [1, 1]} : vector<16x512xf32> to vector<16x128xf32>
    %242 = arith.negf %241 : vector<16x128xf32>
    %243 = math.exp %242 : vector<16x128xf32>
    %cst_69 = arith.constant 1.000000e+00 : f32
    %244 = vector.broadcast %cst_69 : f32 to vector<16x128xf32>
    %245 = arith.addf %244, %243 : vector<16x128xf32>
    %246 = arith.divf %244, %245 : vector<16x128xf32>
    %247 = vector.extract_strided_slice %235 {offsets = [0, 128], sizes = [16, 128], strides = [1, 1]} : vector<16x512xf32> to vector<16x128xf32>
    %248 = arith.negf %247 : vector<16x128xf32>
    %249 = math.exp %248 : vector<16x128xf32>
    %cst_70 = arith.constant 1.000000e+00 : f32
    %250 = vector.broadcast %cst_70 : f32 to vector<16x128xf32>
    %251 = arith.addf %250, %249 : vector<16x128xf32>
    %252 = arith.divf %250, %251 : vector<16x128xf32>
    %253 = vector.extract_strided_slice %235 {offsets = [0, 256], sizes = [16, 128], strides = [1, 1]} : vector<16x512xf32> to vector<16x128xf32>
    %254 = math.tanh %253 : vector<16x128xf32>
    %255 = vector.extract_strided_slice %235 {offsets = [0, 384], sizes = [16, 128], strides = [1, 1]} : vector<16x512xf32> to vector<16x128xf32>
    %256 = arith.negf %255 : vector<16x128xf32>
    %257 = math.exp %256 : vector<16x128xf32>
    %cst_71 = arith.constant 1.000000e+00 : f32
    %258 = vector.broadcast %cst_71 : f32 to vector<16x128xf32>
    %259 = arith.addf %258, %257 : vector<16x128xf32>
    %260 = arith.divf %258, %259 : vector<16x128xf32>
    %261 = arith.mulf %246, %254 : vector<16x128xf32>
    %262 = arith.mulf %252, %207 : vector<16x128xf32>
    %263 = arith.addf %261, %262 : vector<16x128xf32>
    %264 = math.tanh %263 : vector<16x128xf32>
    %265 = arith.mulf %260, %264 : vector<16x128xf32>
    %266 = arith.truncf %265 : vector<16x128xf32> to vector<16x128xbf16>
    %cst_72 = arith.constant dense<0.000000e+00> : vector<16x64xf32>
    %267 = tpu.matmul %266, %23, %cst_72 {dimension_numbers = #tpu.dot_dimension_numbers<[1], [0], [0], [1], [0, 0, 1, 1], [], []>} : vector<16x128xbf16>, vector<128x64xbf16>, vector<16x64xf32> -> vector<16x64xf32>
    %268 = vector.extract_strided_slice %240 {offsets = [0, 0], sizes = [16, 128], strides = [1, 1]} : vector<16x512xf32> to vector<16x128xf32>
    %269 = arith.negf %268 : vector<16x128xf32>
    %270 = math.exp %269 : vector<16x128xf32>
    %cst_73 = arith.constant 1.000000e+00 : f32
    %271 = vector.broadcast %cst_73 : f32 to vector<16x128xf32>
    %272 = arith.addf %271, %270 : vector<16x128xf32>
    %273 = arith.divf %271, %272 : vector<16x128xf32>
    %274 = vector.extract_strided_slice %240 {offsets = [0, 128], sizes = [16, 128], strides = [1, 1]} : vector<16x512xf32> to vector<16x128xf32>
    %275 = arith.negf %274 : vector<16x128xf32>
    %276 = math.exp %275 : vector<16x128xf32>
    %cst_74 = arith.constant 1.000000e+00 : f32
    %277 = vector.broadcast %cst_74 : f32 to vector<16x128xf32>
    %278 = arith.addf %277, %276 : vector<16x128xf32>
    %279 = arith.divf %277, %278 : vector<16x128xf32>
    %280 = vector.extract_strided_slice %240 {offsets = [0, 256], sizes = [16, 128], strides = [1, 1]} : vector<16x512xf32> to vector<16x128xf32>
    %281 = math.tanh %280 : vector<16x128xf32>
    %282 = vector.extract_strided_slice %240 {offsets = [0, 384], sizes = [16, 128], strides = [1, 1]} : vector<16x512xf32> to vector<16x128xf32>
    %283 = arith.negf %282 : vector<16x128xf32>
    %284 = math.exp %283 : vector<16x128xf32>
    %cst_75 = arith.constant 1.000000e+00 : f32
    %285 = vector.broadcast %cst_75 : f32 to vector<16x128xf32>
    %286 = arith.addf %285, %284 : vector<16x128xf32>
    %287 = arith.divf %285, %286 : vector<16x128xf32>
    %288 = arith.mulf %273, %281 : vector<16x128xf32>
    %289 = arith.mulf %279, %220 : vector<16x128xf32>
    %290 = arith.addf %288, %289 : vector<16x128xf32>
    %291 = math.tanh %290 : vector<16x128xf32>
    %292 = arith.mulf %287, %291 : vector<16x128xf32>
    %293 = arith.truncf %292 : vector<16x128xf32> to vector<16x128xbf16>
    %cst_76 = arith.constant dense<0.000000e+00> : vector<16x64xf32>
    %294 = tpu.matmul %293, %24, %cst_76 {dimension_numbers = #tpu.dot_dimension_numbers<[1], [0], [0], [1], [0, 0, 1, 1], [], []>} : vector<16x128xbf16>, vector<128x64xbf16>, vector<16x64xf32> -> vector<16x64xf32>
    %295 = vector.extract_strided_slice %33 {offsets = [2, 0, 0], sizes = [1, 16, 1], strides = [1, 1, 1]} : vector<8x16x1xi1> to vector<1x16x1xi1>
    %296 = vector.shape_cast %295 : vector<1x16x1xi1> to vector<16x1xi1>
    %297 = vector.extract_strided_slice %38 {offsets = [5, 0, 0], sizes = [1, 16, 1], strides = [1, 1, 1]} : vector<8x16x1xi1> to vector<1x16x1xi1>
    %298 = vector.shape_cast %297 : vector<1x16x1xi1> to vector<16x1xi1>
    %299 = vector.shape_cast %296 : vector<16x1xi1> to vector<16x1xi1>
    %300 = vector.broadcast %299 : vector<16x1xi1> to vector<16x128xi1>
    %301 = arith.select %300, %263, %207 : vector<16x128xi1>, vector<16x128xf32>
    %302 = vector.shape_cast %296 : vector<16x1xi1> to vector<16x1xi1>
    %303 = vector.broadcast %302 : vector<16x1xi1> to vector<16x64xi1>
    %304 = arith.select %303, %267, %210 : vector<16x64xi1>, vector<16x64xf32>
    %cst_77 = arith.constant 0.000000e+00 : f32
    %305 = vector.shape_cast %296 : vector<16x1xi1> to vector<16x1xi1>
    %306 = vector.broadcast %305 : vector<16x1xi1> to vector<16x64xi1>
    %307 = vector.broadcast %cst_77 : f32 to vector<16x64xf32>
    %308 = arith.select %306, %267, %307 : vector<16x64xi1>, vector<16x64xf32>
    %c2 = arith.constant 2 : index
    %c0_78 = arith.constant 0 : index
    %c0_79 = arith.constant 0 : index
    %309 = vector.load %arg12[%c2, %c0_78, %c0_79] : memref<8x16x64xf32, #tpu.memory_space<vmem>>, vector<1x16x64xf32>
    %310 = vector.shape_cast %309 : vector<1x16x64xf32> to vector<16x64xf32>
    %311 = vector.shape_cast %308 : vector<16x64xf32> to vector<1x16x64xf32>
    tpu.vector_store %arg12[%c2, %c0_78, %c0_79], %311 {strides = array<i32>} : memref<8x16x64xf32, #tpu.memory_space<vmem>>, vector<1x16x64xf32>,
    %312 = vector.shape_cast %298 : vector<16x1xi1> to vector<16x1xi1>
    %313 = vector.broadcast %312 : vector<16x1xi1> to vector<16x128xi1>
    %314 = arith.select %313, %290, %220 : vector<16x128xi1>, vector<16x128xf32>
    %315 = vector.shape_cast %298 : vector<16x1xi1> to vector<16x1xi1>
    %316 = vector.broadcast %315 : vector<16x1xi1> to vector<16x64xi1>
    %317 = arith.select %316, %294, %223 : vector<16x64xi1>, vector<16x64xf32>
    %cst_80 = arith.constant 0.000000e+00 : f32
    %318 = vector.shape_cast %298 : vector<16x1xi1> to vector<16x1xi1>
    %319 = vector.broadcast %318 : vector<16x1xi1> to vector<16x64xi1>
    %320 = vector.broadcast %cst_80 : f32 to vector<16x64xf32>
    %321 = arith.select %319, %294, %320 : vector<16x64xi1>, vector<16x64xf32>
    %c5 = arith.constant 5 : index
    %c0_81 = arith.constant 0 : index
    %c0_82 = arith.constant 0 : index
    %322 = vector.load %arg13[%c5, %c0_81, %c0_82] : memref<8x16x64xf32, #tpu.memory_space<vmem>>, vector<1x16x64xf32>
    %323 = vector.shape_cast %322 : vector<1x16x64xf32> to vector<16x64xf32>
    %324 = vector.shape_cast %321 : vector<16x64xf32> to vector<1x16x64xf32>
    tpu.vector_store %arg13[%c5, %c0_81, %c0_82], %324 {strides = array<i32>} : memref<8x16x64xf32, #tpu.memory_space<vmem>>, vector<1x16x64xf32>,
    %325 = vector.extract_strided_slice %14 {offsets = [3, 0, 0], sizes = [1, 16, 512], strides = [1, 1, 1]} : vector<8x16x512xf32> to vector<1x16x512xf32>
    %326 = vector.shape_cast %325 : vector<1x16x512xf32> to vector<16x512xf32>
    %327 = arith.truncf %304 : vector<16x64xf32> to vector<16x64xbf16>
    %cst_83 = arith.constant dense<0.000000e+00> : vector<16x512xf32>
    %328 = tpu.matmul %327, %21, %cst_83 {dimension_numbers = #tpu.dot_dimension_numbers<[1], [0], [0], [1], [0, 0, 1, 1], [], []>} : vector<16x64xbf16>, vector<64x512xbf16>, vector<16x512xf32> -> vector<16x512xf32>
    %329 = arith.addf %326, %328 : vector<16x512xf32>
    %330 = vector.extract_strided_slice %20 {offsets = [4, 0, 0], sizes = [1, 16, 512], strides = [1, 1, 1]} : vector<8x16x512xf32> to vector<1x16x512xf32>
    %331 = vector.shape_cast %330 : vector<1x16x512xf32> to vector<16x512xf32>
    %332 = arith.truncf %317 : vector<16x64xf32> to vector<16x64xbf16>
    %cst_84 = arith.constant dense<0.000000e+00> : vector<16x512xf32>
    %333 = tpu.matmul %332, %22, %cst_84 {dimension_numbers = #tpu.dot_dimension_numbers<[1], [0], [0], [1], [0, 0, 1, 1], [], []>} : vector<16x64xbf16>, vector<64x512xbf16>, vector<16x512xf32> -> vector<16x512xf32>
    %334 = arith.addf %331, %333 : vector<16x512xf32>
    %335 = vector.extract_strided_slice %329 {offsets = [0, 0], sizes = [16, 128], strides = [1, 1]} : vector<16x512xf32> to vector<16x128xf32>
    %336 = arith.negf %335 : vector<16x128xf32>
    %337 = math.exp %336 : vector<16x128xf32>
    %cst_85 = arith.constant 1.000000e+00 : f32
    %338 = vector.broadcast %cst_85 : f32 to vector<16x128xf32>
    %339 = arith.addf %338, %337 : vector<16x128xf32>
    %340 = arith.divf %338, %339 : vector<16x128xf32>
    %341 = vector.extract_strided_slice %329 {offsets = [0, 128], sizes = [16, 128], strides = [1, 1]} : vector<16x512xf32> to vector<16x128xf32>
    %342 = arith.negf %341 : vector<16x128xf32>
    %343 = math.exp %342 : vector<16x128xf32>
    %cst_86 = arith.constant 1.000000e+00 : f32
    %344 = vector.broadcast %cst_86 : f32 to vector<16x128xf32>
    %345 = arith.addf %344, %343 : vector<16x128xf32>
    %346 = arith.divf %344, %345 : vector<16x128xf32>
    %347 = vector.extract_strided_slice %329 {offsets = [0, 256], sizes = [16, 128], strides = [1, 1]} : vector<16x512xf32> to vector<16x128xf32>
    %348 = math.tanh %347 : vector<16x128xf32>
    %349 = vector.extract_strided_slice %329 {offsets = [0, 384], sizes = [16, 128], strides = [1, 1]} : vector<16x512xf32> to vector<16x128xf32>
    %350 = arith.negf %349 : vector<16x128xf32>
    %351 = math.exp %350 : vector<16x128xf32>
    %cst_87 = arith.constant 1.000000e+00 : f32
    %352 = vector.broadcast %cst_87 : f32 to vector<16x128xf32>
    %353 = arith.addf %352, %351 : vector<16x128xf32>
    %354 = arith.divf %352, %353 : vector<16x128xf32>
    %355 = arith.mulf %340, %348 : vector<16x128xf32>
    %356 = arith.mulf %346, %301 : vector<16x128xf32>
    %357 = arith.addf %355, %356 : vector<16x128xf32>
    %358 = math.tanh %357 : vector<16x128xf32>
    %359 = arith.mulf %354, %358 : vector<16x128xf32>
    %360 = arith.truncf %359 : vector<16x128xf32> to vector<16x128xbf16>
    %cst_88 = arith.constant dense<0.000000e+00> : vector<16x64xf32>
    %361 = tpu.matmul %360, %23, %cst_88 {dimension_numbers = #tpu.dot_dimension_numbers<[1], [0], [0], [1], [0, 0, 1, 1], [], []>} : vector<16x128xbf16>, vector<128x64xbf16>, vector<16x64xf32> -> vector<16x64xf32>
    %362 = vector.extract_strided_slice %334 {offsets = [0, 0], sizes = [16, 128], strides = [1, 1]} : vector<16x512xf32> to vector<16x128xf32>
    %363 = arith.negf %362 : vector<16x128xf32>
    %364 = math.exp %363 : vector<16x128xf32>
    %cst_89 = arith.constant 1.000000e+00 : f32
    %365 = vector.broadcast %cst_89 : f32 to vector<16x128xf32>
    %366 = arith.addf %365, %364 : vector<16x128xf32>
    %367 = arith.divf %365, %366 : vector<16x128xf32>
    %368 = vector.extract_strided_slice %334 {offsets = [0, 128], sizes = [16, 128], strides = [1, 1]} : vector<16x512xf32> to vector<16x128xf32>
    %369 = arith.negf %368 : vector<16x128xf32>
    %370 = math.exp %369 : vector<16x128xf32>
    %cst_90 = arith.constant 1.000000e+00 : f32
    %371 = vector.broadcast %cst_90 : f32 to vector<16x128xf32>
    %372 = arith.addf %371, %370 : vector<16x128xf32>
    %373 = arith.divf %371, %372 : vector<16x128xf32>
    %374 = vector.extract_strided_slice %334 {offsets = [0, 256], sizes = [16, 128], strides = [1, 1]} : vector<16x512xf32> to vector<16x128xf32>
    %375 = math.tanh %374 : vector<16x128xf32>
    %376 = vector.extract_strided_slice %334 {offsets = [0, 384], sizes = [16, 128], strides = [1, 1]} : vector<16x512xf32> to vector<16x128xf32>
    %377 = arith.negf %376 : vector<16x128xf32>
    %378 = math.exp %377 : vector<16x128xf32>
    %cst_91 = arith.constant 1.000000e+00 : f32
    %379 = vector.broadcast %cst_91 : f32 to vector<16x128xf32>
    %380 = arith.addf %379, %378 : vector<16x128xf32>
    %381 = arith.divf %379, %380 : vector<16x128xf32>
    %382 = arith.mulf %367, %375 : vector<16x128xf32>
    %383 = arith.mulf %373, %314 : vector<16x128xf32>
    %384 = arith.addf %382, %383 : vector<16x128xf32>
    %385 = math.tanh %384 : vector<16x128xf32>
    %386 = arith.mulf %381, %385 : vector<16x128xf32>
    %387 = arith.truncf %386 : vector<16x128xf32> to vector<16x128xbf16>
    %cst_92 = arith.constant dense<0.000000e+00> : vector<16x64xf32>
    %388 = tpu.matmul %387, %24, %cst_92 {dimension_numbers = #tpu.dot_dimension_numbers<[1], [0], [0], [1], [0, 0, 1, 1], [], []>} : vector<16x128xbf16>, vector<128x64xbf16>, vector<16x64xf32> -> vector<16x64xf32>
    %389 = vector.extract_strided_slice %33 {offsets = [3, 0, 0], sizes = [1, 16, 1], strides = [1, 1, 1]} : vector<8x16x1xi1> to vector<1x16x1xi1>
    %390 = vector.shape_cast %389 : vector<1x16x1xi1> to vector<16x1xi1>
    %391 = vector.extract_strided_slice %38 {offsets = [4, 0, 0], sizes = [1, 16, 1], strides = [1, 1, 1]} : vector<8x16x1xi1> to vector<1x16x1xi1>
    %392 = vector.shape_cast %391 : vector<1x16x1xi1> to vector<16x1xi1>
    %393 = vector.shape_cast %390 : vector<16x1xi1> to vector<16x1xi1>
    %394 = vector.broadcast %393 : vector<16x1xi1> to vector<16x128xi1>
    %395 = arith.select %394, %357, %301 : vector<16x128xi1>, vector<16x128xf32>
    %396 = vector.shape_cast %390 : vector<16x1xi1> to vector<16x1xi1>
    %397 = vector.broadcast %396 : vector<16x1xi1> to vector<16x64xi1>
    %398 = arith.select %397, %361, %304 : vector<16x64xi1>, vector<16x64xf32>
    %cst_93 = arith.constant 0.000000e+00 : f32
    %399 = vector.shape_cast %390 : vector<16x1xi1> to vector<16x1xi1>
    %400 = vector.broadcast %399 : vector<16x1xi1> to vector<16x64xi1>
    %401 = vector.broadcast %cst_93 : f32 to vector<16x64xf32>
    %402 = arith.select %400, %361, %401 : vector<16x64xi1>, vector<16x64xf32>
    %c3 = arith.constant 3 : index
    %c0_94 = arith.constant 0 : index
    %c0_95 = arith.constant 0 : index
    %403 = vector.load %arg12[%c3, %c0_94, %c0_95] : memref<8x16x64xf32, #tpu.memory_space<vmem>>, vector<1x16x64xf32>
    %404 = vector.shape_cast %403 : vector<1x16x64xf32> to vector<16x64xf32>
    %405 = vector.shape_cast %402 : vector<16x64xf32> to vector<1x16x64xf32>
    tpu.vector_store %arg12[%c3, %c0_94, %c0_95], %405 {strides = array<i32>} : memref<8x16x64xf32, #tpu.memory_space<vmem>>, vector<1x16x64xf32>,
    %406 = vector.shape_cast %392 : vector<16x1xi1> to vector<16x1xi1>
    %407 = vector.broadcast %406 : vector<16x1xi1> to vector<16x128xi1>
    %408 = arith.select %407, %384, %314 : vector<16x128xi1>, vector<16x128xf32>
    %409 = vector.shape_cast %392 : vector<16x1xi1> to vector<16x1xi1>
    %410 = vector.broadcast %409 : vector<16x1xi1> to vector<16x64xi1>
    %411 = arith.select %410, %388, %317 : vector<16x64xi1>, vector<16x64xf32>
    %cst_96 = arith.constant 0.000000e+00 : f32
    %412 = vector.shape_cast %392 : vector<16x1xi1> to vector<16x1xi1>
    %413 = vector.broadcast %412 : vector<16x1xi1> to vector<16x64xi1>
    %414 = vector.broadcast %cst_96 : f32 to vector<16x64xf32>
    %415 = arith.select %413, %388, %414 : vector<16x64xi1>, vector<16x64xf32>
    %c4 = arith.constant 4 : index
    %c0_97 = arith.constant 0 : index
    %c0_98 = arith.constant 0 : index
    %416 = vector.load %arg13[%c4, %c0_97, %c0_98] : memref<8x16x64xf32, #tpu.memory_space<vmem>>, vector<1x16x64xf32>
    %417 = vector.shape_cast %416 : vector<1x16x64xf32> to vector<16x64xf32>
    %418 = vector.shape_cast %415 : vector<16x64xf32> to vector<1x16x64xf32>
    tpu.vector_store %arg13[%c4, %c0_97, %c0_98], %418 {strides = array<i32>} : memref<8x16x64xf32, #tpu.memory_space<vmem>>, vector<1x16x64xf32>,
    %419 = vector.extract_strided_slice %14 {offsets = [4, 0, 0], sizes = [1, 16, 512], strides = [1, 1, 1]} : vector<8x16x512xf32> to vector<1x16x512xf32>
    %420 = vector.shape_cast %419 : vector<1x16x512xf32> to vector<16x512xf32>
    %421 = arith.truncf %398 : vector<16x64xf32> to vector<16x64xbf16>
    %cst_99 = arith.constant dense<0.000000e+00> : vector<16x512xf32>
    %422 = tpu.matmul %421, %21, %cst_99 {dimension_numbers = #tpu.dot_dimension_numbers<[1], [0], [0], [1], [0, 0, 1, 1], [], []>} : vector<16x64xbf16>, vector<64x512xbf16>, vector<16x512xf32> -> vector<16x512xf32>
    %423 = arith.addf %420, %422 : vector<16x512xf32>
    %424 = vector.extract_strided_slice %20 {offsets = [3, 0, 0], sizes = [1, 16, 512], strides = [1, 1, 1]} : vector<8x16x512xf32> to vector<1x16x512xf32>
    %425 = vector.shape_cast %424 : vector<1x16x512xf32> to vector<16x512xf32>
    %426 = arith.truncf %411 : vector<16x64xf32> to vector<16x64xbf16>
    %cst_100 = arith.constant dense<0.000000e+00> : vector<16x512xf32>
    %427 = tpu.matmul %426, %22, %cst_100 {dimension_numbers = #tpu.dot_dimension_numbers<[1], [0], [0], [1], [0, 0, 1, 1], [], []>} : vector<16x64xbf16>, vector<64x512xbf16>, vector<16x512xf32> -> vector<16x512xf32>
    %428 = arith.addf %425, %427 : vector<16x512xf32>
    %429 = vector.extract_strided_slice %423 {offsets = [0, 0], sizes = [16, 128], strides = [1, 1]} : vector<16x512xf32> to vector<16x128xf32>
    %430 = arith.negf %429 : vector<16x128xf32>
    %431 = math.exp %430 : vector<16x128xf32>
    %cst_101 = arith.constant 1.000000e+00 : f32
    %432 = vector.broadcast %cst_101 : f32 to vector<16x128xf32>
    %433 = arith.addf %432, %431 : vector<16x128xf32>
    %434 = arith.divf %432, %433 : vector<16x128xf32>
    %435 = vector.extract_strided_slice %423 {offsets = [0, 128], sizes = [16, 128], strides = [1, 1]} : vector<16x512xf32> to vector<16x128xf32>
    %436 = arith.negf %435 : vector<16x128xf32>
    %437 = math.exp %436 : vector<16x128xf32>
    %cst_102 = arith.constant 1.000000e+00 : f32
    %438 = vector.broadcast %cst_102 : f32 to vector<16x128xf32>
    %439 = arith.addf %438, %437 : vector<16x128xf32>
    %440 = arith.divf %438, %439 : vector<16x128xf32>
    %441 = vector.extract_strided_slice %423 {offsets = [0, 256], sizes = [16, 128], strides = [1, 1]} : vector<16x512xf32> to vector<16x128xf32>
    %442 = math.tanh %441 : vector<16x128xf32>
    %443 = vector.extract_strided_slice %423 {offsets = [0, 384], sizes = [16, 128], strides = [1, 1]} : vector<16x512xf32> to vector<16x128xf32>
    %444 = arith.negf %443 : vector<16x128xf32>
    %445 = math.exp %444 : vector<16x128xf32>
    %cst_103 = arith.constant 1.000000e+00 : f32
    %446 = vector.broadcast %cst_103 : f32 to vector<16x128xf32>
    %447 = arith.addf %446, %445 : vector<16x128xf32>
    %448 = arith.divf %446, %447 : vector<16x128xf32>
    %449 = arith.mulf %434, %442 : vector<16x128xf32>
    %450 = arith.mulf %440, %395 : vector<16x128xf32>
    %451 = arith.addf %449, %450 : vector<16x128xf32>
    %452 = math.tanh %451 : vector<16x128xf32>
    %453 = arith.mulf %448, %452 : vector<16x128xf32>
    %454 = arith.truncf %453 : vector<16x128xf32> to vector<16x128xbf16>
    %cst_104 = arith.constant dense<0.000000e+00> : vector<16x64xf32>
    %455 = tpu.matmul %454, %23, %cst_104 {dimension_numbers = #tpu.dot_dimension_numbers<[1], [0], [0], [1], [0, 0, 1, 1], [], []>} : vector<16x128xbf16>, vector<128x64xbf16>, vector<16x64xf32> -> vector<16x64xf32>
    %456 = vector.extract_strided_slice %428 {offsets = [0, 0], sizes = [16, 128], strides = [1, 1]} : vector<16x512xf32> to vector<16x128xf32>
    %457 = arith.negf %456 : vector<16x128xf32>
    %458 = math.exp %457 : vector<16x128xf32>
    %cst_105 = arith.constant 1.000000e+00 : f32
    %459 = vector.broadcast %cst_105 : f32 to vector<16x128xf32>
    %460 = arith.addf %459, %458 : vector<16x128xf32>
    %461 = arith.divf %459, %460 : vector<16x128xf32>
    %462 = vector.extract_strided_slice %428 {offsets = [0, 128], sizes = [16, 128], strides = [1, 1]} : vector<16x512xf32> to vector<16x128xf32>
    %463 = arith.negf %462 : vector<16x128xf32>
    %464 = math.exp %463 : vector<16x128xf32>
    %cst_106 = arith.constant 1.000000e+00 : f32
    %465 = vector.broadcast %cst_106 : f32 to vector<16x128xf32>
    %466 = arith.addf %465, %464 : vector<16x128xf32>
    %467 = arith.divf %465, %466 : vector<16x128xf32>
    %468 = vector.extract_strided_slice %428 {offsets = [0, 256], sizes = [16, 128], strides = [1, 1]} : vector<16x512xf32> to vector<16x128xf32>
    %469 = math.tanh %468 : vector<16x128xf32>
    %470 = vector.extract_strided_slice %428 {offsets = [0, 384], sizes = [16, 128], strides = [1, 1]} : vector<16x512xf32> to vector<16x128xf32>
    %471 = arith.negf %470 : vector<16x128xf32>
    %472 = math.exp %471 : vector<16x128xf32>
    %cst_107 = arith.constant 1.000000e+00 : f32
    %473 = vector.broadcast %cst_107 : f32 to vector<16x128xf32>
    %474 = arith.addf %473, %472 : vector<16x128xf32>
    %475 = arith.divf %473, %474 : vector<16x128xf32>
    %476 = arith.mulf %461, %469 : vector<16x128xf32>
    %477 = arith.mulf %467, %408 : vector<16x128xf32>
    %478 = arith.addf %476, %477 : vector<16x128xf32>
    %479 = math.tanh %478 : vector<16x128xf32>
    %480 = arith.mulf %475, %479 : vector<16x128xf32>
    %481 = arith.truncf %480 : vector<16x128xf32> to vector<16x128xbf16>
    %cst_108 = arith.constant dense<0.000000e+00> : vector<16x64xf32>
    %482 = tpu.matmul %481, %24, %cst_108 {dimension_numbers = #tpu.dot_dimension_numbers<[1], [0], [0], [1], [0, 0, 1, 1], [], []>} : vector<16x128xbf16>, vector<128x64xbf16>, vector<16x64xf32> -> vector<16x64xf32>
    %483 = vector.extract_strided_slice %33 {offsets = [4, 0, 0], sizes = [1, 16, 1], strides = [1, 1, 1]} : vector<8x16x1xi1> to vector<1x16x1xi1>
    %484 = vector.shape_cast %483 : vector<1x16x1xi1> to vector<16x1xi1>
    %485 = vector.extract_strided_slice %38 {offsets = [3, 0, 0], sizes = [1, 16, 1], strides = [1, 1, 1]} : vector<8x16x1xi1> to vector<1x16x1xi1>
    %486 = vector.shape_cast %485 : vector<1x16x1xi1> to vector<16x1xi1>
    %487 = vector.shape_cast %484 : vector<16x1xi1> to vector<16x1xi1>
    %488 = vector.broadcast %487 : vector<16x1xi1> to vector<16x128xi1>
    %489 = arith.select %488, %451, %395 : vector<16x128xi1>, vector<16x128xf32>
    %490 = vector.shape_cast %484 : vector<16x1xi1> to vector<16x1xi1>
    %491 = vector.broadcast %490 : vector<16x1xi1> to vector<16x64xi1>
    %492 = arith.select %491, %455, %398 : vector<16x64xi1>, vector<16x64xf32>
    %cst_109 = arith.constant 0.000000e+00 : f32
    %493 = vector.shape_cast %484 : vector<16x1xi1> to vector<16x1xi1>
    %494 = vector.broadcast %493 : vector<16x1xi1> to vector<16x64xi1>
    %495 = vector.broadcast %cst_109 : f32 to vector<16x64xf32>
    %496 = arith.select %494, %455, %495 : vector<16x64xi1>, vector<16x64xf32>
    %c4_110 = arith.constant 4 : index
    %c0_111 = arith.constant 0 : index
    %c0_112 = arith.constant 0 : index
    %497 = vector.load %arg12[%c4_110, %c0_111, %c0_112] : memref<8x16x64xf32, #tpu.memory_space<vmem>>, vector<1x16x64xf32>
    %498 = vector.shape_cast %497 : vector<1x16x64xf32> to vector<16x64xf32>
    %499 = vector.shape_cast %496 : vector<16x64xf32> to vector<1x16x64xf32>
    tpu.vector_store %arg12[%c4_110, %c0_111, %c0_112], %499 {strides = array<i32>} : memref<8x16x64xf32, #tpu.memory_space<vmem>>, vector<1x16x64xf32>,
    %500 = vector.shape_cast %486 : vector<16x1xi1> to vector<16x1xi1>
    %501 = vector.broadcast %500 : vector<16x1xi1> to vector<16x128xi1>
    %502 = arith.select %501, %478, %408 : vector<16x128xi1>, vector<16x128xf32>
    %503 = vector.shape_cast %486 : vector<16x1xi1> to vector<16x1xi1>
    %504 = vector.broadcast %503 : vector<16x1xi1> to vector<16x64xi1>
    %505 = arith.select %504, %482, %411 : vector<16x64xi1>, vector<16x64xf32>
    %cst_113 = arith.constant 0.000000e+00 : f32
    %506 = vector.shape_cast %486 : vector<16x1xi1> to vector<16x1xi1>
    %507 = vector.broadcast %506 : vector<16x1xi1> to vector<16x64xi1>
    %508 = vector.broadcast %cst_113 : f32 to vector<16x64xf32>
    %509 = arith.select %507, %482, %508 : vector<16x64xi1>, vector<16x64xf32>
    %c3_114 = arith.constant 3 : index
    %c0_115 = arith.constant 0 : index
    %c0_116 = arith.constant 0 : index
    %510 = vector.load %arg13[%c3_114, %c0_115, %c0_116] : memref<8x16x64xf32, #tpu.memory_space<vmem>>, vector<1x16x64xf32>
    %511 = vector.shape_cast %510 : vector<1x16x64xf32> to vector<16x64xf32>
    %512 = vector.shape_cast %509 : vector<16x64xf32> to vector<1x16x64xf32>
    tpu.vector_store %arg13[%c3_114, %c0_115, %c0_116], %512 {strides = array<i32>} : memref<8x16x64xf32, #tpu.memory_space<vmem>>, vector<1x16x64xf32>,
    %513 = vector.extract_strided_slice %14 {offsets = [5, 0, 0], sizes = [1, 16, 512], strides = [1, 1, 1]} : vector<8x16x512xf32> to vector<1x16x512xf32>
    %514 = vector.shape_cast %513 : vector<1x16x512xf32> to vector<16x512xf32>
    %515 = arith.truncf %492 : vector<16x64xf32> to vector<16x64xbf16>
    %cst_117 = arith.constant dense<0.000000e+00> : vector<16x512xf32>
    %516 = tpu.matmul %515, %21, %cst_117 {dimension_numbers = #tpu.dot_dimension_numbers<[1], [0], [0], [1], [0, 0, 1, 1], [], []>} : vector<16x64xbf16>, vector<64x512xbf16>, vector<16x512xf32> -> vector<16x512xf32>
    %517 = arith.addf %514, %516 : vector<16x512xf32>
    %518 = vector.extract_strided_slice %20 {offsets = [2, 0, 0], sizes = [1, 16, 512], strides = [1, 1, 1]} : vector<8x16x512xf32> to vector<1x16x512xf32>
    %519 = vector.shape_cast %518 : vector<1x16x512xf32> to vector<16x512xf32>
    %520 = arith.truncf %505 : vector<16x64xf32> to vector<16x64xbf16>
    %cst_118 = arith.constant dense<0.000000e+00> : vector<16x512xf32>
    %521 = tpu.matmul %520, %22, %cst_118 {dimension_numbers = #tpu.dot_dimension_numbers<[1], [0], [0], [1], [0, 0, 1, 1], [], []>} : vector<16x64xbf16>, vector<64x512xbf16>, vector<16x512xf32> -> vector<16x512xf32>
    %522 = arith.addf %519, %521 : vector<16x512xf32>
    %523 = vector.extract_strided_slice %517 {offsets = [0, 0], sizes = [16, 128], strides = [1, 1]} : vector<16x512xf32> to vector<16x128xf32>
    %524 = arith.negf %523 : vector<16x128xf32>
    %525 = math.exp %524 : vector<16x128xf32>
    %cst_119 = arith.constant 1.000000e+00 : f32
    %526 = vector.broadcast %cst_119 : f32 to vector<16x128xf32>
    %527 = arith.addf %526, %525 : vector<16x128xf32>
    %528 = arith.divf %526, %527 : vector<16x128xf32>
    %529 = vector.extract_strided_slice %517 {offsets = [0, 128], sizes = [16, 128], strides = [1, 1]} : vector<16x512xf32> to vector<16x128xf32>
    %530 = arith.negf %529 : vector<16x128xf32>
    %531 = math.exp %530 : vector<16x128xf32>
    %cst_120 = arith.constant 1.000000e+00 : f32
    %532 = vector.broadcast %cst_120 : f32 to vector<16x128xf32>
    %533 = arith.addf %532, %531 : vector<16x128xf32>
    %534 = arith.divf %532, %533 : vector<16x128xf32>
    %535 = vector.extract_strided_slice %517 {offsets = [0, 256], sizes = [16, 128], strides = [1, 1]} : vector<16x512xf32> to vector<16x128xf32>
    %536 = math.tanh %535 : vector<16x128xf32>
    %537 = vector.extract_strided_slice %517 {offsets = [0, 384], sizes = [16, 128], strides = [1, 1]} : vector<16x512xf32> to vector<16x128xf32>
    %538 = arith.negf %537 : vector<16x128xf32>
    %539 = math.exp %538 : vector<16x128xf32>
    %cst_121 = arith.constant 1.000000e+00 : f32
    %540 = vector.broadcast %cst_121 : f32 to vector<16x128xf32>
    %541 = arith.addf %540, %539 : vector<16x128xf32>
    %542 = arith.divf %540, %541 : vector<16x128xf32>
    %543 = arith.mulf %528, %536 : vector<16x128xf32>
    %544 = arith.mulf %534, %489 : vector<16x128xf32>
    %545 = arith.addf %543, %544 : vector<16x128xf32>
    %546 = math.tanh %545 : vector<16x128xf32>
    %547 = arith.mulf %542, %546 : vector<16x128xf32>
    %548 = arith.truncf %547 : vector<16x128xf32> to vector<16x128xbf16>
    %cst_122 = arith.constant dense<0.000000e+00> : vector<16x64xf32>
    %549 = tpu.matmul %548, %23, %cst_122 {dimension_numbers = #tpu.dot_dimension_numbers<[1], [0], [0], [1], [0, 0, 1, 1], [], []>} : vector<16x128xbf16>, vector<128x64xbf16>, vector<16x64xf32> -> vector<16x64xf32>
    %550 = vector.extract_strided_slice %522 {offsets = [0, 0], sizes = [16, 128], strides = [1, 1]} : vector<16x512xf32> to vector<16x128xf32>
    %551 = arith.negf %550 : vector<16x128xf32>
    %552 = math.exp %551 : vector<16x128xf32>
    %cst_123 = arith.constant 1.000000e+00 : f32
    %553 = vector.broadcast %cst_123 : f32 to vector<16x128xf32>
    %554 = arith.addf %553, %552 : vector<16x128xf32>
    %555 = arith.divf %553, %554 : vector<16x128xf32>
    %556 = vector.extract_strided_slice %522 {offsets = [0, 128], sizes = [16, 128], strides = [1, 1]} : vector<16x512xf32> to vector<16x128xf32>
    %557 = arith.negf %556 : vector<16x128xf32>
    %558 = math.exp %557 : vector<16x128xf32>
    %cst_124 = arith.constant 1.000000e+00 : f32
    %559 = vector.broadcast %cst_124 : f32 to vector<16x128xf32>
    %560 = arith.addf %559, %558 : vector<16x128xf32>
    %561 = arith.divf %559, %560 : vector<16x128xf32>
    %562 = vector.extract_strided_slice %522 {offsets = [0, 256], sizes = [16, 128], strides = [1, 1]} : vector<16x512xf32> to vector<16x128xf32>
    %563 = math.tanh %562 : vector<16x128xf32>
    %564 = vector.extract_strided_slice %522 {offsets = [0, 384], sizes = [16, 128], strides = [1, 1]} : vector<16x512xf32> to vector<16x128xf32>
    %565 = arith.negf %564 : vector<16x128xf32>
    %566 = math.exp %565 : vector<16x128xf32>
    %cst_125 = arith.constant 1.000000e+00 : f32
    %567 = vector.broadcast %cst_125 : f32 to vector<16x128xf32>
    %568 = arith.addf %567, %566 : vector<16x128xf32>
    %569 = arith.divf %567, %568 : vector<16x128xf32>
    %570 = arith.mulf %555, %563 : vector<16x128xf32>
    %571 = arith.mulf %561, %502 : vector<16x128xf32>
    %572 = arith.addf %570, %571 : vector<16x128xf32>
    %573 = math.tanh %572 : vector<16x128xf32>
    %574 = arith.mulf %569, %573 : vector<16x128xf32>
    %575 = arith.truncf %574 : vector<16x128xf32> to vector<16x128xbf16>
    %cst_126 = arith.constant dense<0.000000e+00> : vector<16x64xf32>
    %576 = tpu.matmul %575, %24, %cst_126 {dimension_numbers = #tpu.dot_dimension_numbers<[1], [0], [0], [1], [0, 0, 1, 1], [], []>} : vector<16x128xbf16>, vector<128x64xbf16>, vector<16x64xf32> -> vector<16x64xf32>
    %577 = vector.extract_strided_slice %33 {offsets = [5, 0, 0], sizes = [1, 16, 1], strides = [1, 1, 1]} : vector<8x16x1xi1> to vector<1x16x1xi1>
    %578 = vector.shape_cast %577 : vector<1x16x1xi1> to vector<16x1xi1>
    %579 = vector.extract_strided_slice %38 {offsets = [2, 0, 0], sizes = [1, 16, 1], strides = [1, 1, 1]} : vector<8x16x1xi1> to vector<1x16x1xi1>
    %580 = vector.shape_cast %579 : vector<1x16x1xi1> to vector<16x1xi1>
    %581 = vector.shape_cast %578 : vector<16x1xi1> to vector<16x1xi1>
    %582 = vector.broadcast %581 : vector<16x1xi1> to vector<16x128xi1>
    %583 = arith.select %582, %545, %489 : vector<16x128xi1>, vector<16x128xf32>
    %584 = vector.shape_cast %578 : vector<16x1xi1> to vector<16x1xi1>
    %585 = vector.broadcast %584 : vector<16x1xi1> to vector<16x64xi1>
    %586 = arith.select %585, %549, %492 : vector<16x64xi1>, vector<16x64xf32>
    %cst_127 = arith.constant 0.000000e+00 : f32
    %587 = vector.shape_cast %578 : vector<16x1xi1> to vector<16x1xi1>
    %588 = vector.broadcast %587 : vector<16x1xi1> to vector<16x64xi1>
    %589 = vector.broadcast %cst_127 : f32 to vector<16x64xf32>
    %590 = arith.select %588, %549, %589 : vector<16x64xi1>, vector<16x64xf32>
    %c5_128 = arith.constant 5 : index
    %c0_129 = arith.constant 0 : index
    %c0_130 = arith.constant 0 : index
    %591 = vector.load %arg12[%c5_128, %c0_129, %c0_130] : memref<8x16x64xf32, #tpu.memory_space<vmem>>, vector<1x16x64xf32>
    %592 = vector.shape_cast %591 : vector<1x16x64xf32> to vector<16x64xf32>
    %593 = vector.shape_cast %590 : vector<16x64xf32> to vector<1x16x64xf32>
    tpu.vector_store %arg12[%c5_128, %c0_129, %c0_130], %593 {strides = array<i32>} : memref<8x16x64xf32, #tpu.memory_space<vmem>>, vector<1x16x64xf32>,
    %594 = vector.shape_cast %580 : vector<16x1xi1> to vector<16x1xi1>
    %595 = vector.broadcast %594 : vector<16x1xi1> to vector<16x128xi1>
    %596 = arith.select %595, %572, %502 : vector<16x128xi1>, vector<16x128xf32>
    %597 = vector.shape_cast %580 : vector<16x1xi1> to vector<16x1xi1>
    %598 = vector.broadcast %597 : vector<16x1xi1> to vector<16x64xi1>
    %599 = arith.select %598, %576, %505 : vector<16x64xi1>, vector<16x64xf32>
    %cst_131 = arith.constant 0.000000e+00 : f32
    %600 = vector.shape_cast %580 : vector<16x1xi1> to vector<16x1xi1>
    %601 = vector.broadcast %600 : vector<16x1xi1> to vector<16x64xi1>
    %602 = vector.broadcast %cst_131 : f32 to vector<16x64xf32>
    %603 = arith.select %601, %576, %602 : vector<16x64xi1>, vector<16x64xf32>
    %c2_132 = arith.constant 2 : index
    %c0_133 = arith.constant 0 : index
    %c0_134 = arith.constant 0 : index
    %604 = vector.load %arg13[%c2_132, %c0_133, %c0_134] : memref<8x16x64xf32, #tpu.memory_space<vmem>>, vector<1x16x64xf32>
    %605 = vector.shape_cast %604 : vector<1x16x64xf32> to vector<16x64xf32>
    %606 = vector.shape_cast %603 : vector<16x64xf32> to vector<1x16x64xf32>
    tpu.vector_store %arg13[%c2_132, %c0_133, %c0_134], %606 {strides = array<i32>} : memref<8x16x64xf32, #tpu.memory_space<vmem>>, vector<1x16x64xf32>,
    %607 = vector.extract_strided_slice %14 {offsets = [6, 0, 0], sizes = [1, 16, 512], strides = [1, 1, 1]} : vector<8x16x512xf32> to vector<1x16x512xf32>
    %608 = vector.shape_cast %607 : vector<1x16x512xf32> to vector<16x512xf32>
    %609 = arith.truncf %586 : vector<16x64xf32> to vector<16x64xbf16>
    %cst_135 = arith.constant dense<0.000000e+00> : vector<16x512xf32>
    %610 = tpu.matmul %609, %21, %cst_135 {dimension_numbers = #tpu.dot_dimension_numbers<[1], [0], [0], [1], [0, 0, 1, 1], [], []>} : vector<16x64xbf16>, vector<64x512xbf16>, vector<16x512xf32> -> vector<16x512xf32>
    %611 = arith.addf %608, %610 : vector<16x512xf32>
    %612 = vector.extract_strided_slice %20 {offsets = [1, 0, 0], sizes = [1, 16, 512], strides = [1, 1, 1]} : vector<8x16x512xf32> to vector<1x16x512xf32>
    %613 = vector.shape_cast %612 : vector<1x16x512xf32> to vector<16x512xf32>
    %614 = arith.truncf %599 : vector<16x64xf32> to vector<16x64xbf16>
    %cst_136 = arith.constant dense<0.000000e+00> : vector<16x512xf32>
    %615 = tpu.matmul %614, %22, %cst_136 {dimension_numbers = #tpu.dot_dimension_numbers<[1], [0], [0], [1], [0, 0, 1, 1], [], []>} : vector<16x64xbf16>, vector<64x512xbf16>, vector<16x512xf32> -> vector<16x512xf32>
    %616 = arith.addf %613, %615 : vector<16x512xf32>
    %617 = vector.extract_strided_slice %611 {offsets = [0, 0], sizes = [16, 128], strides = [1, 1]} : vector<16x512xf32> to vector<16x128xf32>
    %618 = arith.negf %617 : vector<16x128xf32>
    %619 = math.exp %618 : vector<16x128xf32>
    %cst_137 = arith.constant 1.000000e+00 : f32
    %620 = vector.broadcast %cst_137 : f32 to vector<16x128xf32>
    %621 = arith.addf %620, %619 : vector<16x128xf32>
    %622 = arith.divf %620, %621 : vector<16x128xf32>
    %623 = vector.extract_strided_slice %611 {offsets = [0, 128], sizes = [16, 128], strides = [1, 1]} : vector<16x512xf32> to vector<16x128xf32>
    %624 = arith.negf %623 : vector<16x128xf32>
    %625 = math.exp %624 : vector<16x128xf32>
    %cst_138 = arith.constant 1.000000e+00 : f32
    %626 = vector.broadcast %cst_138 : f32 to vector<16x128xf32>
    %627 = arith.addf %626, %625 : vector<16x128xf32>
    %628 = arith.divf %626, %627 : vector<16x128xf32>
    %629 = vector.extract_strided_slice %611 {offsets = [0, 256], sizes = [16, 128], strides = [1, 1]} : vector<16x512xf32> to vector<16x128xf32>
    %630 = math.tanh %629 : vector<16x128xf32>
    %631 = vector.extract_strided_slice %611 {offsets = [0, 384], sizes = [16, 128], strides = [1, 1]} : vector<16x512xf32> to vector<16x128xf32>
    %632 = arith.negf %631 : vector<16x128xf32>
    %633 = math.exp %632 : vector<16x128xf32>
    %cst_139 = arith.constant 1.000000e+00 : f32
    %634 = vector.broadcast %cst_139 : f32 to vector<16x128xf32>
    %635 = arith.addf %634, %633 : vector<16x128xf32>
    %636 = arith.divf %634, %635 : vector<16x128xf32>
    %637 = arith.mulf %622, %630 : vector<16x128xf32>
    %638 = arith.mulf %628, %583 : vector<16x128xf32>
    %639 = arith.addf %637, %638 : vector<16x128xf32>
    %640 = math.tanh %639 : vector<16x128xf32>
    %641 = arith.mulf %636, %640 : vector<16x128xf32>
    %642 = arith.truncf %641 : vector<16x128xf32> to vector<16x128xbf16>
    %cst_140 = arith.constant dense<0.000000e+00> : vector<16x64xf32>
    %643 = tpu.matmul %642, %23, %cst_140 {dimension_numbers = #tpu.dot_dimension_numbers<[1], [0], [0], [1], [0, 0, 1, 1], [], []>} : vector<16x128xbf16>, vector<128x64xbf16>, vector<16x64xf32> -> vector<16x64xf32>
    %644 = vector.extract_strided_slice %616 {offsets = [0, 0], sizes = [16, 128], strides = [1, 1]} : vector<16x512xf32> to vector<16x128xf32>
    %645 = arith.negf %644 : vector<16x128xf32>
    %646 = math.exp %645 : vector<16x128xf32>
    %cst_141 = arith.constant 1.000000e+00 : f32
    %647 = vector.broadcast %cst_141 : f32 to vector<16x128xf32>
    %648 = arith.addf %647, %646 : vector<16x128xf32>
    %649 = arith.divf %647, %648 : vector<16x128xf32>
    %650 = vector.extract_strided_slice %616 {offsets = [0, 128], sizes = [16, 128], strides = [1, 1]} : vector<16x512xf32> to vector<16x128xf32>
    %651 = arith.negf %650 : vector<16x128xf32>
    %652 = math.exp %651 : vector<16x128xf32>
    %cst_142 = arith.constant 1.000000e+00 : f32
    %653 = vector.broadcast %cst_142 : f32 to vector<16x128xf32>
    %654 = arith.addf %653, %652 : vector<16x128xf32>
    %655 = arith.divf %653, %654 : vector<16x128xf32>
    %656 = vector.extract_strided_slice %616 {offsets = [0, 256], sizes = [16, 128], strides = [1, 1]} : vector<16x512xf32> to vector<16x128xf32>
    %657 = math.tanh %656 : vector<16x128xf32>
    %658 = vector.extract_strided_slice %616 {offsets = [0, 384], sizes = [16, 128], strides = [1, 1]} : vector<16x512xf32> to vector<16x128xf32>
    %659 = arith.negf %658 : vector<16x128xf32>
    %660 = math.exp %659 : vector<16x128xf32>
    %cst_143 = arith.constant 1.000000e+00 : f32
    %661 = vector.broadcast %cst_143 : f32 to vector<16x128xf32>
    %662 = arith.addf %661, %660 : vector<16x128xf32>
    %663 = arith.divf %661, %662 : vector<16x128xf32>
    %664 = arith.mulf %649, %657 : vector<16x128xf32>
    %665 = arith.mulf %655, %596 : vector<16x128xf32>
    %666 = arith.addf %664, %665 : vector<16x128xf32>
    %667 = math.tanh %666 : vector<16x128xf32>
    %668 = arith.mulf %663, %667 : vector<16x128xf32>
    %669 = arith.truncf %668 : vector<16x128xf32> to vector<16x128xbf16>
    %cst_144 = arith.constant dense<0.000000e+00> : vector<16x64xf32>
    %670 = tpu.matmul %669, %24, %cst_144 {dimension_numbers = #tpu.dot_dimension_numbers<[1], [0], [0], [1], [0, 0, 1, 1], [], []>} : vector<16x128xbf16>, vector<128x64xbf16>, vector<16x64xf32> -> vector<16x64xf32>
    %671 = vector.extract_strided_slice %33 {offsets = [6, 0, 0], sizes = [1, 16, 1], strides = [1, 1, 1]} : vector<8x16x1xi1> to vector<1x16x1xi1>
    %672 = vector.shape_cast %671 : vector<1x16x1xi1> to vector<16x1xi1>
    %673 = vector.extract_strided_slice %38 {offsets = [1, 0, 0], sizes = [1, 16, 1], strides = [1, 1, 1]} : vector<8x16x1xi1> to vector<1x16x1xi1>
    %674 = vector.shape_cast %673 : vector<1x16x1xi1> to vector<16x1xi1>
    %675 = vector.shape_cast %672 : vector<16x1xi1> to vector<16x1xi1>
    %676 = vector.broadcast %675 : vector<16x1xi1> to vector<16x128xi1>
    %677 = arith.select %676, %639, %583 : vector<16x128xi1>, vector<16x128xf32>
    %678 = vector.shape_cast %672 : vector<16x1xi1> to vector<16x1xi1>
    %679 = vector.broadcast %678 : vector<16x1xi1> to vector<16x64xi1>
    %680 = arith.select %679, %643, %586 : vector<16x64xi1>, vector<16x64xf32>
    %cst_145 = arith.constant 0.000000e+00 : f32
    %681 = vector.shape_cast %672 : vector<16x1xi1> to vector<16x1xi1>
    %682 = vector.broadcast %681 : vector<16x1xi1> to vector<16x64xi1>
    %683 = vector.broadcast %cst_145 : f32 to vector<16x64xf32>
    %684 = arith.select %682, %643, %683 : vector<16x64xi1>, vector<16x64xf32>
    %c6_146 = arith.constant 6 : index
    %c0_147 = arith.constant 0 : index
    %c0_148 = arith.constant 0 : index
    %685 = vector.load %arg12[%c6_146, %c0_147, %c0_148] : memref<8x16x64xf32, #tpu.memory_space<vmem>>, vector<1x16x64xf32>
    %686 = vector.shape_cast %685 : vector<1x16x64xf32> to vector<16x64xf32>
    %687 = vector.shape_cast %684 : vector<16x64xf32> to vector<1x16x64xf32>
    tpu.vector_store %arg12[%c6_146, %c0_147, %c0_148], %687 {strides = array<i32>} : memref<8x16x64xf32, #tpu.memory_space<vmem>>, vector<1x16x64xf32>,
    %688 = vector.shape_cast %674 : vector<16x1xi1> to vector<16x1xi1>
    %689 = vector.broadcast %688 : vector<16x1xi1> to vector<16x128xi1>
    %690 = arith.select %689, %666, %596 : vector<16x128xi1>, vector<16x128xf32>
    %691 = vector.shape_cast %674 : vector<16x1xi1> to vector<16x1xi1>
    %692 = vector.broadcast %691 : vector<16x1xi1> to vector<16x64xi1>
    %693 = arith.select %692, %670, %599 : vector<16x64xi1>, vector<16x64xf32>
    %cst_149 = arith.constant 0.000000e+00 : f32
    %694 = vector.shape_cast %674 : vector<16x1xi1> to vector<16x1xi1>
    %695 = vector.broadcast %694 : vector<16x1xi1> to vector<16x64xi1>
    %696 = vector.broadcast %cst_149 : f32 to vector<16x64xf32>
    %697 = arith.select %695, %670, %696 : vector<16x64xi1>, vector<16x64xf32>
    %c1_150 = arith.constant 1 : index
    %c0_151 = arith.constant 0 : index
    %c0_152 = arith.constant 0 : index
    %698 = vector.load %arg13[%c1_150, %c0_151, %c0_152] : memref<8x16x64xf32, #tpu.memory_space<vmem>>, vector<1x16x64xf32>
    %699 = vector.shape_cast %698 : vector<1x16x64xf32> to vector<16x64xf32>
    %700 = vector.shape_cast %697 : vector<16x64xf32> to vector<1x16x64xf32>
    tpu.vector_store %arg13[%c1_150, %c0_151, %c0_152], %700 {strides = array<i32>} : memref<8x16x64xf32, #tpu.memory_space<vmem>>, vector<1x16x64xf32>,
    %701 = vector.extract_strided_slice %14 {offsets = [7, 0, 0], sizes = [1, 16, 512], strides = [1, 1, 1]} : vector<8x16x512xf32> to vector<1x16x512xf32>
    %702 = vector.shape_cast %701 : vector<1x16x512xf32> to vector<16x512xf32>
    %703 = arith.truncf %680 : vector<16x64xf32> to vector<16x64xbf16>
    %cst_153 = arith.constant dense<0.000000e+00> : vector<16x512xf32>
    %704 = tpu.matmul %703, %21, %cst_153 {dimension_numbers = #tpu.dot_dimension_numbers<[1], [0], [0], [1], [0, 0, 1, 1], [], []>} : vector<16x64xbf16>, vector<64x512xbf16>, vector<16x512xf32> -> vector<16x512xf32>
    %705 = arith.addf %702, %704 : vector<16x512xf32>
    %706 = vector.extract_strided_slice %20 {offsets = [0, 0, 0], sizes = [1, 16, 512], strides = [1, 1, 1]} : vector<8x16x512xf32> to vector<1x16x512xf32>
    %707 = vector.shape_cast %706 : vector<1x16x512xf32> to vector<16x512xf32>
    %708 = arith.truncf %693 : vector<16x64xf32> to vector<16x64xbf16>
    %cst_154 = arith.constant dense<0.000000e+00> : vector<16x512xf32>
    %709 = tpu.matmul %708, %22, %cst_154 {dimension_numbers = #tpu.dot_dimension_numbers<[1], [0], [0], [1], [0, 0, 1, 1], [], []>} : vector<16x64xbf16>, vector<64x512xbf16>, vector<16x512xf32> -> vector<16x512xf32>
    %710 = arith.addf %707, %709 : vector<16x512xf32>
    %711 = vector.extract_strided_slice %705 {offsets = [0, 0], sizes = [16, 128], strides = [1, 1]} : vector<16x512xf32> to vector<16x128xf32>
    %712 = arith.negf %711 : vector<16x128xf32>
    %713 = math.exp %712 : vector<16x128xf32>
    %cst_155 = arith.constant 1.000000e+00 : f32
    %714 = vector.broadcast %cst_155 : f32 to vector<16x128xf32>
    %715 = arith.addf %714, %713 : vector<16x128xf32>
    %716 = arith.divf %714, %715 : vector<16x128xf32>
    %717 = vector.extract_strided_slice %705 {offsets = [0, 128], sizes = [16, 128], strides = [1, 1]} : vector<16x512xf32> to vector<16x128xf32>
    %718 = arith.negf %717 : vector<16x128xf32>
    %719 = math.exp %718 : vector<16x128xf32>
    %cst_156 = arith.constant 1.000000e+00 : f32
    %720 = vector.broadcast %cst_156 : f32 to vector<16x128xf32>
    %721 = arith.addf %720, %719 : vector<16x128xf32>
    %722 = arith.divf %720, %721 : vector<16x128xf32>
    %723 = vector.extract_strided_slice %705 {offsets = [0, 256], sizes = [16, 128], strides = [1, 1]} : vector<16x512xf32> to vector<16x128xf32>
    %724 = math.tanh %723 : vector<16x128xf32>
    %725 = vector.extract_strided_slice %705 {offsets = [0, 384], sizes = [16, 128], strides = [1, 1]} : vector<16x512xf32> to vector<16x128xf32>
    %726 = arith.negf %725 : vector<16x128xf32>
    %727 = math.exp %726 : vector<16x128xf32>
    %cst_157 = arith.constant 1.000000e+00 : f32
    %728 = vector.broadcast %cst_157 : f32 to vector<16x128xf32>
    %729 = arith.addf %728, %727 : vector<16x128xf32>
    %730 = arith.divf %728, %729 : vector<16x128xf32>
    %731 = arith.mulf %716, %724 : vector<16x128xf32>
    %732 = arith.mulf %722, %677 : vector<16x128xf32>
    %733 = arith.addf %731, %732 : vector<16x128xf32>
    %734 = math.tanh %733 : vector<16x128xf32>
    %735 = arith.mulf %730, %734 : vector<16x128xf32>
    %736 = arith.truncf %735 : vector<16x128xf32> to vector<16x128xbf16>
    %cst_158 = arith.constant dense<0.000000e+00> : vector<16x64xf32>
    %737 = tpu.matmul %736, %23, %cst_158 {dimension_numbers = #tpu.dot_dimension_numbers<[1], [0], [0], [1], [0, 0, 1, 1], [], []>} : vector<16x128xbf16>, vector<128x64xbf16>, vector<16x64xf32> -> vector<16x64xf32>
    %738 = vector.extract_strided_slice %710 {offsets = [0, 0], sizes = [16, 128], strides = [1, 1]} : vector<16x512xf32> to vector<16x128xf32>
    %739 = arith.negf %738 : vector<16x128xf32>
    %740 = math.exp %739 : vector<16x128xf32>
    %cst_159 = arith.constant 1.000000e+00 : f32
    %741 = vector.broadcast %cst_159 : f32 to vector<16x128xf32>
    %742 = arith.addf %741, %740 : vector<16x128xf32>
    %743 = arith.divf %741, %742 : vector<16x128xf32>
    %744 = vector.extract_strided_slice %710 {offsets = [0, 128], sizes = [16, 128], strides = [1, 1]} : vector<16x512xf32> to vector<16x128xf32>
    %745 = arith.negf %744 : vector<16x128xf32>
    %746 = math.exp %745 : vector<16x128xf32>
    %cst_160 = arith.constant 1.000000e+00 : f32
    %747 = vector.broadcast %cst_160 : f32 to vector<16x128xf32>
    %748 = arith.addf %747, %746 : vector<16x128xf32>
    %749 = arith.divf %747, %748 : vector<16x128xf32>
    %750 = vector.extract_strided_slice %710 {offsets = [0, 256], sizes = [16, 128], strides = [1, 1]} : vector<16x512xf32> to vector<16x128xf32>
    %751 = math.tanh %750 : vector<16x128xf32>
    %752 = vector.extract_strided_slice %710 {offsets = [0, 384], sizes = [16, 128], strides = [1, 1]} : vector<16x512xf32> to vector<16x128xf32>
    %753 = arith.negf %752 : vector<16x128xf32>
    %754 = math.exp %753 : vector<16x128xf32>
    %cst_161 = arith.constant 1.000000e+00 : f32
    %755 = vector.broadcast %cst_161 : f32 to vector<16x128xf32>
    %756 = arith.addf %755, %754 : vector<16x128xf32>
    %757 = arith.divf %755, %756 : vector<16x128xf32>
    %758 = arith.mulf %743, %751 : vector<16x128xf32>
    %759 = arith.mulf %749, %690 : vector<16x128xf32>
    %760 = arith.addf %758, %759 : vector<16x128xf32>
    %761 = math.tanh %760 : vector<16x128xf32>
    %762 = arith.mulf %757, %761 : vector<16x128xf32>
    %763 = arith.truncf %762 : vector<16x128xf32> to vector<16x128xbf16>
    %cst_162 = arith.constant dense<0.000000e+00> : vector<16x64xf32>
    %764 = tpu.matmul %763, %24, %cst_162 {dimension_numbers = #tpu.dot_dimension_numbers<[1], [0], [0], [1], [0, 0, 1, 1], [], []>} : vector<16x128xbf16>, vector<128x64xbf16>, vector<16x64xf32> -> vector<16x64xf32>
    %765 = vector.extract_strided_slice %33 {offsets = [7, 0, 0], sizes = [1, 16, 1], strides = [1, 1, 1]} : vector<8x16x1xi1> to vector<1x16x1xi1>
    %766 = vector.shape_cast %765 : vector<1x16x1xi1> to vector<16x1xi1>
    %767 = vector.extract_strided_slice %38 {offsets = [0, 0, 0], sizes = [1, 16, 1], strides = [1, 1, 1]} : vector<8x16x1xi1> to vector<1x16x1xi1>
    %768 = vector.shape_cast %767 : vector<1x16x1xi1> to vector<16x1xi1>
    %769 = vector.shape_cast %766 : vector<16x1xi1> to vector<16x1xi1>
    %770 = vector.broadcast %769 : vector<16x1xi1> to vector<16x128xi1>
    %771 = arith.select %770, %733, %677 : vector<16x128xi1>, vector<16x128xf32>
    %772 = vector.shape_cast %766 : vector<16x1xi1> to vector<16x1xi1>
    %773 = vector.broadcast %772 : vector<16x1xi1> to vector<16x64xi1>
    %774 = arith.select %773, %737, %680 : vector<16x64xi1>, vector<16x64xf32>
    %cst_163 = arith.constant 0.000000e+00 : f32
    %775 = vector.shape_cast %766 : vector<16x1xi1> to vector<16x1xi1>
    %776 = vector.broadcast %775 : vector<16x1xi1> to vector<16x64xi1>
    %777 = vector.broadcast %cst_163 : f32 to vector<16x64xf32>
    %778 = arith.select %776, %737, %777 : vector<16x64xi1>, vector<16x64xf32>
    %c7_164 = arith.constant 7 : index
    %c0_165 = arith.constant 0 : index
    %c0_166 = arith.constant 0 : index
    %779 = vector.load %arg12[%c7_164, %c0_165, %c0_166] : memref<8x16x64xf32, #tpu.memory_space<vmem>>, vector<1x16x64xf32>
    %780 = vector.shape_cast %779 : vector<1x16x64xf32> to vector<16x64xf32>
    %781 = vector.shape_cast %778 : vector<16x64xf32> to vector<1x16x64xf32>
    tpu.vector_store %arg12[%c7_164, %c0_165, %c0_166], %781 {strides = array<i32>} : memref<8x16x64xf32, #tpu.memory_space<vmem>>, vector<1x16x64xf32>,
    %782 = vector.shape_cast %768 : vector<16x1xi1> to vector<16x1xi1>
    %783 = vector.broadcast %782 : vector<16x1xi1> to vector<16x128xi1>
    %784 = arith.select %783, %760, %690 : vector<16x128xi1>, vector<16x128xf32>
    %785 = vector.shape_cast %768 : vector<16x1xi1> to vector<16x1xi1>
    %786 = vector.broadcast %785 : vector<16x1xi1> to vector<16x64xi1>
    %787 = arith.select %786, %764, %693 : vector<16x64xi1>, vector<16x64xf32>
    %cst_167 = arith.constant 0.000000e+00 : f32
    %788 = vector.shape_cast %768 : vector<16x1xi1> to vector<16x1xi1>
    %789 = vector.broadcast %788 : vector<16x1xi1> to vector<16x64xi1>
    %790 = vector.broadcast %cst_167 : f32 to vector<16x64xf32>
    %791 = arith.select %789, %764, %790 : vector<16x64xi1>, vector<16x64xf32>
    %c0_168 = arith.constant 0 : index
    %c0_169 = arith.constant 0 : index
    %c0_170 = arith.constant 0 : index
    %792 = vector.load %arg13[%c0_168, %c0_169, %c0_170] : memref<8x16x64xf32, #tpu.memory_space<vmem>>, vector<1x16x64xf32>
    %793 = vector.shape_cast %792 : vector<1x16x64xf32> to vector<16x64xf32>
    %794 = vector.shape_cast %791 : vector<16x64xf32> to vector<1x16x64xf32>
    tpu.vector_store %arg13[%c0_168, %c0_169, %c0_170], %794 {strides = array<i32>} : memref<8x16x64xf32, #tpu.memory_space<vmem>>, vector<1x16x64xf32>,
    %c0_171 = arith.constant 0 : index
    %c0_172 = arith.constant 0 : index
    %795 = vector.load %arg14[%c0_171, %c0_172] : memref<16x64xf32, #tpu.memory_space<vmem>>, vector<16x64xf32>
    tpu.vector_store %arg14[%c0_171, %c0_172], %774 {strides = array<i32>} : memref<16x64xf32, #tpu.memory_space<vmem>>, vector<16x64xf32>,
    %c0_173 = arith.constant 0 : index
    %c0_174 = arith.constant 0 : index
    %796 = vector.load %arg15[%c0_173, %c0_174] : memref<16x128xf32, #tpu.memory_space<vmem>>, vector<16x128xf32>
    tpu.vector_store %arg15[%c0_173, %c0_174], %771 {strides = array<i32>} : memref<16x128xf32, #tpu.memory_space<vmem>>, vector<16x128xf32>,
    %c0_175 = arith.constant 0 : index
    %c0_176 = arith.constant 0 : index
    %797 = vector.load %arg16[%c0_175, %c0_176] : memref<16x64xf32, #tpu.memory_space<vmem>>, vector<16x64xf32>
    tpu.vector_store %arg16[%c0_175, %c0_176], %787 {strides = array<i32>} : memref<16x64xf32, #tpu.memory_space<vmem>>, vector<16x64xf32>,
    %c0_177 = arith.constant 0 : index
    %c0_178 = arith.constant 0 : index
    %798 = vector.load %arg17[%c0_177, %c0_178] : memref<16x128xf32, #tpu.memory_space<vmem>>, vector<16x128xf32>
    tpu.vector_store %arg17[%c0_177, %c0_178], %784 {strides = array<i32>} : memref<16x128xf32, #tpu.memory_space<vmem>>, vector<16x128xf32>,
    return
  }
  func.func @transform_0(%arg0: i32) -> (i32, i32, i32) {
    %c0_i32 = arith.constant 0 : i32
    %c0_i32_0 = arith.constant 0 : i32
    %c0_i32_1 = arith.constant 0 : i32
    return %arg0, %c0_i32, %c0_i32_0 : i32, i32, i32
  }
  func.func @transform_1(%arg0: i32) -> (i32, i32, i32) {
    %c1_i32 = arith.constant 1 : i32
    %0 = arith.subi %c1_i32, %arg0 : i32
    %c0_i32 = arith.constant 0 : i32
    %c0_i32_0 = arith.constant 0 : i32
    %c0_i32_1 = arith.constant 0 : i32
    return %0, %c0_i32, %c0_i32_0 : i32, i32, i32
  }
  func.func @transform_2(%arg0: i32) -> (i32, i32) {
    %c0_i32 = arith.constant 0 : i32
    %c0_i32_0 = arith.constant 0 : i32
    %c0_i32_1 = arith.constant 0 : i32
    return %c0_i32, %c0_i32_0 : i32, i32
  }
  func.func @transform_3(%arg0: i32) -> (i32, i32) {
    %c0_i32 = arith.constant 0 : i32
    %c0_i32_0 = arith.constant 0 : i32
    %c0_i32_1 = arith.constant 0 : i32
    return %c0_i32, %c0_i32_0 : i32, i32
  }
  func.func @transform_4(%arg0: i32) -> (i32, i32) {
    %c0_i32 = arith.constant 0 : i32
    %c0_i32_0 = arith.constant 0 : i32
    %c0_i32_1 = arith.constant 0 : i32
    return %c0_i32, %c0_i32_0 : i32, i32
  }
  func.func @transform_5(%arg0: i32) -> (i32, i32) {
    %c0_i32 = arith.constant 0 : i32
    %c0_i32_0 = arith.constant 0 : i32
    %c0_i32_1 = arith.constant 0 : i32
    return %c0_i32, %c0_i32_0 : i32, i32
  }
  func.func @transform_6(%arg0: i32) -> (i32, i32) {
    %c0_i32 = arith.constant 0 : i32
    %c0_i32_0 = arith.constant 0 : i32
    %c0_i32_1 = arith.constant 0 : i32
    return %c0_i32, %c0_i32_0 : i32, i32
  }
  func.func @transform_7(%arg0: i32) -> (i32, i32) {
    %c0_i32 = arith.constant 0 : i32
    %c0_i32_0 = arith.constant 0 : i32
    %c0_i32_1 = arith.constant 0 : i32
    return %c0_i32, %c0_i32_0 : i32, i32
  }
  func.func @transform_8(%arg0: i32) -> (i32, i32) {
    %c0_i32 = arith.constant 0 : i32
    %c0_i32_0 = arith.constant 0 : i32
    %c0_i32_1 = arith.constant 0 : i32
    return %c0_i32, %c0_i32_0 : i32, i32
  }
  func.func @transform_9(%arg0: i32) -> (i32, i32) {
    %c0_i32 = arith.constant 0 : i32
    %c0_i32_0 = arith.constant 0 : i32
    %c0_i32_1 = arith.constant 0 : i32
    return %c0_i32, %c0_i32_0 : i32, i32
  }
  func.func @transform_10(%arg0: i32) -> (i32, i32) {
    %c0_i32 = arith.constant 0 : i32
    %c0_i32_0 = arith.constant 0 : i32
    %c0_i32_1 = arith.constant 0 : i32
    return %c0_i32, %c0_i32_0 : i32, i32
  }
  func.func @transform_11(%arg0: i32) -> (i32, i32, i32) {
    %c0_i32 = arith.constant 0 : i32
    %c0_i32_0 = arith.constant 0 : i32
    %c0_i32_1 = arith.constant 0 : i32
    return %arg0, %c0_i32, %c0_i32_0 : i32, i32, i32
  }
  func.func @transform_12(%arg0: i32) -> (i32, i32, i32) {
    %c1_i32 = arith.constant 1 : i32
    %0 = arith.subi %c1_i32, %arg0 : i32
    %c0_i32 = arith.constant 0 : i32
    %c0_i32_0 = arith.constant 0 : i32
    %c0_i32_1 = arith.constant 0 : i32
    return %0, %c0_i32, %c0_i32_0 : i32, i32, i32
  }
}

</mosaic_0001>

<llo_original>
// kernel: tpu_custom_call.1
$region0: #{tpu_custom_call.1}
  #allocation0 [shape = 'u32[]', space=smem, size = 0x4, offset = 0x4, fixed_abs, tag = 'smem constant byte address 0x4 - core index']
  #allocation1 [shape = 'u32[72,128]{1,0:T(1,128)}', space=vmem, size = 0x9000, scoped, tag = 'internal scratch']
  #allocation2 [shape = 'f32[16,64]{1,0:T(8,128)}', space=vmem, size = 0x2000, scoped, tag = 'scratch operand']
  #allocation3 [shape = 'f32[16,128]{1,0:T(8,128)}', space=vmem, size = 0x2000, scoped, tag = 'scratch operand']
  #allocation4 [shape = 'f32[16,64]{1,0:T(8,128)}', space=vmem, size = 0x2000, scoped, tag = 'scratch operand']
  #allocation5 [shape = 'f32[16,128]{1,0:T(8,128)}', space=vmem, size = 0x2000, scoped, tag = 'scratch operand']
  %s0 = inlined_call_operand.hbm [shape: f32[16,16,64], index: 0, kind: input, shape index: {}]
  %s1 = inlined_call_operand.hbm [shape: f32[16,16,64], index: 1, kind: input, shape index: {}]
  %s2 = inlined_call_operand.vmem [shape: bf16[64,512], index: 2, kind: input, shape index: {}]
  %s3 = inlined_call_operand.hbm [shape: bf16[64,512], index: 3, kind: input, shape index: {}]
  %s4 = inlined_call_operand.vmem [shape: bf16[128,64], index: 4, kind: input, shape index: {}]
  %s5 = inlined_call_operand.vmem [shape: f32[1,512], index: 5, kind: input, shape index: {}]
  %s6 = inlined_call_operand.hbm [shape: bf16[64,512], index: 6, kind: input, shape index: {}]
  %s7 = inlined_call_operand.hbm [shape: bf16[64,512], index: 7, kind: input, shape index: {}]
  %s8 = inlined_call_operand.vmem [shape: bf16[128,64], index: 8, kind: input, shape index: {}]
  %s9 = inlined_call_operand.vmem [shape: f32[1,512], index: 9, kind: input, shape index: {}]
  %s10 = inlined_call_operand.vmem [shape: s32[16,1], index: 10, kind: input, shape index: {}]
  %s11 = inlined_call_operand.hbm [shape: f32[16,16,64], index: 11, kind: output, shape index: {0}]
  %s12 = inlined_call_operand.hbm [shape: f32[16,16,64], index: 12, kind: output, shape index: {1}]
  %13 = xla_tuple %s11, %s12
  %s14 = sld [smem:[#allocation0]]
  $region109: #{tpu_custom_call.1} parent=0
    _
  %s16 = ssub.s32 1, %s14
  %s17 = scalar_select 0, %s16, %s14
  $region1: #{tpu_custom_call.1} parent=0
    #allocation6 [shape = 'u8[131072]{0}', space=vmem, size = 0x20000, scoped, tag = 'input window, operand 0']
    #allocation7 [shape = 's32[2]{0}', space=sflag, size = 0x8, scoped, tag = 'scoped memory for tpu_custom_call.1']
    #allocation8 [shape = 's32[2]{0}', space=sflag, size = 0x8, scoped, tag = 'scoped memory for tpu_custom_call.1']
    #allocation9 [shape = 'u8[131072]{0}', space=vmem, size = 0x20000, scoped, tag = 'input window, operand 1']
    #allocation10 [shape = 's32[2]{0}', space=sflag, size = 0x8, scoped, tag = 'scoped memory for tpu_custom_call.1']
    #allocation11 [shape = 'u8[65536]{0}', space=vmem, size = 0x10000, scoped, tag = 'input window, operand 3, single buffered']
    #allocation12 [shape = 'u8[65536]{0}', space=vmem, size = 0x10000, scoped, tag = 'input window, operand 6, single buffered']
    #allocation13 [shape = 's32[1]{0}', space=sflag, size = 0x4, scoped, tag = 'scoped memory for tpu_custom_call.1']
    #allocation14 [shape = 'u8[65536]{0}', space=vmem, size = 0x10000, scoped, tag = 'input window, operand 7, single buffered']
    #allocation15 [shape = 'u8[131072]{0}', space=vmem, size = 0x20000, scoped, tag = 'output window, operand 0']
    #allocation16 [shape = 'u8[131072]{0}', space=vmem, size = 0x20000, scoped, tag = 'output window, operand 1']
    #allocation17 [shape = 's32[2]{0}', space=sflag, size = 0x8, scoped, tag = 'scoped memory for tpu_custom_call.1']
    %18 = vsyncpa [#allocation7], 0
    %s19 = scalar_lea.sflag [#allocation7], 1
    %20 = vsyncpa %s19, 0
    %21 = vsyncpa [#allocation10], 0
    %s22 = scalar_lea.sflag [#allocation10], 1
    %23 = vsyncpa %s22, 0
    %24 = vsyncpa [#allocation13], 0
    %25 = vsyncpa [#allocation8], 0
    %s26 = scalar_lea.sflag [#allocation8], 1
    %27 = vsyncpa %s26, 0
    %28 = vsyncpa [#allocation17], 0
    %s29 = scalar_lea.sflag [#allocation17], 1
    %30 = vsyncpa %s29, 0
    loop: start=0, step=1, limit=4
    $region2: #{tpu_custom_call.1} parent=1 // loop_pre_header
      _
    $region3: #{tpu_custom_call.1} parent=1 // loop_header
      %s32 = sphi 0, %s36
      %p33 = scmp.ge.s32.totalorder %s32, 4
      %s42 = sphi 0, %s44
      %s45 = sphi 0, %s42
      %s46 = sphi 0, %s45
      %s62 = sphi 0, %s46
      %s70 = sphi 0, %s72
      %s73 = sphi 0, %s70
      %s74 = sphi 0, %s73
      %s90 = sphi 0, %s74
      %s94 = sphi 0, %s94
      %s96 = sphi 0, %s94
      %s97 = sphi 0, %s96
      %s111 = sphi 0, %s97
      %s115 = sphi 0, %s115
      %s117 = sphi 0, %s115
      %s118 = sphi 0, %s117
      %s132 = sphi 0, %s118
      %s136 = sphi 0, %s136
      %s138 = sphi 0, %s136
      %s139 = sphi 0, %s138
      %s153 = sphi 0, %s139
      %s157 = sphi 0, %s157
      %s159 = sphi 0, %s157
      %s160 = sphi 0, %s159
      %s174 = sphi 0, %s160
      %s178 = sphi 0, %s178
      %s180 = sphi 0, %s178
      %s181 = sphi 0, %s180
      %s195 = sphi 0, %s181
      %s199 = sphi 0, %s199
      %s201 = sphi 0, %s199
      %s202 = sphi 0, %s201
      %s216 = sphi 0, %s202
      %s220 = sphi 0, %s220
      %s222 = sphi 0, %s220
      %s223 = sphi 0, %s222
      %s237 = sphi 0, %s223
      %s241 = sphi 0, %s241
      %s243 = sphi 0, %s241
      %s244 = sphi 0, %s243
      %s258 = sphi 0, %s244
      %s262 = sphi 0, %s262
      %s264 = sphi 0, %s262
      %s265 = sphi 0, %s264
      %s279 = sphi 0, %s265
      %s285 = sphi 0, %s287
      %s288 = sphi 0, %s285
      %s289 = sphi 0, %s288
      %s305 = sphi 0, %s289
      %s313 = sphi 0, %s315
      %s316 = sphi 0, %s313
      %s317 = sphi 0, %s316
      %s333 = sphi 0, %s317
    $region4: #{tpu_custom_call.1} parent=1 // loop_header_branch
      %35 = sbr.rel (%p33) target = $region8
    $region5: #{tpu_custom_call.1} parent=1 // loop_body
      %s37 = ssub.s32 %s32, 1
      %s38 = ssub.s32 %s32, 2
      %s39 = sadd.s32 %s32, 1
      %s40 = ssub.s32 %s32, %s39
      %p41 = scmp.eq.s32.totalorder %s40, 0
      %s43 = sadd.s32 %s42, 1
      %s44 = scalar_select %p41, %s42, %s43
      %p47 = pneg %p41
      %p48 = scmp.eq.s32.totalorder %s32, 1
      %p49 = por %p47, %p48
      %p50 = scmp.ne.s32.totalorder %s42, %s45
      %p51 = scmp.eq.s32.totalorder %s32, 0
      %p52 = por %p50, %p51
      %p53 = scmp.ne.s32.totalorder %s42, %s45
      %p54 = scmp.eq.s32.totalorder %s37, 1
      %p55 = por %p53, %p54
      %p56 = scmp.ne.s32.totalorder %s45, %s46
      %p57 = scmp.eq.s32.totalorder %s37, 0
      %p58 = por %p56, %p57
      %p59 = scmp.ne.s32.totalorder %s45, %s46
      %p60 = scmp.eq.s32.totalorder %s38, 1
      %p61 = por %p59, %p60
      %p63 = scmp.ne.s32.totalorder %s46, %s62
      %p64 = scmp.eq.s32.totalorder %s38, 0
      %p65 = por %p63, %p64
      %s66 = ssub.s32 1, %s32
      %s67 = ssub.s32 1, %s39
      %s68 = ssub.s32 %s66, %s67
      %p69 = scmp.eq.s32.totalorder %s68, 0
      %s71 = sadd.s32 %s70, 1
      %s72 = scalar_select %p69, %s70, %s71
      %p75 = pneg %p69
      %p76 = scmp.eq.s32.totalorder %s32, 1
      %p77 = por %p75, %p76
      %p78 = scmp.ne.s32.totalorder %s70, %s73
      %p79 = scmp.eq.s32.totalorder %s32, 0
      %p80 = por %p78, %p79
      %p81 = scmp.ne.s32.totalorder %s70, %s73
      %p82 = scmp.eq.s32.totalorder %s37, 1
      %p83 = por %p81, %p82
      %p84 = scmp.ne.s32.totalorder %s73, %s74
      %p85 = scmp.eq.s32.totalorder %s37, 0
      %p86 = por %p84, %p85
      %p87 = scmp.ne.s32.totalorder %s73, %s74
      %p88 = scmp.eq.s32.totalorder %s38, 1
      %p89 = por %p87, %p88
      %p91 = scmp.ne.s32.totalorder %s74, %s90
      %p92 = scmp.eq.s32.totalorder %s38, 0
      %p93 = por %p91, %p92
      %s95 = sadd.s32 %s94, 1
      %p98 = scmp.eq.s32.totalorder %s32, 1
      %p99 = scmp.ne.s32.totalorder %s94, %s96
      %p100 = scmp.eq.s32.totalorder %s32, 0
      %p101 = por %p99, %p100
      %p102 = scmp.ne.s32.totalorder %s94, %s96
      %p103 = scmp.eq.s32.totalorder %s37, 1
      %p104 = por %p102, %p103
      %p105 = scmp.ne.s32.totalorder %s96, %s97
      %p106 = scmp.eq.s32.totalorder %s37, 0
      %p107 = por %p105, %p106
      %p108 = scmp.ne.s32.totalorder %s96, %s97
      %p109 = scmp.eq.s32.totalorder %s38, 1
      %p110 = por %p108, %p109
      %p112 = scmp.ne.s32.totalorder %s97, %s111
      %p113 = scmp.eq.s32.totalorder %s38, 0
      %p114 = por %p112, %p113
      %s116 = sadd.s32 %s115, 1
      %p119 = scmp.eq.s32.totalorder %s32, 1
      %p120 = scmp.ne.s32.totalorder %s115, %s117
      %p121 = scmp.eq.s32.totalorder %s32, 0
      %p122 = por %p120, %p121
      %p123 = scmp.ne.s32.totalorder %s115, %s117
      %p124 = scmp.eq.s32.totalorder %s37, 1
      %p125 = por %p123, %p124
      %p126 = scmp.ne.s32.totalorder %s117, %s118
      %p127 = scmp.eq.s32.totalorder %s37, 0
      %p128 = por %p126, %p127
      %p129 = scmp.ne.s32.totalorder %s117, %s118
      %p130 = scmp.eq.s32.totalorder %s38, 1
      %p131 = por %p129, %p130
      %p133 = scmp.ne.s32.totalorder %s118, %s132
      %p134 = scmp.eq.s32.totalorder %s38, 0
      %p135 = por %p133, %p134
      %s137 = sadd.s32 %s136, 1
      %p140 = scmp.eq.s32.totalorder %s32, 1
      %p141 = scmp.ne.s32.totalorder %s136, %s138
      %p142 = scmp.eq.s32.totalorder %s32, 0
      %p143 = por %p141, %p142
      %p144 = scmp.ne.s32.totalorder %s136, %s138
      %p145 = scmp.eq.s32.totalorder %s37, 1
      %p146 = por %p144, %p145
      %p147 = scmp.ne.s32.totalorder %s138, %s139
      %p148 = scmp.eq.s32.totalorder %s37, 0
      %p149 = por %p147, %p148
      %p150 = scmp.ne.s32.totalorder %s138, %s139
      %p151 = scmp.eq.s32.totalorder %s38, 1
      %p152 = por %p150, %p151
      %p154 = scmp.ne.s32.totalorder %s139, %s153
      %p155 = scmp.eq.s32.totalorder %s38, 0
      %p156 = por %p154, %p155
      %s158 = sadd.s32 %s157, 1
      %p161 = scmp.eq.s32.totalorder %s32, 1
      %p162 = scmp.ne.s32.totalorder %s157, %s159
      %p163 = scmp.eq.s32.totalorder %s32, 0
      %p164 = por %p162, %p163
      %p165 = scmp.ne.s32.totalorder %s157, %s159
      %p166 = scmp.eq.s32.totalorder %s37, 1
      %p167 = por %p165, %p166
      %p168 = scmp.ne.s32.totalorder %s159, %s160
      %p169 = scmp.eq.s32.totalorder %s37, 0
      %p170 = por %p168, %p169
      %p171 = scmp.ne.s32.totalorder %s159, %s160
      %p172 = scmp.eq.s32.totalorder %s38, 1
      %p173 = por %p171, %p172
      %p175 = scmp.ne.s32.totalorder %s160, %s174
      %p176 = scmp.eq.s32.totalorder %s38, 0
      %p177 = por %p175, %p176
      %s179 = sadd.s32 %s178, 1
      %p182 = scmp.eq.s32.totalorder %s32, 1
      %p183 = scmp.ne.s32.totalorder %s178, %s180
      %p184 = scmp.eq.s32.totalorder %s32, 0
      %p185 = por %p183, %p184
      %p186 = scmp.ne.s32.totalorder %s178, %s180
      %p187 = scmp.eq.s32.totalorder %s37, 1
      %p188 = por %p186, %p187
      %p189 = scmp.ne.s32.totalorder %s180, %s181
      %p190 = scmp.eq.s32.totalorder %s37, 0
      %p191 = por %p189, %p190
      %p192 = scmp.ne.s32.totalorder %s180, %s181
      %p193 = scmp.eq.s32.totalorder %s38, 1
      %p194 = por %p192, %p193
      %p196 = scmp.ne.s32.totalorder %s181, %s195
      %p197 = scmp.eq.s32.totalorder %s38, 0
      %p198 = por %p196, %p197
      %s200 = sadd.s32 %s199, 1
      %p203 = scmp.eq.s32.totalorder %s32, 1
      %p204 = scmp.ne.s32.totalorder %s199, %s201
      %p205 = scmp.eq.s32.totalorder %s32, 0
      %p206 = por %p204, %p205
      %p207 = scmp.ne.s32.totalorder %s199, %s201
      %p208 = scmp.eq.s32.totalorder %s37, 1
      %p209 = por %p207, %p208
      %p210 = scmp.ne.s32.totalorder %s201, %s202
      %p211 = scmp.eq.s32.totalorder %s37, 0
      %p212 = por %p210, %p211
      %p213 = scmp.ne.s32.totalorder %s201, %s202
      %p214 = scmp.eq.s32.totalorder %s38, 1
      %p215 = por %p213, %p214
      %p217 = scmp.ne.s32.totalorder %s202, %s216
      %p218 = scmp.eq.s32.totalorder %s38, 0
      %p219 = por %p217, %p218
      %s221 = sadd.s32 %s220, 1
      %p224 = scmp.eq.s32.totalorder %s32, 1
      %p225 = scmp.ne.s32.totalorder %s220, %s222
      %p226 = scmp.eq.s32.totalorder %s32, 0
      %p227 = por %p225, %p226
      %p228 = scmp.ne.s32.totalorder %s220, %s222
      %p229 = scmp.eq.s32.totalorder %s37, 1
      %p230 = por %p228, %p229
      %p231 = scmp.ne.s32.totalorder %s222, %s223
      %p232 = scmp.eq.s32.totalorder %s37, 0
      %p233 = por %p231, %p232
      %p234 = scmp.ne.s32.totalorder %s222, %s223
      %p235 = scmp.eq.s32.totalorder %s38, 1
      %p236 = por %p234, %p235
      %p238 = scmp.ne.s32.totalorder %s223, %s237
      %p239 = scmp.eq.s32.totalorder %s38, 0
      %p240 = por %p238, %p239
      %s242 = sadd.s32 %s241, 1
      %p245 = scmp.eq.s32.totalorder %s32, 1
      %p246 = scmp.ne.s32.totalorder %s241, %s243
      %p247 = scmp.eq.s32.totalorder %s32, 0
      %p248 = por %p246, %p247
      %p249 = scmp.ne.s32.totalorder %s241, %s243
      %p250 = scmp.eq.s32.totalorder %s37, 1
      %p251 = por %p249, %p250
      %p252 = scmp.ne.s32.totalorder %s243, %s244
      %p253 = scmp.eq.s32.totalorder %s37, 0
      %p254 = por %p252, %p253
      %p255 = scmp.ne.s32.totalorder %s243, %s244
      %p256 = scmp.eq.s32.totalorder %s38, 1
      %p257 = por %p255, %p256
      %p259 = scmp.ne.s32.totalorder %s244, %s258
      %p260 = scmp.eq.s32.totalorder %s38, 0
      %p261 = por %p259, %p260
      %s263 = sadd.s32 %s262, 1
      %p266 = scmp.eq.s32.totalorder %s32, 1
      %p267 = scmp.ne.s32.totalorder %s262, %s264
      %p268 = scmp.eq.s32.totalorder %s32, 0
      %p269 = por %p267, %p268
      %p270 = scmp.ne.s32.totalorder %s262, %s264
      %p271 = scmp.eq.s32.totalorder %s37, 1
      %p272 = por %p270, %p271
      %p273 = scmp.ne.s32.totalorder %s264, %s265
      %p274 = scmp.eq.s32.totalorder %s37, 0
      %p275 = por %p273, %p274
      %p276 = scmp.ne.s32.totalorder %s264, %s265
      %p277 = scmp.eq.s32.totalorder %s38, 1
      %p278 = por %p276, %p277
      %p280 = scmp.ne.s32.totalorder %s265, %s279
      %p281 = scmp.eq.s32.totalorder %s38, 0
      %p282 = por %p280, %p281
      %s283 = ssub.s32 %s32, %s39
      %p284 = scmp.eq.s32.totalorder %s283, 0
      %s286 = sadd.s32 %s285, 1
      %s287 = scalar_select %p284, %s285, %s286
      %p290 = pneg %p284
      %p291 = scmp.eq.s32.totalorder %s32, 1
      %p292 = por %p290, %p291
      %p293 = scmp.ne.s32.totalorder %s285, %s288
      %p294 = scmp.eq.s32.totalorder %s32, 0
      %p295 = por %p293, %p294
      %p296 = scmp.ne.s32.totalorder %s285, %s288
      %p297 = scmp.eq.s32.totalorder %s37, 1
      %p298 = por %p296, %p297
      %p299 = scmp.ne.s32.totalorder %s288, %s289
      %p300 = scmp.eq.s32.totalorder %s37, 0
      %p301 = por %p299, %p300
      %p302 = scmp.ne.s32.totalorder %s288, %s289
      %p303 = scmp.eq.s32.totalorder %s38, 1
      %p304 = por %p302, %p303
      %p306 = scmp.ne.s32.totalorder %s289, %s305
      %p307 = scmp.eq.s32.totalorder %s38, 0
      %p308 = por %p306, %p307
      %s309 = ssub.s32 1, %s32
      %s310 = ssub.s32 1, %s39
      %s311 = ssub.s32 %s309, %s310
      %p312 = scmp.eq.s32.totalorder %s311, 0
      %s314 = sadd.s32 %s313, 1
      %s315 = scalar_select %p312, %s313, %s314
      %p318 = pneg %p312
      %p319 = scmp.eq.s32.totalorder %s32, 1
      %p320 = por %p318, %p319
      %p321 = scmp.ne.s32.totalorder %s313, %s316
      %p322 = scmp.eq.s32.totalorder %s32, 0
      %p323 = por %p321, %p322
      %p324 = scmp.ne.s32.totalorder %s313, %s316
      %p325 = scmp.eq.s32.totalorder %s37, 1
      %p326 = por %p324, %p325
      %p327 = scmp.ne.s32.totalorder %s316, %s317
      %p328 = scmp.eq.s32.totalorder %s37, 0
      %p329 = por %p327, %p328
      %p330 = scmp.ne.s32.totalorder %s316, %s317
      %p331 = scmp.eq.s32.totalorder %s38, 1
      %p332 = por %p330, %p331
      %p334 = scmp.ne.s32.totalorder %s317, %s333
      %p335 = scmp.eq.s32.totalorder %s38, 0
      %p336 = por %p334, %p335
      %p337 = scmp.le.s32.totalorder 1, %s32
      %p338 = scmp.lt.s32.totalorder %s32, 3
      %p339 = pnand %p337, %p338
      %p340 = pneg %p339
      // Predicated region
      $region9: #{tpu_custom_call.1} parent=5 // pred_check
        _
      $region10: #{tpu_custom_call.1} parent=5 // pred_check_branch
        %342 = sbr.rel (%p339) target = $region12
      $region11: #{tpu_custom_call.1} parent=5 // pred_region
        %s343 = ssub.s32 %s32, 1
        // Predicated region
        $region13: #{tpu_custom_call.1} parent=11 // pred_check
          %p344 = pneg %p107
        $region14: #{tpu_custom_call.1} parent=11 // pred_check_branch
          %346 = sbr.rel (%p344) target = $region16
        $region15: #{tpu_custom_call.1} parent=11 // pred_region
          _
        $region16: #{tpu_custom_call.1} parent=11 // pred_fallthru
          _
        // Predicated region
        $region17: #{tpu_custom_call.1} parent=11 // pred_check
          %p347 = pneg %p128
        $region18: #{tpu_custom_call.1} parent=11 // pred_check_branch
          %349 = sbr.rel (%p347) target = $region20
        $region19: #{tpu_custom_call.1} parent=11 // pred_region
          %351 = vsyncadd [#allocation10], 0
          %s352 = sshll.u32 %s3, 4
          %s353 = int_to_ptr.hbm [resolvable:$true] %s352
          %s354 = sshll.u32 [#allocation11], 4
          %s355 = int_to_ptr.vmem [resolvable:$true] %s354
          %360 = dma.hbm_to_vmem [thread:$0]  %s353, 2048, %s355, [#allocation10], 256, 256, 16
        $region20: #{tpu_custom_call.1} parent=11 // pred_fallthru
          _
        // Predicated region
        $region21: #{tpu_custom_call.1} parent=11 // pred_check
          %p361 = pneg %p149
        $region22: #{tpu_custom_call.1} parent=11 // pred_check_branch
          %363 = sbr.rel (%p361) target = $region24
        $region23: #{tpu_custom_call.1} parent=11 // pred_region
          _
        $region24: #{tpu_custom_call.1} parent=11 // pred_fallthru
          _
        // Predicated region
        $region25: #{tpu_custom_call.1} parent=11 // pred_check
          %p364 = pneg %p170
        $region26: #{tpu_custom_call.1} parent=11 // pred_check_branch
          %366 = sbr.rel (%p364) target = $region28
        $region27: #{tpu_custom_call.1} parent=11 // pred_region
          _
        $region28: #{tpu_custom_call.1} parent=11 // pred_fallthru
          _
        // Predicated region
        $region29: #{tpu_custom_call.1} parent=11 // pred_check
          %p367 = pneg %p191
        $region30: #{tpu_custom_call.1} parent=11 // pred_check_branch
          %369 = sbr.rel (%p367) target = $region32
        $region31: #{tpu_custom_call.1} parent=11 // pred_region
          %371 = vsyncadd [#allocation13], 0
          %s372 = sshll.u32 %s6, 4
          %s373 = int_to_ptr.hbm [resolvable:$true] %s372
          %s374 = sshll.u32 [#allocation12], 4
          %s375 = int_to_ptr.vmem [resolvable:$true] %s374
          %380 = dma.hbm_to_vmem [thread:$0]  %s373, 2048, %s375, [#allocation13], 256, 256, 16
        $region32: #{tpu_custom_call.1} parent=11 // pred_fallthru
          _
        // Predicated region
        $region33: #{tpu_custom_call.1} parent=11 // pred_check
          %p381 = pneg %p212
        $region34: #{tpu_custom_call.1} parent=11 // pred_check_branch
          %383 = sbr.rel (%p381) target = $region36
        $region35: #{tpu_custom_call.1} parent=11 // pred_region
          %385 = vsyncadd [#allocation13], 0
          %s386 = sshll.u32 %s7, 4
          %s387 = int_to_ptr.hbm [resolvable:$true] %s386
          %s388 = sshll.u32 [#allocation14], 4
          %s389 = int_to_ptr.vmem [resolvable:$true] %s388
          %394 = dma.hbm_to_vmem [thread:$0]  %s387, 2048, %s389, [#allocation13], 256, 256, 16
        $region36: #{tpu_custom_call.1} parent=11 // pred_fallthru
          _
        // Predicated region
        $region37: #{tpu_custom_call.1} parent=11 // pred_check
          %p395 = pneg %p233
        $region38: #{tpu_custom_call.1} parent=11 // pred_check_branch
          %397 = sbr.rel (%p395) target = $region40
        $region39: #{tpu_custom_call.1} parent=11 // pred_region
          _
        $region40: #{tpu_custom_call.1} parent=11 // pred_fallthru
          _
        // Predicated region
        $region41: #{tpu_custom_call.1} parent=11 // pred_check
          %p398 = pneg %p254
        $region42: #{tpu_custom_call.1} parent=11 // pred_check_branch
          %400 = sbr.rel (%p398) target = $region44
        $region43: #{tpu_custom_call.1} parent=11 // pred_region
          _
        $region44: #{tpu_custom_call.1} parent=11 // pred_fallthru
          _
        // Predicated region
        $region45: #{tpu_custom_call.1} parent=11 // pred_check
          %p401 = pneg %p275
        $region46: #{tpu_custom_call.1} parent=11 // pred_check_branch
          %403 = sbr.rel (%p401) target = $region48
        $region47: #{tpu_custom_call.1} parent=11 // pred_region
          _
        $region48: #{tpu_custom_call.1} parent=11 // pred_fallthru
          _
      $region12: #{tpu_custom_call.1} parent=5 // pred_fallthru
        _
      %p404 = scmp.lt.s32.totalorder %s32, 2
      // Predicated region
      $region49: #{tpu_custom_call.1} parent=5 // pred_check
        %p405 = pneg %p404
      $region50: #{tpu_custom_call.1} parent=5 // pred_check_branch
        %407 = sbr.rel (%p405) target = $region52
      $region51: #{tpu_custom_call.1} parent=5 // pred_region
        // Predicated region
        $region53: #{tpu_custom_call.1} parent=51 // pred_check
          %p408 = pneg %p52
        $region54: #{tpu_custom_call.1} parent=51 // pred_check_branch
          %410 = sbr.rel (%p408) target = $region56
        $region55: #{tpu_custom_call.1} parent=51 // pred_region
          %s411 = sand.u32 %s42, 1
          %s412 = scalar_lea.sflag [#allocation7], %s411
          %s413 = sand.u32 %s42, 1
          %s414 = smul.addr %s413, 128
          %s415 = scalar_lea.vmem [#allocation6], %s414
          %s416 = smul.u32 8, %s32
          %418 = vsyncadd %s412, 0
          %s419 = smul.addr %s416, 2
          %s420 = smul.addr %s419, 8
          %s421 = scalar_lea.hbm %s0, %s420
          %s422 = sshll.u32 %s421, 4
          %s423 = int_to_ptr.hbm [resolvable:$true] %s422
          %s424 = sshll.u32 %s415, 4
          %s425 = int_to_ptr.vmem [resolvable:$true] %s424
          %430 = dma.hbm_to_vmem [thread:$0]  %s423, 2048, %s425, %s412, 128, 128, 8
        $region56: #{tpu_custom_call.1} parent=51 // pred_fallthru
          _
        // Predicated region
        $region57: #{tpu_custom_call.1} parent=51 // pred_check
          %p431 = pneg %p80
        $region58: #{tpu_custom_call.1} parent=51 // pred_check_branch
          %433 = sbr.rel (%p431) target = $region60
        $region59: #{tpu_custom_call.1} parent=51 // pred_region
          %s434 = sand.u32 %s32, 1
          %s435 = scalar_lea.sflag [#allocation10], %s434
          %s436 = sand.u32 %s70, 1
          %s437 = smul.addr %s436, 128
          %s438 = scalar_lea.vmem [#allocation9], %s437
          %s439 = ssub.s32 1, %s32
          %s440 = smul.u32 8, %s439
          %442 = vsyncadd %s435, 0
          %s443 = smul.addr %s440, 2
          %s444 = smul.addr %s443, 8
          %s445 = scalar_lea.hbm %s1, %s444
          %s446 = sshll.u32 %s445, 4
          %s447 = int_to_ptr.hbm [resolvable:$true] %s446
          %s448 = sshll.u32 %s438, 4
          %s449 = int_to_ptr.vmem [resolvable:$true] %s448
          %454 = dma.hbm_to_vmem [thread:$0]  %s447, 2048, %s449, %s435, 128, 128, 8
        $region60: #{tpu_custom_call.1} parent=51 // pred_fallthru
          _
      $region52: #{tpu_custom_call.1} parent=5 // pred_fallthru
        _
      %p455 = scmp.le.s32.totalorder 1, %s32
      %p456 = scmp.lt.s32.totalorder %s32, 3
      %p457 = pnand %p455, %p456
      %p458 = pneg %p457
      // Predicated region
      $region61: #{tpu_custom_call.1} parent=5 // pred_check
        _
      $region62: #{tpu_custom_call.1} parent=5 // pred_check_branch
        %460 = sbr.rel (%p457) target = $region64
      $region63: #{tpu_custom_call.1} parent=5 // pred_region
        %s461 = ssub.s32 %s32, 1
        %s462 = sand.u32 %s45, 1
        %s463 = scalar_lea.sflag [#allocation7], %s462
        %s464 = sand.u32 %s45, 1
        %s465 = smul.addr %s464, 128
        %s466 = scalar_lea.vmem [#allocation6], %s465
        // Predicated region
        $region65: #{tpu_custom_call.1} parent=63 // pred_check
          %p467 = pneg %p58
        $region66: #{tpu_custom_call.1} parent=63 // pred_check_branch
          %469 = sbr.rel (%p467) target = $region68
        $region67: #{tpu_custom_call.1} parent=63 // pred_region
          %471 = dma.done %s463, 2048
        $region68: #{tpu_custom_call.1} parent=63 // pred_fallthru
          _
        %s472 = sand.u32 %s37, 1
        %s473 = scalar_lea.sflag [#allocation10], %s472
        %s474 = sand.u32 %s73, 1
        %s475 = smul.addr %s474, 128
        %s476 = scalar_lea.vmem [#allocation9], %s475
        // Predicated region
        $region69: #{tpu_custom_call.1} parent=63 // pred_check
          %p477 = pneg %p86
        $region70: #{tpu_custom_call.1} parent=63 // pred_check_branch
          %479 = sbr.rel (%p477) target = $region72
        $region71: #{tpu_custom_call.1} parent=63 // pred_region
          %481 = dma.done %s473, 2048
        $region72: #{tpu_custom_call.1} parent=63 // pred_fallthru
          _
        // Predicated region
        $region73: #{tpu_custom_call.1} parent=63 // pred_check
          %p482 = pneg %p128
        $region74: #{tpu_custom_call.1} parent=63 // pred_check_branch
          %484 = sbr.rel (%p482) target = $region76
        $region75: #{tpu_custom_call.1} parent=63 // pred_region
          %486 = dma.done [#allocation10], 2048
        $region76: #{tpu_custom_call.1} parent=63 // pred_fallthru
          _
        // Predicated region
        $region77: #{tpu_custom_call.1} parent=63 // pred_check
          %p487 = pneg %p191
        $region78: #{tpu_custom_call.1} parent=63 // pred_check_branch
          %489 = sbr.rel (%p487) target = $region80
        $region79: #{tpu_custom_call.1} parent=63 // pred_region
          %491 = dma.done [#allocation13], 2048
        $region80: #{tpu_custom_call.1} parent=63 // pred_fallthru
          _
        // Predicated region
        $region81: #{tpu_custom_call.1} parent=63 // pred_check
          %p492 = pneg %p212
        $region82: #{tpu_custom_call.1} parent=63 // pred_check_branch
          %494 = sbr.rel (%p492) target = $region84
        $region83: #{tpu_custom_call.1} parent=63 // pred_region
          %496 = dma.done [#allocation13], 2048
        $region84: #{tpu_custom_call.1} parent=63 // pred_fallthru
          _
        %s497 = sand.u32 %s45, 1
        %s498 = scalar_lea.sflag [#allocation7], %s497
        %s499 = sand.u32 %s45, 1
        %s500 = smul.addr %s499, 128
        %s501 = scalar_lea.vmem [#allocation6], %s500
        %p502 = pneg %p58
        %p503 = pneg %p55
        %s504 = sand.u32 %s37, 1
        %s505 = scalar_lea.sflag [#allocation10], %s504
        %s506 = sand.u32 %s73, 1
        %s507 = smul.addr %s506, 128
        %s508 = scalar_lea.vmem [#allocation9], %s507
        %p509 = pneg %p86
        %p510 = pneg %p83
        %p511 = pneg %p107
        %p512 = pneg %p104
        %p513 = pneg %p128
        %p514 = pneg %p125
        %p515 = pneg %p149
        %p516 = pneg %p146
        %p517 = pneg %p170
        %p518 = pneg %p167
        %p519 = pneg %p191
        %p520 = pneg %p188
        %p521 = pneg %p212
        %p522 = pneg %p209
        %p523 = pneg %p233
        %p524 = pneg %p230
        %p525 = pneg %p254
        %p526 = pneg %p251
        %p527 = pneg %p275
        %p528 = pneg %p272
        %p529 = pneg %p301
        %p530 = pneg %p298
        %s531 = sand.u32 %s288, 1
        %s532 = scalar_lea.sflag [#allocation8], %s531
        %s533 = sand.u32 %s288, 1
        %s534 = smul.addr %s533, 128
        %s535 = scalar_lea.vmem [#allocation15], %s534
        %p536 = pneg %p329
        %p537 = pneg %p326
        %s538 = sand.u32 %s316, 1
        %s539 = scalar_lea.sflag [#allocation17], %s538
        %s540 = sand.u32 %s316, 1
        %s541 = smul.addr %s540, 128
        %s542 = scalar_lea.vmem [#allocation16], %s541
        %s543 = smul.u32 8, %s37
        %s544 = ssub.s32 1, %s37
        %s545 = smul.u32 8, %s544
        %s546 = smul.u32 8, %s37
        %s547 = ssub.s32 1, %s37
        %s548 = smul.u32 8, %s547
        %p550 = scmp.eq.s32.totalorder %s37, 0
        // Predicated region
        $region85: #{tpu_custom_call.1} parent=63 // pred_check
          %p551 = pneg %p550
        $region86: #{tpu_custom_call.1} parent=63 // pred_check_branch
          %553 = sbr.rel (%p551) target = $region88
        $region87: #{tpu_custom_call.1} parent=63 // pred_region
          %vm554 = vcmask 523264
          %555 = vst.msk [vmem:[#allocation2] sm:$0xff] %vm554, 0.0
          %556 = vst.msk [vmem:[#allocation2 + $0x8] sm:$0xff] %vm554, 0.0
          %557 = vst [vmem:[#allocation3] sm:$0xff] 0.0
          %558 = vst [vmem:[#allocation3 + $0x8] sm:$0xff] 0.0
          %559 = vst.msk [vmem:[#allocation4] sm:$0xff] %vm554, 0.0
          %560 = vst.msk [vmem:[#allocation4 + $0x8] sm:$0xff] %vm554, 0.0
          %561 = vst [vmem:[#allocation5] sm:$0xff] 0.0
          %562 = vst [vmem:[#allocation5 + $0x8] sm:$0xff] 0.0
        $region88: #{tpu_custom_call.1} parent=63 // pred_fallthru
          _
        %v563 = vld [vmem:[%s466] sm:$0xff]
        %v564 = vld [vmem:[%s466 + $0x8] sm:$0xff]
        %v565 = vld [vmem:[%s466 + $0x10] sm:$0xff]
        %v566 = vld [vmem:[%s466 + $0x18] sm:$0xff]
        %v567 = vld [vmem:[%s466 + $0x20] sm:$0xff]
        %v568 = vld [vmem:[%s466 + $0x28] sm:$0xff]
        %v569 = vld [vmem:[%s466 + $0x30] sm:$0xff]
        %v570 = vld [vmem:[%s466 + $0x38] sm:$0xff]
        %v571 = vld [vmem:[%s466 + $0x40] sm:$0xff]
        %v572 = vld [vmem:[%s466 + $0x48] sm:$0xff]
        %v573 = vld [vmem:[%s466 + $0x50] sm:$0xff]
        %v574 = vld [vmem:[%s466 + $0x58] sm:$0xff]
        %v575 = vld [vmem:[%s466 + $0x60] sm:$0xff]
        %v576 = vld [vmem:[%s466 + $0x68] sm:$0xff]
        %v577 = vld [vmem:[%s466 + $0x70] sm:$0xff]
        %v578 = vld [vmem:[%s466 + $0x78] sm:$0xff]
        %v579 = vpack.c.bf16 %v564, %v563
        %v580 = vpack.c.bf16 %v566, %v565
        %v581 = vpack.c.bf16 %v568, %v567
        %v582 = vpack.c.bf16 %v570, %v569
        %v583 = vpack.c.bf16 %v572, %v571
        %v584 = vpack.c.bf16 %v574, %v573
        %v585 = vpack.c.bf16 %v576, %v575
        %v586 = vpack.c.bf16 %v578, %v577
        %v587 = vld [vmem:[%s476] sm:$0xff]
        %v588 = vld [vmem:[%s476 + $0x8] sm:$0xff]
        %v589 = vld [vmem:[%s476 + $0x10] sm:$0xff]
        %v590 = vld [vmem:[%s476 + $0x18] sm:$0xff]
        %v591 = vld [vmem:[%s476 + $0x20] sm:$0xff]
        %v592 = vld [vmem:[%s476 + $0x28] sm:$0xff]
        %v593 = vld [vmem:[%s476 + $0x30] sm:$0xff]
        %v594 = vld [vmem:[%s476 + $0x38] sm:$0xff]
        %v595 = vld [vmem:[%s476 + $0x40] sm:$0xff]
        %v596 = vld [vmem:[%s476 + $0x48] sm:$0xff]
        %v597 = vld [vmem:[%s476 + $0x50] sm:$0xff]
        %v598 = vld [vmem:[%s476 + $0x58] sm:$0xff]
        %v599 = vld [vmem:[%s476 + $0x60] sm:$0xff]
        %v600 = vld [vmem:[%s476 + $0x68] sm:$0xff]
        %v601 = vld [vmem:[%s476 + $0x70] sm:$0xff]
        %v602 = vld [vmem:[%s476 + $0x78] sm:$0xff]
        %v603 = vpack.c.bf16 %v588, %v587
        %v604 = vpack.c.bf16 %v590, %v589
        %v605 = vpack.c.bf16 %v592, %v591
        %v606 = vpack.c.bf16 %v594, %v593
        %v607 = vpack.c.bf16 %v596, %v595
        %v608 = vpack.c.bf16 %v598, %v597
        %v609 = vpack.c.bf16 %v600, %v599
        %v610 = vpack.c.bf16 %v602, %v601
        %v611 = vld [vmem:[%s2] sm:$0xff]
        %v612 = vld [vmem:[%s2 + $0x8] sm:$0xff]
        %v613 = vld [vmem:[%s2 + $0x10] sm:$0xff]
        %v614 = vld [vmem:[%s2 + $0x18] sm:$0xff]
        %v615 = vld [vmem:[%s2 + $0x20] sm:$0xff]
        %v616 = vld [vmem:[%s2 + $0x28] sm:$0xff]
        %v617 = vld [vmem:[%s2 + $0x30] sm:$0xff]
        %v618 = vld [vmem:[%s2 + $0x38] sm:$0xff]
        %v619 = vld [vmem:[%s2 + $0x40] sm:$0xff]
        %v620 = vld [vmem:[%s2 + $0x48] sm:$0xff]
        %v621 = vld [vmem:[%s2 + $0x50] sm:$0xff]
        %v622 = vld [vmem:[%s2 + $0x58] sm:$0xff]
        %v623 = vld [vmem:[%s2 + $0x60] sm:$0xff]
        %v624 = vld [vmem:[%s2 + $0x68] sm:$0xff]
        %v625 = vld [vmem:[%s2 + $0x70] sm:$0xff]
        %v626 = vld [vmem:[%s2 + $0x78] sm:$0xff]
        %v627 = vld [vmem:[%s5] sm:$0xf]
        %v629 = vperm.slane %v627, 0
        %v630 = vperm.slane %v627, 1
        %v631 = vperm.slane %v627, 2
        %v632 = vperm.slane %v627, 3
        %v653 = vunpack.c.l.b16 %v611
        %v654 = vunpack.c.h.b16 %v611
        %v655 = vunpack.c.l.b16 %v612
        %v656 = vunpack.c.h.b16 %v612
        %v657 = vunpack.c.l.b16 %v613
        %v658 = vunpack.c.h.b16 %v613
        %v659 = vunpack.c.l.b16 %v614
        %v660 = vunpack.c.h.b16 %v614
        %v661 = vunpack.c.l.b16 %v615
        %v662 = vunpack.c.h.b16 %v615
        %v663 = vunpack.c.l.b16 %v616
        %v664 = vunpack.c.h.b16 %v616
        %v665 = vunpack.c.l.b16 %v617
        %v666 = vunpack.c.h.b16 %v617
        %v667 = vunpack.c.l.b16 %v618
        %v668 = vunpack.c.h.b16 %v618
        %v669 = vunpack.c.l.b16 %v619
        %v670 = vunpack.c.h.b16 %v619
        %v671 = vunpack.c.l.b16 %v620
        %v672 = vunpack.c.h.b16 %v620
        %v673 = vunpack.c.l.b16 %v621
        %v674 = vunpack.c.h.b16 %v621
        %v675 = vunpack.c.l.b16 %v622
        %v676 = vunpack.c.h.b16 %v622
        %v677 = vunpack.c.l.b16 %v623
        %v678 = vunpack.c.h.b16 %v623
        %v679 = vunpack.c.l.b16 %v624
        %v680 = vunpack.c.h.b16 %v624
        %v681 = vunpack.c.l.b16 %v625
        %v682 = vunpack.c.h.b16 %v625
        %v683 = vunpack.c.l.b16 %v626
        %v684 = vunpack.c.h.b16 %v626
        %v685 = vpack.c.b16 %v657, %v653
        %v686 = vpack.c.b16 %v658, %v654
        %v687 = vpack.c.b16 %v659, %v655
        %v688 = vpack.c.b16 %v660, %v656
        %v689 = vpack.c.b16 %v665, %v661
        %v690 = vpack.c.b16 %v666, %v662
        %v691 = vpack.c.b16 %v667, %v663
        %v692 = vpack.c.b16 %v668, %v664
        %v693 = vpack.c.b16 %v673, %v669
        %v694 = vpack.c.b16 %v674, %v670
        %v695 = vpack.c.b16 %v675, %v671
        %v696 = vpack.c.b16 %v676, %v672
        %v697 = vpack.c.b16 %v681, %v677
        %v698 = vpack.c.b16 %v682, %v678
        %v699 = vpack.c.b16 %v683, %v679
        %v700 = vpack.c.b16 %v684, %v680
        %vm717 = vcmask 523264
        %v719 = vsel %vm717, %v579, 0
        %v722 = vsel %vm717, %v580, 0
        %v725 = vsel %vm717, %v581, 0
        %v728 = vsel %vm717, %v582, 0
        %v731 = vsel %vm717, %v583, 0
        %v734 = vsel %vm717, %v584, 0
        %v737 = vsel %vm717, %v585, 0
        %v740 = vsel %vm717, %v586, 0
        %742 = vmatpush.bf16.msra.mxu0 0
        %743 = vmatpush.bf16.msra.mxu0 0
        %744 = vmatpush.bf16.msra.mxu0 0
        %745 = vmatpush.bf16.msra.mxu0 0
        %746 = vmatpush.bf16.msra.mxu0 %v697
        %747 = vmatpush.bf16.msra.mxu0 %v693
        %748 = vmatpush.bf16.msra.mxu0 %v689
        %749 = vmatpush.bf16.msra.mxu0 %v685
        %750 = vmatmul.bf16.gmra.mxu0 %v719
        %v751 = vpop.f32.mrf.mxu0
        %v752 = vadd.f32 %v629, %v751
        %v753 = vpop.f32.mrf.mxu0
        %v754 = vadd.f32 %v629, %v753
        %755 = vmatmul.bf16.gmra.mxu0 %v722
        %v756 = vpop.f32.mrf.mxu0
        %v757 = vadd.f32 %v629, %v756
        %v758 = vpop.f32.mrf.mxu0
        %v759 = vadd.f32 %v629, %v758
        %760 = vmatmul.bf16.gmra.mxu0 %v725
        %v761 = vpop.f32.mrf.mxu0
        %v762 = vadd.f32 %v629, %v761
        %v763 = vpop.f32.mrf.mxu0
        %v764 = vadd.f32 %v629, %v763
        %765 = vmatmul.bf16.gmra.mxu0 %v728
        %v766 = vpop.f32.mrf.mxu0
        %v767 = vadd.f32 %v629, %v766
        %v768 = vpop.f32.mrf.mxu0
        %v769 = vadd.f32 %v629, %v768
        %770 = vmatmul.bf16.gmra.mxu0 %v731
        %v771 = vpop.f32.mrf.mxu0
        %v772 = vadd.f32 %v629, %v771
        %v773 = vpop.f32.mrf.mxu0
        %v774 = vadd.f32 %v629, %v773
        %775 = vmatmul.bf16.gmra.mxu0 %v734
        %v776 = vpop.f32.mrf.mxu0
        %v777 = vadd.f32 %v629, %v776
        %v778 = vpop.f32.mrf.mxu0
        %v779 = vadd.f32 %v629, %v778
        %780 = vmatmul.bf16.gmra.mxu0 %v737
        %v781 = vpop.f32.mrf.mxu0
        %v782 = vadd.f32 %v629, %v781
        %v783 = vpop.f32.mrf.mxu0
        %v784 = vadd.f32 %v629, %v783
        %785 = vmatmul.bf16.gmra.mxu0 %v740
        %v786 = vpop.f32.mrf.mxu0
        %v787 = vadd.f32 %v629, %v786
        %v788 = vpop.f32.mrf.mxu0
        %v789 = vadd.f32 %v629, %v788
        %790 = vdwg.mxu0
        %791 = vmatpush.bf16.msra.mxu0 0
        %792 = vmatpush.bf16.msra.mxu0 0
        %793 = vmatpush.bf16.msra.mxu0 0
        %794 = vmatpush.bf16.msra.mxu0 0
        %795 = vmatpush.bf16.msra.mxu0 %v698
        %796 = vmatpush.bf16.msra.mxu0 %v694
        %797 = vmatpush.bf16.msra.mxu0 %v690
        %798 = vmatpush.bf16.msra.mxu0 %v686
        %799 = vmatmul.bf16.gmra.mxu0 %v719
        %v800 = vpop.f32.mrf.mxu0
        %v801 = vadd.f32 %v630, %v800
        %v802 = vpop.f32.mrf.mxu0
        %v803 = vadd.f32 %v630, %v802
        %804 = vmatmul.bf16.gmra.mxu0 %v722
        %v805 = vpop.f32.mrf.mxu0
        %v806 = vadd.f32 %v630, %v805
        %v807 = vpop.f32.mrf.mxu0
        %v808 = vadd.f32 %v630, %v807
        %809 = vmatmul.bf16.gmra.mxu0 %v725
        %v810 = vpop.f32.mrf.mxu0
        %v811 = vadd.f32 %v630, %v810
        %v812 = vpop.f32.mrf.mxu0
        %v813 = vadd.f32 %v630, %v812
        %814 = vmatmul.bf16.gmra.mxu0 %v728
        %v815 = vpop.f32.mrf.mxu0
        %v816 = vadd.f32 %v630, %v815
        %v817 = vpop.f32.mrf.mxu0
        %v818 = vadd.f32 %v630, %v817
        %819 = vmatmul.bf16.gmra.mxu0 %v731
        %v820 = vpop.f32.mrf.mxu0
        %v821 = vadd.f32 %v630, %v820
        %v822 = vpop.f32.mrf.mxu0
        %v823 = vadd.f32 %v630, %v822
        %824 = vmatmul.bf16.gmra.mxu0 %v734
        %v825 = vpop.f32.mrf.mxu0
        %v826 = vadd.f32 %v630, %v825
        %v827 = vpop.f32.mrf.mxu0
        %v828 = vadd.f32 %v630, %v827
        %829 = vmatmul.bf16.gmra.mxu0 %v737
        %v830 = vpop.f32.mrf.mxu0
        %v831 = vadd.f32 %v630, %v830
        %v832 = vpop.f32.mrf.mxu0
        %v833 = vadd.f32 %v630, %v832
        %834 = vmatmul.bf16.gmra.mxu0 %v740
        %v835 = vpop.f32.mrf.mxu0
        %v836 = vadd.f32 %v630, %v835
        %v837 = vpop.f32.mrf.mxu0
        %v838 = vadd.f32 %v630, %v837
        %839 = vdwg.mxu0
        %840 = vmatpush.bf16.msra.mxu0 0
        %841 = vmatpush.bf16.msra.mxu0 0
        %842 = vmatpush.bf16.msra.mxu0 0
        %843 = vmatpush.bf16.msra.mxu0 0
        %844 = vmatpush.bf16.msra.mxu0 %v699
        %845 = vmatpush.bf16.msra.mxu0 %v695
        %846 = vmatpush.bf16.msra.mxu0 %v691
        %847 = vmatpush.bf16.msra.mxu0 %v687
        %848 = vmatmul.bf16.gmra.mxu0 %v719
        %v849 = vpop.f32.mrf.mxu0
        %v850 = vadd.f32 %v631, %v849
        %v851 = vpop.f32.mrf.mxu0
        %v852 = vadd.f32 %v631, %v851
        %853 = vmatmul.bf16.gmra.mxu0 %v722
        %v854 = vpop.f32.mrf.mxu0
        %v855 = vadd.f32 %v631, %v854
        %v856 = vpop.f32.mrf.mxu0
        %v857 = vadd.f32 %v631, %v856
        %858 = vmatmul.bf16.gmra.mxu0 %v725
        %v859 = vpop.f32.mrf.mxu0
        %v860 = vadd.f32 %v631, %v859
        %v861 = vpop.f32.mrf.mxu0
        %v862 = vadd.f32 %v631, %v861
        %863 = vmatmul.bf16.gmra.mxu0 %v728
        %v864 = vpop.f32.mrf.mxu0
        %v865 = vadd.f32 %v631, %v864
        %v866 = vpop.f32.mrf.mxu0
        %v867 = vadd.f32 %v631, %v866
        %868 = vmatmul.bf16.gmra.mxu0 %v731
        %v869 = vpop.f32.mrf.mxu0
        %v870 = vadd.f32 %v631, %v869
        %v871 = vpop.f32.mrf.mxu0
        %v872 = vadd.f32 %v631, %v871
        %873 = vmatmul.bf16.gmra.mxu0 %v734
        %v874 = vpop.f32.mrf.mxu0
        %v875 = vadd.f32 %v631, %v874
        %v876 = vpop.f32.mrf.mxu0
        %v877 = vadd.f32 %v631, %v876
        %878 = vmatmul.bf16.gmra.mxu0 %v737
        %v879 = vpop.f32.mrf.mxu0
        %v880 = vadd.f32 %v631, %v879
        %v881 = vpop.f32.mrf.mxu0
        %v882 = vadd.f32 %v631, %v881
        %883 = vmatmul.bf16.gmra.mxu0 %v740
        %v884 = vpop.f32.mrf.mxu0
        %v885 = vadd.f32 %v631, %v884
        %v886 = vpop.f32.mrf.mxu0
        %v887 = vadd.f32 %v631, %v886
        %888 = vdwg.mxu0
        %889 = vmatpush.bf16.msra.mxu0 0
        %890 = vmatpush.bf16.msra.mxu0 0
        %891 = vmatpush.bf16.msra.mxu0 0
        %892 = vmatpush.bf16.msra.mxu0 0
        %893 = vmatpush.bf16.msra.mxu0 %v700
        %894 = vmatpush.bf16.msra.mxu0 %v696
        %895 = vmatpush.bf16.msra.mxu0 %v692
        %896 = vmatpush.bf16.msra.mxu0 %v688
        %897 = vmatmul.bf16.gmra.mxu0 %v719
        %v898 = vpop.f32.mrf.mxu0
        %v899 = vadd.f32 %v632, %v898
        %v900 = vpop.f32.mrf.mxu0
        %v901 = vadd.f32 %v632, %v900
        %902 = vmatmul.bf16.gmra.mxu0 %v722
        %v903 = vpop.f32.mrf.mxu0
        %v904 = vadd.f32 %v632, %v903
        %v905 = vpop.f32.mrf.mxu0
        %v906 = vadd.f32 %v632, %v905
        %907 = vmatmul.bf16.gmra.mxu0 %v725
        %v908 = vpop.f32.mrf.mxu0
        %v909 = vadd.f32 %v632, %v908
        %v910 = vpop.f32.mrf.mxu0
        %v911 = vadd.f32 %v632, %v910
        %912 = vmatmul.bf16.gmra.mxu0 %v728
        %v913 = vpop.f32.mrf.mxu0
        %v914 = vadd.f32 %v632, %v913
        %v915 = vpop.f32.mrf.mxu0
        %v916 = vadd.f32 %v632, %v915
        %917 = vmatmul.bf16.gmra.mxu0 %v731
        %v918 = vpop.f32.mrf.mxu0
        %v919 = vadd.f32 %v632, %v918
        %v920 = vpop.f32.mrf.mxu0
        %v921 = vadd.f32 %v632, %v920
        %922 = vmatmul.bf16.gmra.mxu0 %v734
        %v923 = vpop.f32.mrf.mxu0
        %v924 = vadd.f32 %v632, %v923
        %v925 = vpop.f32.mrf.mxu0
        %v926 = vadd.f32 %v632, %v925
        %927 = vmatmul.bf16.gmra.mxu0 %v737
        %v928 = vpop.f32.mrf.mxu0
        %v929 = vadd.f32 %v632, %v928
        %v930 = vpop.f32.mrf.mxu0
        %v931 = vadd.f32 %v632, %v930
        %932 = vmatmul.bf16.gmra.mxu0 %v740
        %v933 = vpop.f32.mrf.mxu0
        %v934 = vadd.f32 %v632, %v933
        %v935 = vpop.f32.mrf.mxu0
        %v936 = vadd.f32 %v632, %v935
        %937 = vdwg.mxu0
        %v938 = vld [vmem:[#allocation12] sm:$0xff]
        %v939 = vld [vmem:[#allocation12 + $0x8] sm:$0xff]
        %v940 = vld [vmem:[#allocation12 + $0x10] sm:$0xff]
        %v941 = vld [vmem:[#allocation12 + $0x18] sm:$0xff]
        %v942 = vld [vmem:[#allocation12 + $0x20] sm:$0xff]
        %v943 = vld [vmem:[#allocation12 + $0x28] sm:$0xff]
        %v944 = vld [vmem:[#allocation12 + $0x30] sm:$0xff]
        %v945 = vld [vmem:[#allocation12 + $0x38] sm:$0xff]
        %v946 = vld [vmem:[#allocation12 + $0x40] sm:$0xff]
        %v947 = vld [vmem:[#allocation12 + $0x48] sm:$0xff]
        %v948 = vld [vmem:[#allocation12 + $0x50] sm:$0xff]
        %v949 = vld [vmem:[#allocation12 + $0x58] sm:$0xff]
        %v950 = vld [vmem:[#allocation12 + $0x60] sm:$0xff]
        %v951 = vld [vmem:[#allocation12 + $0x68] sm:$0xff]
        %v952 = vld [vmem:[#allocation12 + $0x70] sm:$0xff]
        %v953 = vld [vmem:[#allocation12 + $0x78] sm:$0xff]
        %v954 = vld [vmem:[%s9] sm:$0xf]
        %v956 = vperm.slane %v954, 0
        %v957 = vperm.slane %v954, 1
        %v958 = vperm.slane %v954, 2
        %v959 = vperm.slane %v954, 3
        %v980 = vunpack.c.l.b16 %v938
        %v981 = vunpack.c.h.b16 %v938
        %v982 = vunpack.c.l.b16 %v939
        %v983 = vunpack.c.h.b16 %v939
        %v984 = vunpack.c.l.b16 %v940
        %v985 = vunpack.c.h.b16 %v940
        %v986 = vunpack.c.l.b16 %v941
        %v987 = vunpack.c.h.b16 %v941
        %v988 = vunpack.c.l.b16 %v942
        %v989 = vunpack.c.h.b16 %v942
        %v990 = vunpack.c.l.b16 %v943
        %v991 = vunpack.c.h.b16 %v943
        %v992 = vunpack.c.l.b16 %v944
        %v993 = vunpack.c.h.b16 %v944
        %v994 = vunpack.c.l.b16 %v945
        %v995 = vunpack.c.h.b16 %v945
        %v996 = vunpack.c.l.b16 %v946
        %v997 = vunpack.c.h.b16 %v946
        %v998 = vunpack.c.l.b16 %v947
        %v999 = vunpack.c.h.b16 %v947
        %v1000 = vunpack.c.l.b16 %v948
        %v1001 = vunpack.c.h.b16 %v948
        %v1002 = vunpack.c.l.b16 %v949
        %v1003 = vunpack.c.h.b16 %v949
        %v1004 = vunpack.c.l.b16 %v950
        %v1005 = vunpack.c.h.b16 %v950
        %v1006 = vunpack.c.l.b16 %v951
        %v1007 = vunpack.c.h.b16 %v951
        %v1008 = vunpack.c.l.b16 %v952
        %v1009 = vunpack.c.h.b16 %v952
        %v1010 = vunpack.c.l.b16 %v953
        %v1011 = vunpack.c.h.b16 %v953
        %v1012 = vpack.c.b16 %v984, %v980
        %v1013 = vpack.c.b16 %v985, %v981
        %v1014 = vpack.c.b16 %v986, %v982
        %v1015 = vpack.c.b16 %v987, %v983
        %v1016 = vpack.c.b16 %v992, %v988
        %v1017 = vpack.c.b16 %v993, %v989
        %v1018 = vpack.c.b16 %v994, %v990
        %v1019 = vpack.c.b16 %v995, %v991
        %v1020 = vpack.c.b16 %v1000, %v996
        %v1021 = vpack.c.b16 %v1001, %v997
        %v1022 = vpack.c.b16 %v1002, %v998
        %v1023 = vpack.c.b16 %v1003, %v999
        %v1024 = vpack.c.b16 %v1008, %v1004
        %v1025 = vpack.c.b16 %v1009, %v1005
        %v1026 = vpack.c.b16 %v1010, %v1006
        %v1027 = vpack.c.b16 %v1011, %v1007
        %v1045 = vsel %vm717, %v603, 0
        %v1048 = vsel %vm717, %v604, 0
        %v1051 = vsel %vm717, %v605, 0
        %v1054 = vsel %vm717, %v606, 0
        %v1057 = vsel %vm717, %v607, 0
        %v1060 = vsel %vm717, %v608, 0
        %v1063 = vsel %vm717, %v609, 0
        %v1066 = vsel %vm717, %v610, 0
        %1068 = vmatpush.bf16.msra.mxu0 0
        %1069 = vmatpush.bf16.msra.mxu0 0
        %1070 = vmatpush.bf16.msra.mxu0 0
        %1071 = vmatpush.bf16.msra.mxu0 0
        %1072 = vmatpush.bf16.msra.mxu0 %v1024
        %1073 = vmatpush.bf16.msra.mxu0 %v1020
        %1074 = vmatpush.bf16.msra.mxu0 %v1016
        %1075 = vmatpush.bf16.msra.mxu0 %v1012
        %1076 = vmatmul.bf16.gmra.mxu0 %v1045
        %v1077 = vpop.f32.mrf.mxu0
        %v1078 = vadd.f32 %v956, %v1077
        %v1079 = vpop.f32.mrf.mxu0
        %v1080 = vadd.f32 %v956, %v1079
        %1081 = vmatmul.bf16.gmra.mxu0 %v1048
        %v1082 = vpop.f32.mrf.mxu0
        %v1083 = vadd.f32 %v956, %v1082
        %v1084 = vpop.f32.mrf.mxu0
        %v1085 = vadd.f32 %v956, %v1084
        %1086 = vmatmul.bf16.gmra.mxu0 %v1051
        %v1087 = vpop.f32.mrf.mxu0
        %v1088 = vadd.f32 %v956, %v1087
        %v1089 = vpop.f32.mrf.mxu0
        %v1090 = vadd.f32 %v956, %v1089
        %1091 = vmatmul.bf16.gmra.mxu0 %v1054
        %v1092 = vpop.f32.mrf.mxu0
        %v1093 = vadd.f32 %v956, %v1092
        %v1094 = vpop.f32.mrf.mxu0
        %v1095 = vadd.f32 %v956, %v1094
        %1096 = vmatmul.bf16.gmra.mxu0 %v1057
        %v1097 = vpop.f32.mrf.mxu0
        %v1098 = vadd.f32 %v956, %v1097
        %v1099 = vpop.f32.mrf.mxu0
        %v1100 = vadd.f32 %v956, %v1099
        %1101 = vmatmul.bf16.gmra.mxu0 %v1060
        %v1102 = vpop.f32.mrf.mxu0
        %v1103 = vadd.f32 %v956, %v1102
        %v1104 = vpop.f32.mrf.mxu0
        %v1105 = vadd.f32 %v956, %v1104
        %1106 = vmatmul.bf16.gmra.mxu0 %v1063
        %v1107 = vpop.f32.mrf.mxu0
        %v1108 = vadd.f32 %v956, %v1107
        %v1109 = vpop.f32.mrf.mxu0
        %v1110 = vadd.f32 %v956, %v1109
        %1111 = vmatmul.bf16.gmra.mxu0 %v1066
        %v1112 = vpop.f32.mrf.mxu0
        %v1113 = vadd.f32 %v956, %v1112
        %v1114 = vpop.f32.mrf.mxu0
        %v1115 = vadd.f32 %v956, %v1114
        %1116 = vdwg.mxu0
        %1117 = vmatpush.bf16.msra.mxu0 0
        %1118 = vmatpush.bf16.msra.mxu0 0
        %1119 = vmatpush.bf16.msra.mxu0 0
        %1120 = vmatpush.bf16.msra.mxu0 0
        %1121 = vmatpush.bf16.msra.mxu0 %v1025
        %1122 = vmatpush.bf16.msra.mxu0 %v1021
        %1123 = vmatpush.bf16.msra.mxu0 %v1017
        %1124 = vmatpush.bf16.msra.mxu0 %v1013
        %1125 = vmatmul.bf16.gmra.mxu0 %v1045
        %v1126 = vpop.f32.mrf.mxu0
        %v1127 = vadd.f32 %v957, %v1126
        %v1128 = vpop.f32.mrf.mxu0
        %v1129 = vadd.f32 %v957, %v1128
        %1130 = vmatmul.bf16.gmra.mxu0 %v1048
        %v1131 = vpop.f32.mrf.mxu0
        %v1132 = vadd.f32 %v957, %v1131
        %v1133 = vpop.f32.mrf.mxu0
        %v1134 = vadd.f32 %v957, %v1133
        %1135 = vmatmul.bf16.gmra.mxu0 %v1051
        %v1136 = vpop.f32.mrf.mxu0
        %v1137 = vadd.f32 %v957, %v1136
        %v1138 = vpop.f32.mrf.mxu0
        %v1139 = vadd.f32 %v957, %v1138
        %1140 = vmatmul.bf16.gmra.mxu0 %v1054
        %v1141 = vpop.f32.mrf.mxu0
        %v1142 = vadd.f32 %v957, %v1141
        %v1143 = vpop.f32.mrf.mxu0
        %v1144 = vadd.f32 %v957, %v1143
        %1145 = vmatmul.bf16.gmra.mxu0 %v1057
        %v1146 = vpop.f32.mrf.mxu0
        %v1147 = vadd.f32 %v957, %v1146
        %v1148 = vpop.f32.mrf.mxu0
        %v1149 = vadd.f32 %v957, %v1148
        %1150 = vmatmul.bf16.gmra.mxu0 %v1060
        %v1151 = vpop.f32.mrf.mxu0
        %v1152 = vadd.f32 %v957, %v1151
        %v1153 = vpop.f32.mrf.mxu0
        %v1154 = vadd.f32 %v957, %v1153
        %1155 = vmatmul.bf16.gmra.mxu0 %v1063
        %v1156 = vpop.f32.mrf.mxu0
        %v1157 = vadd.f32 %v957, %v1156
        %v1158 = vpop.f32.mrf.mxu0
        %v1159 = vadd.f32 %v957, %v1158
        %1160 = vmatmul.bf16.gmra.mxu0 %v1066
        %v1161 = vpop.f32.mrf.mxu0
        %v1162 = vadd.f32 %v957, %v1161
        %v1163 = vpop.f32.mrf.mxu0
        %v1164 = vadd.f32 %v957, %v1163
        %1165 = vdwg.mxu0
        %1166 = vmatpush.bf16.msra.mxu0 0
        %1167 = vmatpush.bf16.msra.mxu0 0
        %1168 = vmatpush.bf16.msra.mxu0 0
        %1169 = vmatpush.bf16.msra.mxu0 0
        %1170 = vmatpush.bf16.msra.mxu0 %v1026
        %1171 = vmatpush.bf16.msra.mxu0 %v1022
        %1172 = vmatpush.bf16.msra.mxu0 %v1018
        %1173 = vmatpush.bf16.msra.mxu0 %v1014
        %1174 = vmatmul.bf16.gmra.mxu0 %v1045
        %v1175 = vpop.f32.mrf.mxu0
        %v1176 = vadd.f32 %v958, %v1175
        %v1177 = vpop.f32.mrf.mxu0
        %v1178 = vadd.f32 %v958, %v1177
        %1179 = vmatmul.bf16.gmra.mxu0 %v1048
        %v1180 = vpop.f32.mrf.mxu0
        %v1181 = vadd.f32 %v958, %v1180
        %v1182 = vpop.f32.mrf.mxu0
        %v1183 = vadd.f32 %v958, %v1182
        %1184 = vmatmul.bf16.gmra.mxu0 %v1051
        %v1185 = vpop.f32.mrf.mxu0
        %v1186 = vadd.f32 %v958, %v1185
        %v1187 = vpop.f32.mrf.mxu0
        %v1188 = vadd.f32 %v958, %v1187
        %1189 = vmatmul.bf16.gmra.mxu0 %v1054
        %v1190 = vpop.f32.mrf.mxu0
        %v1191 = vadd.f32 %v958, %v1190
        %v1192 = vpop.f32.mrf.mxu0
        %v1193 = vadd.f32 %v958, %v1192
        %1194 = vmatmul.bf16.gmra.mxu0 %v1057
        %v1195 = vpop.f32.mrf.mxu0
        %v1196 = vadd.f32 %v958, %v1195
        %v1197 = vpop.f32.mrf.mxu0
        %v1198 = vadd.f32 %v958, %v1197
        %1199 = vmatmul.bf16.gmra.mxu0 %v1060
        %v1200 = vpop.f32.mrf.mxu0
        %v1201 = vadd.f32 %v958, %v1200
        %v1202 = vpop.f32.mrf.mxu0
        %v1203 = vadd.f32 %v958, %v1202
        %1204 = vmatmul.bf16.gmra.mxu0 %v1063
        %v1205 = vpop.f32.mrf.mxu0
        %v1206 = vadd.f32 %v958, %v1205
        %v1207 = vpop.f32.mrf.mxu0
        %v1208 = vadd.f32 %v958, %v1207
        %1209 = vmatmul.bf16.gmra.mxu0 %v1066
        %v1210 = vpop.f32.mrf.mxu0
        %v1211 = vadd.f32 %v958, %v1210
        %v1212 = vpop.f32.mrf.mxu0
        %v1213 = vadd.f32 %v958, %v1212
        %1214 = vdwg.mxu0
        %1215 = vmatpush.bf16.msra.mxu0 0
        %1216 = vmatpush.bf16.msra.mxu0 0
        %1217 = vmatpush.bf16.msra.mxu0 0
        %1218 = vmatpush.bf16.msra.mxu0 0
        %1219 = vmatpush.bf16.msra.mxu0 %v1027
        %1220 = vmatpush.bf16.msra.mxu0 %v1023
        %1221 = vmatpush.bf16.msra.mxu0 %v1019
        %1222 = vmatpush.bf16.msra.mxu0 %v1015
        %1223 = vmatmul.bf16.gmra.mxu0 %v1045
        %v1224 = vpop.f32.mrf.mxu0
        %v1225 = vadd.f32 %v959, %v1224
        %v1226 = vpop.f32.mrf.mxu0
        %v1227 = vadd.f32 %v959, %v1226
        %1228 = vmatmul.bf16.gmra.mxu0 %v1048
        %v1229 = vpop.f32.mrf.mxu0
        %v1230 = vadd.f32 %v959, %v1229
        %v1231 = vpop.f32.mrf.mxu0
        %v1232 = vadd.f32 %v959, %v1231
        %1233 = vmatmul.bf16.gmra.mxu0 %v1051
        %v1234 = vpop.f32.mrf.mxu0
        %v1235 = vadd.f32 %v959, %v1234
        %v1236 = vpop.f32.mrf.mxu0
        %v1237 = vadd.f32 %v959, %v1236
        %1238 = vmatmul.bf16.gmra.mxu0 %v1054
        %v1239 = vpop.f32.mrf.mxu0
        %v1240 = vadd.f32 %v959, %v1239
        %v1241 = vpop.f32.mrf.mxu0
        %v1242 = vadd.f32 %v959, %v1241
        %1243 = vmatmul.bf16.gmra.mxu0 %v1057
        %v1244 = vpop.f32.mrf.mxu0
        %v1245 = vadd.f32 %v959, %v1244
        %v1246 = vpop.f32.mrf.mxu0
        %v1247 = vadd.f32 %v959, %v1246
        %1248 = vmatmul.bf16.gmra.mxu0 %v1060
        %v1249 = vpop.f32.mrf.mxu0
        %v1250 = vadd.f32 %v959, %v1249
        %v1251 = vpop.f32.mrf.mxu0
        %v1252 = vadd.f32 %v959, %v1251
        %1253 = vmatmul.bf16.gmra.mxu0 %v1063
        %v1254 = vpop.f32.mrf.mxu0
        %v1255 = vadd.f32 %v959, %v1254
        %v1256 = vpop.f32.mrf.mxu0
        %v1257 = vadd.f32 %v959, %v1256
        %1258 = vmatmul.bf16.gmra.mxu0 %v1066
        %v1259 = vpop.f32.mrf.mxu0
        %v1260 = vadd.f32 %v959, %v1259
        %v1261 = vpop.f32.mrf.mxu0
        %v1262 = vadd.f32 %v959, %v1261
        %1263 = vdwg.mxu0
        %v1264 = vld [vmem:[#allocation11] sm:$0xff]
        %v1265 = vld [vmem:[#allocation11 + $0x8] sm:$0xff]
        %v1266 = vld [vmem:[#allocation11 + $0x10] sm:$0xff]
        %v1267 = vld [vmem:[#allocation11 + $0x18] sm:$0xff]
        %v1268 = vld [vmem:[#allocation11 + $0x20] sm:$0xff]
        %v1269 = vld [vmem:[#allocation11 + $0x28] sm:$0xff]
        %v1270 = vld [vmem:[#allocation11 + $0x30] sm:$0xff]
        %v1271 = vld [vmem:[#allocation11 + $0x38] sm:$0xff]
        %v1272 = vld [vmem:[#allocation11 + $0x40] sm:$0xff]
        %v1273 = vld [vmem:[#allocation11 + $0x48] sm:$0xff]
        %v1274 = vld [vmem:[#allocation11 + $0x50] sm:$0xff]
        %v1275 = vld [vmem:[#allocation11 + $0x58] sm:$0xff]
        %v1276 = vld [vmem:[#allocation11 + $0x60] sm:$0xff]
        %v1277 = vld [vmem:[#allocation11 + $0x68] sm:$0xff]
        %v1278 = vld [vmem:[#allocation11 + $0x70] sm:$0xff]
        %v1279 = vld [vmem:[#allocation11 + $0x78] sm:$0xff]
        %v1280 = vld [vmem:[#allocation14] sm:$0xff]
        %v1281 = vld [vmem:[#allocation14 + $0x8] sm:$0xff]
        %v1282 = vld [vmem:[#allocation14 + $0x10] sm:$0xff]
        %v1283 = vld [vmem:[#allocation14 + $0x18] sm:$0xff]
        %v1284 = vld [vmem:[#allocation14 + $0x20] sm:$0xff]
        %v1285 = vld [vmem:[#allocation14 + $0x28] sm:$0xff]
        %v1286 = vld [vmem:[#allocation14 + $0x30] sm:$0xff]
        %v1287 = vld [vmem:[#allocation14 + $0x38] sm:$0xff]
        %v1288 = vld [vmem:[#allocation14 + $0x40] sm:$0xff]
        %v1289 = vld [vmem:[#allocation14 + $0x48] sm:$0xff]
        %v1290 = vld [vmem:[#allocation14 + $0x50] sm:$0xff]
        %v1291 = vld [vmem:[#allocation14 + $0x58] sm:$0xff]
        %v1292 = vld [vmem:[#allocation14 + $0x60] sm:$0xff]
        %v1293 = vld [vmem:[#allocation14 + $0x68] sm:$0xff]
        %v1294 = vld [vmem:[#allocation14 + $0x70] sm:$0xff]
        %v1295 = vld [vmem:[#allocation14 + $0x78] sm:$0xff]
        %v1296 = vld [vmem:[%s4] sm:$0xf]
        %v1297 = vld [vmem:[%s4 + $0x4] sm:$0xf]
        %v1298 = vld [vmem:[%s4 + $0x8] sm:$0xf]
        %v1299 = vld [vmem:[%s4 + $0xc] sm:$0xf]
        %v1300 = vld [vmem:[%s4 + $0x10] sm:$0xf]
        %v1301 = vld [vmem:[%s4 + $0x14] sm:$0xf]
        %v1302 = vld [vmem:[%s4 + $0x18] sm:$0xf]
        %v1303 = vld [vmem:[%s4 + $0x1c] sm:$0xf]
        %v1304 = vld [vmem:[%s4 + $0x20] sm:$0xf]
        %v1305 = vld [vmem:[%s4 + $0x24] sm:$0xf]
        %v1306 = vld [vmem:[%s4 + $0x28] sm:$0xf]
        %v1307 = vld [vmem:[%s4 + $0x2c] sm:$0xf]
        %v1308 = vld [vmem:[%s4 + $0x30] sm:$0xf]
        %v1309 = vld [vmem:[%s4 + $0x34] sm:$0xf]
        %v1310 = vld [vmem:[%s4 + $0x38] sm:$0xf]
        %v1311 = vld [vmem:[%s4 + $0x3c] sm:$0xf]
        %v1312 = vld [vmem:[%s8] sm:$0xf]
        %v1313 = vld [vmem:[%s8 + $0x4] sm:$0xf]
        %v1314 = vld [vmem:[%s8 + $0x8] sm:$0xf]
        %v1315 = vld [vmem:[%s8 + $0xc] sm:$0xf]
        %v1316 = vld [vmem:[%s8 + $0x10] sm:$0xf]
        %v1317 = vld [vmem:[%s8 + $0x14] sm:$0xf]
        %v1318 = vld [vmem:[%s8 + $0x18] sm:$0xf]
        %v1319 = vld [vmem:[%s8 + $0x1c] sm:$0xf]
        %v1320 = vld [vmem:[%s8 + $0x20] sm:$0xf]
        %v1321 = vld [vmem:[%s8 + $0x24] sm:$0xf]
        %v1322 = vld [vmem:[%s8 + $0x28] sm:$0xf]
        %v1323 = vld [vmem:[%s8 + $0x2c] sm:$0xf]
        %v1324 = vld [vmem:[%s8 + $0x30] sm:$0xf]
        %v1325 = vld [vmem:[%s8 + $0x34] sm:$0xf]
        %v1326 = vld [vmem:[%s8 + $0x38] sm:$0xf]
        %v1327 = vld [vmem:[%s8 + $0x3c] sm:$0xf]
        %v1328 = vld [vmem:[%s10] sm:$0xff]
        %v1329 = vld [vmem:[%s10 + $0x8] sm:$0xff]
        %s1330 = smul.u32 %s37, 8
        %s1331 = ssub.s32 8, %s1330
        %v1332 = vstv %s1330
        %v1333 = vadd.s32 %v1332, 1
        %v1334 = vadd.s32 %v1332, 2
        %v1335 = vadd.s32 %v1332, 3
        %v1336 = vadd.s32 %v1332, 4
        %v1337 = vadd.s32 %v1332, 5
        %v1338 = vadd.s32 %v1332, 6
        %v1339 = vadd.s32 %v1332, 7
        %vm1340 = vcmp.gt.s32.totalorder %v1328, %v1332
        %vm1341 = vcmp.gt.s32.totalorder %v1329, %v1332
        %vm1342 = vcmp.gt.s32.totalorder %v1328, %v1333
        %vm1343 = vcmp.gt.s32.totalorder %v1329, %v1333
        %vm1344 = vcmp.gt.s32.totalorder %v1328, %v1334
        %vm1345 = vcmp.gt.s32.totalorder %v1329, %v1334
        %vm1346 = vcmp.gt.s32.totalorder %v1328, %v1335
        %vm1347 = vcmp.gt.s32.totalorder %v1329, %v1335
        %vm1348 = vcmp.gt.s32.totalorder %v1328, %v1336
        %vm1349 = vcmp.gt.s32.totalorder %v1329, %v1336
        %vm1350 = vcmp.gt.s32.totalorder %v1328, %v1337
        %vm1351 = vcmp.gt.s32.totalorder %v1329, %v1337
        %vm1352 = vcmp.gt.s32.totalorder %v1328, %v1338
        %vm1353 = vcmp.gt.s32.totalorder %v1329, %v1338
        %vm1354 = vcmp.gt.s32.totalorder %v1328, %v1339
        %vm1355 = vcmp.gt.s32.totalorder %v1329, %v1339
        %v1356 = vstv %s1331
        %v1357 = vadd.s32 %v1356, 1
        %v1358 = vadd.s32 %v1356, 2
        %v1359 = vadd.s32 %v1356, 3
        %v1360 = vadd.s32 %v1356, 4
        %v1361 = vadd.s32 %v1356, 5
        %v1362 = vadd.s32 %v1356, 6
        %v1363 = vadd.s32 %v1356, 7
        %vm1364 = vcmp.gt.s32.totalorder %v1328, %v1356
        %vm1365 = vcmp.gt.s32.totalorder %v1329, %v1356
        %vm1366 = vcmp.gt.s32.totalorder %v1328, %v1357
        %vm1367 = vcmp.gt.s32.totalorder %v1329, %v1357
        %vm1368 = vcmp.gt.s32.totalorder %v1328, %v1358
        %vm1369 = vcmp.gt.s32.totalorder %v1329, %v1358
        %vm1370 = vcmp.gt.s32.totalorder %v1328, %v1359
        %vm1371 = vcmp.gt.s32.totalorder %v1329, %v1359
        %vm1372 = vcmp.gt.s32.totalorder %v1328, %v1360
        %vm1373 = vcmp.gt.s32.totalorder %v1329, %v1360
        %vm1374 = vcmp.gt.s32.totalorder %v1328, %v1361
        %vm1375 = vcmp.gt.s32.totalorder %v1329, %v1361
        %vm1376 = vcmp.gt.s32.totalorder %v1328, %v1362
        %vm1377 = vcmp.gt.s32.totalorder %v1329, %v1362
        %vm1378 = vcmp.gt.s32.totalorder %v1328, %v1363
        %vm1379 = vcmp.gt.s32.totalorder %v1329, %v1363
        %v1380 = vld [vmem:[#allocation2] sm:$0xff]
        %v1381 = vld [vmem:[#allocation2 + $0x8] sm:$0xff]
        %v1382 = vld [vmem:[#allocation3] sm:$0xff]
        %v1383 = vld [vmem:[#allocation3 + $0x8] sm:$0xff]
        %v1384 = vld [vmem:[#allocation4] sm:$0xff]
        %v1385 = vld [vmem:[#allocation4 + $0x8] sm:$0xff]
        %v1386 = vld [vmem:[#allocation5] sm:$0xff]
        %v1387 = vld [vmem:[#allocation5 + $0x8] sm:$0xff]
        %v1388 = vpack.c.bf16 %v1381, %v1380
        %v1405 = vunpack.c.l.b16 %v1264
        %v1406 = vunpack.c.h.b16 %v1264
        %v1407 = vunpack.c.l.b16 %v1265
        %v1408 = vunpack.c.h.b16 %v1265
        %v1409 = vunpack.c.l.b16 %v1266
        %v1410 = vunpack.c.h.b16 %v1266
        %v1411 = vunpack.c.l.b16 %v1267
        %v1412 = vunpack.c.h.b16 %v1267
        %v1413 = vunpack.c.l.b16 %v1268
        %v1414 = vunpack.c.h.b16 %v1268
        %v1415 = vunpack.c.l.b16 %v1269
        %v1416 = vunpack.c.h.b16 %v1269
        %v1417 = vunpack.c.l.b16 %v1270
        %v1418 = vunpack.c.h.b16 %v1270
        %v1419 = vunpack.c.l.b16 %v1271
        %v1420 = vunpack.c.h.b16 %v1271
        %v1421 = vunpack.c.l.b16 %v1272
        %v1422 = vunpack.c.h.b16 %v1272
        %v1423 = vunpack.c.l.b16 %v1273
        %v1424 = vunpack.c.h.b16 %v1273
        %v1425 = vunpack.c.l.b16 %v1274
        %v1426 = vunpack.c.h.b16 %v1274
        %v1427 = vunpack.c.l.b16 %v1275
        %v1428 = vunpack.c.h.b16 %v1275
        %v1429 = vunpack.c.l.b16 %v1276
        %v1430 = vunpack.c.h.b16 %v1276
        %v1431 = vunpack.c.l.b16 %v1277
        %v1432 = vunpack.c.h.b16 %v1277
        %v1433 = vunpack.c.l.b16 %v1278
        %v1434 = vunpack.c.h.b16 %v1278
        %v1435 = vunpack.c.l.b16 %v1279
        %v1436 = vunpack.c.h.b16 %v1279
        %v1437 = vpack.c.b16 %v1409, %v1405
        %v1438 = vpack.c.b16 %v1410, %v1406
        %v1439 = vpack.c.b16 %v1411, %v1407
        %v1440 = vpack.c.b16 %v1412, %v1408
        %v1441 = vpack.c.b16 %v1417, %v1413
        %v1442 = vpack.c.b16 %v1418, %v1414
        %v1443 = vpack.c.b16 %v1419, %v1415
        %v1444 = vpack.c.b16 %v1420, %v1416
        %v1445 = vpack.c.b16 %v1425, %v1421
        %v1446 = vpack.c.b16 %v1426, %v1422
        %v1447 = vpack.c.b16 %v1427, %v1423
        %v1448 = vpack.c.b16 %v1428, %v1424
        %v1449 = vpack.c.b16 %v1433, %v1429
        %v1450 = vpack.c.b16 %v1434, %v1430
        %v1451 = vpack.c.b16 %v1435, %v1431
        %v1452 = vpack.c.b16 %v1436, %v1432
        %v1470 = vsel %vm717, %v1388, 0
        %1472 = vmatpush.bf16.msra.mxu0 0
        %1473 = vmatpush.bf16.msra.mxu0 0
        %1474 = vmatpush.bf16.msra.mxu0 0
        %1475 = vmatpush.bf16.msra.mxu0 0
        %1476 = vmatpush.bf16.msra.mxu0 %v1449
        %1477 = vmatpush.bf16.msra.mxu0 %v1445
        %1478 = vmatpush.bf16.msra.mxu0 %v1441
        %1479 = vmatpush.bf16.msra.mxu0 %v1437
        %1480 = vmatmul.bf16.gmra.mxu0 %v1470
        %v1481 = vpop.f32.mrf.mxu0
        %v1482 = vadd.f32 0.0, %v1481
        %v1483 = vpop.f32.mrf.mxu0
        %v1484 = vadd.f32 0.0, %v1483
        %1485 = vdwg.mxu0
        %1486 = vmatpush.bf16.msra.mxu0 0
        %1487 = vmatpush.bf16.msra.mxu0 0
        %1488 = vmatpush.bf16.msra.mxu0 0
        %1489 = vmatpush.bf16.msra.mxu0 0
        %1490 = vmatpush.bf16.msra.mxu0 %v1450
        %1491 = vmatpush.bf16.msra.mxu0 %v1446
        %1492 = vmatpush.bf16.msra.mxu0 %v1442
        %1493 = vmatpush.bf16.msra.mxu0 %v1438
        %1494 = vmatmul.bf16.gmra.mxu0 %v1470
        %v1495 = vpop.f32.mrf.mxu0
        %v1496 = vadd.f32 0.0, %v1495
        %v1497 = vpop.f32.mrf.mxu0
        %v1498 = vadd.f32 0.0, %v1497
        %1499 = vdwg.mxu0
        %1500 = vmatpush.bf16.msra.mxu0 0
        %1501 = vmatpush.bf16.msra.mxu0 0
        %1502 = vmatpush.bf16.msra.mxu0 0
        %1503 = vmatpush.bf16.msra.mxu0 0
        %1504 = vmatpush.bf16.msra.mxu0 %v1451
        %1505 = vmatpush.bf16.msra.mxu0 %v1447
        %1506 = vmatpush.bf16.msra.mxu0 %v1443
        %1507 = vmatpush.bf16.msra.mxu0 %v1439
        %1508 = vmatmul.bf16.gmra.mxu0 %v1470
        %v1509 = vpop.f32.mrf.mxu0
        %v1510 = vadd.f32 0.0, %v1509
        %v1511 = vpop.f32.mrf.mxu0
        %v1512 = vadd.f32 0.0, %v1511
        %1513 = vdwg.mxu0
        %1514 = vmatpush.bf16.msra.mxu0 0
        %1515 = vmatpush.bf16.msra.mxu0 0
        %1516 = vmatpush.bf16.msra.mxu0 0
        %1517 = vmatpush.bf16.msra.mxu0 0
        %1518 = vmatpush.bf16.msra.mxu0 %v1452
        %1519 = vmatpush.bf16.msra.mxu0 %v1448
        %1520 = vmatpush.bf16.msra.mxu0 %v1444
        %1521 = vmatpush.bf16.msra.mxu0 %v1440
        %1522 = vmatmul.bf16.gmra.mxu0 %v1470
        %v1523 = vpop.f32.mrf.mxu0
        %v1524 = vadd.f32 0.0, %v1523
        %v1525 = vpop.f32.mrf.mxu0
        %v1526 = vadd.f32 0.0, %v1525
        %1527 = vdwg.mxu0
        %v1528 = vadd.f32 %v752, %v1482
        %v1529 = vadd.f32 %v801, %v1496
        %v1530 = vadd.f32 %v850, %v1510
        %v1531 = vadd.f32 %v899, %v1524
        %v1532 = vadd.f32 %v754, %v1484
        %v1533 = vadd.f32 %v803, %v1498
        %v1534 = vadd.f32 %v852, %v1512
        %v1535 = vadd.f32 %v901, %v1526
        %v1536 = vpack.c.bf16 %v1385, %v1384
        %v1553 = vunpack.c.l.b16 %v1280
        %v1554 = vunpack.c.h.b16 %v1280
        %v1555 = vunpack.c.l.b16 %v1281
        %v1556 = vunpack.c.h.b16 %v1281
        %v1557 = vunpack.c.l.b16 %v1282
        %v1558 = vunpack.c.h.b16 %v1282
        %v1559 = vunpack.c.l.b16 %v1283
        %v1560 = vunpack.c.h.b16 %v1283
        %v1561 = vunpack.c.l.b16 %v1284
        %v1562 = vunpack.c.h.b16 %v1284
        %v1563 = vunpack.c.l.b16 %v1285
        %v1564 = vunpack.c.h.b16 %v1285
        %v1565 = vunpack.c.l.b16 %v1286
        %v1566 = vunpack.c.h.b16 %v1286
        %v1567 = vunpack.c.l.b16 %v1287
        %v1568 = vunpack.c.h.b16 %v1287
        %v1569 = vunpack.c.l.b16 %v1288
        %v1570 = vunpack.c.h.b16 %v1288
        %v1571 = vunpack.c.l.b16 %v1289
        %v1572 = vunpack.c.h.b16 %v1289
        %v1573 = vunpack.c.l.b16 %v1290
        %v1574 = vunpack.c.h.b16 %v1290
        %v1575 = vunpack.c.l.b16 %v1291
        %v1576 = vunpack.c.h.b16 %v1291
        %v1577 = vunpack.c.l.b16 %v1292
        %v1578 = vunpack.c.h.b16 %v1292
        %v1579 = vunpack.c.l.b16 %v1293
        %v1580 = vunpack.c.h.b16 %v1293
        %v1581 = vunpack.c.l.b16 %v1294
        %v1582 = vunpack.c.h.b16 %v1294
        %v1583 = vunpack.c.l.b16 %v1295
        %v1584 = vunpack.c.h.b16 %v1295
        %v1585 = vpack.c.b16 %v1557, %v1553
        %v1586 = vpack.c.b16 %v1558, %v1554
        %v1587 = vpack.c.b16 %v1559, %v1555
        %v1588 = vpack.c.b16 %v1560, %v1556
        %v1589 = vpack.c.b16 %v1565, %v1561
        %v1590 = vpack.c.b16 %v1566, %v1562
        %v1591 = vpack.c.b16 %v1567, %v1563
        %v1592 = vpack.c.b16 %v1568, %v1564
        %v1593 = vpack.c.b16 %v1573, %v1569
        %v1594 = vpack.c.b16 %v1574, %v1570
        %v1595 = vpack.c.b16 %v1575, %v1571
        %v1596 = vpack.c.b16 %v1576, %v1572
        %v1597 = vpack.c.b16 %v1581, %v1577
        %v1598 = vpack.c.b16 %v1582, %v1578
        %v1599 = vpack.c.b16 %v1583, %v1579
        %v1600 = vpack.c.b16 %v1584, %v1580
        %v1618 = vsel %vm717, %v1536, 0
        %1620 = vmatpush.bf16.msra.mxu0 0
        %1621 = vmatpush.bf16.msra.mxu0 0
        %1622 = vmatpush.bf16.msra.mxu0 0
        %1623 = vmatpush.bf16.msra.mxu0 0
        %1624 = vmatpush.bf16.msra.mxu0 %v1597
        %1625 = vmatpush.bf16.msra.mxu0 %v1593
        %1626 = vmatpush.bf16.msra.mxu0 %v1589
        %1627 = vmatpush.bf16.msra.mxu0 %v1585
        %1628 = vmatmul.bf16.gmra.mxu0 %v1618
        %v1629 = vpop.f32.mrf.mxu0
        %v1630 = vadd.f32 0.0, %v1629
        %v1631 = vpop.f32.mrf.mxu0
        %v1632 = vadd.f32 0.0, %v1631
        %1633 = vdwg.mxu0
        %1634 = vmatpush.bf16.msra.mxu0 0
        %1635 = vmatpush.bf16.msra.mxu0 0
        %1636 = vmatpush.bf16.msra.mxu0 0
        %1637 = vmatpush.bf16.msra.mxu0 0
        %1638 = vmatpush.bf16.msra.mxu0 %v1598
        %1639 = vmatpush.bf16.msra.mxu0 %v1594
        %1640 = vmatpush.bf16.msra.mxu0 %v1590
        %1641 = vmatpush.bf16.msra.mxu0 %v1586
        %1642 = vmatmul.bf16.gmra.mxu0 %v1618
        %v1643 = vpop.f32.mrf.mxu0
        %v1644 = vadd.f32 0.0, %v1643
        %v1645 = vpop.f32.mrf.mxu0
        %v1646 = vadd.f32 0.0, %v1645
        %1647 = vdwg.mxu0
        %1648 = vmatpush.bf16.msra.mxu0 0
        %1649 = vmatpush.bf16.msra.mxu0 0
        %1650 = vmatpush.bf16.msra.mxu0 0
        %1651 = vmatpush.bf16.msra.mxu0 0
        %1652 = vmatpush.bf16.msra.mxu0 %v1599
        %1653 = vmatpush.bf16.msra.mxu0 %v1595
        %1654 = vmatpush.bf16.msra.mxu0 %v1591
        %1655 = vmatpush.bf16.msra.mxu0 %v1587
        %1656 = vmatmul.bf16.gmra.mxu0 %v1618
        %v1657 = vpop.f32.mrf.mxu0
        %v1658 = vadd.f32 0.0, %v1657
        %v1659 = vpop.f32.mrf.mxu0
        %v1660 = vadd.f32 0.0, %v1659
        %1661 = vdwg.mxu0
        %1662 = vmatpush.bf16.msra.mxu0 0
        %1663 = vmatpush.bf16.msra.mxu0 0
        %1664 = vmatpush.bf16.msra.mxu0 0
        %1665 = vmatpush.bf16.msra.mxu0 0
        %1666 = vmatpush.bf16.msra.mxu0 %v1600
        %1667 = vmatpush.bf16.msra.mxu0 %v1596
        %1668 = vmatpush.bf16.msra.mxu0 %v1592
        %1669 = vmatpush.bf16.msra.mxu0 %v1588
        %1670 = vmatmul.bf16.gmra.mxu0 %v1618
        %v1671 = vpop.f32.mrf.mxu0
        %v1672 = vadd.f32 0.0, %v1671
        %v1673 = vpop.f32.mrf.mxu0
        %v1674 = vadd.f32 0.0, %v1673
        %1675 = vdwg.mxu0
        %v1676 = vadd.f32 %v1113, %v1630
        %v1677 = vadd.f32 %v1162, %v1644
        %v1678 = vadd.f32 %v1211, %v1658
        %v1679 = vadd.f32 %v1260, %v1672
        %v1680 = vadd.f32 %v1115, %v1632
        %v1681 = vadd.f32 %v1164, %v1646
        %v1682 = vadd.f32 %v1213, %v1660
        %v1683 = vadd.f32 %v1262, %v1674
        %v1684 = vxor.u32 %v1528, 2147483648
        %v1685 = vxor.u32 %v1532, 2147483648
        %v1686 = vmul.f32 %v1684, 1.442695
        %v1687 = vpow.pop %v1686
        %v1688 = vmul.f32 %v1685, 1.442695
        %v1689 = vpow.pop %v1688
        %v1690 = vadd.f32 %v1687, 1.0
        %v1691 = vadd.f32 %v1689, 1.0
        %v1692 = vrcp.pop %v1690
        %v1693 = vmul.f32 %v1690, %v1692
        %v1694 = vsub.f32 1.0, %v1693
        %v1695 = vmul.f32 %v1692, %v1694
        %v1696 = vadd.f32 %v1692, %v1695
        %vm1697 = vweird.f32 %v1690
        %vm1698 = vweird.f32 %v1692
        %vm1699 = vmor %vm1697, %vm1698
        %v1700 = vsel %vm1699, %v1692, %v1696
        %v1701 = vand.u32 2147483647, %v1690
        %vm1702 = vcmp.eq.f32.partialorder %v1701, 8.507059e+37
        %v1703 = vand.u32 %v1690, 2147483648
        %v1704 = vor.u32 1.1754944e-38, %v1703
        %v1705 = vsel %vm1702, %v1704, %v1700
        %v1706 = vmul.f32 1.0, %v1705
        %v1707 = vrcp.pop %v1691
        %v1708 = vmul.f32 %v1691, %v1707
        %v1709 = vsub.f32 1.0, %v1708
        %v1710 = vmul.f32 %v1707, %v1709
        %v1711 = vadd.f32 %v1707, %v1710
        %vm1712 = vweird.f32 %v1691
        %vm1713 = vweird.f32 %v1707
        %vm1714 = vmor %vm1712, %vm1713
        %v1715 = vsel %vm1714, %v1707, %v1711
        %v1716 = vand.u32 2147483647, %v1691
        %vm1717 = vcmp.eq.f32.partialorder %v1716, 8.507059e+37
        %v1718 = vand.u32 %v1691, 2147483648
        %v1719 = vor.u32 1.1754944e-38, %v1718
        %v1720 = vsel %vm1717, %v1719, %v1715
        %v1721 = vmul.f32 1.0, %v1720
        %v1722 = vxor.u32 %v1529, 2147483648
        %v1723 = vxor.u32 %v1533, 2147483648
        %v1724 = vmul.f32 %v1722, 1.442695
        %v1725 = vpow.pop %v1724
        %v1726 = vmul.f32 %v1723, 1.442695
        %v1727 = vpow.pop %v1726
        %v1728 = vadd.f32 %v1725, 1.0
        %v1729 = vadd.f32 %v1727, 1.0
        %v1730 = vrcp.pop %v1728
        %v1731 = vmul.f32 %v1728, %v1730
        %v1732 = vsub.f32 1.0, %v1731
        %v1733 = vmul.f32 %v1730, %v1732
        %v1734 = vadd.f32 %v1730, %v1733
        %vm1735 = vweird.f32 %v1728
        %vm1736 = vweird.f32 %v1730
        %vm1737 = vmor %vm1735, %vm1736
        %v1738 = vsel %vm1737, %v1730, %v1734
        %v1739 = vand.u32 2147483647, %v1728
        %vm1740 = vcmp.eq.f32.partialorder %v1739, 8.507059e+37
        %v1741 = vand.u32 %v1728, 2147483648
        %v1742 = vor.u32 1.1754944e-38, %v1741
        %v1743 = vsel %vm1740, %v1742, %v1738
        %v1744 = vmul.f32 1.0, %v1743
        %v1745 = vrcp.pop %v1729
        %v1746 = vmul.f32 %v1729, %v1745
        %v1747 = vsub.f32 1.0, %v1746
        %v1748 = vmul.f32 %v1745, %v1747
        %v1749 = vadd.f32 %v1745, %v1748
        %vm1750 = vweird.f32 %v1729
        %vm1751 = vweird.f32 %v1745
        %vm1752 = vmor %vm1750, %vm1751
        %v1753 = vsel %vm1752, %v1745, %v1749
        %v1754 = vand.u32 2147483647, %v1729
        %vm1755 = vcmp.eq.f32.partialorder %v1754, 8.507059e+37
        %v1756 = vand.u32 %v1729, 2147483648
        %v1757 = vor.u32 1.1754944e-38, %v1756
        %v1758 = vsel %vm1755, %v1757, %v1753
        %v1759 = vmul.f32 1.0, %v1758
        %v1760 = vtanh.pop %v1530
        %v1761 = vtanh.pop %v1534
        %v1762 = vxor.u32 %v1531, 2147483648
        %v1763 = vxor.u32 %v1535, 2147483648
        %v1764 = vmul.f32 %v1762, 1.442695
        %v1765 = vpow.pop %v1764
        %v1766 = vmul.f32 %v1763, 1.442695
        %v1767 = vpow.pop %v1766
        %v1768 = vadd.f32 %v1765, 1.0
        %v1769 = vadd.f32 %v1767, 1.0
        %v1770 = vrcp.pop %v1768
        %v1771 = vmul.f32 %v1768, %v1770
        %v1772 = vsub.f32 1.0, %v1771
        %v1773 = vmul.f32 %v1770, %v1772
        %v1774 = vadd.f32 %v1770, %v1773
        %vm1775 = vweird.f32 %v1768
        %vm1776 = vweird.f32 %v1770
        %vm1777 = vmor %vm1775, %vm1776
        %v1778 = vsel %vm1777, %v1770, %v1774
        %v1779 = vand.u32 2147483647, %v1768
        %vm1780 = vcmp.eq.f32.partialorder %v1779, 8.507059e+37
        %v1781 = vand.u32 %v1768, 2147483648
        %v1782 = vor.u32 1.1754944e-38, %v1781
        %v1783 = vsel %vm1780, %v1782, %v1778
        %v1784 = vmul.f32 1.0, %v1783
        %v1785 = vrcp.pop %v1769
        %v1786 = vmul.f32 %v1769, %v1785
        %v1787 = vsub.f32 1.0, %v1786
        %v1788 = vmul.f32 %v1785, %v1787
        %v1789 = vadd.f32 %v1785, %v1788
        %vm1790 = vweird.f32 %v1769
        %vm1791 = vweird.f32 %v1785
        %vm1792 = vmor %vm1790, %vm1791
        %v1793 = vsel %vm1792, %v1785, %v1789
        %v1794 = vand.u32 2147483647, %v1769
        %vm1795 = vcmp.eq.f32.partialorder %v1794, 8.507059e+37
        %v1796 = vand.u32 %v1769, 2147483648
        %v1797 = vor.u32 1.1754944e-38, %v1796
        %v1798 = vsel %vm1795, %v1797, %v1793
        %v1799 = vmul.f32 1.0, %v1798
        %v1800 = vmul.f32 %v1706, %v1760
        %v1801 = vmul.f32 %v1721, %v1761
        %v1802 = vmul.f32 %v1744, %v1382
        %v1803 = vmul.f32 %v1759, %v1383
        %v1804 = vadd.f32 %v1800, %v1802
        %v1805 = vadd.f32 %v1801, %v1803
        %v1806 = vtanh.pop %v1804
        %v1807 = vtanh.pop %v1805
        %v1808 = vmul.f32 %v1784, %v1806
        %v1809 = vmul.f32 %v1799, %v1807
        %v1810 = vpack.c.bf16 %v1809, %v1808
        %v1827 = vunpack.c.l.b16 %v1296
        %v1828 = vunpack.c.l.b16 %v1297
        %v1829 = vunpack.c.l.b16 %v1298
        %v1830 = vunpack.c.l.b16 %v1299
        %v1831 = vunpack.c.l.b16 %v1300
        %v1832 = vunpack.c.l.b16 %v1301
        %v1833 = vunpack.c.l.b16 %v1302
        %v1834 = vunpack.c.l.b16 %v1303
        %v1835 = vunpack.c.l.b16 %v1304
        %v1836 = vunpack.c.l.b16 %v1305
        %v1837 = vunpack.c.l.b16 %v1306
        %v1838 = vunpack.c.l.b16 %v1307
        %v1839 = vunpack.c.l.b16 %v1308
        %v1840 = vunpack.c.l.b16 %v1309
        %v1841 = vunpack.c.l.b16 %v1310
        %v1842 = vunpack.c.l.b16 %v1311
        %v1843 = vpack.c.b16 %v1828, %v1827
        %v1844 = vpack.c.b16 %v1830, %v1829
        %v1845 = vpack.c.b16 %v1832, %v1831
        %v1846 = vpack.c.b16 %v1834, %v1833
        %v1847 = vpack.c.b16 %v1836, %v1835
        %v1848 = vpack.c.b16 %v1838, %v1837
        %v1849 = vpack.c.b16 %v1840, %v1839
        %v1850 = vpack.c.b16 %v1842, %v1841
        %1859 = vmatpush.bf16.msra.mxu0 %v1850
        %1860 = vmatpush.bf16.msra.mxu0 %v1849
        %1861 = vmatpush.bf16.msra.mxu0 %v1848
        %1862 = vmatpush.bf16.msra.mxu0 %v1847
        %1863 = vmatpush.bf16.msra.mxu0 %v1846
        %1864 = vmatpush.bf16.msra.mxu0 %v1845
        %1865 = vmatpush.bf16.msra.mxu0 %v1844
        %1866 = vmatpush.bf16.msra.mxu0 %v1843
        %1867 = vmatmul.bf16.gmra.mxu0 %v1810
        %v1868 = vpop.f32.mrf.mxu0
        %v1869 = vadd.f32 0.0, %v1868
        %v1870 = vpop.f32.mrf.mxu0
        %v1871 = vadd.f32 0.0, %v1870
        %1872 = vdwg.mxu0
        %v1873 = vxor.u32 %v1676, 2147483648
        %v1874 = vxor.u32 %v1680, 2147483648
        %v1875 = vmul.f32 %v1873, 1.442695
        %v1876 = vpow.pop %v1875
        %v1877 = vmul.f32 %v1874, 1.442695
        %v1878 = vpow.pop %v1877
        %v1879 = vadd.f32 %v1876, 1.0
        %v1880 = vadd.f32 %v1878, 1.0
        %v1881 = vrcp.pop %v1879
        %v1882 = vmul.f32 %v1879, %v1881
        %v1883 = vsub.f32 1.0, %v1882
        %v1884 = vmul.f32 %v1881, %v1883
        %v1885 = vadd.f32 %v1881, %v1884
        %vm1886 = vweird.f32 %v1879
        %vm1887 = vweird.f32 %v1881
        %vm1888 = vmor %vm1886, %vm1887
        %v1889 = vsel %vm1888, %v1881, %v1885
        %v1890 = vand.u32 2147483647, %v1879
        %vm1891 = vcmp.eq.f32.partialorder %v1890, 8.507059e+37
        %v1892 = vand.u32 %v1879, 2147483648
        %v1893 = vor.u32 1.1754944e-38, %v1892
        %v1894 = vsel %vm1891, %v1893, %v1889
        %v1895 = vmul.f32 1.0, %v1894
        %v1896 = vrcp.pop %v1880
        %v1897 = vmul.f32 %v1880, %v1896
        %v1898 = vsub.f32 1.0, %v1897
        %v1899 = vmul.f32 %v1896, %v1898
        %v1900 = vadd.f32 %v1896, %v1899
        %vm1901 = vweird.f32 %v1880
        %vm1902 = vweird.f32 %v1896
        %vm1903 = vmor %vm1901, %vm1902
        %v1904 = vsel %vm1903, %v1896, %v1900
        %v1905 = vand.u32 2147483647, %v1880
        %vm1906 = vcmp.eq.f32.partialorder %v1905, 8.507059e+37
        %v1907 = vand.u32 %v1880, 2147483648
        %v1908 = vor.u32 1.1754944e-38, %v1907
        %v1909 = vsel %vm1906, %v1908, %v1904
        %v1910 = vmul.f32 1.0, %v1909
        %v1911 = vxor.u32 %v1677, 2147483648
        %v1912 = vxor.u32 %v1681, 2147483648
        %v1913 = vmul.f32 %v1911, 1.442695
        %v1914 = vpow.pop %v1913
        %v1915 = vmul.f32 %v1912, 1.442695
        %v1916 = vpow.pop %v1915
        %v1917 = vadd.f32 %v1914, 1.0
        %v1918 = vadd.f32 %v1916, 1.0
        %v1919 = vrcp.pop %v1917
        %v1920 = vmul.f32 %v1917, %v1919
        %v1921 = vsub.f32 1.0, %v1920
        %v1922 = vmul.f32 %v1919, %v1921
        %v1923 = vadd.f32 %v1919, %v1922
        %vm1924 = vweird.f32 %v1917
        %vm1925 = vweird.f32 %v1919
        %vm1926 = vmor %vm1924, %vm1925
        %v1927 = vsel %vm1926, %v1919, %v1923
        %v1928 = vand.u32 2147483647, %v1917
        %vm1929 = vcmp.eq.f32.partialorder %v1928, 8.507059e+37
        %v1930 = vand.u32 %v1917, 2147483648
        %v1931 = vor.u32 1.1754944e-38, %v1930
        %v1932 = vsel %vm1929, %v1931, %v1927
        %v1933 = vmul.f32 1.0, %v1932
        %v1934 = vrcp.pop %v1918
        %v1935 = vmul.f32 %v1918, %v1934
        %v1936 = vsub.f32 1.0, %v1935
        %v1937 = vmul.f32 %v1934, %v1936
        %v1938 = vadd.f32 %v1934, %v1937
        %vm1939 = vweird.f32 %v1918
        %vm1940 = vweird.f32 %v1934
        %vm1941 = vmor %vm1939, %vm1940
        %v1942 = vsel %vm1941, %v1934, %v1938
        %v1943 = vand.u32 2147483647, %v1918
        %vm1944 = vcmp.eq.f32.partialorder %v1943, 8.507059e+37
        %v1945 = vand.u32 %v1918, 2147483648
        %v1946 = vor.u32 1.1754944e-38, %v1945
        %v1947 = vsel %vm1944, %v1946, %v1942
        %v1948 = vmul.f32 1.0, %v1947
        %v1949 = vtanh.pop %v1678
        %v1950 = vtanh.pop %v1682
        %v1951 = vxor.u32 %v1679, 2147483648
        %v1952 = vxor.u32 %v1683, 2147483648
        %v1953 = vmul.f32 %v1951, 1.442695
        %v1954 = vpow.pop %v1953
        %v1955 = vmul.f32 %v1952, 1.442695
        %v1956 = vpow.pop %v1955
        %v1957 = vadd.f32 %v1954, 1.0
        %v1958 = vadd.f32 %v1956, 1.0
        %v1959 = vrcp.pop %v1957
        %v1960 = vmul.f32 %v1957, %v1959
        %v1961 = vsub.f32 1.0, %v1960
        %v1962 = vmul.f32 %v1959, %v1961
        %v1963 = vadd.f32 %v1959, %v1962
        %vm1964 = vweird.f32 %v1957
        %vm1965 = vweird.f32 %v1959
        %vm1966 = vmor %vm1964, %vm1965
        %v1967 = vsel %vm1966, %v1959, %v1963
        %v1968 = vand.u32 2147483647, %v1957
        %vm1969 = vcmp.eq.f32.partialorder %v1968, 8.507059e+37
        %v1970 = vand.u32 %v1957, 2147483648
        %v1971 = vor.u32 1.1754944e-38, %v1970
        %v1972 = vsel %vm1969, %v1971, %v1967
        %v1973 = vmul.f32 1.0, %v1972
        %v1974 = vrcp.pop %v1958
        %v1975 = vmul.f32 %v1958, %v1974
        %v1976 = vsub.f32 1.0, %v1975
        %v1977 = vmul.f32 %v1974, %v1976
        %v1978 = vadd.f32 %v1974, %v1977
        %vm1979 = vweird.f32 %v1958
        %vm1980 = vweird.f32 %v1974
        %vm1981 = vmor %vm1979, %vm1980
        %v1982 = vsel %vm1981, %v1974, %v1978
        %v1983 = vand.u32 2147483647, %v1958
        %vm1984 = vcmp.eq.f32.partialorder %v1983, 8.507059e+37
        %v1985 = vand.u32 %v1958, 2147483648
        %v1986 = vor.u32 1.1754944e-38, %v1985
        %v1987 = vsel %vm1984, %v1986, %v1982
        %v1988 = vmul.f32 1.0, %v1987
        %v1989 = vmul.f32 %v1895, %v1949
        %v1990 = vmul.f32 %v1910, %v1950
        %v1991 = vmul.f32 %v1933, %v1386
        %v1992 = vmul.f32 %v1948, %v1387
        %v1993 = vadd.f32 %v1989, %v1991
        %v1994 = vadd.f32 %v1990, %v1992
        %v1995 = vtanh.pop %v1993
        %v1996 = vtanh.pop %v1994
        %v1997 = vmul.f32 %v1973, %v1995
        %v1998 = vmul.f32 %v1988, %v1996
        %v1999 = vpack.c.bf16 %v1998, %v1997
        %v2016 = vunpack.c.l.b16 %v1312
        %v2017 = vunpack.c.l.b16 %v1313
        %v2018 = vunpack.c.l.b16 %v1314
        %v2019 = vunpack.c.l.b16 %v1315
        %v2020 = vunpack.c.l.b16 %v1316
        %v2021 = vunpack.c.l.b16 %v1317
        %v2022 = vunpack.c.l.b16 %v1318
        %v2023 = vunpack.c.l.b16 %v1319
        %v2024 = vunpack.c.l.b16 %v1320
        %v2025 = vunpack.c.l.b16 %v1321
        %v2026 = vunpack.c.l.b16 %v1322
        %v2027 = vunpack.c.l.b16 %v1323
        %v2028 = vunpack.c.l.b16 %v1324
        %v2029 = vunpack.c.l.b16 %v1325
        %v2030 = vunpack.c.l.b16 %v1326
        %v2031 = vunpack.c.l.b16 %v1327
        %v2032 = vpack.c.b16 %v2017, %v2016
        %v2033 = vpack.c.b16 %v2019, %v2018
        %v2034 = vpack.c.b16 %v2021, %v2020
        %v2035 = vpack.c.b16 %v2023, %v2022
        %v2036 = vpack.c.b16 %v2025, %v2024
        %v2037 = vpack.c.b16 %v2027, %v2026
        %v2038 = vpack.c.b16 %v2029, %v2028
        %v2039 = vpack.c.b16 %v2031, %v2030
        %2048 = vmatpush.bf16.msra.mxu0 %v2039
        %2049 = vmatpush.bf16.msra.mxu0 %v2038
        %2050 = vmatpush.bf16.msra.mxu0 %v2037
        %2051 = vmatpush.bf16.msra.mxu0 %v2036
        %2052 = vmatpush.bf16.msra.mxu0 %v2035
        %2053 = vmatpush.bf16.msra.mxu0 %v2034
        %2054 = vmatpush.bf16.msra.mxu0 %v2033
        %2055 = vmatpush.bf16.msra.mxu0 %v2032
        %2056 = vmatmul.bf16.gmra.mxu0 %v1999
        %v2057 = vpop.f32.mrf.mxu0
        %v2058 = vadd.f32 0.0, %v2057
        %v2059 = vpop.f32.mrf.mxu0
        %v2060 = vadd.f32 0.0, %v2059
        %2061 = vdwg.mxu0
        %v2062 = vsel %vm1340, 1, 0
        %v2063 = vsel %vm1341, 1, 0
        %2064 = vset.pattern.permute.xlu0 0
        %2065 = vperm.xlu0 %2064, %v2062
        %v2066 = vpop.permute.xlu0 %2065
        %2067 = vset.pattern.permute.xlu0 0
        %2068 = vperm.xlu0 %2067, %v2063
        %v2069 = vpop.permute.xlu0 %2068
        %vm2070 = vcmp.eq.s32.totalorder %v2066, 1
        %vm2071 = vcmp.eq.s32.totalorder %v2069, 1
        %v2072 = vsel %vm2070, %v1804, %v1382
        %v2073 = vsel %vm2071, %v1805, %v1383
        %v2074 = vsel %vm2070, %v1869, %v1380
        %v2075 = vsel %vm2071, %v1871, %v1381
        %v2076 = vsel %vm2070, %v1869, 0.0
        %v2077 = vsel %vm2071, %v1871, 0.0
        %2078 = vst.msk [vmem:[%s535] sm:$0xff] %vm717, %v2076
        %2079 = vst.msk [vmem:[%s535 + $0x8] sm:$0xff] %vm717, %v2077
        %v2080 = vsel %vm1378, 1, 0
        %v2081 = vsel %vm1379, 1, 0
        %2082 = vset.pattern.permute.xlu0 0
        %2083 = vperm.xlu0 %2082, %v2080
        %v2084 = vpop.permute.xlu0 %2083
        %2085 = vset.pattern.permute.xlu0 0
        %2086 = vperm.xlu0 %2085, %v2081
        %v2087 = vpop.permute.xlu0 %2086
        %vm2088 = vcmp.eq.s32.totalorder %v2084, 1
        %vm2089 = vcmp.eq.s32.totalorder %v2087, 1
        %v2090 = vsel %vm2088, %v1993, %v1386
        %v2091 = vsel %vm2089, %v1994, %v1387
        %v2092 = vsel %vm2088, %v2058, %v1384
        %v2093 = vsel %vm2089, %v2060, %v1385
        %v2094 = vsel %vm2088, %v2058, 0.0
        %v2095 = vsel %vm2089, %v2060, 0.0
        %s2096 = scalar_lea.vmem %s542, 112 [#allocation16]
        %2097 = vst.msk [vmem:[%s2096] sm:$0xff] %vm717, %v2094
        %2098 = vst.msk [vmem:[%s2096 + $0x8] sm:$0xff] %vm717, %v2095
        %v2099 = vpack.c.bf16 %v2075, %v2074
        %v2101 = vsel %vm717, %v2099, 0
        %2103 = vmatpush.bf16.msra.mxu0 0
        %2104 = vmatpush.bf16.msra.mxu0 0
        %2105 = vmatpush.bf16.msra.mxu0 0
        %2106 = vmatpush.bf16.msra.mxu0 0
        %2107 = vmatpush.bf16.msra.mxu0 %v1449
        %2108 = vmatpush.bf16.msra.mxu0 %v1445
        %2109 = vmatpush.bf16.msra.mxu0 %v1441
        %2110 = vmatpush.bf16.msra.mxu0 %v1437
        %2111 = vmatmul.bf16.gmra.mxu0 %v2101
        %v2112 = vpop.f32.mrf.mxu0
        %v2113 = vadd.f32 0.0, %v2112
        %v2114 = vpop.f32.mrf.mxu0
        %v2115 = vadd.f32 0.0, %v2114
        %2116 = vdwg.mxu0
        %2117 = vmatpush.bf16.msra.mxu0 0
        %2118 = vmatpush.bf16.msra.mxu0 0
        %2119 = vmatpush.bf16.msra.mxu0 0
        %2120 = vmatpush.bf16.msra.mxu0 0
        %2121 = vmatpush.bf16.msra.mxu0 %v1450
        %2122 = vmatpush.bf16.msra.mxu0 %v1446
        %2123 = vmatpush.bf16.msra.mxu0 %v1442
        %2124 = vmatpush.bf16.msra.mxu0 %v1438
        %2125 = vmatmul.bf16.gmra.mxu0 %v2101
        %v2126 = vpop.f32.mrf.mxu0
        %v2127 = vadd.f32 0.0, %v2126
        %v2128 = vpop.f32.mrf.mxu0
        %v2129 = vadd.f32 0.0, %v2128
        %2130 = vdwg.mxu0
        %2131 = vmatpush.bf16.msra.mxu0 0
        %2132 = vmatpush.bf16.msra.mxu0 0
        %2133 = vmatpush.bf16.msra.mxu0 0
        %2134 = vmatpush.bf16.msra.mxu0 0
        %2135 = vmatpush.bf16.msra.mxu0 %v1451
        %2136 = vmatpush.bf16.msra.mxu0 %v1447
        %2137 = vmatpush.bf16.msra.mxu0 %v1443
        %2138 = vmatpush.bf16.msra.mxu0 %v1439
        %2139 = vmatmul.bf16.gmra.mxu0 %v2101
        %v2140 = vpop.f32.mrf.mxu0
        %v2141 = vadd.f32 0.0, %v2140
        %v2142 = vpop.f32.mrf.mxu0
        %v2143 = vadd.f32 0.0, %v2142
        %2144 = vdwg.mxu0
        %2145 = vmatpush.bf16.msra.mxu0 0
        %2146 = vmatpush.bf16.msra.mxu0 0
        %2147 = vmatpush.bf16.msra.mxu0 0
        %2148 = vmatpush.bf16.msra.mxu0 0
        %2149 = vmatpush.bf16.msra.mxu0 %v1452
        %2150 = vmatpush.bf16.msra.mxu0 %v1448
        %2151 = vmatpush.bf16.msra.mxu0 %v1444
        %2152 = vmatpush.bf16.msra.mxu0 %v1440
        %2153 = vmatmul.bf16.gmra.mxu0 %v2101
        %v2154 = vpop.f32.mrf.mxu0
        %v2155 = vadd.f32 0.0, %v2154
        %v2156 = vpop.f32.mrf.mxu0
        %v2157 = vadd.f32 0.0, %v2156
        %2158 = vdwg.mxu0
        %v2159 = vadd.f32 %v757, %v2113
        %v2160 = vadd.f32 %v806, %v2127
        %v2161 = vadd.f32 %v855, %v2141
        %v2162 = vadd.f32 %v904, %v2155
        %v2163 = vadd.f32 %v759, %v2115
        %v2164 = vadd.f32 %v808, %v2129
        %v2165 = vadd.f32 %v857, %v2143
        %v2166 = vadd.f32 %v906, %v2157
        %v2167 = vpack.c.bf16 %v2093, %v2092
        %v2169 = vsel %vm717, %v2167, 0
        %2171 = vmatpush.bf16.msra.mxu0 0
        %2172 = vmatpush.bf16.msra.mxu0 0
        %2173 = vmatpush.bf16.msra.mxu0 0
        %2174 = vmatpush.bf16.msra.mxu0 0
        %2175 = vmatpush.bf16.msra.mxu0 %v1597
        %2176 = vmatpush.bf16.msra.mxu0 %v1593
        %2177 = vmatpush.bf16.msra.mxu0 %v1589
        %2178 = vmatpush.bf16.msra.mxu0 %v1585
        %2179 = vmatmul.bf16.gmra.mxu0 %v2169
        %v2180 = vpop.f32.mrf.mxu0
        %v2181 = vadd.f32 0.0, %v2180
        %v2182 = vpop.f32.mrf.mxu0
        %v2183 = vadd.f32 0.0, %v2182
        %2184 = vdwg.mxu0
        %2185 = vmatpush.bf16.msra.mxu0 0
        %2186 = vmatpush.bf16.msra.mxu0 0
        %2187 = vmatpush.bf16.msra.mxu0 0
        %2188 = vmatpush.bf16.msra.mxu0 0
        %2189 = vmatpush.bf16.msra.mxu0 %v1598
        %2190 = vmatpush.bf16.msra.mxu0 %v1594
        %2191 = vmatpush.bf16.msra.mxu0 %v1590
        %2192 = vmatpush.bf16.msra.mxu0 %v1586
        %2193 = vmatmul.bf16.gmra.mxu0 %v2169
        %v2194 = vpop.f32.mrf.mxu0
        %v2195 = vadd.f32 0.0, %v2194
        %v2196 = vpop.f32.mrf.mxu0
        %v2197 = vadd.f32 0.0, %v2196
        %2198 = vdwg.mxu0
        %2199 = vmatpush.bf16.msra.mxu0 0
        %2200 = vmatpush.bf16.msra.mxu0 0
        %2201 = vmatpush.bf16.msra.mxu0 0
        %2202 = vmatpush.bf16.msra.mxu0 0
        %2203 = vmatpush.bf16.msra.mxu0 %v1599
        %2204 = vmatpush.bf16.msra.mxu0 %v1595
        %2205 = vmatpush.bf16.msra.mxu0 %v1591
        %2206 = vmatpush.bf16.msra.mxu0 %v1587
        %2207 = vmatmul.bf16.gmra.mxu0 %v2169
        %v2208 = vpop.f32.mrf.mxu0
        %v2209 = vadd.f32 0.0, %v2208
        %v2210 = vpop.f32.mrf.mxu0
        %v2211 = vadd.f32 0.0, %v2210
        %2212 = vdwg.mxu0
        %2213 = vmatpush.bf16.msra.mxu0 0
        %2214 = vmatpush.bf16.msra.mxu0 0
        %2215 = vmatpush.bf16.msra.mxu0 0
        %2216 = vmatpush.bf16.msra.mxu0 0
        %2217 = vmatpush.bf16.msra.mxu0 %v1600
        %2218 = vmatpush.bf16.msra.mxu0 %v1596
        %2219 = vmatpush.bf16.msra.mxu0 %v1592
        %2220 = vmatpush.bf16.msra.mxu0 %v1588
        %2221 = vmatmul.bf16.gmra.mxu0 %v2169
        %v2222 = vpop.f32.mrf.mxu0
        %v2223 = vadd.f32 0.0, %v2222
        %v2224 = vpop.f32.mrf.mxu0
        %v2225 = vadd.f32 0.0, %v2224
        %2226 = vdwg.mxu0
        %v2227 = vadd.f32 %v1108, %v2181
        %v2228 = vadd.f32 %v1157, %v2195
        %v2229 = vadd.f32 %v1206, %v2209
        %v2230 = vadd.f32 %v1255, %v2223
        %v2231 = vadd.f32 %v1110, %v2183
        %v2232 = vadd.f32 %v1159, %v2197
        %v2233 = vadd.f32 %v1208, %v2211
        %v2234 = vadd.f32 %v1257, %v2225
        %v2235 = vxor.u32 %v2159, 2147483648
        %v2236 = vxor.u32 %v2163, 2147483648
        %v2237 = vmul.f32 %v2235, 1.442695
        %v2238 = vpow.pop %v2237
        %v2239 = vmul.f32 %v2236, 1.442695
        %v2240 = vpow.pop %v2239
        %v2241 = vadd.f32 %v2238, 1.0
        %v2242 = vadd.f32 %v2240, 1.0
        %v2243 = vrcp.pop %v2241
        %v2244 = vmul.f32 %v2241, %v2243
        %v2245 = vsub.f32 1.0, %v2244
        %v2246 = vmul.f32 %v2243, %v2245
        %v2247 = vadd.f32 %v2243, %v2246
        %vm2248 = vweird.f32 %v2241
        %vm2249 = vweird.f32 %v2243
        %vm2250 = vmor %vm2248, %vm2249
        %v2251 = vsel %vm2250, %v2243, %v2247
        %v2252 = vand.u32 2147483647, %v2241
        %vm2253 = vcmp.eq.f32.partialorder %v2252, 8.507059e+37
        %v2254 = vand.u32 %v2241, 2147483648
        %v2255 = vor.u32 1.1754944e-38, %v2254
        %v2256 = vsel %vm2253, %v2255, %v2251
        %v2257 = vmul.f32 1.0, %v2256
        %v2258 = vrcp.pop %v2242
        %v2259 = vmul.f32 %v2242, %v2258
        %v2260 = vsub.f32 1.0, %v2259
        %v2261 = vmul.f32 %v2258, %v2260
        %v2262 = vadd.f32 %v2258, %v2261
        %vm2263 = vweird.f32 %v2242
        %vm2264 = vweird.f32 %v2258
        %vm2265 = vmor %vm2263, %vm2264
        %v2266 = vsel %vm2265, %v2258, %v2262
        %v2267 = vand.u32 2147483647, %v2242
        %vm2268 = vcmp.eq.f32.partialorder %v2267, 8.507059e+37
        %v2269 = vand.u32 %v2242, 2147483648
        %v2270 = vor.u32 1.1754944e-38, %v2269
        %v2271 = vsel %vm2268, %v2270, %v2266
        %v2272 = vmul.f32 1.0, %v2271
        %v2273 = vxor.u32 %v2160, 2147483648
        %v2274 = vxor.u32 %v2164, 2147483648
        %v2275 = vmul.f32 %v2273, 1.442695
        %v2276 = vpow.pop %v2275
        %v2277 = vmul.f32 %v2274, 1.442695
        %v2278 = vpow.pop %v2277
        %v2279 = vadd.f32 %v2276, 1.0
        %v2280 = vadd.f32 %v2278, 1.0
        %v2281 = vrcp.pop %v2279
        %v2282 = vmul.f32 %v2279, %v2281
        %v2283 = vsub.f32 1.0, %v2282
        %v2284 = vmul.f32 %v2281, %v2283
        %v2285 = vadd.f32 %v2281, %v2284
        %vm2286 = vweird.f32 %v2279
        %vm2287 = vweird.f32 %v2281
        %vm2288 = vmor %vm2286, %vm2287
        %v2289 = vsel %vm2288, %v2281, %v2285
        %v2290 = vand.u32 2147483647, %v2279
        %vm2291 = vcmp.eq.f32.partialorder %v2290, 8.507059e+37
        %v2292 = vand.u32 %v2279, 2147483648
        %v2293 = vor.u32 1.1754944e-38, %v2292
        %v2294 = vsel %vm2291, %v2293, %v2289
        %v2295 = vmul.f32 1.0, %v2294
        %v2296 = vrcp.pop %v2280
        %v2297 = vmul.f32 %v2280, %v2296
        %v2298 = vsub.f32 1.0, %v2297
        %v2299 = vmul.f32 %v2296, %v2298
        %v2300 = vadd.f32 %v2296, %v2299
        %vm2301 = vweird.f32 %v2280
        %vm2302 = vweird.f32 %v2296
        %vm2303 = vmor %vm2301, %vm2302
        %v2304 = vsel %vm2303, %v2296, %v2300
        %v2305 = vand.u32 2147483647, %v2280
        %vm2306 = vcmp.eq.f32.partialorder %v2305, 8.507059e+37
        %v2307 = vand.u32 %v2280, 2147483648
        %v2308 = vor.u32 1.1754944e-38, %v2307
        %v2309 = vsel %vm2306, %v2308, %v2304
        %v2310 = vmul.f32 1.0, %v2309
        %v2311 = vtanh.pop %v2161
        %v2312 = vtanh.pop %v2165
        %v2313 = vxor.u32 %v2162, 2147483648
        %v2314 = vxor.u32 %v2166, 2147483648
        %v2315 = vmul.f32 %v2313, 1.442695
        %v2316 = vpow.pop %v2315
        %v2317 = vmul.f32 %v2314, 1.442695
        %v2318 = vpow.pop %v2317
        %v2319 = vadd.f32 %v2316, 1.0
        %v2320 = vadd.f32 %v2318, 1.0
        %v2321 = vrcp.pop %v2319
        %v2322 = vmul.f32 %v2319, %v2321
        %v2323 = vsub.f32 1.0, %v2322
        %v2324 = vmul.f32 %v2321, %v2323
        %v2325 = vadd.f32 %v2321, %v2324
        %vm2326 = vweird.f32 %v2319
        %vm2327 = vweird.f32 %v2321
        %vm2328 = vmor %vm2326, %vm2327
        %v2329 = vsel %vm2328, %v2321, %v2325
        %v2330 = vand.u32 2147483647, %v2319
        %vm2331 = vcmp.eq.f32.partialorder %v2330, 8.507059e+37
        %v2332 = vand.u32 %v2319, 2147483648
        %v2333 = vor.u32 1.1754944e-38, %v2332
        %v2334 = vsel %vm2331, %v2333, %v2329
        %v2335 = vmul.f32 1.0, %v2334
        %v2336 = vrcp.pop %v2320
        %v2337 = vmul.f32 %v2320, %v2336
        %v2338 = vsub.f32 1.0, %v2337
        %v2339 = vmul.f32 %v2336, %v2338
        %v2340 = vadd.f32 %v2336, %v2339
        %vm2341 = vweird.f32 %v2320
        %vm2342 = vweird.f32 %v2336
        %vm2343 = vmor %vm2341, %vm2342
        %v2344 = vsel %vm2343, %v2336, %v2340
        %v2345 = vand.u32 2147483647, %v2320
        %vm2346 = vcmp.eq.f32.partialorder %v2345, 8.507059e+37
        %v2347 = vand.u32 %v2320, 2147483648
        %v2348 = vor.u32 1.1754944e-38, %v2347
        %v2349 = vsel %vm2346, %v2348, %v2344
        %v2350 = vmul.f32 1.0, %v2349
        %v2351 = vmul.f32 %v2257, %v2311
        %v2352 = vmul.f32 %v2272, %v2312
        %v2353 = vmul.f32 %v2295, %v2072
        %v2354 = vmul.f32 %v2310, %v2073
        %v2355 = vadd.f32 %v2351, %v2353
        %v2356 = vadd.f32 %v2352, %v2354
        %v2357 = vtanh.pop %v2355
        %v2358 = vtanh.pop %v2356
        %v2359 = vmul.f32 %v2335, %v2357
        %v2360 = vmul.f32 %v2350, %v2358
        %v2361 = vpack.c.bf16 %v2360, %v2359
        %2362 = vmatpush.bf16.msra.mxu0 %v1850
        %2363 = vmatpush.bf16.msra.mxu0 %v1849
        %2364 = vmatpush.bf16.msra.mxu0 %v1848
        %2365 = vmatpush.bf16.msra.mxu0 %v1847
        %2366 = vmatpush.bf16.msra.mxu0 %v1846
        %2367 = vmatpush.bf16.msra.mxu0 %v1845
        %2368 = vmatpush.bf16.msra.mxu0 %v1844
        %2369 = vmatpush.bf16.msra.mxu0 %v1843
        %2370 = vmatmul.bf16.gmra.mxu0 %v2361
        %v2371 = vpop.f32.mrf.mxu0
        %v2372 = vadd.f32 0.0, %v2371
        %v2373 = vpop.f32.mrf.mxu0
        %v2374 = vadd.f32 0.0, %v2373
        %2375 = vdwg.mxu0
        %v2376 = vxor.u32 %v2227, 2147483648
        %v2377 = vxor.u32 %v2231, 2147483648
        %v2378 = vmul.f32 %v2376, 1.442695
        %v2379 = vpow.pop %v2378
        %v2380 = vmul.f32 %v2377, 1.442695
        %v2381 = vpow.pop %v2380
        %v2382 = vadd.f32 %v2379, 1.0
        %v2383 = vadd.f32 %v2381, 1.0
        %v2384 = vrcp.pop %v2382
        %v2385 = vmul.f32 %v2382, %v2384
        %v2386 = vsub.f32 1.0, %v2385
        %v2387 = vmul.f32 %v2384, %v2386
        %v2388 = vadd.f32 %v2384, %v2387
        %vm2389 = vweird.f32 %v2382
        %vm2390 = vweird.f32 %v2384
        %vm2391 = vmor %vm2389, %vm2390
        %v2392 = vsel %vm2391, %v2384, %v2388
        %v2393 = vand.u32 2147483647, %v2382
        %vm2394 = vcmp.eq.f32.partialorder %v2393, 8.507059e+37
        %v2395 = vand.u32 %v2382, 2147483648
        %v2396 = vor.u32 1.1754944e-38, %v2395
        %v2397 = vsel %vm2394, %v2396, %v2392
        %v2398 = vmul.f32 1.0, %v2397
        %v2399 = vrcp.pop %v2383
        %v2400 = vmul.f32 %v2383, %v2399
        %v2401 = vsub.f32 1.0, %v2400
        %v2402 = vmul.f32 %v2399, %v2401
        %v2403 = vadd.f32 %v2399, %v2402
        %vm2404 = vweird.f32 %v2383
        %vm2405 = vweird.f32 %v2399
        %vm2406 = vmor %vm2404, %vm2405
        %v2407 = vsel %vm2406, %v2399, %v2403
        %v2408 = vand.u32 2147483647, %v2383
        %vm2409 = vcmp.eq.f32.partialorder %v2408, 8.507059e+37
        %v2410 = vand.u32 %v2383, 2147483648
        %v2411 = vor.u32 1.1754944e-38, %v2410
        %v2412 = vsel %vm2409, %v2411, %v2407
        %v2413 = vmul.f32 1.0, %v2412
        %v2414 = vxor.u32 %v2228, 2147483648
        %v2415 = vxor.u32 %v2232, 2147483648
        %v2416 = vmul.f32 %v2414, 1.442695
        %v2417 = vpow.pop %v2416
        %v2418 = vmul.f32 %v2415, 1.442695
        %v2419 = vpow.pop %v2418
        %v2420 = vadd.f32 %v2417, 1.0
        %v2421 = vadd.f32 %v2419, 1.0
        %v2422 = vrcp.pop %v2420
        %v2423 = vmul.f32 %v2420, %v2422
        %v2424 = vsub.f32 1.0, %v2423
        %v2425 = vmul.f32 %v2422, %v2424
        %v2426 = vadd.f32 %v2422, %v2425
        %vm2427 = vweird.f32 %v2420
        %vm2428 = vweird.f32 %v2422
        %vm2429 = vmor %vm2427, %vm2428
        %v2430 = vsel %vm2429, %v2422, %v2426
        %v2431 = vand.u32 2147483647, %v2420
        %vm2432 = vcmp.eq.f32.partialorder %v2431, 8.507059e+37
        %v2433 = vand.u32 %v2420, 2147483648
        %v2434 = vor.u32 1.1754944e-38, %v2433
        %v2435 = vsel %vm2432, %v2434, %v2430
        %v2436 = vmul.f32 1.0, %v2435
        %v2437 = vrcp.pop %v2421
        %v2438 = vmul.f32 %v2421, %v2437
        %v2439 = vsub.f32 1.0, %v2438
        %v2440 = vmul.f32 %v2437, %v2439
        %v2441 = vadd.f32 %v2437, %v2440
        %vm2442 = vweird.f32 %v2421
        %vm2443 = vweird.f32 %v2437
        %vm2444 = vmor %vm2442, %vm2443
        %v2445 = vsel %vm2444, %v2437, %v2441
        %v2446 = vand.u32 2147483647, %v2421
        %vm2447 = vcmp.eq.f32.partialorder %v2446, 8.507059e+37
        %v2448 = vand.u32 %v2421, 2147483648
        %v2449 = vor.u32 1.1754944e-38, %v2448
        %v2450 = vsel %vm2447, %v2449, %v2445
        %v2451 = vmul.f32 1.0, %v2450
        %v2452 = vtanh.pop %v2229
        %v2453 = vtanh.pop %v2233
        %v2454 = vxor.u32 %v2230, 2147483648
        %v2455 = vxor.u32 %v2234, 2147483648
        %v2456 = vmul.f32 %v2454, 1.442695
        %v2457 = vpow.pop %v2456
        %v2458 = vmul.f32 %v2455, 1.442695
        %v2459 = vpow.pop %v2458
        %v2460 = vadd.f32 %v2457, 1.0
        %v2461 = vadd.f32 %v2459, 1.0
        %v2462 = vrcp.pop %v2460
        %v2463 = vmul.f32 %v2460, %v2462
        %v2464 = vsub.f32 1.0, %v2463
        %v2465 = vmul.f32 %v2462, %v2464
        %v2466 = vadd.f32 %v2462, %v2465
        %vm2467 = vweird.f32 %v2460
        %vm2468 = vweird.f32 %v2462
        %vm2469 = vmor %vm2467, %vm2468
        %v2470 = vsel %vm2469, %v2462, %v2466
        %v2471 = vand.u32 2147483647, %v2460
        %vm2472 = vcmp.eq.f32.partialorder %v2471, 8.507059e+37
        %v2473 = vand.u32 %v2460, 2147483648
        %v2474 = vor.u32 1.1754944e-38, %v2473
        %v2475 = vsel %vm2472, %v2474, %v2470
        %v2476 = vmul.f32 1.0, %v2475
        %v2477 = vrcp.pop %v2461
        %v2478 = vmul.f32 %v2461, %v2477
        %v2479 = vsub.f32 1.0, %v2478
        %v2480 = vmul.f32 %v2477, %v2479
        %v2481 = vadd.f32 %v2477, %v2480
        %vm2482 = vweird.f32 %v2461
        %vm2483 = vweird.f32 %v2477
        %vm2484 = vmor %vm2482, %vm2483
        %v2485 = vsel %vm2484, %v2477, %v2481
        %v2486 = vand.u32 2147483647, %v2461
        %vm2487 = vcmp.eq.f32.partialorder %v2486, 8.507059e+37
        %v2488 = vand.u32 %v2461, 2147483648
        %v2489 = vor.u32 1.1754944e-38, %v2488
        %v2490 = vsel %vm2487, %v2489, %v2485
        %v2491 = vmul.f32 1.0, %v2490
        %v2492 = vmul.f32 %v2398, %v2452
        %v2493 = vmul.f32 %v2413, %v2453
        %v2494 = vmul.f32 %v2436, %v2090
        %v2495 = vmul.f32 %v2451, %v2091
        %v2496 = vadd.f32 %v2492, %v2494
        %v2497 = vadd.f32 %v2493, %v2495
        %v2498 = vtanh.pop %v2496
        %v2499 = vtanh.pop %v2497
        %v2500 = vmul.f32 %v2476, %v2498
        %v2501 = vmul.f32 %v2491, %v2499
        %v2502 = vpack.c.bf16 %v2501, %v2500
        %2503 = vmatpush.bf16.msra.mxu0 %v2039
        %2504 = vmatpush.bf16.msra.mxu0 %v2038
        %2505 = vmatpush.bf16.msra.mxu0 %v2037
        %2506 = vmatpush.bf16.msra.mxu0 %v2036
        %2507 = vmatpush.bf16.msra.mxu0 %v2035
        %2508 = vmatpush.bf16.msra.mxu0 %v2034
        %2509 = vmatpush.bf16.msra.mxu0 %v2033
        %2510 = vmatpush.bf16.msra.mxu0 %v2032
        %2511 = vmatmul.bf16.gmra.mxu0 %v2502
        %v2512 = vpop.f32.mrf.mxu0
        %v2513 = vadd.f32 0.0, %v2512
        %v2514 = vpop.f32.mrf.mxu0
        %v2515 = vadd.f32 0.0, %v2514
        %2516 = vdwg.mxu0
        %v2517 = vsel %vm1342, 1, 0
        %v2518 = vsel %vm1343, 1, 0
        %2519 = vset.pattern.permute.xlu0 0
        %2520 = vperm.xlu0 %2519, %v2517
        %v2521 = vpop.permute.xlu0 %2520
        %2522 = vset.pattern.permute.xlu0 0
        %2523 = vperm.xlu0 %2522, %v2518
        %v2524 = vpop.permute.xlu0 %2523
        %vm2525 = vcmp.eq.s32.totalorder %v2521, 1
        %vm2526 = vcmp.eq.s32.totalorder %v2524, 1
        %v2527 = vsel %vm2525, %v2355, %v2072
        %v2528 = vsel %vm2526, %v2356, %v2073
        %v2529 = vsel %vm2525, %v2372, %v2074
        %v2530 = vsel %vm2526, %v2374, %v2075
        %v2531 = vsel %vm2525, %v2372, 0.0
        %v2532 = vsel %vm2526, %v2374, 0.0
        %s2533 = scalar_lea.vmem %s535, 16 [#allocation15]
        %2534 = vst.msk [vmem:[%s2533] sm:$0xff] %vm717, %v2531
        %2535 = vst.msk [vmem:[%s2533 + $0x8] sm:$0xff] %vm717, %v2532
        %v2536 = vsel %vm1376, 1, 0
        %v2537 = vsel %vm1377, 1, 0
        %2538 = vset.pattern.permute.xlu0 0
        %2539 = vperm.xlu0 %2538, %v2536
        %v2540 = vpop.permute.xlu0 %2539
        %2541 = vset.pattern.permute.xlu0 0
        %2542 = vperm.xlu0 %2541, %v2537
        %v2543 = vpop.permute.xlu0 %2542
        %vm2544 = vcmp.eq.s32.totalorder %v2540, 1
        %vm2545 = vcmp.eq.s32.totalorder %v2543, 1
        %v2546 = vsel %vm2544, %v2496, %v2090
        %v2547 = vsel %vm2545, %v2497, %v2091
        %v2548 = vsel %vm2544, %v2513, %v2092
        %v2549 = vsel %vm2545, %v2515, %v2093
        %v2550 = vsel %vm2544, %v2513, 0.0
        %v2551 = vsel %vm2545, %v2515, 0.0
        %s2552 = scalar_lea.vmem %s542, 96 [#allocation16]
        %2553 = vst.msk [vmem:[%s2552] sm:$0xff] %vm717, %v2550
        %2554 = vst.msk [vmem:[%s2552 + $0x8] sm:$0xff] %vm717, %v2551
        %v2555 = vpack.c.bf16 %v2530, %v2529
        %v2557 = vsel %vm717, %v2555, 0
        %2559 = vmatpush.bf16.msra.mxu0 0
        %2560 = vmatpush.bf16.msra.mxu0 0
        %2561 = vmatpush.bf16.msra.mxu0 0
        %2562 = vmatpush.bf16.msra.mxu0 0
        %2563 = vmatpush.bf16.msra.mxu0 %v1449
        %2564 = vmatpush.bf16.msra.mxu0 %v1445
        %2565 = vmatpush.bf16.msra.mxu0 %v1441
        %2566 = vmatpush.bf16.msra.mxu0 %v1437
        %2567 = vmatmul.bf16.gmra.mxu0 %v2557
        %v2568 = vpop.f32.mrf.mxu0
        %v2569 = vadd.f32 0.0, %v2568
        %v2570 = vpop.f32.mrf.mxu0
        %v2571 = vadd.f32 0.0, %v2570
        %2572 = vdwg.mxu0
        %2573 = vmatpush.bf16.msra.mxu0 0
        %2574 = vmatpush.bf16.msra.mxu0 0
        %2575 = vmatpush.bf16.msra.mxu0 0
        %2576 = vmatpush.bf16.msra.mxu0 0
        %2577 = vmatpush.bf16.msra.mxu0 %v1450
        %2578 = vmatpush.bf16.msra.mxu0 %v1446
        %2579 = vmatpush.bf16.msra.mxu0 %v1442
        %2580 = vmatpush.bf16.msra.mxu0 %v1438
        %2581 = vmatmul.bf16.gmra.mxu0 %v2557
        %v2582 = vpop.f32.mrf.mxu0
        %v2583 = vadd.f32 0.0, %v2582
        %v2584 = vpop.f32.mrf.mxu0
        %v2585 = vadd.f32 0.0, %v2584
        %2586 = vdwg.mxu0
        %2587 = vmatpush.bf16.msra.mxu0 0
        %2588 = vmatpush.bf16.msra.mxu0 0
        %2589 = vmatpush.bf16.msra.mxu0 0
        %2590 = vmatpush.bf16.msra.mxu0 0
        %2591 = vmatpush.bf16.msra.mxu0 %v1451
        %2592 = vmatpush.bf16.msra.mxu0 %v1447
        %2593 = vmatpush.bf16.msra.mxu0 %v1443
        %2594 = vmatpush.bf16.msra.mxu0 %v1439
        %2595 = vmatmul.bf16.gmra.mxu0 %v2557
        %v2596 = vpop.f32.mrf.mxu0
        %v2597 = vadd.f32 0.0, %v2596
        %v2598 = vpop.f32.mrf.mxu0
        %v2599 = vadd.f32 0.0, %v2598
        %2600 = vdwg.mxu0
        %2601 = vmatpush.bf16.msra.mxu0 0
        %2602 = vmatpush.bf16.msra.mxu0 0
        %2603 = vmatpush.bf16.msra.mxu0 0
        %2604 = vmatpush.bf16.msra.mxu0 0
        %2605 = vmatpush.bf16.msra.mxu0 %v1452
        %2606 = vmatpush.bf16.msra.mxu0 %v1448
        %2607 = vmatpush.bf16.msra.mxu0 %v1444
        %2608 = vmatpush.bf16.msra.mxu0 %v1440
        %2609 = vmatmul.bf16.gmra.mxu0 %v2557
        %v2610 = vpop.f32.mrf.mxu0
        %v2611 = vadd.f32 0.0, %v2610
        %v2612 = vpop.f32.mrf.mxu0
        %v2613 = vadd.f32 0.0, %v2612
        %2614 = vdwg.mxu0
        %v2615 = vadd.f32 %v762, %v2569
        %v2616 = vadd.f32 %v811, %v2583
        %v2617 = vadd.f32 %v860, %v2597
        %v2618 = vadd.f32 %v909, %v2611
        %v2619 = vadd.f32 %v764, %v2571
        %v2620 = vadd.f32 %v813, %v2585
        %v2621 = vadd.f32 %v862, %v2599
        %v2622 = vadd.f32 %v911, %v2613
        %v2623 = vpack.c.bf16 %v2549, %v2548
        %v2625 = vsel %vm717, %v2623, 0
        %2627 = vmatpush.bf16.msra.mxu0 0
        %2628 = vmatpush.bf16.msra.mxu0 0
        %2629 = vmatpush.bf16.msra.mxu0 0
        %2630 = vmatpush.bf16.msra.mxu0 0
        %2631 = vmatpush.bf16.msra.mxu0 %v1597
        %2632 = vmatpush.bf16.msra.mxu0 %v1593
        %2633 = vmatpush.bf16.msra.mxu0 %v1589
        %2634 = vmatpush.bf16.msra.mxu0 %v1585
        %2635 = vmatmul.bf16.gmra.mxu0 %v2625
        %v2636 = vpop.f32.mrf.mxu0
        %v2637 = vadd.f32 0.0, %v2636
        %v2638 = vpop.f32.mrf.mxu0
        %v2639 = vadd.f32 0.0, %v2638
        %2640 = vdwg.mxu0
        %2641 = vmatpush.bf16.msra.mxu0 0
        %2642 = vmatpush.bf16.msra.mxu0 0
        %2643 = vmatpush.bf16.msra.mxu0 0
        %2644 = vmatpush.bf16.msra.mxu0 0
        %2645 = vmatpush.bf16.msra.mxu0 %v1598
        %2646 = vmatpush.bf16.msra.mxu0 %v1594
        %2647 = vmatpush.bf16.msra.mxu0 %v1590
        %2648 = vmatpush.bf16.msra.mxu0 %v1586
        %2649 = vmatmul.bf16.gmra.mxu0 %v2625
        %v2650 = vpop.f32.mrf.mxu0
        %v2651 = vadd.f32 0.0, %v2650
        %v2652 = vpop.f32.mrf.mxu0
        %v2653 = vadd.f32 0.0, %v2652
        %2654 = vdwg.mxu0
        %2655 = vmatpush.bf16.msra.mxu0 0
        %2656 = vmatpush.bf16.msra.mxu0 0
        %2657 = vmatpush.bf16.msra.mxu0 0
        %2658 = vmatpush.bf16.msra.mxu0 0
        %2659 = vmatpush.bf16.msra.mxu0 %v1599
        %2660 = vmatpush.bf16.msra.mxu0 %v1595
        %2661 = vmatpush.bf16.msra.mxu0 %v1591
        %2662 = vmatpush.bf16.msra.mxu0 %v1587
        %2663 = vmatmul.bf16.gmra.mxu0 %v2625
        %v2664 = vpop.f32.mrf.mxu0
        %v2665 = vadd.f32 0.0, %v2664
        %v2666 = vpop.f32.mrf.mxu0
        %v2667 = vadd.f32 0.0, %v2666
        %2668 = vdwg.mxu0
        %2669 = vmatpush.bf16.msra.mxu0 0
        %2670 = vmatpush.bf16.msra.mxu0 0
        %2671 = vmatpush.bf16.msra.mxu0 0
        %2672 = vmatpush.bf16.msra.mxu0 0
        %2673 = vmatpush.bf16.msra.mxu0 %v1600
        %2674 = vmatpush.bf16.msra.mxu0 %v1596
        %2675 = vmatpush.bf16.msra.mxu0 %v1592
        %2676 = vmatpush.bf16.msra.mxu0 %v1588
        %2677 = vmatmul.bf16.gmra.mxu0 %v2625
        %v2678 = vpop.f32.mrf.mxu0
        %v2679 = vadd.f32 0.0, %v2678
        %v2680 = vpop.f32.mrf.mxu0
        %v2681 = vadd.f32 0.0, %v2680
        %2682 = vdwg.mxu0
        %v2683 = vadd.f32 %v1103, %v2637
        %v2684 = vadd.f32 %v1152, %v2651
        %v2685 = vadd.f32 %v1201, %v2665
        %v2686 = vadd.f32 %v1250, %v2679
        %v2687 = vadd.f32 %v1105, %v2639
        %v2688 = vadd.f32 %v1154, %v2653
        %v2689 = vadd.f32 %v1203, %v2667
        %v2690 = vadd.f32 %v1252, %v2681
        %v2691 = vxor.u32 %v2615, 2147483648
        %v2692 = vxor.u32 %v2619, 2147483648
        %v2693 = vmul.f32 %v2691, 1.442695
        %v2694 = vpow.pop %v2693
        %v2695 = vmul.f32 %v2692, 1.442695
        %v2696 = vpow.pop %v2695
        %v2697 = vadd.f32 %v2694, 1.0
        %v2698 = vadd.f32 %v2696, 1.0
        %v2699 = vrcp.pop %v2697
        %v2700 = vmul.f32 %v2697, %v2699
        %v2701 = vsub.f32 1.0, %v2700
        %v2702 = vmul.f32 %v2699, %v2701
        %v2703 = vadd.f32 %v2699, %v2702
        %vm2704 = vweird.f32 %v2697
        %vm2705 = vweird.f32 %v2699
        %vm2706 = vmor %vm2704, %vm2705
        %v2707 = vsel %vm2706, %v2699, %v2703
        %v2708 = vand.u32 2147483647, %v2697
        %vm2709 = vcmp.eq.f32.partialorder %v2708, 8.507059e+37
        %v2710 = vand.u32 %v2697, 2147483648
        %v2711 = vor.u32 1.1754944e-38, %v2710
        %v2712 = vsel %vm2709, %v2711, %v2707
        %v2713 = vmul.f32 1.0, %v2712
        %v2714 = vrcp.pop %v2698
        %v2715 = vmul.f32 %v2698, %v2714
        %v2716 = vsub.f32 1.0, %v2715
        %v2717 = vmul.f32 %v2714, %v2716
        %v2718 = vadd.f32 %v2714, %v2717
        %vm2719 = vweird.f32 %v2698
        %vm2720 = vweird.f32 %v2714
        %vm2721 = vmor %vm2719, %vm2720
        %v2722 = vsel %vm2721, %v2714, %v2718
        %v2723 = vand.u32 2147483647, %v2698
        %vm2724 = vcmp.eq.f32.partialorder %v2723, 8.507059e+37
        %v2725 = vand.u32 %v2698, 2147483648
        %v2726 = vor.u32 1.1754944e-38, %v2725
        %v2727 = vsel %vm2724, %v2726, %v2722
        %v2728 = vmul.f32 1.0, %v2727
        %v2729 = vxor.u32 %v2616, 2147483648
        %v2730 = vxor.u32 %v2620, 2147483648
        %v2731 = vmul.f32 %v2729, 1.442695
        %v2732 = vpow.pop %v2731
        %v2733 = vmul.f32 %v2730, 1.442695
        %v2734 = vpow.pop %v2733
        %v2735 = vadd.f32 %v2732, 1.0
        %v2736 = vadd.f32 %v2734, 1.0
        %v2737 = vrcp.pop %v2735
        %v2738 = vmul.f32 %v2735, %v2737
        %v2739 = vsub.f32 1.0, %v2738
        %v2740 = vmul.f32 %v2737, %v2739
        %v2741 = vadd.f32 %v2737, %v2740
        %vm2742 = vweird.f32 %v2735
        %vm2743 = vweird.f32 %v2737
        %vm2744 = vmor %vm2742, %vm2743
        %v2745 = vsel %vm2744, %v2737, %v2741
        %v2746 = vand.u32 2147483647, %v2735
        %vm2747 = vcmp.eq.f32.partialorder %v2746, 8.507059e+37
        %v2748 = vand.u32 %v2735, 2147483648
        %v2749 = vor.u32 1.1754944e-38, %v2748
        %v2750 = vsel %vm2747, %v2749, %v2745
        %v2751 = vmul.f32 1.0, %v2750
        %v2752 = vrcp.pop %v2736
        %v2753 = vmul.f32 %v2736, %v2752
        %v2754 = vsub.f32 1.0, %v2753
        %v2755 = vmul.f32 %v2752, %v2754
        %v2756 = vadd.f32 %v2752, %v2755
        %vm2757 = vweird.f32 %v2736
        %vm2758 = vweird.f32 %v2752
        %vm2759 = vmor %vm2757, %vm2758
        %v2760 = vsel %vm2759, %v2752, %v2756
        %v2761 = vand.u32 2147483647, %v2736
        %vm2762 = vcmp.eq.f32.partialorder %v2761, 8.507059e+37
        %v2763 = vand.u32 %v2736, 2147483648
        %v2764 = vor.u32 1.1754944e-38, %v2763
        %v2765 = vsel %vm2762, %v2764, %v2760
        %v2766 = vmul.f32 1.0, %v2765
        %v2767 = vtanh.pop %v2617
        %v2768 = vtanh.pop %v2621
        %v2769 = vxor.u32 %v2618, 2147483648
        %v2770 = vxor.u32 %v2622, 2147483648
        %v2771 = vmul.f32 %v2769, 1.442695
        %v2772 = vpow.pop %v2771
        %v2773 = vmul.f32 %v2770, 1.442695
        %v2774 = vpow.pop %v2773
        %v2775 = vadd.f32 %v2772, 1.0
        %v2776 = vadd.f32 %v2774, 1.0
        %v2777 = vrcp.pop %v2775
        %v2778 = vmul.f32 %v2775, %v2777
        %v2779 = vsub.f32 1.0, %v2778
        %v2780 = vmul.f32 %v2777, %v2779
        %v2781 = vadd.f32 %v2777, %v2780
        %vm2782 = vweird.f32 %v2775
        %vm2783 = vweird.f32 %v2777
        %vm2784 = vmor %vm2782, %vm2783
        %v2785 = vsel %vm2784, %v2777, %v2781
        %v2786 = vand.u32 2147483647, %v2775
        %vm2787 = vcmp.eq.f32.partialorder %v2786, 8.507059e+37
        %v2788 = vand.u32 %v2775, 2147483648
        %v2789 = vor.u32 1.1754944e-38, %v2788
        %v2790 = vsel %vm2787, %v2789, %v2785
        %v2791 = vmul.f32 1.0, %v2790
        %v2792 = vrcp.pop %v2776
        %v2793 = vmul.f32 %v2776, %v2792
        %v2794 = vsub.f32 1.0, %v2793
        %v2795 = vmul.f32 %v2792, %v2794
        %v2796 = vadd.f32 %v2792, %v2795
        %vm2797 = vweird.f32 %v2776
        %vm2798 = vweird.f32 %v2792
        %vm2799 = vmor %vm2797, %vm2798
        %v2800 = vsel %vm2799, %v2792, %v2796
        %v2801 = vand.u32 2147483647, %v2776
        %vm2802 = vcmp.eq.f32.partialorder %v2801, 8.507059e+37
        %v2803 = vand.u32 %v2776, 2147483648
        %v2804 = vor.u32 1.1754944e-38, %v2803
        %v2805 = vsel %vm2802, %v2804, %v2800
        %v2806 = vmul.f32 1.0, %v2805
        %v2807 = vmul.f32 %v2713, %v2767
        %v2808 = vmul.f32 %v2728, %v2768
        %v2809 = vmul.f32 %v2751, %v2527
        %v2810 = vmul.f32 %v2766, %v2528
        %v2811 = vadd.f32 %v2807, %v2809
        %v2812 = vadd.f32 %v2808, %v2810
        %v2813 = vtanh.pop %v2811
        %v2814 = vtanh.pop %v2812
        %v2815 = vmul.f32 %v2791, %v2813
        %v2816 = vmul.f32 %v2806, %v2814
        %v2817 = vpack.c.bf16 %v2816, %v2815
        %2818 = vmatpush.bf16.msra.mxu0 %v1850
        %2819 = vmatpush.bf16.msra.mxu0 %v1849
        %2820 = vmatpush.bf16.msra.mxu0 %v1848
        %2821 = vmatpush.bf16.msra.mxu0 %v1847
        %2822 = vmatpush.bf16.msra.mxu0 %v1846
        %2823 = vmatpush.bf16.msra.mxu0 %v1845
        %2824 = vmatpush.bf16.msra.mxu0 %v1844
        %2825 = vmatpush.bf16.msra.mxu0 %v1843
        %2826 = vmatmul.bf16.gmra.mxu0 %v2817
        %v2827 = vpop.f32.mrf.mxu0
        %v2828 = vadd.f32 0.0, %v2827
        %v2829 = vpop.f32.mrf.mxu0
        %v2830 = vadd.f32 0.0, %v2829
        %2831 = vdwg.mxu0
        %v2832 = vxor.u32 %v2683, 2147483648
        %v2833 = vxor.u32 %v2687, 2147483648
        %v2834 = vmul.f32 %v2832, 1.442695
        %v2835 = vpow.pop %v2834
        %v2836 = vmul.f32 %v2833, 1.442695
        %v2837 = vpow.pop %v2836
        %v2838 = vadd.f32 %v2835, 1.0
        %v2839 = vadd.f32 %v2837, 1.0
        %v2840 = vrcp.pop %v2838
        %v2841 = vmul.f32 %v2838, %v2840
        %v2842 = vsub.f32 1.0, %v2841
        %v2843 = vmul.f32 %v2840, %v2842
        %v2844 = vadd.f32 %v2840, %v2843
        %vm2845 = vweird.f32 %v2838
        %vm2846 = vweird.f32 %v2840
        %vm2847 = vmor %vm2845, %vm2846
        %v2848 = vsel %vm2847, %v2840, %v2844
        %v2849 = vand.u32 2147483647, %v2838
        %vm2850 = vcmp.eq.f32.partialorder %v2849, 8.507059e+37
        %v2851 = vand.u32 %v2838, 2147483648
        %v2852 = vor.u32 1.1754944e-38, %v2851
        %v2853 = vsel %vm2850, %v2852, %v2848
        %v2854 = vmul.f32 1.0, %v2853
        %v2855 = vrcp.pop %v2839
        %v2856 = vmul.f32 %v2839, %v2855
        %v2857 = vsub.f32 1.0, %v2856
        %v2858 = vmul.f32 %v2855, %v2857
        %v2859 = vadd.f32 %v2855, %v2858
        %vm2860 = vweird.f32 %v2839
        %vm2861 = vweird.f32 %v2855
        %vm2862 = vmor %vm2860, %vm2861
        %v2863 = vsel %vm2862, %v2855, %v2859
        %v2864 = vand.u32 2147483647, %v2839
        %vm2865 = vcmp.eq.f32.partialorder %v2864, 8.507059e+37
        %v2866 = vand.u32 %v2839, 2147483648
        %v2867 = vor.u32 1.1754944e-38, %v2866
        %v2868 = vsel %vm2865, %v2867, %v2863
        %v2869 = vmul.f32 1.0, %v2868
        %v2870 = vxor.u32 %v2684, 2147483648
        %v2871 = vxor.u32 %v2688, 2147483648
        %v2872 = vmul.f32 %v2870, 1.442695
        %v2873 = vpow.pop %v2872
        %v2874 = vmul.f32 %v2871, 1.442695
        %v2875 = vpow.pop %v2874
        %v2876 = vadd.f32 %v2873, 1.0
        %v2877 = vadd.f32 %v2875, 1.0
        %v2878 = vrcp.pop %v2876
        %v2879 = vmul.f32 %v2876, %v2878
        %v2880 = vsub.f32 1.0, %v2879
        %v2881 = vmul.f32 %v2878, %v2880
        %v2882 = vadd.f32 %v2878, %v2881
        %vm2883 = vweird.f32 %v2876
        %vm2884 = vweird.f32 %v2878
        %vm2885 = vmor %vm2883, %vm2884
        %v2886 = vsel %vm2885, %v2878, %v2882
        %v2887 = vand.u32 2147483647, %v2876
        %vm2888 = vcmp.eq.f32.partialorder %v2887, 8.507059e+37
        %v2889 = vand.u32 %v2876, 2147483648
        %v2890 = vor.u32 1.1754944e-38, %v2889
        %v2891 = vsel %vm2888, %v2890, %v2886
        %v2892 = vmul.f32 1.0, %v2891
        %v2893 = vrcp.pop %v2877
        %v2894 = vmul.f32 %v2877, %v2893
        %v2895 = vsub.f32 1.0, %v2894
        %v2896 = vmul.f32 %v2893, %v2895
        %v2897 = vadd.f32 %v2893, %v2896
        %vm2898 = vweird.f32 %v2877
        %vm2899 = vweird.f32 %v2893
        %vm2900 = vmor %vm2898, %vm2899
        %v2901 = vsel %vm2900, %v2893, %v2897
        %v2902 = vand.u32 2147483647, %v2877
        %vm2903 = vcmp.eq.f32.partialorder %v2902, 8.507059e+37
        %v2904 = vand.u32 %v2877, 2147483648
        %v2905 = vor.u32 1.1754944e-38, %v2904
        %v2906 = vsel %vm2903, %v2905, %v2901
        %v2907 = vmul.f32 1.0, %v2906
        %v2908 = vtanh.pop %v2685
        %v2909 = vtanh.pop %v2689
        %v2910 = vxor.u32 %v2686, 2147483648
        %v2911 = vxor.u32 %v2690, 2147483648
        %v2912 = vmul.f32 %v2910, 1.442695
        %v2913 = vpow.pop %v2912
        %v2914 = vmul.f32 %v2911, 1.442695
        %v2915 = vpow.pop %v2914
        %v2916 = vadd.f32 %v2913, 1.0
        %v2917 = vadd.f32 %v2915, 1.0
        %v2918 = vrcp.pop %v2916
        %v2919 = vmul.f32 %v2916, %v2918
        %v2920 = vsub.f32 1.0, %v2919
        %v2921 = vmul.f32 %v2918, %v2920
        %v2922 = vadd.f32 %v2918, %v2921
        %vm2923 = vweird.f32 %v2916
        %vm2924 = vweird.f32 %v2918
        %vm2925 = vmor %vm2923, %vm2924
        %v2926 = vsel %vm2925, %v2918, %v2922
        %v2927 = vand.u32 2147483647, %v2916
        %vm2928 = vcmp.eq.f32.partialorder %v2927, 8.507059e+37
        %v2929 = vand.u32 %v2916, 2147483648
        %v2930 = vor.u32 1.1754944e-38, %v2929
        %v2931 = vsel %vm2928, %v2930, %v2926
        %v2932 = vmul.f32 1.0, %v2931
        %v2933 = vrcp.pop %v2917
        %v2934 = vmul.f32 %v2917, %v2933
        %v2935 = vsub.f32 1.0, %v2934
        %v2936 = vmul.f32 %v2933, %v2935
        %v2937 = vadd.f32 %v2933, %v2936
        %vm2938 = vweird.f32 %v2917
        %vm2939 = vweird.f32 %v2933
        %vm2940 = vmor %vm2938, %vm2939
        %v2941 = vsel %vm2940, %v2933, %v2937
        %v2942 = vand.u32 2147483647, %v2917
        %vm2943 = vcmp.eq.f32.partialorder %v2942, 8.507059e+37
        %v2944 = vand.u32 %v2917, 2147483648
        %v2945 = vor.u32 1.1754944e-38, %v2944
        %v2946 = vsel %vm2943, %v2945, %v2941
        %v2947 = vmul.f32 1.0, %v2946
        %v2948 = vmul.f32 %v2854, %v2908
        %v2949 = vmul.f32 %v2869, %v2909
        %v2950 = vmul.f32 %v2892, %v2546
        %v2951 = vmul.f32 %v2907, %v2547
        %v2952 = vadd.f32 %v2948, %v2950
        %v2953 = vadd.f32 %v2949, %v2951
        %v2954 = vtanh.pop %v2952
        %v2955 = vtanh.pop %v2953
        %v2956 = vmul.f32 %v2932, %v2954
        %v2957 = vmul.f32 %v2947, %v2955
        %v2958 = vpack.c.bf16 %v2957, %v2956
        %2959 = vmatpush.bf16.msra.mxu0 %v2039
        %2960 = vmatpush.bf16.msra.mxu0 %v2038
        %2961 = vmatpush.bf16.msra.mxu0 %v2037
        %2962 = vmatpush.bf16.msra.mxu0 %v2036
        %2963 = vmatpush.bf16.msra.mxu0 %v2035
        %2964 = vmatpush.bf16.msra.mxu0 %v2034
        %2965 = vmatpush.bf16.msra.mxu0 %v2033
        %2966 = vmatpush.bf16.msra.mxu0 %v2032
        %2967 = vmatmul.bf16.gmra.mxu0 %v2958
        %v2968 = vpop.f32.mrf.mxu0
        %v2969 = vadd.f32 0.0, %v2968
        %v2970 = vpop.f32.mrf.mxu0
        %v2971 = vadd.f32 0.0, %v2970
        %2972 = vdwg.mxu0
        %v2973 = vsel %vm1344, 1, 0
        %v2974 = vsel %vm1345, 1, 0
        %2975 = vset.pattern.permute.xlu0 0
        %2976 = vperm.xlu0 %2975, %v2973
        %v2977 = vpop.permute.xlu0 %2976
        %2978 = vset.pattern.permute.xlu0 0
        %2979 = vperm.xlu0 %2978, %v2974
        %v2980 = vpop.permute.xlu0 %2979
        %vm2981 = vcmp.eq.s32.totalorder %v2977, 1
        %vm2982 = vcmp.eq.s32.totalorder %v2980, 1
        %v2983 = vsel %vm2981, %v2811, %v2527
        %v2984 = vsel %vm2982, %v2812, %v2528
        %v2985 = vsel %vm2981, %v2828, %v2529
        %v2986 = vsel %vm2982, %v2830, %v2530
        %v2987 = vsel %vm2981, %v2828, 0.0
        %v2988 = vsel %vm2982, %v2830, 0.0
        %s2989 = scalar_lea.vmem %s535, 32 [#allocation15]
        %2990 = vst.msk [vmem:[%s2989] sm:$0xff] %vm717, %v2987
        %2991 = vst.msk [vmem:[%s2989 + $0x8] sm:$0xff] %vm717, %v2988
        %v2992 = vsel %vm1374, 1, 0
        %v2993 = vsel %vm1375, 1, 0
        %2994 = vset.pattern.permute.xlu0 0
        %2995 = vperm.xlu0 %2994, %v2992
        %v2996 = vpop.permute.xlu0 %2995
        %2997 = vset.pattern.permute.xlu0 0
        %2998 = vperm.xlu0 %2997, %v2993
        %v2999 = vpop.permute.xlu0 %2998
        %vm3000 = vcmp.eq.s32.totalorder %v2996, 1
        %vm3001 = vcmp.eq.s32.totalorder %v2999, 1
        %v3002 = vsel %vm3000, %v2952, %v2546
        %v3003 = vsel %vm3001, %v2953, %v2547
        %v3004 = vsel %vm3000, %v2969, %v2548
        %v3005 = vsel %vm3001, %v2971, %v2549
        %v3006 = vsel %vm3000, %v2969, 0.0
        %v3007 = vsel %vm3001, %v2971, 0.0
        %s3008 = scalar_lea.vmem %s542, 80 [#allocation16]
        %3009 = vst.msk [vmem:[%s3008] sm:$0xff] %vm717, %v3006
        %3010 = vst.msk [vmem:[%s3008 + $0x8] sm:$0xff] %vm717, %v3007
        %v3011 = vpack.c.bf16 %v2986, %v2985
        %v3013 = vsel %vm717, %v3011, 0
        %3015 = vmatpush.bf16.msra.mxu0 0
        %3016 = vmatpush.bf16.msra.mxu0 0
        %3017 = vmatpush.bf16.msra.mxu0 0
        %3018 = vmatpush.bf16.msra.mxu0 0
        %3019 = vmatpush.bf16.msra.mxu0 %v1449
        %3020 = vmatpush.bf16.msra.mxu0 %v1445
        %3021 = vmatpush.bf16.msra.mxu0 %v1441
        %3022 = vmatpush.bf16.msra.mxu0 %v1437
        %3023 = vmatmul.bf16.gmra.mxu0 %v3013
        %v3024 = vpop.f32.mrf.mxu0
        %v3025 = vadd.f32 0.0, %v3024
        %v3026 = vpop.f32.mrf.mxu0
        %v3027 = vadd.f32 0.0, %v3026
        %3028 = vdwg.mxu0
        %3029 = vmatpush.bf16.msra.mxu0 0
        %3030 = vmatpush.bf16.msra.mxu0 0
        %3031 = vmatpush.bf16.msra.mxu0 0
        %3032 = vmatpush.bf16.msra.mxu0 0
        %3033 = vmatpush.bf16.msra.mxu0 %v1450
        %3034 = vmatpush.bf16.msra.mxu0 %v1446
        %3035 = vmatpush.bf16.msra.mxu0 %v1442
        %3036 = vmatpush.bf16.msra.mxu0 %v1438
        %3037 = vmatmul.bf16.gmra.mxu0 %v3013
        %v3038 = vpop.f32.mrf.mxu0
        %v3039 = vadd.f32 0.0, %v3038
        %v3040 = vpop.f32.mrf.mxu0
        %v3041 = vadd.f32 0.0, %v3040
        %3042 = vdwg.mxu0
        %3043 = vmatpush.bf16.msra.mxu0 0
        %3044 = vmatpush.bf16.msra.mxu0 0
        %3045 = vmatpush.bf16.msra.mxu0 0
        %3046 = vmatpush.bf16.msra.mxu0 0
        %3047 = vmatpush.bf16.msra.mxu0 %v1451
        %3048 = vmatpush.bf16.msra.mxu0 %v1447
        %3049 = vmatpush.bf16.msra.mxu0 %v1443
        %3050 = vmatpush.bf16.msra.mxu0 %v1439
        %3051 = vmatmul.bf16.gmra.mxu0 %v3013
        %v3052 = vpop.f32.mrf.mxu0
        %v3053 = vadd.f32 0.0, %v3052
        %v3054 = vpop.f32.mrf.mxu0
        %v3055 = vadd.f32 0.0, %v3054
        %3056 = vdwg.mxu0
        %3057 = vmatpush.bf16.msra.mxu0 0
        %3058 = vmatpush.bf16.msra.mxu0 0
        %3059 = vmatpush.bf16.msra.mxu0 0
        %3060 = vmatpush.bf16.msra.mxu0 0
        %3061 = vmatpush.bf16.msra.mxu0 %v1452
        %3062 = vmatpush.bf16.msra.mxu0 %v1448
        %3063 = vmatpush.bf16.msra.mxu0 %v1444
        %3064 = vmatpush.bf16.msra.mxu0 %v1440
        %3065 = vmatmul.bf16.gmra.mxu0 %v3013
        %v3066 = vpop.f32.mrf.mxu0
        %v3067 = vadd.f32 0.0, %v3066
        %v3068 = vpop.f32.mrf.mxu0
        %v3069 = vadd.f32 0.0, %v3068
        %3070 = vdwg.mxu0
        %v3071 = vadd.f32 %v767, %v3025
        %v3072 = vadd.f32 %v816, %v3039
        %v3073 = vadd.f32 %v865, %v3053
        %v3074 = vadd.f32 %v914, %v3067
        %v3075 = vadd.f32 %v769, %v3027
        %v3076 = vadd.f32 %v818, %v3041
        %v3077 = vadd.f32 %v867, %v3055
        %v3078 = vadd.f32 %v916, %v3069
        %v3079 = vpack.c.bf16 %v3005, %v3004
        %v3081 = vsel %vm717, %v3079, 0
        %3083 = vmatpush.bf16.msra.mxu0 0
        %3084 = vmatpush.bf16.msra.mxu0 0
        %3085 = vmatpush.bf16.msra.mxu0 0
        %3086 = vmatpush.bf16.msra.mxu0 0
        %3087 = vmatpush.bf16.msra.mxu0 %v1597
        %3088 = vmatpush.bf16.msra.mxu0 %v1593
        %3089 = vmatpush.bf16.msra.mxu0 %v1589
        %3090 = vmatpush.bf16.msra.mxu0 %v1585
        %3091 = vmatmul.bf16.gmra.mxu0 %v3081
        %v3092 = vpop.f32.mrf.mxu0
        %v3093 = vadd.f32 0.0, %v3092
        %v3094 = vpop.f32.mrf.mxu0
        %v3095 = vadd.f32 0.0, %v3094
        %3096 = vdwg.mxu0
        %3097 = vmatpush.bf16.msra.mxu0 0
        %3098 = vmatpush.bf16.msra.mxu0 0
        %3099 = vmatpush.bf16.msra.mxu0 0
        %3100 = vmatpush.bf16.msra.mxu0 0
        %3101 = vmatpush.bf16.msra.mxu0 %v1598
        %3102 = vmatpush.bf16.msra.mxu0 %v1594
        %3103 = vmatpush.bf16.msra.mxu0 %v1590
        %3104 = vmatpush.bf16.msra.mxu0 %v1586
        %3105 = vmatmul.bf16.gmra.mxu0 %v3081
        %v3106 = vpop.f32.mrf.mxu0
        %v3107 = vadd.f32 0.0, %v3106
        %v3108 = vpop.f32.mrf.mxu0
        %v3109 = vadd.f32 0.0, %v3108
        %3110 = vdwg.mxu0
        %3111 = vmatpush.bf16.msra.mxu0 0
        %3112 = vmatpush.bf16.msra.mxu0 0
        %3113 = vmatpush.bf16.msra.mxu0 0
        %3114 = vmatpush.bf16.msra.mxu0 0
        %3115 = vmatpush.bf16.msra.mxu0 %v1599
        %3116 = vmatpush.bf16.msra.mxu0 %v1595
        %3117 = vmatpush.bf16.msra.mxu0 %v1591
        %3118 = vmatpush.bf16.msra.mxu0 %v1587
        %3119 = vmatmul.bf16.gmra.mxu0 %v3081
        %v3120 = vpop.f32.mrf.mxu0
        %v3121 = vadd.f32 0.0, %v3120
        %v3122 = vpop.f32.mrf.mxu0
        %v3123 = vadd.f32 0.0, %v3122
        %3124 = vdwg.mxu0
        %3125 = vmatpush.bf16.msra.mxu0 0
        %3126 = vmatpush.bf16.msra.mxu0 0
        %3127 = vmatpush.bf16.msra.mxu0 0
        %3128 = vmatpush.bf16.msra.mxu0 0
        %3129 = vmatpush.bf16.msra.mxu0 %v1600
        %3130 = vmatpush.bf16.msra.mxu0 %v1596
        %3131 = vmatpush.bf16.msra.mxu0 %v1592
        %3132 = vmatpush.bf16.msra.mxu0 %v1588
        %3133 = vmatmul.bf16.gmra.mxu0 %v3081
        %v3134 = vpop.f32.mrf.mxu0
        %v3135 = vadd.f32 0.0, %v3134
        %v3136 = vpop.f32.mrf.mxu0
        %v3137 = vadd.f32 0.0, %v3136
        %3138 = vdwg.mxu0
        %v3139 = vadd.f32 %v1098, %v3093
        %v3140 = vadd.f32 %v1147, %v3107
        %v3141 = vadd.f32 %v1196, %v3121
        %v3142 = vadd.f32 %v1245, %v3135
        %v3143 = vadd.f32 %v1100, %v3095
        %v3144 = vadd.f32 %v1149, %v3109
        %v3145 = vadd.f32 %v1198, %v3123
        %v3146 = vadd.f32 %v1247, %v3137
        %v3147 = vxor.u32 %v3071, 2147483648
        %v3148 = vxor.u32 %v3075, 2147483648
        %v3149 = vmul.f32 %v3147, 1.442695
        %v3150 = vpow.pop %v3149
        %v3151 = vmul.f32 %v3148, 1.442695
        %v3152 = vpow.pop %v3151
        %v3153 = vadd.f32 %v3150, 1.0
        %v3154 = vadd.f32 %v3152, 1.0
        %v3155 = vrcp.pop %v3153
        %v3156 = vmul.f32 %v3153, %v3155
        %v3157 = vsub.f32 1.0, %v3156
        %v3158 = vmul.f32 %v3155, %v3157
        %v3159 = vadd.f32 %v3155, %v3158
        %vm3160 = vweird.f32 %v3153
        %vm3161 = vweird.f32 %v3155
        %vm3162 = vmor %vm3160, %vm3161
        %v3163 = vsel %vm3162, %v3155, %v3159
        %v3164 = vand.u32 2147483647, %v3153
        %vm3165 = vcmp.eq.f32.partialorder %v3164, 8.507059e+37
        %v3166 = vand.u32 %v3153, 2147483648
        %v3167 = vor.u32 1.1754944e-38, %v3166
        %v3168 = vsel %vm3165, %v3167, %v3163
        %v3169 = vmul.f32 1.0, %v3168
        %v3170 = vrcp.pop %v3154
        %v3171 = vmul.f32 %v3154, %v3170
        %v3172 = vsub.f32 1.0, %v3171
        %v3173 = vmul.f32 %v3170, %v3172
        %v3174 = vadd.f32 %v3170, %v3173
        %vm3175 = vweird.f32 %v3154
        %vm3176 = vweird.f32 %v3170
        %vm3177 = vmor %vm3175, %vm3176
        %v3178 = vsel %vm3177, %v3170, %v3174
        %v3179 = vand.u32 2147483647, %v3154
        %vm3180 = vcmp.eq.f32.partialorder %v3179, 8.507059e+37
        %v3181 = vand.u32 %v3154, 2147483648
        %v3182 = vor.u32 1.1754944e-38, %v3181
        %v3183 = vsel %vm3180, %v3182, %v3178
        %v3184 = vmul.f32 1.0, %v3183
        %v3185 = vxor.u32 %v3072, 2147483648
        %v3186 = vxor.u32 %v3076, 2147483648
        %v3187 = vmul.f32 %v3185, 1.442695
        %v3188 = vpow.pop %v3187
        %v3189 = vmul.f32 %v3186, 1.442695
        %v3190 = vpow.pop %v3189
        %v3191 = vadd.f32 %v3188, 1.0
        %v3192 = vadd.f32 %v3190, 1.0
        %v3193 = vrcp.pop %v3191
        %v3194 = vmul.f32 %v3191, %v3193
        %v3195 = vsub.f32 1.0, %v3194
        %v3196 = vmul.f32 %v3193, %v3195
        %v3197 = vadd.f32 %v3193, %v3196
        %vm3198 = vweird.f32 %v3191
        %vm3199 = vweird.f32 %v3193
        %vm3200 = vmor %vm3198, %vm3199
        %v3201 = vsel %vm3200, %v3193, %v3197
        %v3202 = vand.u32 2147483647, %v3191
        %vm3203 = vcmp.eq.f32.partialorder %v3202, 8.507059e+37
        %v3204 = vand.u32 %v3191, 2147483648
        %v3205 = vor.u32 1.1754944e-38, %v3204
        %v3206 = vsel %vm3203, %v3205, %v3201
        %v3207 = vmul.f32 1.0, %v3206
        %v3208 = vrcp.pop %v3192
        %v3209 = vmul.f32 %v3192, %v3208
        %v3210 = vsub.f32 1.0, %v3209
        %v3211 = vmul.f32 %v3208, %v3210
        %v3212 = vadd.f32 %v3208, %v3211
        %vm3213 = vweird.f32 %v3192
        %vm3214 = vweird.f32 %v3208
        %vm3215 = vmor %vm3213, %vm3214
        %v3216 = vsel %vm3215, %v3208, %v3212
        %v3217 = vand.u32 2147483647, %v3192
        %vm3218 = vcmp.eq.f32.partialorder %v3217, 8.507059e+37
        %v3219 = vand.u32 %v3192, 2147483648
        %v3220 = vor.u32 1.1754944e-38, %v3219
        %v3221 = vsel %vm3218, %v3220, %v3216
        %v3222 = vmul.f32 1.0, %v3221
        %v3223 = vtanh.pop %v3073
        %v3224 = vtanh.pop %v3077
        %v3225 = vxor.u32 %v3074, 2147483648
        %v3226 = vxor.u32 %v3078, 2147483648
        %v3227 = vmul.f32 %v3225, 1.442695
        %v3228 = vpow.pop %v3227
        %v3229 = vmul.f32 %v3226, 1.442695
        %v3230 = vpow.pop %v3229
        %v3231 = vadd.f32 %v3228, 1.0
        %v3232 = vadd.f32 %v3230, 1.0
        %v3233 = vrcp.pop %v3231
        %v3234 = vmul.f32 %v3231, %v3233
        %v3235 = vsub.f32 1.0, %v3234
        %v3236 = vmul.f32 %v3233, %v3235
        %v3237 = vadd.f32 %v3233, %v3236
        %vm3238 = vweird.f32 %v3231
        %vm3239 = vweird.f32 %v3233
        %vm3240 = vmor %vm3238, %vm3239
        %v3241 = vsel %vm3240, %v3233, %v3237
        %v3242 = vand.u32 2147483647, %v3231
        %vm3243 = vcmp.eq.f32.partialorder %v3242, 8.507059e+37
        %v3244 = vand.u32 %v3231, 2147483648
        %v3245 = vor.u32 1.1754944e-38, %v3244
        %v3246 = vsel %vm3243, %v3245, %v3241
        %v3247 = vmul.f32 1.0, %v3246
        %v3248 = vrcp.pop %v3232
        %v3249 = vmul.f32 %v3232, %v3248
        %v3250 = vsub.f32 1.0, %v3249
        %v3251 = vmul.f32 %v3248, %v3250
        %v3252 = vadd.f32 %v3248, %v3251
        %vm3253 = vweird.f32 %v3232
        %vm3254 = vweird.f32 %v3248
        %vm3255 = vmor %vm3253, %vm3254
        %v3256 = vsel %vm3255, %v3248, %v3252
        %v3257 = vand.u32 2147483647, %v3232
        %vm3258 = vcmp.eq.f32.partialorder %v3257, 8.507059e+37
        %v3259 = vand.u32 %v3232, 2147483648
        %v3260 = vor.u32 1.1754944e-38, %v3259
        %v3261 = vsel %vm3258, %v3260, %v3256
        %v3262 = vmul.f32 1.0, %v3261
        %v3263 = vmul.f32 %v3169, %v3223
        %v3264 = vmul.f32 %v3184, %v3224
        %v3265 = vmul.f32 %v3207, %v2983
        %v3266 = vmul.f32 %v3222, %v2984
        %v3267 = vadd.f32 %v3263, %v3265
        %v3268 = vadd.f32 %v3264, %v3266
        %v3269 = vtanh.pop %v3267
        %v3270 = vtanh.pop %v3268
        %v3271 = vmul.f32 %v3247, %v3269
        %v3272 = vmul.f32 %v3262, %v3270
        %v3273 = vpack.c.bf16 %v3272, %v3271
        %3274 = vmatpush.bf16.msra.mxu0 %v1850
        %3275 = vmatpush.bf16.msra.mxu0 %v1849
        %3276 = vmatpush.bf16.msra.mxu0 %v1848
        %3277 = vmatpush.bf16.msra.mxu0 %v1847
        %3278 = vmatpush.bf16.msra.mxu0 %v1846
        %3279 = vmatpush.bf16.msra.mxu0 %v1845
        %3280 = vmatpush.bf16.msra.mxu0 %v1844
        %3281 = vmatpush.bf16.msra.mxu0 %v1843
        %3282 = vmatmul.bf16.gmra.mxu0 %v3273
        %v3283 = vpop.f32.mrf.mxu0
        %v3284 = vadd.f32 0.0, %v3283
        %v3285 = vpop.f32.mrf.mxu0
        %v3286 = vadd.f32 0.0, %v3285
        %3287 = vdwg.mxu0
        %v3288 = vxor.u32 %v3139, 2147483648
        %v3289 = vxor.u32 %v3143, 2147483648
        %v3290 = vmul.f32 %v3288, 1.442695
        %v3291 = vpow.pop %v3290
        %v3292 = vmul.f32 %v3289, 1.442695
        %v3293 = vpow.pop %v3292
        %v3294 = vadd.f32 %v3291, 1.0
        %v3295 = vadd.f32 %v3293, 1.0
        %v3296 = vrcp.pop %v3294
        %v3297 = vmul.f32 %v3294, %v3296
        %v3298 = vsub.f32 1.0, %v3297
        %v3299 = vmul.f32 %v3296, %v3298
        %v3300 = vadd.f32 %v3296, %v3299
        %vm3301 = vweird.f32 %v3294
        %vm3302 = vweird.f32 %v3296
        %vm3303 = vmor %vm3301, %vm3302
        %v3304 = vsel %vm3303, %v3296, %v3300
        %v3305 = vand.u32 2147483647, %v3294
        %vm3306 = vcmp.eq.f32.partialorder %v3305, 8.507059e+37
        %v3307 = vand.u32 %v3294, 2147483648
        %v3308 = vor.u32 1.1754944e-38, %v3307
        %v3309 = vsel %vm3306, %v3308, %v3304
        %v3310 = vmul.f32 1.0, %v3309
        %v3311 = vrcp.pop %v3295
        %v3312 = vmul.f32 %v3295, %v3311
        %v3313 = vsub.f32 1.0, %v3312
        %v3314 = vmul.f32 %v3311, %v3313
        %v3315 = vadd.f32 %v3311, %v3314
        %vm3316 = vweird.f32 %v3295
        %vm3317 = vweird.f32 %v3311
        %vm3318 = vmor %vm3316, %vm3317
        %v3319 = vsel %vm3318, %v3311, %v3315
        %v3320 = vand.u32 2147483647, %v3295
        %vm3321 = vcmp.eq.f32.partialorder %v3320, 8.507059e+37
        %v3322 = vand.u32 %v3295, 2147483648
        %v3323 = vor.u32 1.1754944e-38, %v3322
        %v3324 = vsel %vm3321, %v3323, %v3319
        %v3325 = vmul.f32 1.0, %v3324
        %v3326 = vxor.u32 %v3140, 2147483648
        %v3327 = vxor.u32 %v3144, 2147483648
        %v3328 = vmul.f32 %v3326, 1.442695
        %v3329 = vpow.pop %v3328
        %v3330 = vmul.f32 %v3327, 1.442695
        %v3331 = vpow.pop %v3330
        %v3332 = vadd.f32 %v3329, 1.0
        %v3333 = vadd.f32 %v3331, 1.0
        %v3334 = vrcp.pop %v3332
        %v3335 = vmul.f32 %v3332, %v3334
        %v3336 = vsub.f32 1.0, %v3335
        %v3337 = vmul.f32 %v3334, %v3336
        %v3338 = vadd.f32 %v3334, %v3337
        %vm3339 = vweird.f32 %v3332
        %vm3340 = vweird.f32 %v3334
        %vm3341 = vmor %vm3339, %vm3340
        %v3342 = vsel %vm3341, %v3334, %v3338
        %v3343 = vand.u32 2147483647, %v3332
        %vm3344 = vcmp.eq.f32.partialorder %v3343, 8.507059e+37
        %v3345 = vand.u32 %v3332, 2147483648
        %v3346 = vor.u32 1.1754944e-38, %v3345
        %v3347 = vsel %vm3344, %v3346, %v3342
        %v3348 = vmul.f32 1.0, %v3347
        %v3349 = vrcp.pop %v3333
        %v3350 = vmul.f32 %v3333, %v3349
        %v3351 = vsub.f32 1.0, %v3350
        %v3352 = vmul.f32 %v3349, %v3351
        %v3353 = vadd.f32 %v3349, %v3352
        %vm3354 = vweird.f32 %v3333
        %vm3355 = vweird.f32 %v3349
        %vm3356 = vmor %vm3354, %vm3355
        %v3357 = vsel %vm3356, %v3349, %v3353
        %v3358 = vand.u32 2147483647, %v3333
        %vm3359 = vcmp.eq.f32.partialorder %v3358, 8.507059e+37
        %v3360 = vand.u32 %v3333, 2147483648
        %v3361 = vor.u32 1.1754944e-38, %v3360
        %v3362 = vsel %vm3359, %v3361, %v3357
        %v3363 = vmul.f32 1.0, %v3362
        %v3364 = vtanh.pop %v3141
        %v3365 = vtanh.pop %v3145
        %v3366 = vxor.u32 %v3142, 2147483648
        %v3367 = vxor.u32 %v3146, 2147483648
        %v3368 = vmul.f32 %v3366, 1.442695
        %v3369 = vpow.pop %v3368
        %v3370 = vmul.f32 %v3367, 1.442695
        %v3371 = vpow.pop %v3370
        %v3372 = vadd.f32 %v3369, 1.0
        %v3373 = vadd.f32 %v3371, 1.0
        %v3374 = vrcp.pop %v3372
        %v3375 = vmul.f32 %v3372, %v3374
        %v3376 = vsub.f32 1.0, %v3375
        %v3377 = vmul.f32 %v3374, %v3376
        %v3378 = vadd.f32 %v3374, %v3377
        %vm3379 = vweird.f32 %v3372
        %vm3380 = vweird.f32 %v3374
        %vm3381 = vmor %vm3379, %vm3380
        %v3382 = vsel %vm3381, %v3374, %v3378
        %v3383 = vand.u32 2147483647, %v3372
        %vm3384 = vcmp.eq.f32.partialorder %v3383, 8.507059e+37
        %v3385 = vand.u32 %v3372, 2147483648
        %v3386 = vor.u32 1.1754944e-38, %v3385
        %v3387 = vsel %vm3384, %v3386, %v3382
        %v3388 = vmul.f32 1.0, %v3387
        %v3389 = vrcp.pop %v3373
        %v3390 = vmul.f32 %v3373, %v3389
        %v3391 = vsub.f32 1.0, %v3390
        %v3392 = vmul.f32 %v3389, %v3391
        %v3393 = vadd.f32 %v3389, %v3392
        %vm3394 = vweird.f32 %v3373
        %vm3395 = vweird.f32 %v3389
        %vm3396 = vmor %vm3394, %vm3395
        %v3397 = vsel %vm3396, %v3389, %v3393
        %v3398 = vand.u32 2147483647, %v3373
        %vm3399 = vcmp.eq.f32.partialorder %v3398, 8.507059e+37
        %v3400 = vand.u32 %v3373, 2147483648
        %v3401 = vor.u32 1.1754944e-38, %v3400
        %v3402 = vsel %vm3399, %v3401, %v3397
        %v3403 = vmul.f32 1.0, %v3402
        %v3404 = vmul.f32 %v3310, %v3364
        %v3405 = vmul.f32 %v3325, %v3365
        %v3406 = vmul.f32 %v3348, %v3002
        %v3407 = vmul.f32 %v3363, %v3003
        %v3408 = vadd.f32 %v3404, %v3406
        %v3409 = vadd.f32 %v3405, %v3407
        %v3410 = vtanh.pop %v3408
        %v3411 = vtanh.pop %v3409
        %v3412 = vmul.f32 %v3388, %v3410
        %v3413 = vmul.f32 %v3403, %v3411
        %v3414 = vpack.c.bf16 %v3413, %v3412
        %3415 = vmatpush.bf16.msra.mxu0 %v2039
        %3416 = vmatpush.bf16.msra.mxu0 %v2038
        %3417 = vmatpush.bf16.msra.mxu0 %v2037
        %3418 = vmatpush.bf16.msra.mxu0 %v2036
        %3419 = vmatpush.bf16.msra.mxu0 %v2035
        %3420 = vmatpush.bf16.msra.mxu0 %v2034
        %3421 = vmatpush.bf16.msra.mxu0 %v2033
        %3422 = vmatpush.bf16.msra.mxu0 %v2032
        %3423 = vmatmul.bf16.gmra.mxu0 %v3414
        %v3424 = vpop.f32.mrf.mxu0
        %v3425 = vadd.f32 0.0, %v3424
        %v3426 = vpop.f32.mrf.mxu0
        %v3427 = vadd.f32 0.0, %v3426
        %3428 = vdwg.mxu0
        %v3429 = vsel %vm1346, 1, 0
        %v3430 = vsel %vm1347, 1, 0
        %3431 = vset.pattern.permute.xlu0 0
        %3432 = vperm.xlu0 %3431, %v3429
        %v3433 = vpop.permute.xlu0 %3432
        %3434 = vset.pattern.permute.xlu0 0
        %3435 = vperm.xlu0 %3434, %v3430
        %v3436 = vpop.permute.xlu0 %3435
        %vm3437 = vcmp.eq.s32.totalorder %v3433, 1
        %vm3438 = vcmp.eq.s32.totalorder %v3436, 1
        %v3439 = vsel %vm3437, %v3267, %v2983
        %v3440 = vsel %vm3438, %v3268, %v2984
        %v3441 = vsel %vm3437, %v3284, %v2985
        %v3442 = vsel %vm3438, %v3286, %v2986
        %v3443 = vsel %vm3437, %v3284, 0.0
        %v3444 = vsel %vm3438, %v3286, 0.0
        %s3445 = scalar_lea.vmem %s535, 48 [#allocation15]
        %3446 = vst.msk [vmem:[%s3445] sm:$0xff] %vm717, %v3443
        %3447 = vst.msk [vmem:[%s3445 + $0x8] sm:$0xff] %vm717, %v3444
        %v3448 = vsel %vm1372, 1, 0
        %v3449 = vsel %vm1373, 1, 0
        %3450 = vset.pattern.permute.xlu0 0
        %3451 = vperm.xlu0 %3450, %v3448
        %v3452 = vpop.permute.xlu0 %3451
        %3453 = vset.pattern.permute.xlu0 0
        %3454 = vperm.xlu0 %3453, %v3449
        %v3455 = vpop.permute.xlu0 %3454
        %vm3456 = vcmp.eq.s32.totalorder %v3452, 1
        %vm3457 = vcmp.eq.s32.totalorder %v3455, 1
        %v3458 = vsel %vm3456, %v3408, %v3002
        %v3459 = vsel %vm3457, %v3409, %v3003
        %v3460 = vsel %vm3456, %v3425, %v3004
        %v3461 = vsel %vm3457, %v3427, %v3005
        %v3462 = vsel %vm3456, %v3425, 0.0
        %v3463 = vsel %vm3457, %v3427, 0.0
        %s3464 = scalar_lea.vmem %s542, 64 [#allocation16]
        %3465 = vst.msk [vmem:[%s3464] sm:$0xff] %vm717, %v3462
        %3466 = vst.msk [vmem:[%s3464 + $0x8] sm:$0xff] %vm717, %v3463
        %v3467 = vpack.c.bf16 %v3442, %v3441
        %v3469 = vsel %vm717, %v3467, 0
        %3471 = vmatpush.bf16.msra.mxu0 0
        %3472 = vmatpush.bf16.msra.mxu0 0
        %3473 = vmatpush.bf16.msra.mxu0 0
        %3474 = vmatpush.bf16.msra.mxu0 0
        %3475 = vmatpush.bf16.msra.mxu0 %v1449
        %3476 = vmatpush.bf16.msra.mxu0 %v1445
        %3477 = vmatpush.bf16.msra.mxu0 %v1441
        %3478 = vmatpush.bf16.msra.mxu0 %v1437
        %3479 = vmatmul.bf16.gmra.mxu0 %v3469
        %v3480 = vpop.f32.mrf.mxu0
        %v3481 = vadd.f32 0.0, %v3480
        %v3482 = vpop.f32.mrf.mxu0
        %v3483 = vadd.f32 0.0, %v3482
        %3484 = vdwg.mxu0
        %3485 = vmatpush.bf16.msra.mxu0 0
        %3486 = vmatpush.bf16.msra.mxu0 0
        %3487 = vmatpush.bf16.msra.mxu0 0
        %3488 = vmatpush.bf16.msra.mxu0 0
        %3489 = vmatpush.bf16.msra.mxu0 %v1450
        %3490 = vmatpush.bf16.msra.mxu0 %v1446
        %3491 = vmatpush.bf16.msra.mxu0 %v1442
        %3492 = vmatpush.bf16.msra.mxu0 %v1438
        %3493 = vmatmul.bf16.gmra.mxu0 %v3469
        %v3494 = vpop.f32.mrf.mxu0
        %v3495 = vadd.f32 0.0, %v3494
        %v3496 = vpop.f32.mrf.mxu0
        %v3497 = vadd.f32 0.0, %v3496
        %3498 = vdwg.mxu0
        %3499 = vmatpush.bf16.msra.mxu0 0
        %3500 = vmatpush.bf16.msra.mxu0 0
        %3501 = vmatpush.bf16.msra.mxu0 0
        %3502 = vmatpush.bf16.msra.mxu0 0
        %3503 = vmatpush.bf16.msra.mxu0 %v1451
        %3504 = vmatpush.bf16.msra.mxu0 %v1447
        %3505 = vmatpush.bf16.msra.mxu0 %v1443
        %3506 = vmatpush.bf16.msra.mxu0 %v1439
        %3507 = vmatmul.bf16.gmra.mxu0 %v3469
        %v3508 = vpop.f32.mrf.mxu0
        %v3509 = vadd.f32 0.0, %v3508
        %v3510 = vpop.f32.mrf.mxu0
        %v3511 = vadd.f32 0.0, %v3510
        %3512 = vdwg.mxu0
        %3513 = vmatpush.bf16.msra.mxu0 0
        %3514 = vmatpush.bf16.msra.mxu0 0
        %3515 = vmatpush.bf16.msra.mxu0 0
        %3516 = vmatpush.bf16.msra.mxu0 0
        %3517 = vmatpush.bf16.msra.mxu0 %v1452
        %3518 = vmatpush.bf16.msra.mxu0 %v1448
        %3519 = vmatpush.bf16.msra.mxu0 %v1444
        %3520 = vmatpush.bf16.msra.mxu0 %v1440
        %3521 = vmatmul.bf16.gmra.mxu0 %v3469
        %v3522 = vpop.f32.mrf.mxu0
        %v3523 = vadd.f32 0.0, %v3522
        %v3524 = vpop.f32.mrf.mxu0
        %v3525 = vadd.f32 0.0, %v3524
        %3526 = vdwg.mxu0
        %v3527 = vadd.f32 %v772, %v3481
        %v3528 = vadd.f32 %v821, %v3495
        %v3529 = vadd.f32 %v870, %v3509
        %v3530 = vadd.f32 %v919, %v3523
        %v3531 = vadd.f32 %v774, %v3483
        %v3532 = vadd.f32 %v823, %v3497
        %v3533 = vadd.f32 %v872, %v3511
        %v3534 = vadd.f32 %v921, %v3525
        %v3535 = vpack.c.bf16 %v3461, %v3460
        %v3537 = vsel %vm717, %v3535, 0
        %3539 = vmatpush.bf16.msra.mxu0 0
        %3540 = vmatpush.bf16.msra.mxu0 0
        %3541 = vmatpush.bf16.msra.mxu0 0
        %3542 = vmatpush.bf16.msra.mxu0 0
        %3543 = vmatpush.bf16.msra.mxu0 %v1597
        %3544 = vmatpush.bf16.msra.mxu0 %v1593
        %3545 = vmatpush.bf16.msra.mxu0 %v1589
        %3546 = vmatpush.bf16.msra.mxu0 %v1585
        %3547 = vmatmul.bf16.gmra.mxu0 %v3537
        %v3548 = vpop.f32.mrf.mxu0
        %v3549 = vadd.f32 0.0, %v3548
        %v3550 = vpop.f32.mrf.mxu0
        %v3551 = vadd.f32 0.0, %v3550
        %3552 = vdwg.mxu0
        %3553 = vmatpush.bf16.msra.mxu0 0
        %3554 = vmatpush.bf16.msra.mxu0 0
        %3555 = vmatpush.bf16.msra.mxu0 0
        %3556 = vmatpush.bf16.msra.mxu0 0
        %3557 = vmatpush.bf16.msra.mxu0 %v1598
        %3558 = vmatpush.bf16.msra.mxu0 %v1594
        %3559 = vmatpush.bf16.msra.mxu0 %v1590
        %3560 = vmatpush.bf16.msra.mxu0 %v1586
        %3561 = vmatmul.bf16.gmra.mxu0 %v3537
        %v3562 = vpop.f32.mrf.mxu0
        %v3563 = vadd.f32 0.0, %v3562
        %v3564 = vpop.f32.mrf.mxu0
        %v3565 = vadd.f32 0.0, %v3564
        %3566 = vdwg.mxu0
        %3567 = vmatpush.bf16.msra.mxu0 0
        %3568 = vmatpush.bf16.msra.mxu0 0
        %3569 = vmatpush.bf16.msra.mxu0 0
        %3570 = vmatpush.bf16.msra.mxu0 0
        %3571 = vmatpush.bf16.msra.mxu0 %v1599
        %3572 = vmatpush.bf16.msra.mxu0 %v1595
        %3573 = vmatpush.bf16.msra.mxu0 %v1591
        %3574 = vmatpush.bf16.msra.mxu0 %v1587
        %3575 = vmatmul.bf16.gmra.mxu0 %v3537
        %v3576 = vpop.f32.mrf.mxu0
        %v3577 = vadd.f32 0.0, %v3576
        %v3578 = vpop.f32.mrf.mxu0
        %v3579 = vadd.f32 0.0, %v3578
        %3580 = vdwg.mxu0
        %3581 = vmatpush.bf16.msra.mxu0 0
        %3582 = vmatpush.bf16.msra.mxu0 0
        %3583 = vmatpush.bf16.msra.mxu0 0
        %3584 = vmatpush.bf16.msra.mxu0 0
        %3585 = vmatpush.bf16.msra.mxu0 %v1600
        %3586 = vmatpush.bf16.msra.mxu0 %v1596
        %3587 = vmatpush.bf16.msra.mxu0 %v1592
        %3588 = vmatpush.bf16.msra.mxu0 %v1588
        %3589 = vmatmul.bf16.gmra.mxu0 %v3537
        %v3590 = vpop.f32.mrf.mxu0
        %v3591 = vadd.f32 0.0, %v3590
        %v3592 = vpop.f32.mrf.mxu0
        %v3593 = vadd.f32 0.0, %v3592
        %3594 = vdwg.mxu0
        %v3595 = vadd.f32 %v1093, %v3549
        %v3596 = vadd.f32 %v1142, %v3563
        %v3597 = vadd.f32 %v1191, %v3577
        %v3598 = vadd.f32 %v1240, %v3591
        %v3599 = vadd.f32 %v1095, %v3551
        %v3600 = vadd.f32 %v1144, %v3565
        %v3601 = vadd.f32 %v1193, %v3579
        %v3602 = vadd.f32 %v1242, %v3593
        %v3603 = vxor.u32 %v3527, 2147483648
        %v3604 = vxor.u32 %v3531, 2147483648
        %v3605 = vmul.f32 %v3603, 1.442695
        %v3606 = vpow.pop %v3605
        %v3607 = vmul.f32 %v3604, 1.442695
        %v3608 = vpow.pop %v3607
        %v3609 = vadd.f32 %v3606, 1.0
        %v3610 = vadd.f32 %v3608, 1.0
        %v3611 = vrcp.pop %v3609
        %v3612 = vmul.f32 %v3609, %v3611
        %v3613 = vsub.f32 1.0, %v3612
        %v3614 = vmul.f32 %v3611, %v3613
        %v3615 = vadd.f32 %v3611, %v3614
        %vm3616 = vweird.f32 %v3609
        %vm3617 = vweird.f32 %v3611
        %vm3618 = vmor %vm3616, %vm3617
        %v3619 = vsel %vm3618, %v3611, %v3615
        %v3620 = vand.u32 2147483647, %v3609
        %vm3621 = vcmp.eq.f32.partialorder %v3620, 8.507059e+37
        %v3622 = vand.u32 %v3609, 2147483648
        %v3623 = vor.u32 1.1754944e-38, %v3622
        %v3624 = vsel %vm3621, %v3623, %v3619
        %v3625 = vmul.f32 1.0, %v3624
        %v3626 = vrcp.pop %v3610
        %v3627 = vmul.f32 %v3610, %v3626
        %v3628 = vsub.f32 1.0, %v3627
        %v3629 = vmul.f32 %v3626, %v3628
        %v3630 = vadd.f32 %v3626, %v3629
        %vm3631 = vweird.f32 %v3610
        %vm3632 = vweird.f32 %v3626
        %vm3633 = vmor %vm3631, %vm3632
        %v3634 = vsel %vm3633, %v3626, %v3630
        %v3635 = vand.u32 2147483647, %v3610
        %vm3636 = vcmp.eq.f32.partialorder %v3635, 8.507059e+37
        %v3637 = vand.u32 %v3610, 2147483648
        %v3638 = vor.u32 1.1754944e-38, %v3637
        %v3639 = vsel %vm3636, %v3638, %v3634
        %v3640 = vmul.f32 1.0, %v3639
        %v3641 = vxor.u32 %v3528, 2147483648
        %v3642 = vxor.u32 %v3532, 2147483648
        %v3643 = vmul.f32 %v3641, 1.442695
        %v3644 = vpow.pop %v3643
        %v3645 = vmul.f32 %v3642, 1.442695
        %v3646 = vpow.pop %v3645
        %v3647 = vadd.f32 %v3644, 1.0
        %v3648 = vadd.f32 %v3646, 1.0
        %v3649 = vrcp.pop %v3647
        %v3650 = vmul.f32 %v3647, %v3649
        %v3651 = vsub.f32 1.0, %v3650
        %v3652 = vmul.f32 %v3649, %v3651
        %v3653 = vadd.f32 %v3649, %v3652
        %vm3654 = vweird.f32 %v3647
        %vm3655 = vweird.f32 %v3649
        %vm3656 = vmor %vm3654, %vm3655
        %v3657 = vsel %vm3656, %v3649, %v3653
        %v3658 = vand.u32 2147483647, %v3647
        %vm3659 = vcmp.eq.f32.partialorder %v3658, 8.507059e+37
        %v3660 = vand.u32 %v3647, 2147483648
        %v3661 = vor.u32 1.1754944e-38, %v3660
        %v3662 = vsel %vm3659, %v3661, %v3657
        %v3663 = vmul.f32 1.0, %v3662
        %v3664 = vrcp.pop %v3648
        %v3665 = vmul.f32 %v3648, %v3664
        %v3666 = vsub.f32 1.0, %v3665
        %v3667 = vmul.f32 %v3664, %v3666
        %v3668 = vadd.f32 %v3664, %v3667
        %vm3669 = vweird.f32 %v3648
        %vm3670 = vweird.f32 %v3664
        %vm3671 = vmor %vm3669, %vm3670
        %v3672 = vsel %vm3671, %v3664, %v3668
        %v3673 = vand.u32 2147483647, %v3648
        %vm3674 = vcmp.eq.f32.partialorder %v3673, 8.507059e+37
        %v3675 = vand.u32 %v3648, 2147483648
        %v3676 = vor.u32 1.1754944e-38, %v3675
        %v3677 = vsel %vm3674, %v3676, %v3672
        %v3678 = vmul.f32 1.0, %v3677
        %v3679 = vtanh.pop %v3529
        %v3680 = vtanh.pop %v3533
        %v3681 = vxor.u32 %v3530, 2147483648
        %v3682 = vxor.u32 %v3534, 2147483648
        %v3683 = vmul.f32 %v3681, 1.442695
        %v3684 = vpow.pop %v3683
        %v3685 = vmul.f32 %v3682, 1.442695
        %v3686 = vpow.pop %v3685
        %v3687 = vadd.f32 %v3684, 1.0
        %v3688 = vadd.f32 %v3686, 1.0
        %v3689 = vrcp.pop %v3687
        %v3690 = vmul.f32 %v3687, %v3689
        %v3691 = vsub.f32 1.0, %v3690
        %v3692 = vmul.f32 %v3689, %v3691
        %v3693 = vadd.f32 %v3689, %v3692
        %vm3694 = vweird.f32 %v3687
        %vm3695 = vweird.f32 %v3689
        %vm3696 = vmor %vm3694, %vm3695
        %v3697 = vsel %vm3696, %v3689, %v3693
        %v3698 = vand.u32 2147483647, %v3687
        %vm3699 = vcmp.eq.f32.partialorder %v3698, 8.507059e+37
        %v3700 = vand.u32 %v3687, 2147483648
        %v3701 = vor.u32 1.1754944e-38, %v3700
        %v3702 = vsel %vm3699, %v3701, %v3697
        %v3703 = vmul.f32 1.0, %v3702
        %v3704 = vrcp.pop %v3688
        %v3705 = vmul.f32 %v3688, %v3704
        %v3706 = vsub.f32 1.0, %v3705
        %v3707 = vmul.f32 %v3704, %v3706
        %v3708 = vadd.f32 %v3704, %v3707
        %vm3709 = vweird.f32 %v3688
        %vm3710 = vweird.f32 %v3704
        %vm3711 = vmor %vm3709, %vm3710
        %v3712 = vsel %vm3711, %v3704, %v3708
        %v3713 = vand.u32 2147483647, %v3688
        %vm3714 = vcmp.eq.f32.partialorder %v3713, 8.507059e+37
        %v3715 = vand.u32 %v3688, 2147483648
        %v3716 = vor.u32 1.1754944e-38, %v3715
        %v3717 = vsel %vm3714, %v3716, %v3712
        %v3718 = vmul.f32 1.0, %v3717
        %v3719 = vmul.f32 %v3625, %v3679
        %v3720 = vmul.f32 %v3640, %v3680
        %v3721 = vmul.f32 %v3663, %v3439
        %v3722 = vmul.f32 %v3678, %v3440
        %v3723 = vadd.f32 %v3719, %v3721
        %v3724 = vadd.f32 %v3720, %v3722
        %v3725 = vtanh.pop %v3723
        %v3726 = vtanh.pop %v3724
        %v3727 = vmul.f32 %v3703, %v3725
        %v3728 = vmul.f32 %v3718, %v3726
        %v3729 = vpack.c.bf16 %v3728, %v3727
        %3730 = vmatpush.bf16.msra.mxu0 %v1850
        %3731 = vmatpush.bf16.msra.mxu0 %v1849
        %3732 = vmatpush.bf16.msra.mxu0 %v1848
        %3733 = vmatpush.bf16.msra.mxu0 %v1847
        %3734 = vmatpush.bf16.msra.mxu0 %v1846
        %3735 = vmatpush.bf16.msra.mxu0 %v1845
        %3736 = vmatpush.bf16.msra.mxu0 %v1844
        %3737 = vmatpush.bf16.msra.mxu0 %v1843
        %3738 = vmatmul.bf16.gmra.mxu0 %v3729
        %v3739 = vpop.f32.mrf.mxu0
        %v3740 = vadd.f32 0.0, %v3739
        %v3741 = vpop.f32.mrf.mxu0
        %v3742 = vadd.f32 0.0, %v3741
        %3743 = vdwg.mxu0
        %v3744 = vxor.u32 %v3595, 2147483648
        %v3745 = vxor.u32 %v3599, 2147483648
        %v3746 = vmul.f32 %v3744, 1.442695
        %v3747 = vpow.pop %v3746
        %v3748 = vmul.f32 %v3745, 1.442695
        %v3749 = vpow.pop %v3748
        %v3750 = vadd.f32 %v3747, 1.0
        %v3751 = vadd.f32 %v3749, 1.0
        %v3752 = vrcp.pop %v3750
        %v3753 = vmul.f32 %v3750, %v3752
        %v3754 = vsub.f32 1.0, %v3753
        %v3755 = vmul.f32 %v3752, %v3754
        %v3756 = vadd.f32 %v3752, %v3755
        %vm3757 = vweird.f32 %v3750
        %vm3758 = vweird.f32 %v3752
        %vm3759 = vmor %vm3757, %vm3758
        %v3760 = vsel %vm3759, %v3752, %v3756
        %v3761 = vand.u32 2147483647, %v3750
        %vm3762 = vcmp.eq.f32.partialorder %v3761, 8.507059e+37
        %v3763 = vand.u32 %v3750, 2147483648
        %v3764 = vor.u32 1.1754944e-38, %v3763
        %v3765 = vsel %vm3762, %v3764, %v3760
        %v3766 = vmul.f32 1.0, %v3765
        %v3767 = vrcp.pop %v3751
        %v3768 = vmul.f32 %v3751, %v3767
        %v3769 = vsub.f32 1.0, %v3768
        %v3770 = vmul.f32 %v3767, %v3769
        %v3771 = vadd.f32 %v3767, %v3770
        %vm3772 = vweird.f32 %v3751
        %vm3773 = vweird.f32 %v3767
        %vm3774 = vmor %vm3772, %vm3773
        %v3775 = vsel %vm3774, %v3767, %v3771
        %v3776 = vand.u32 2147483647, %v3751
        %vm3777 = vcmp.eq.f32.partialorder %v3776, 8.507059e+37
        %v3778 = vand.u32 %v3751, 2147483648
        %v3779 = vor.u32 1.1754944e-38, %v3778
        %v3780 = vsel %vm3777, %v3779, %v3775
        %v3781 = vmul.f32 1.0, %v3780
        %v3782 = vxor.u32 %v3596, 2147483648
        %v3783 = vxor.u32 %v3600, 2147483648
        %v3784 = vmul.f32 %v3782, 1.442695
        %v3785 = vpow.pop %v3784
        %v3786 = vmul.f32 %v3783, 1.442695
        %v3787 = vpow.pop %v3786
        %v3788 = vadd.f32 %v3785, 1.0
        %v3789 = vadd.f32 %v3787, 1.0
        %v3790 = vrcp.pop %v3788
        %v3791 = vmul.f32 %v3788, %v3790
        %v3792 = vsub.f32 1.0, %v3791
        %v3793 = vmul.f32 %v3790, %v3792
        %v3794 = vadd.f32 %v3790, %v3793
        %vm3795 = vweird.f32 %v3788
        %vm3796 = vweird.f32 %v3790
        %vm3797 = vmor %vm3795, %vm3796
        %v3798 = vsel %vm3797, %v3790, %v3794
        %v3799 = vand.u32 2147483647, %v3788
        %vm3800 = vcmp.eq.f32.partialorder %v3799, 8.507059e+37
        %v3801 = vand.u32 %v3788, 2147483648
        %v3802 = vor.u32 1.1754944e-38, %v3801
        %v3803 = vsel %vm3800, %v3802, %v3798
        %v3804 = vmul.f32 1.0, %v3803
        %v3805 = vrcp.pop %v3789
        %v3806 = vmul.f32 %v3789, %v3805
        %v3807 = vsub.f32 1.0, %v3806
        %v3808 = vmul.f32 %v3805, %v3807
        %v3809 = vadd.f32 %v3805, %v3808
        %vm3810 = vweird.f32 %v3789
        %vm3811 = vweird.f32 %v3805
        %vm3812 = vmor %vm3810, %vm3811
        %v3813 = vsel %vm3812, %v3805, %v3809
        %v3814 = vand.u32 2147483647, %v3789
        %vm3815 = vcmp.eq.f32.partialorder %v3814, 8.507059e+37
        %v3816 = vand.u32 %v3789, 2147483648
        %v3817 = vor.u32 1.1754944e-38, %v3816
        %v3818 = vsel %vm3815, %v3817, %v3813
        %v3819 = vmul.f32 1.0, %v3818
        %v3820 = vtanh.pop %v3597
        %v3821 = vtanh.pop %v3601
        %v3822 = vxor.u32 %v3598, 2147483648
        %v3823 = vxor.u32 %v3602, 2147483648
        %v3824 = vmul.f32 %v3822, 1.442695
        %v3825 = vpow.pop %v3824
        %v3826 = vmul.f32 %v3823, 1.442695
        %v3827 = vpow.pop %v3826
        %v3828 = vadd.f32 %v3825, 1.0
        %v3829 = vadd.f32 %v3827, 1.0
        %v3830 = vrcp.pop %v3828
        %v3831 = vmul.f32 %v3828, %v3830
        %v3832 = vsub.f32 1.0, %v3831
        %v3833 = vmul.f32 %v3830, %v3832
        %v3834 = vadd.f32 %v3830, %v3833
        %vm3835 = vweird.f32 %v3828
        %vm3836 = vweird.f32 %v3830
        %vm3837 = vmor %vm3835, %vm3836
        %v3838 = vsel %vm3837, %v3830, %v3834
        %v3839 = vand.u32 2147483647, %v3828
        %vm3840 = vcmp.eq.f32.partialorder %v3839, 8.507059e+37
        %v3841 = vand.u32 %v3828, 2147483648
        %v3842 = vor.u32 1.1754944e-38, %v3841
        %v3843 = vsel %vm3840, %v3842, %v3838
        %v3844 = vmul.f32 1.0, %v3843
        %v3845 = vrcp.pop %v3829
        %v3846 = vmul.f32 %v3829, %v3845
        %v3847 = vsub.f32 1.0, %v3846
        %v3848 = vmul.f32 %v3845, %v3847
        %v3849 = vadd.f32 %v3845, %v3848
        %vm3850 = vweird.f32 %v3829
        %vm3851 = vweird.f32 %v3845
        %vm3852 = vmor %vm3850, %vm3851
        %v3853 = vsel %vm3852, %v3845, %v3849
        %v3854 = vand.u32 2147483647, %v3829
        %vm3855 = vcmp.eq.f32.partialorder %v3854, 8.507059e+37
        %v3856 = vand.u32 %v3829, 2147483648
        %v3857 = vor.u32 1.1754944e-38, %v3856
        %v3858 = vsel %vm3855, %v3857, %v3853
        %v3859 = vmul.f32 1.0, %v3858
        %v3860 = vmul.f32 %v3766, %v3820
        %v3861 = vmul.f32 %v3781, %v3821
        %v3862 = vmul.f32 %v3804, %v3458
        %v3863 = vmul.f32 %v3819, %v3459
        %v3864 = vadd.f32 %v3860, %v3862
        %v3865 = vadd.f32 %v3861, %v3863
        %v3866 = vtanh.pop %v3864
        %v3867 = vtanh.pop %v3865
        %v3868 = vmul.f32 %v3844, %v3866
        %v3869 = vmul.f32 %v3859, %v3867
        %v3870 = vpack.c.bf16 %v3869, %v3868
        %3871 = vmatpush.bf16.msra.mxu0 %v2039
        %3872 = vmatpush.bf16.msra.mxu0 %v2038
        %3873 = vmatpush.bf16.msra.mxu0 %v2037
        %3874 = vmatpush.bf16.msra.mxu0 %v2036
        %3875 = vmatpush.bf16.msra.mxu0 %v2035
        %3876 = vmatpush.bf16.msra.mxu0 %v2034
        %3877 = vmatpush.bf16.msra.mxu0 %v2033
        %3878 = vmatpush.bf16.msra.mxu0 %v2032
        %3879 = vmatmul.bf16.gmra.mxu0 %v3870
        %v3880 = vpop.f32.mrf.mxu0
        %v3881 = vadd.f32 0.0, %v3880
        %v3882 = vpop.f32.mrf.mxu0
        %v3883 = vadd.f32 0.0, %v3882
        %3884 = vdwg.mxu0
        %v3885 = vsel %vm1348, 1, 0
        %v3886 = vsel %vm1349, 1, 0
        %3887 = vset.pattern.permute.xlu0 0
        %3888 = vperm.xlu0 %3887, %v3885
        %v3889 = vpop.permute.xlu0 %3888
        %3890 = vset.pattern.permute.xlu0 0
        %3891 = vperm.xlu0 %3890, %v3886
        %v3892 = vpop.permute.xlu0 %3891
        %vm3893 = vcmp.eq.s32.totalorder %v3889, 1
        %vm3894 = vcmp.eq.s32.totalorder %v3892, 1
        %v3895 = vsel %vm3893, %v3723, %v3439
        %v3896 = vsel %vm3894, %v3724, %v3440
        %v3897 = vsel %vm3893, %v3740, %v3441
        %v3898 = vsel %vm3894, %v3742, %v3442
        %v3899 = vsel %vm3893, %v3740, 0.0
        %v3900 = vsel %vm3894, %v3742, 0.0
        %s3901 = scalar_lea.vmem %s535, 64 [#allocation15]
        %3902 = vst.msk [vmem:[%s3901] sm:$0xff] %vm717, %v3899
        %3903 = vst.msk [vmem:[%s3901 + $0x8] sm:$0xff] %vm717, %v3900
        %v3904 = vsel %vm1370, 1, 0
        %v3905 = vsel %vm1371, 1, 0
        %3906 = vset.pattern.permute.xlu0 0
        %3907 = vperm.xlu0 %3906, %v3904
        %v3908 = vpop.permute.xlu0 %3907
        %3909 = vset.pattern.permute.xlu0 0
        %3910 = vperm.xlu0 %3909, %v3905
        %v3911 = vpop.permute.xlu0 %3910
        %vm3912 = vcmp.eq.s32.totalorder %v3908, 1
        %vm3913 = vcmp.eq.s32.totalorder %v3911, 1
        %v3914 = vsel %vm3912, %v3864, %v3458
        %v3915 = vsel %vm3913, %v3865, %v3459
        %v3916 = vsel %vm3912, %v3881, %v3460
        %v3917 = vsel %vm3913, %v3883, %v3461
        %v3918 = vsel %vm3912, %v3881, 0.0
        %v3919 = vsel %vm3913, %v3883, 0.0
        %s3920 = scalar_lea.vmem %s542, 48 [#allocation16]
        %3921 = vst.msk [vmem:[%s3920] sm:$0xff] %vm717, %v3918
        %3922 = vst.msk [vmem:[%s3920 + $0x8] sm:$0xff] %vm717, %v3919
        %v3923 = vpack.c.bf16 %v3898, %v3897
        %v3925 = vsel %vm717, %v3923, 0
        %3927 = vmatpush.bf16.msra.mxu0 0
        %3928 = vmatpush.bf16.msra.mxu0 0
        %3929 = vmatpush.bf16.msra.mxu0 0
        %3930 = vmatpush.bf16.msra.mxu0 0
        %3931 = vmatpush.bf16.msra.mxu0 %v1449
        %3932 = vmatpush.bf16.msra.mxu0 %v1445
        %3933 = vmatpush.bf16.msra.mxu0 %v1441
        %3934 = vmatpush.bf16.msra.mxu0 %v1437
        %3935 = vmatmul.bf16.gmra.mxu0 %v3925
        %v3936 = vpop.f32.mrf.mxu0
        %v3937 = vadd.f32 0.0, %v3936
        %v3938 = vpop.f32.mrf.mxu0
        %v3939 = vadd.f32 0.0, %v3938
        %3940 = vdwg.mxu0
        %3941 = vmatpush.bf16.msra.mxu0 0
        %3942 = vmatpush.bf16.msra.mxu0 0
        %3943 = vmatpush.bf16.msra.mxu0 0
        %3944 = vmatpush.bf16.msra.mxu0 0
        %3945 = vmatpush.bf16.msra.mxu0 %v1450
        %3946 = vmatpush.bf16.msra.mxu0 %v1446
        %3947 = vmatpush.bf16.msra.mxu0 %v1442
        %3948 = vmatpush.bf16.msra.mxu0 %v1438
        %3949 = vmatmul.bf16.gmra.mxu0 %v3925
        %v3950 = vpop.f32.mrf.mxu0
        %v3951 = vadd.f32 0.0, %v3950
        %v3952 = vpop.f32.mrf.mxu0
        %v3953 = vadd.f32 0.0, %v3952
        %3954 = vdwg.mxu0
        %3955 = vmatpush.bf16.msra.mxu0 0
        %3956 = vmatpush.bf16.msra.mxu0 0
        %3957 = vmatpush.bf16.msra.mxu0 0
        %3958 = vmatpush.bf16.msra.mxu0 0
        %3959 = vmatpush.bf16.msra.mxu0 %v1451
        %3960 = vmatpush.bf16.msra.mxu0 %v1447
        %3961 = vmatpush.bf16.msra.mxu0 %v1443
        %3962 = vmatpush.bf16.msra.mxu0 %v1439
        %3963 = vmatmul.bf16.gmra.mxu0 %v3925
        %v3964 = vpop.f32.mrf.mxu0
        %v3965 = vadd.f32 0.0, %v3964
        %v3966 = vpop.f32.mrf.mxu0
        %v3967 = vadd.f32 0.0, %v3966
        %3968 = vdwg.mxu0
        %3969 = vmatpush.bf16.msra.mxu0 0
        %3970 = vmatpush.bf16.msra.mxu0 0
        %3971 = vmatpush.bf16.msra.mxu0 0
        %3972 = vmatpush.bf16.msra.mxu0 0
        %3973 = vmatpush.bf16.msra.mxu0 %v1452
        %3974 = vmatpush.bf16.msra.mxu0 %v1448
        %3975 = vmatpush.bf16.msra.mxu0 %v1444
        %3976 = vmatpush.bf16.msra.mxu0 %v1440
        %3977 = vmatmul.bf16.gmra.mxu0 %v3925
        %v3978 = vpop.f32.mrf.mxu0
        %v3979 = vadd.f32 0.0, %v3978
        %v3980 = vpop.f32.mrf.mxu0
        %v3981 = vadd.f32 0.0, %v3980
        %3982 = vdwg.mxu0
        %v3983 = vadd.f32 %v777, %v3937
        %v3984 = vadd.f32 %v826, %v3951
        %v3985 = vadd.f32 %v875, %v3965
        %v3986 = vadd.f32 %v924, %v3979
        %v3987 = vadd.f32 %v779, %v3939
        %v3988 = vadd.f32 %v828, %v3953
        %v3989 = vadd.f32 %v877, %v3967
        %v3990 = vadd.f32 %v926, %v3981
        %v3991 = vpack.c.bf16 %v3917, %v3916
        %v3993 = vsel %vm717, %v3991, 0
        %3995 = vmatpush.bf16.msra.mxu0 0
        %3996 = vmatpush.bf16.msra.mxu0 0
        %3997 = vmatpush.bf16.msra.mxu0 0
        %3998 = vmatpush.bf16.msra.mxu0 0
        %3999 = vmatpush.bf16.msra.mxu0 %v1597
        %4000 = vmatpush.bf16.msra.mxu0 %v1593
        %4001 = vmatpush.bf16.msra.mxu0 %v1589
        %4002 = vmatpush.bf16.msra.mxu0 %v1585
        %4003 = vmatmul.bf16.gmra.mxu0 %v3993
        %v4004 = vpop.f32.mrf.mxu0
        %v4005 = vadd.f32 0.0, %v4004
        %v4006 = vpop.f32.mrf.mxu0
        %v4007 = vadd.f32 0.0, %v4006
        %4008 = vdwg.mxu0
        %4009 = vmatpush.bf16.msra.mxu0 0
        %4010 = vmatpush.bf16.msra.mxu0 0
        %4011 = vmatpush.bf16.msra.mxu0 0
        %4012 = vmatpush.bf16.msra.mxu0 0
        %4013 = vmatpush.bf16.msra.mxu0 %v1598
        %4014 = vmatpush.bf16.msra.mxu0 %v1594
        %4015 = vmatpush.bf16.msra.mxu0 %v1590
        %4016 = vmatpush.bf16.msra.mxu0 %v1586
        %4017 = vmatmul.bf16.gmra.mxu0 %v3993
        %v4018 = vpop.f32.mrf.mxu0
        %v4019 = vadd.f32 0.0, %v4018
        %v4020 = vpop.f32.mrf.mxu0
        %v4021 = vadd.f32 0.0, %v4020
        %4022 = vdwg.mxu0
        %4023 = vmatpush.bf16.msra.mxu0 0
        %4024 = vmatpush.bf16.msra.mxu0 0
        %4025 = vmatpush.bf16.msra.mxu0 0
        %4026 = vmatpush.bf16.msra.mxu0 0
        %4027 = vmatpush.bf16.msra.mxu0 %v1599
        %4028 = vmatpush.bf16.msra.mxu0 %v1595
        %4029 = vmatpush.bf16.msra.mxu0 %v1591
        %4030 = vmatpush.bf16.msra.mxu0 %v1587
        %4031 = vmatmul.bf16.gmra.mxu0 %v3993
        %v4032 = vpop.f32.mrf.mxu0
        %v4033 = vadd.f32 0.0, %v4032
        %v4034 = vpop.f32.mrf.mxu0
        %v4035 = vadd.f32 0.0, %v4034
        %4036 = vdwg.mxu0
        %4037 = vmatpush.bf16.msra.mxu0 0
        %4038 = vmatpush.bf16.msra.mxu0 0
        %4039 = vmatpush.bf16.msra.mxu0 0
        %4040 = vmatpush.bf16.msra.mxu0 0
        %4041 = vmatpush.bf16.msra.mxu0 %v1600
        %4042 = vmatpush.bf16.msra.mxu0 %v1596
        %4043 = vmatpush.bf16.msra.mxu0 %v1592
        %4044 = vmatpush.bf16.msra.mxu0 %v1588
        %4045 = vmatmul.bf16.gmra.mxu0 %v3993
        %v4046 = vpop.f32.mrf.mxu0
        %v4047 = vadd.f32 0.0, %v4046
        %v4048 = vpop.f32.mrf.mxu0
        %v4049 = vadd.f32 0.0, %v4048
        %4050 = vdwg.mxu0
        %v4051 = vadd.f32 %v1088, %v4005
        %v4052 = vadd.f32 %v1137, %v4019
        %v4053 = vadd.f32 %v1186, %v4033
        %v4054 = vadd.f32 %v1235, %v4047
        %v4055 = vadd.f32 %v1090, %v4007
        %v4056 = vadd.f32 %v1139, %v4021
        %v4057 = vadd.f32 %v1188, %v4035
        %v4058 = vadd.f32 %v1237, %v4049
        %v4059 = vxor.u32 %v3983, 2147483648
        %v4060 = vxor.u32 %v3987, 2147483648
        %v4061 = vmul.f32 %v4059, 1.442695
        %v4062 = vpow.pop %v4061
        %v4063 = vmul.f32 %v4060, 1.442695
        %v4064 = vpow.pop %v4063
        %v4065 = vadd.f32 %v4062, 1.0
        %v4066 = vadd.f32 %v4064, 1.0
        %v4067 = vrcp.pop %v4065
        %v4068 = vmul.f32 %v4065, %v4067
        %v4069 = vsub.f32 1.0, %v4068
        %v4070 = vmul.f32 %v4067, %v4069
        %v4071 = vadd.f32 %v4067, %v4070
        %vm4072 = vweird.f32 %v4065
        %vm4073 = vweird.f32 %v4067
        %vm4074 = vmor %vm4072, %vm4073
        %v4075 = vsel %vm4074, %v4067, %v4071
        %v4076 = vand.u32 2147483647, %v4065
        %vm4077 = vcmp.eq.f32.partialorder %v4076, 8.507059e+37
        %v4078 = vand.u32 %v4065, 2147483648
        %v4079 = vor.u32 1.1754944e-38, %v4078
        %v4080 = vsel %vm4077, %v4079, %v4075
        %v4081 = vmul.f32 1.0, %v4080
        %v4082 = vrcp.pop %v4066
        %v4083 = vmul.f32 %v4066, %v4082
        %v4084 = vsub.f32 1.0, %v4083
        %v4085 = vmul.f32 %v4082, %v4084
        %v4086 = vadd.f32 %v4082, %v4085
        %vm4087 = vweird.f32 %v4066
        %vm4088 = vweird.f32 %v4082
        %vm4089 = vmor %vm4087, %vm4088
        %v4090 = vsel %vm4089, %v4082, %v4086
        %v4091 = vand.u32 2147483647, %v4066
        %vm4092 = vcmp.eq.f32.partialorder %v4091, 8.507059e+37
        %v4093 = vand.u32 %v4066, 2147483648
        %v4094 = vor.u32 1.1754944e-38, %v4093
        %v4095 = vsel %vm4092, %v4094, %v4090
        %v4096 = vmul.f32 1.0, %v4095
        %v4097 = vxor.u32 %v3984, 2147483648
        %v4098 = vxor.u32 %v3988, 2147483648
        %v4099 = vmul.f32 %v4097, 1.442695
        %v4100 = vpow.pop %v4099
        %v4101 = vmul.f32 %v4098, 1.442695
        %v4102 = vpow.pop %v4101
        %v4103 = vadd.f32 %v4100, 1.0
        %v4104 = vadd.f32 %v4102, 1.0
        %v4105 = vrcp.pop %v4103
        %v4106 = vmul.f32 %v4103, %v4105
        %v4107 = vsub.f32 1.0, %v4106
        %v4108 = vmul.f32 %v4105, %v4107
        %v4109 = vadd.f32 %v4105, %v4108
        %vm4110 = vweird.f32 %v4103
        %vm4111 = vweird.f32 %v4105
        %vm4112 = vmor %vm4110, %vm4111
        %v4113 = vsel %vm4112, %v4105, %v4109
        %v4114 = vand.u32 2147483647, %v4103
        %vm4115 = vcmp.eq.f32.partialorder %v4114, 8.507059e+37
        %v4116 = vand.u32 %v4103, 2147483648
        %v4117 = vor.u32 1.1754944e-38, %v4116
        %v4118 = vsel %vm4115, %v4117, %v4113
        %v4119 = vmul.f32 1.0, %v4118
        %v4120 = vrcp.pop %v4104
        %v4121 = vmul.f32 %v4104, %v4120
        %v4122 = vsub.f32 1.0, %v4121
        %v4123 = vmul.f32 %v4120, %v4122
        %v4124 = vadd.f32 %v4120, %v4123
        %vm4125 = vweird.f32 %v4104
        %vm4126 = vweird.f32 %v4120
        %vm4127 = vmor %vm4125, %vm4126
        %v4128 = vsel %vm4127, %v4120, %v4124
        %v4129 = vand.u32 2147483647, %v4104
        %vm4130 = vcmp.eq.f32.partialorder %v4129, 8.507059e+37
        %v4131 = vand.u32 %v4104, 2147483648
        %v4132 = vor.u32 1.1754944e-38, %v4131
        %v4133 = vsel %vm4130, %v4132, %v4128
        %v4134 = vmul.f32 1.0, %v4133
        %v4135 = vtanh.pop %v3985
        %v4136 = vtanh.pop %v3989
        %v4137 = vxor.u32 %v3986, 2147483648
        %v4138 = vxor.u32 %v3990, 2147483648
        %v4139 = vmul.f32 %v4137, 1.442695
        %v4140 = vpow.pop %v4139
        %v4141 = vmul.f32 %v4138, 1.442695
        %v4142 = vpow.pop %v4141
        %v4143 = vadd.f32 %v4140, 1.0
        %v4144 = vadd.f32 %v4142, 1.0
        %v4145 = vrcp.pop %v4143
        %v4146 = vmul.f32 %v4143, %v4145
        %v4147 = vsub.f32 1.0, %v4146
        %v4148 = vmul.f32 %v4145, %v4147
        %v4149 = vadd.f32 %v4145, %v4148
        %vm4150 = vweird.f32 %v4143
        %vm4151 = vweird.f32 %v4145
        %vm4152 = vmor %vm4150, %vm4151
        %v4153 = vsel %vm4152, %v4145, %v4149
        %v4154 = vand.u32 2147483647, %v4143
        %vm4155 = vcmp.eq.f32.partialorder %v4154, 8.507059e+37
        %v4156 = vand.u32 %v4143, 2147483648
        %v4157 = vor.u32 1.1754944e-38, %v4156
        %v4158 = vsel %vm4155, %v4157, %v4153
        %v4159 = vmul.f32 1.0, %v4158
        %v4160 = vrcp.pop %v4144
        %v4161 = vmul.f32 %v4144, %v4160
        %v4162 = vsub.f32 1.0, %v4161
        %v4163 = vmul.f32 %v4160, %v4162
        %v4164 = vadd.f32 %v4160, %v4163
        %vm4165 = vweird.f32 %v4144
        %vm4166 = vweird.f32 %v4160
        %vm4167 = vmor %vm4165, %vm4166
        %v4168 = vsel %vm4167, %v4160, %v4164
        %v4169 = vand.u32 2147483647, %v4144
        %vm4170 = vcmp.eq.f32.partialorder %v4169, 8.507059e+37
        %v4171 = vand.u32 %v4144, 2147483648
        %v4172 = vor.u32 1.1754944e-38, %v4171
        %v4173 = vsel %vm4170, %v4172, %v4168
        %v4174 = vmul.f32 1.0, %v4173
        %v4175 = vmul.f32 %v4081, %v4135
        %v4176 = vmul.f32 %v4096, %v4136
        %v4177 = vmul.f32 %v4119, %v3895
        %v4178 = vmul.f32 %v4134, %v3896
        %v4179 = vadd.f32 %v4175, %v4177
        %v4180 = vadd.f32 %v4176, %v4178
        %v4181 = vtanh.pop %v4179
        %v4182 = vtanh.pop %v4180
        %v4183 = vmul.f32 %v4159, %v4181
        %v4184 = vmul.f32 %v4174, %v4182
        %v4185 = vpack.c.bf16 %v4184, %v4183
        %4186 = vmatpush.bf16.msra.mxu0 %v1850
        %4187 = vmatpush.bf16.msra.mxu0 %v1849
        %4188 = vmatpush.bf16.msra.mxu0 %v1848
        %4189 = vmatpush.bf16.msra.mxu0 %v1847
        %4190 = vmatpush.bf16.msra.mxu0 %v1846
        %4191 = vmatpush.bf16.msra.mxu0 %v1845
        %4192 = vmatpush.bf16.msra.mxu0 %v1844
        %4193 = vmatpush.bf16.msra.mxu0 %v1843
        %4194 = vmatmul.bf16.gmra.mxu0 %v4185
        %v4195 = vpop.f32.mrf.mxu0
        %v4196 = vadd.f32 0.0, %v4195
        %v4197 = vpop.f32.mrf.mxu0
        %v4198 = vadd.f32 0.0, %v4197
        %4199 = vdwg.mxu0
        %v4200 = vxor.u32 %v4051, 2147483648
        %v4201 = vxor.u32 %v4055, 2147483648
        %v4202 = vmul.f32 %v4200, 1.442695
        %v4203 = vpow.pop %v4202
        %v4204 = vmul.f32 %v4201, 1.442695
        %v4205 = vpow.pop %v4204
        %v4206 = vadd.f32 %v4203, 1.0
        %v4207 = vadd.f32 %v4205, 1.0
        %v4208 = vrcp.pop %v4206
        %v4209 = vmul.f32 %v4206, %v4208
        %v4210 = vsub.f32 1.0, %v4209
        %v4211 = vmul.f32 %v4208, %v4210
        %v4212 = vadd.f32 %v4208, %v4211
        %vm4213 = vweird.f32 %v4206
        %vm4214 = vweird.f32 %v4208
        %vm4215 = vmor %vm4213, %vm4214
        %v4216 = vsel %vm4215, %v4208, %v4212
        %v4217 = vand.u32 2147483647, %v4206
        %vm4218 = vcmp.eq.f32.partialorder %v4217, 8.507059e+37
        %v4219 = vand.u32 %v4206, 2147483648
        %v4220 = vor.u32 1.1754944e-38, %v4219
        %v4221 = vsel %vm4218, %v4220, %v4216
        %v4222 = vmul.f32 1.0, %v4221
        %v4223 = vrcp.pop %v4207
        %v4224 = vmul.f32 %v4207, %v4223
        %v4225 = vsub.f32 1.0, %v4224
        %v4226 = vmul.f32 %v4223, %v4225
        %v4227 = vadd.f32 %v4223, %v4226
        %vm4228 = vweird.f32 %v4207
        %vm4229 = vweird.f32 %v4223
        %vm4230 = vmor %vm4228, %vm4229
        %v4231 = vsel %vm4230, %v4223, %v4227
        %v4232 = vand.u32 2147483647, %v4207
        %vm4233 = vcmp.eq.f32.partialorder %v4232, 8.507059e+37
        %v4234 = vand.u32 %v4207, 2147483648
        %v4235 = vor.u32 1.1754944e-38, %v4234
        %v4236 = vsel %vm4233, %v4235, %v4231
        %v4237 = vmul.f32 1.0, %v4236
        %v4238 = vxor.u32 %v4052, 2147483648
        %v4239 = vxor.u32 %v4056, 2147483648
        %v4240 = vmul.f32 %v4238, 1.442695
        %v4241 = vpow.pop %v4240
        %v4242 = vmul.f32 %v4239, 1.442695
        %v4243 = vpow.pop %v4242
        %v4244 = vadd.f32 %v4241, 1.0
        %v4245 = vadd.f32 %v4243, 1.0
        %v4246 = vrcp.pop %v4244
        %v4247 = vmul.f32 %v4244, %v4246
        %v4248 = vsub.f32 1.0, %v4247
        %v4249 = vmul.f32 %v4246, %v4248
        %v4250 = vadd.f32 %v4246, %v4249
        %vm4251 = vweird.f32 %v4244
        %vm4252 = vweird.f32 %v4246
        %vm4253 = vmor %vm4251, %vm4252
        %v4254 = vsel %vm4253, %v4246, %v4250
        %v4255 = vand.u32 2147483647, %v4244
        %vm4256 = vcmp.eq.f32.partialorder %v4255, 8.507059e+37
        %v4257 = vand.u32 %v4244, 2147483648
        %v4258 = vor.u32 1.1754944e-38, %v4257
        %v4259 = vsel %vm4256, %v4258, %v4254
        %v4260 = vmul.f32 1.0, %v4259
        %v4261 = vrcp.pop %v4245
        %v4262 = vmul.f32 %v4245, %v4261
        %v4263 = vsub.f32 1.0, %v4262
        %v4264 = vmul.f32 %v4261, %v4263
        %v4265 = vadd.f32 %v4261, %v4264
        %vm4266 = vweird.f32 %v4245
        %vm4267 = vweird.f32 %v4261
        %vm4268 = vmor %vm4266, %vm4267
        %v4269 = vsel %vm4268, %v4261, %v4265
        %v4270 = vand.u32 2147483647, %v4245
        %vm4271 = vcmp.eq.f32.partialorder %v4270, 8.507059e+37
        %v4272 = vand.u32 %v4245, 2147483648
        %v4273 = vor.u32 1.1754944e-38, %v4272
        %v4274 = vsel %vm4271, %v4273, %v4269
        %v4275 = vmul.f32 1.0, %v4274
        %v4276 = vtanh.pop %v4053
        %v4277 = vtanh.pop %v4057
        %v4278 = vxor.u32 %v4054, 2147483648
        %v4279 = vxor.u32 %v4058, 2147483648
        %v4280 = vmul.f32 %v4278, 1.442695
        %v4281 = vpow.pop %v4280
        %v4282 = vmul.f32 %v4279, 1.442695
        %v4283 = vpow.pop %v4282
        %v4284 = vadd.f32 %v4281, 1.0
        %v4285 = vadd.f32 %v4283, 1.0
        %v4286 = vrcp.pop %v4284
        %v4287 = vmul.f32 %v4284, %v4286
        %v4288 = vsub.f32 1.0, %v4287
        %v4289 = vmul.f32 %v4286, %v4288
        %v4290 = vadd.f32 %v4286, %v4289
        %vm4291 = vweird.f32 %v4284
        %vm4292 = vweird.f32 %v4286
        %vm4293 = vmor %vm4291, %vm4292
        %v4294 = vsel %vm4293, %v4286, %v4290
        %v4295 = vand.u32 2147483647, %v4284
        %vm4296 = vcmp.eq.f32.partialorder %v4295, 8.507059e+37
        %v4297 = vand.u32 %v4284, 2147483648
        %v4298 = vor.u32 1.1754944e-38, %v4297
        %v4299 = vsel %vm4296, %v4298, %v4294
        %v4300 = vmul.f32 1.0, %v4299
        %v4301 = vrcp.pop %v4285
        %v4302 = vmul.f32 %v4285, %v4301
        %v4303 = vsub.f32 1.0, %v4302
        %v4304 = vmul.f32 %v4301, %v4303
        %v4305 = vadd.f32 %v4301, %v4304
        %vm4306 = vweird.f32 %v4285
        %vm4307 = vweird.f32 %v4301
        %vm4308 = vmor %vm4306, %vm4307
        %v4309 = vsel %vm4308, %v4301, %v4305
        %v4310 = vand.u32 2147483647, %v4285
        %vm4311 = vcmp.eq.f32.partialorder %v4310, 8.507059e+37
        %v4312 = vand.u32 %v4285, 2147483648
        %v4313 = vor.u32 1.1754944e-38, %v4312
        %v4314 = vsel %vm4311, %v4313, %v4309
        %v4315 = vmul.f32 1.0, %v4314
        %v4316 = vmul.f32 %v4222, %v4276
        %v4317 = vmul.f32 %v4237, %v4277
        %v4318 = vmul.f32 %v4260, %v3914
        %v4319 = vmul.f32 %v4275, %v3915
        %v4320 = vadd.f32 %v4316, %v4318
        %v4321 = vadd.f32 %v4317, %v4319
        %v4322 = vtanh.pop %v4320
        %v4323 = vtanh.pop %v4321
        %v4324 = vmul.f32 %v4300, %v4322
        %v4325 = vmul.f32 %v4315, %v4323
        %v4326 = vpack.c.bf16 %v4325, %v4324
        %4327 = vmatpush.bf16.msra.mxu0 %v2039
        %4328 = vmatpush.bf16.msra.mxu0 %v2038
        %4329 = vmatpush.bf16.msra.mxu0 %v2037
        %4330 = vmatpush.bf16.msra.mxu0 %v2036
        %4331 = vmatpush.bf16.msra.mxu0 %v2035
        %4332 = vmatpush.bf16.msra.mxu0 %v2034
        %4333 = vmatpush.bf16.msra.mxu0 %v2033
        %4334 = vmatpush.bf16.msra.mxu0 %v2032
        %4335 = vmatmul.bf16.gmra.mxu0 %v4326
        %v4336 = vpop.f32.mrf.mxu0
        %v4337 = vadd.f32 0.0, %v4336
        %v4338 = vpop.f32.mrf.mxu0
        %v4339 = vadd.f32 0.0, %v4338
        %4340 = vdwg.mxu0
        %v4341 = vsel %vm1350, 1, 0
        %v4342 = vsel %vm1351, 1, 0
        %4343 = vset.pattern.permute.xlu0 0
        %4344 = vperm.xlu0 %4343, %v4341
        %v4345 = vpop.permute.xlu0 %4344
        %4346 = vset.pattern.permute.xlu0 0
        %4347 = vperm.xlu0 %4346, %v4342
        %v4348 = vpop.permute.xlu0 %4347
        %vm4349 = vcmp.eq.s32.totalorder %v4345, 1
        %vm4350 = vcmp.eq.s32.totalorder %v4348, 1
        %v4351 = vsel %vm4349, %v4179, %v3895
        %v4352 = vsel %vm4350, %v4180, %v3896
        %v4353 = vsel %vm4349, %v4196, %v3897
        %v4354 = vsel %vm4350, %v4198, %v3898
        %v4355 = vsel %vm4349, %v4196, 0.0
        %v4356 = vsel %vm4350, %v4198, 0.0
        %s4357 = scalar_lea.vmem %s535, 80 [#allocation15]
        %4358 = vst.msk [vmem:[%s4357] sm:$0xff] %vm717, %v4355
        %4359 = vst.msk [vmem:[%s4357 + $0x8] sm:$0xff] %vm717, %v4356
        %v4360 = vsel %vm1368, 1, 0
        %v4361 = vsel %vm1369, 1, 0
        %4362 = vset.pattern.permute.xlu0 0
        %4363 = vperm.xlu0 %4362, %v4360
        %v4364 = vpop.permute.xlu0 %4363
        %4365 = vset.pattern.permute.xlu0 0
        %4366 = vperm.xlu0 %4365, %v4361
        %v4367 = vpop.permute.xlu0 %4366
        %vm4368 = vcmp.eq.s32.totalorder %v4364, 1
        %vm4369 = vcmp.eq.s32.totalorder %v4367, 1
        %v4370 = vsel %vm4368, %v4320, %v3914
        %v4371 = vsel %vm4369, %v4321, %v3915
        %v4372 = vsel %vm4368, %v4337, %v3916
        %v4373 = vsel %vm4369, %v4339, %v3917
        %v4374 = vsel %vm4368, %v4337, 0.0
        %v4375 = vsel %vm4369, %v4339, 0.0
        %s4376 = scalar_lea.vmem %s542, 32 [#allocation16]
        %4377 = vst.msk [vmem:[%s4376] sm:$0xff] %vm717, %v4374
        %4378 = vst.msk [vmem:[%s4376 + $0x8] sm:$0xff] %vm717, %v4375
        %v4379 = vpack.c.bf16 %v4354, %v4353
        %v4381 = vsel %vm717, %v4379, 0
        %4383 = vmatpush.bf16.msra.mxu0 0
        %4384 = vmatpush.bf16.msra.mxu0 0
        %4385 = vmatpush.bf16.msra.mxu0 0
        %4386 = vmatpush.bf16.msra.mxu0 0
        %4387 = vmatpush.bf16.msra.mxu0 %v1449
        %4388 = vmatpush.bf16.msra.mxu0 %v1445
        %4389 = vmatpush.bf16.msra.mxu0 %v1441
        %4390 = vmatpush.bf16.msra.mxu0 %v1437
        %4391 = vmatmul.bf16.gmra.mxu0 %v4381
        %v4392 = vpop.f32.mrf.mxu0
        %v4393 = vadd.f32 0.0, %v4392
        %v4394 = vpop.f32.mrf.mxu0
        %v4395 = vadd.f32 0.0, %v4394
        %4396 = vdwg.mxu0
        %4397 = vmatpush.bf16.msra.mxu0 0
        %4398 = vmatpush.bf16.msra.mxu0 0
        %4399 = vmatpush.bf16.msra.mxu0 0
        %4400 = vmatpush.bf16.msra.mxu0 0
        %4401 = vmatpush.bf16.msra.mxu0 %v1450
        %4402 = vmatpush.bf16.msra.mxu0 %v1446
        %4403 = vmatpush.bf16.msra.mxu0 %v1442
        %4404 = vmatpush.bf16.msra.mxu0 %v1438
        %4405 = vmatmul.bf16.gmra.mxu0 %v4381
        %v4406 = vpop.f32.mrf.mxu0
        %v4407 = vadd.f32 0.0, %v4406
        %v4408 = vpop.f32.mrf.mxu0
        %v4409 = vadd.f32 0.0, %v4408
        %4410 = vdwg.mxu0
        %4411 = vmatpush.bf16.msra.mxu0 0
        %4412 = vmatpush.bf16.msra.mxu0 0
        %4413 = vmatpush.bf16.msra.mxu0 0
        %4414 = vmatpush.bf16.msra.mxu0 0
        %4415 = vmatpush.bf16.msra.mxu0 %v1451
        %4416 = vmatpush.bf16.msra.mxu0 %v1447
        %4417 = vmatpush.bf16.msra.mxu0 %v1443
        %4418 = vmatpush.bf16.msra.mxu0 %v1439
        %4419 = vmatmul.bf16.gmra.mxu0 %v4381
        %v4420 = vpop.f32.mrf.mxu0
        %v4421 = vadd.f32 0.0, %v4420
        %v4422 = vpop.f32.mrf.mxu0
        %v4423 = vadd.f32 0.0, %v4422
        %4424 = vdwg.mxu0
        %4425 = vmatpush.bf16.msra.mxu0 0
        %4426 = vmatpush.bf16.msra.mxu0 0
        %4427 = vmatpush.bf16.msra.mxu0 0
        %4428 = vmatpush.bf16.msra.mxu0 0
        %4429 = vmatpush.bf16.msra.mxu0 %v1452
        %4430 = vmatpush.bf16.msra.mxu0 %v1448
        %4431 = vmatpush.bf16.msra.mxu0 %v1444
        %4432 = vmatpush.bf16.msra.mxu0 %v1440
        %4433 = vmatmul.bf16.gmra.mxu0 %v4381
        %v4434 = vpop.f32.mrf.mxu0
        %v4435 = vadd.f32 0.0, %v4434
        %v4436 = vpop.f32.mrf.mxu0
        %v4437 = vadd.f32 0.0, %v4436
        %4438 = vdwg.mxu0
        %v4439 = vadd.f32 %v782, %v4393
        %v4440 = vadd.f32 %v831, %v4407
        %v4441 = vadd.f32 %v880, %v4421
        %v4442 = vadd.f32 %v929, %v4435
        %v4443 = vadd.f32 %v784, %v4395
        %v4444 = vadd.f32 %v833, %v4409
        %v4445 = vadd.f32 %v882, %v4423
        %v4446 = vadd.f32 %v931, %v4437
        %v4447 = vpack.c.bf16 %v4373, %v4372
        %v4449 = vsel %vm717, %v4447, 0
        %4451 = vmatpush.bf16.msra.mxu0 0
        %4452 = vmatpush.bf16.msra.mxu0 0
        %4453 = vmatpush.bf16.msra.mxu0 0
        %4454 = vmatpush.bf16.msra.mxu0 0
        %4455 = vmatpush.bf16.msra.mxu0 %v1597
        %4456 = vmatpush.bf16.msra.mxu0 %v1593
        %4457 = vmatpush.bf16.msra.mxu0 %v1589
        %4458 = vmatpush.bf16.msra.mxu0 %v1585
        %4459 = vmatmul.bf16.gmra.mxu0 %v4449
        %v4460 = vpop.f32.mrf.mxu0
        %v4461 = vadd.f32 0.0, %v4460
        %v4462 = vpop.f32.mrf.mxu0
        %v4463 = vadd.f32 0.0, %v4462
        %4464 = vdwg.mxu0
        %4465 = vmatpush.bf16.msra.mxu0 0
        %4466 = vmatpush.bf16.msra.mxu0 0
        %4467 = vmatpush.bf16.msra.mxu0 0
        %4468 = vmatpush.bf16.msra.mxu0 0
        %4469 = vmatpush.bf16.msra.mxu0 %v1598
        %4470 = vmatpush.bf16.msra.mxu0 %v1594
        %4471 = vmatpush.bf16.msra.mxu0 %v1590
        %4472 = vmatpush.bf16.msra.mxu0 %v1586
        %4473 = vmatmul.bf16.gmra.mxu0 %v4449
        %v4474 = vpop.f32.mrf.mxu0
        %v4475 = vadd.f32 0.0, %v4474
        %v4476 = vpop.f32.mrf.mxu0
        %v4477 = vadd.f32 0.0, %v4476
        %4478 = vdwg.mxu0
        %4479 = vmatpush.bf16.msra.mxu0 0
        %4480 = vmatpush.bf16.msra.mxu0 0
        %4481 = vmatpush.bf16.msra.mxu0 0
        %4482 = vmatpush.bf16.msra.mxu0 0
        %4483 = vmatpush.bf16.msra.mxu0 %v1599
        %4484 = vmatpush.bf16.msra.mxu0 %v1595
        %4485 = vmatpush.bf16.msra.mxu0 %v1591
        %4486 = vmatpush.bf16.msra.mxu0 %v1587
        %4487 = vmatmul.bf16.gmra.mxu0 %v4449
        %v4488 = vpop.f32.mrf.mxu0
        %v4489 = vadd.f32 0.0, %v4488
        %v4490 = vpop.f32.mrf.mxu0
        %v4491 = vadd.f32 0.0, %v4490
        %4492 = vdwg.mxu0
        %4493 = vmatpush.bf16.msra.mxu0 0
        %4494 = vmatpush.bf16.msra.mxu0 0
        %4495 = vmatpush.bf16.msra.mxu0 0
        %4496 = vmatpush.bf16.msra.mxu0 0
        %4497 = vmatpush.bf16.msra.mxu0 %v1600
        %4498 = vmatpush.bf16.msra.mxu0 %v1596
        %4499 = vmatpush.bf16.msra.mxu0 %v1592
        %4500 = vmatpush.bf16.msra.mxu0 %v1588
        %4501 = vmatmul.bf16.gmra.mxu0 %v4449
        %v4502 = vpop.f32.mrf.mxu0
        %v4503 = vadd.f32 0.0, %v4502
        %v4504 = vpop.f32.mrf.mxu0
        %v4505 = vadd.f32 0.0, %v4504
        %4506 = vdwg.mxu0
        %v4507 = vadd.f32 %v1083, %v4461
        %v4508 = vadd.f32 %v1132, %v4475
        %v4509 = vadd.f32 %v1181, %v4489
        %v4510 = vadd.f32 %v1230, %v4503
        %v4511 = vadd.f32 %v1085, %v4463
        %v4512 = vadd.f32 %v1134, %v4477
        %v4513 = vadd.f32 %v1183, %v4491
        %v4514 = vadd.f32 %v1232, %v4505
        %v4515 = vxor.u32 %v4439, 2147483648
        %v4516 = vxor.u32 %v4443, 2147483648
        %v4517 = vmul.f32 %v4515, 1.442695
        %v4518 = vpow.pop %v4517
        %v4519 = vmul.f32 %v4516, 1.442695
        %v4520 = vpow.pop %v4519
        %v4521 = vadd.f32 %v4518, 1.0
        %v4522 = vadd.f32 %v4520, 1.0
        %v4523 = vrcp.pop %v4521
        %v4524 = vmul.f32 %v4521, %v4523
        %v4525 = vsub.f32 1.0, %v4524
        %v4526 = vmul.f32 %v4523, %v4525
        %v4527 = vadd.f32 %v4523, %v4526
        %vm4528 = vweird.f32 %v4521
        %vm4529 = vweird.f32 %v4523
        %vm4530 = vmor %vm4528, %vm4529
        %v4531 = vsel %vm4530, %v4523, %v4527
        %v4532 = vand.u32 2147483647, %v4521
        %vm4533 = vcmp.eq.f32.partialorder %v4532, 8.507059e+37
        %v4534 = vand.u32 %v4521, 2147483648
        %v4535 = vor.u32 1.1754944e-38, %v4534
        %v4536 = vsel %vm4533, %v4535, %v4531
        %v4537 = vmul.f32 1.0, %v4536
        %v4538 = vrcp.pop %v4522
        %v4539 = vmul.f32 %v4522, %v4538
        %v4540 = vsub.f32 1.0, %v4539
        %v4541 = vmul.f32 %v4538, %v4540
        %v4542 = vadd.f32 %v4538, %v4541
        %vm4543 = vweird.f32 %v4522
        %vm4544 = vweird.f32 %v4538
        %vm4545 = vmor %vm4543, %vm4544
        %v4546 = vsel %vm4545, %v4538, %v4542
        %v4547 = vand.u32 2147483647, %v4522
        %vm4548 = vcmp.eq.f32.partialorder %v4547, 8.507059e+37
        %v4549 = vand.u32 %v4522, 2147483648
        %v4550 = vor.u32 1.1754944e-38, %v4549
        %v4551 = vsel %vm4548, %v4550, %v4546
        %v4552 = vmul.f32 1.0, %v4551
        %v4553 = vxor.u32 %v4440, 2147483648
        %v4554 = vxor.u32 %v4444, 2147483648
        %v4555 = vmul.f32 %v4553, 1.442695
        %v4556 = vpow.pop %v4555
        %v4557 = vmul.f32 %v4554, 1.442695
        %v4558 = vpow.pop %v4557
        %v4559 = vadd.f32 %v4556, 1.0
        %v4560 = vadd.f32 %v4558, 1.0
        %v4561 = vrcp.pop %v4559
        %v4562 = vmul.f32 %v4559, %v4561
        %v4563 = vsub.f32 1.0, %v4562
        %v4564 = vmul.f32 %v4561, %v4563
        %v4565 = vadd.f32 %v4561, %v4564
        %vm4566 = vweird.f32 %v4559
        %vm4567 = vweird.f32 %v4561
        %vm4568 = vmor %vm4566, %vm4567
        %v4569 = vsel %vm4568, %v4561, %v4565
        %v4570 = vand.u32 2147483647, %v4559
        %vm4571 = vcmp.eq.f32.partialorder %v4570, 8.507059e+37
        %v4572 = vand.u32 %v4559, 2147483648
        %v4573 = vor.u32 1.1754944e-38, %v4572
        %v4574 = vsel %vm4571, %v4573, %v4569
        %v4575 = vmul.f32 1.0, %v4574
        %v4576 = vrcp.pop %v4560
        %v4577 = vmul.f32 %v4560, %v4576
        %v4578 = vsub.f32 1.0, %v4577
        %v4579 = vmul.f32 %v4576, %v4578
        %v4580 = vadd.f32 %v4576, %v4579
        %vm4581 = vweird.f32 %v4560
        %vm4582 = vweird.f32 %v4576
        %vm4583 = vmor %vm4581, %vm4582
        %v4584 = vsel %vm4583, %v4576, %v4580
        %v4585 = vand.u32 2147483647, %v4560
        %vm4586 = vcmp.eq.f32.partialorder %v4585, 8.507059e+37
        %v4587 = vand.u32 %v4560, 2147483648
        %v4588 = vor.u32 1.1754944e-38, %v4587
        %v4589 = vsel %vm4586, %v4588, %v4584
        %v4590 = vmul.f32 1.0, %v4589
        %v4591 = vtanh.pop %v4441
        %v4592 = vtanh.pop %v4445
        %v4593 = vxor.u32 %v4442, 2147483648
        %v4594 = vxor.u32 %v4446, 2147483648
        %v4595 = vmul.f32 %v4593, 1.442695
        %v4596 = vpow.pop %v4595
        %v4597 = vmul.f32 %v4594, 1.442695
        %v4598 = vpow.pop %v4597
        %v4599 = vadd.f32 %v4596, 1.0
        %v4600 = vadd.f32 %v4598, 1.0
        %v4601 = vrcp.pop %v4599
        %v4602 = vmul.f32 %v4599, %v4601
        %v4603 = vsub.f32 1.0, %v4602
        %v4604 = vmul.f32 %v4601, %v4603
        %v4605 = vadd.f32 %v4601, %v4604
        %vm4606 = vweird.f32 %v4599
        %vm4607 = vweird.f32 %v4601
        %vm4608 = vmor %vm4606, %vm4607
        %v4609 = vsel %vm4608, %v4601, %v4605
        %v4610 = vand.u32 2147483647, %v4599
        %vm4611 = vcmp.eq.f32.partialorder %v4610, 8.507059e+37
        %v4612 = vand.u32 %v4599, 2147483648
        %v4613 = vor.u32 1.1754944e-38, %v4612
        %v4614 = vsel %vm4611, %v4613, %v4609
        %v4615 = vmul.f32 1.0, %v4614
        %v4616 = vrcp.pop %v4600
        %v4617 = vmul.f32 %v4600, %v4616
        %v4618 = vsub.f32 1.0, %v4617
        %v4619 = vmul.f32 %v4616, %v4618
        %v4620 = vadd.f32 %v4616, %v4619
        %vm4621 = vweird.f32 %v4600
        %vm4622 = vweird.f32 %v4616
        %vm4623 = vmor %vm4621, %vm4622
        %v4624 = vsel %vm4623, %v4616, %v4620
        %v4625 = vand.u32 2147483647, %v4600
        %vm4626 = vcmp.eq.f32.partialorder %v4625, 8.507059e+37
        %v4627 = vand.u32 %v4600, 2147483648
        %v4628 = vor.u32 1.1754944e-38, %v4627
        %v4629 = vsel %vm4626, %v4628, %v4624
        %v4630 = vmul.f32 1.0, %v4629
        %v4631 = vmul.f32 %v4537, %v4591
        %v4632 = vmul.f32 %v4552, %v4592
        %v4633 = vmul.f32 %v4575, %v4351
        %v4634 = vmul.f32 %v4590, %v4352
        %v4635 = vadd.f32 %v4631, %v4633
        %v4636 = vadd.f32 %v4632, %v4634
        %v4637 = vtanh.pop %v4635
        %v4638 = vtanh.pop %v4636
        %v4639 = vmul.f32 %v4615, %v4637
        %v4640 = vmul.f32 %v4630, %v4638
        %v4641 = vpack.c.bf16 %v4640, %v4639
        %4642 = vmatpush.bf16.msra.mxu0 %v1850
        %4643 = vmatpush.bf16.msra.mxu0 %v1849
        %4644 = vmatpush.bf16.msra.mxu0 %v1848
        %4645 = vmatpush.bf16.msra.mxu0 %v1847
        %4646 = vmatpush.bf16.msra.mxu0 %v1846
        %4647 = vmatpush.bf16.msra.mxu0 %v1845
        %4648 = vmatpush.bf16.msra.mxu0 %v1844
        %4649 = vmatpush.bf16.msra.mxu0 %v1843
        %4650 = vmatmul.bf16.gmra.mxu0 %v4641
        %v4651 = vpop.f32.mrf.mxu0
        %v4652 = vadd.f32 0.0, %v4651
        %v4653 = vpop.f32.mrf.mxu0
        %v4654 = vadd.f32 0.0, %v4653
        %4655 = vdwg.mxu0
        %v4656 = vxor.u32 %v4507, 2147483648
        %v4657 = vxor.u32 %v4511, 2147483648
        %v4658 = vmul.f32 %v4656, 1.442695
        %v4659 = vpow.pop %v4658
        %v4660 = vmul.f32 %v4657, 1.442695
        %v4661 = vpow.pop %v4660
        %v4662 = vadd.f32 %v4659, 1.0
        %v4663 = vadd.f32 %v4661, 1.0
        %v4664 = vrcp.pop %v4662
        %v4665 = vmul.f32 %v4662, %v4664
        %v4666 = vsub.f32 1.0, %v4665
        %v4667 = vmul.f32 %v4664, %v4666
        %v4668 = vadd.f32 %v4664, %v4667
        %vm4669 = vweird.f32 %v4662
        %vm4670 = vweird.f32 %v4664
        %vm4671 = vmor %vm4669, %vm4670
        %v4672 = vsel %vm4671, %v4664, %v4668
        %v4673 = vand.u32 2147483647, %v4662
        %vm4674 = vcmp.eq.f32.partialorder %v4673, 8.507059e+37
        %v4675 = vand.u32 %v4662, 2147483648
        %v4676 = vor.u32 1.1754944e-38, %v4675
        %v4677 = vsel %vm4674, %v4676, %v4672
        %v4678 = vmul.f32 1.0, %v4677
        %v4679 = vrcp.pop %v4663
        %v4680 = vmul.f32 %v4663, %v4679
        %v4681 = vsub.f32 1.0, %v4680
        %v4682 = vmul.f32 %v4679, %v4681
        %v4683 = vadd.f32 %v4679, %v4682
        %vm4684 = vweird.f32 %v4663
        %vm4685 = vweird.f32 %v4679
        %vm4686 = vmor %vm4684, %vm4685
        %v4687 = vsel %vm4686, %v4679, %v4683
        %v4688 = vand.u32 2147483647, %v4663
        %vm4689 = vcmp.eq.f32.partialorder %v4688, 8.507059e+37
        %v4690 = vand.u32 %v4663, 2147483648
        %v4691 = vor.u32 1.1754944e-38, %v4690
        %v4692 = vsel %vm4689, %v4691, %v4687
        %v4693 = vmul.f32 1.0, %v4692
        %v4694 = vxor.u32 %v4508, 2147483648
        %v4695 = vxor.u32 %v4512, 2147483648
        %v4696 = vmul.f32 %v4694, 1.442695
        %v4697 = vpow.pop %v4696
        %v4698 = vmul.f32 %v4695, 1.442695
        %v4699 = vpow.pop %v4698
        %v4700 = vadd.f32 %v4697, 1.0
        %v4701 = vadd.f32 %v4699, 1.0
        %v4702 = vrcp.pop %v4700
        %v4703 = vmul.f32 %v4700, %v4702
        %v4704 = vsub.f32 1.0, %v4703
        %v4705 = vmul.f32 %v4702, %v4704
        %v4706 = vadd.f32 %v4702, %v4705
        %vm4707 = vweird.f32 %v4700
        %vm4708 = vweird.f32 %v4702
        %vm4709 = vmor %vm4707, %vm4708
        %v4710 = vsel %vm4709, %v4702, %v4706
        %v4711 = vand.u32 2147483647, %v4700
        %vm4712 = vcmp.eq.f32.partialorder %v4711, 8.507059e+37
        %v4713 = vand.u32 %v4700, 2147483648
        %v4714 = vor.u32 1.1754944e-38, %v4713
        %v4715 = vsel %vm4712, %v4714, %v4710
        %v4716 = vmul.f32 1.0, %v4715
        %v4717 = vrcp.pop %v4701
        %v4718 = vmul.f32 %v4701, %v4717
        %v4719 = vsub.f32 1.0, %v4718
        %v4720 = vmul.f32 %v4717, %v4719
        %v4721 = vadd.f32 %v4717, %v4720
        %vm4722 = vweird.f32 %v4701
        %vm4723 = vweird.f32 %v4717
        %vm4724 = vmor %vm4722, %vm4723
        %v4725 = vsel %vm4724, %v4717, %v4721
        %v4726 = vand.u32 2147483647, %v4701
        %vm4727 = vcmp.eq.f32.partialorder %v4726, 8.507059e+37
        %v4728 = vand.u32 %v4701, 2147483648
        %v4729 = vor.u32 1.1754944e-38, %v4728
        %v4730 = vsel %vm4727, %v4729, %v4725
        %v4731 = vmul.f32 1.0, %v4730
        %v4732 = vtanh.pop %v4509
        %v4733 = vtanh.pop %v4513
        %v4734 = vxor.u32 %v4510, 2147483648
        %v4735 = vxor.u32 %v4514, 2147483648
        %v4736 = vmul.f32 %v4734, 1.442695
        %v4737 = vpow.pop %v4736
        %v4738 = vmul.f32 %v4735, 1.442695
        %v4739 = vpow.pop %v4738
        %v4740 = vadd.f32 %v4737, 1.0
        %v4741 = vadd.f32 %v4739, 1.0
        %v4742 = vrcp.pop %v4740
        %v4743 = vmul.f32 %v4740, %v4742
        %v4744 = vsub.f32 1.0, %v4743
        %v4745 = vmul.f32 %v4742, %v4744
        %v4746 = vadd.f32 %v4742, %v4745
        %vm4747 = vweird.f32 %v4740
        %vm4748 = vweird.f32 %v4742
        %vm4749 = vmor %vm4747, %vm4748
        %v4750 = vsel %vm4749, %v4742, %v4746
        %v4751 = vand.u32 2147483647, %v4740
        %vm4752 = vcmp.eq.f32.partialorder %v4751, 8.507059e+37
        %v4753 = vand.u32 %v4740, 2147483648
        %v4754 = vor.u32 1.1754944e-38, %v4753
        %v4755 = vsel %vm4752, %v4754, %v4750
        %v4756 = vmul.f32 1.0, %v4755
        %v4757 = vrcp.pop %v4741
        %v4758 = vmul.f32 %v4741, %v4757
        %v4759 = vsub.f32 1.0, %v4758
        %v4760 = vmul.f32 %v4757, %v4759
        %v4761 = vadd.f32 %v4757, %v4760
        %vm4762 = vweird.f32 %v4741
        %vm4763 = vweird.f32 %v4757
        %vm4764 = vmor %vm4762, %vm4763
        %v4765 = vsel %vm4764, %v4757, %v4761
        %v4766 = vand.u32 2147483647, %v4741
        %vm4767 = vcmp.eq.f32.partialorder %v4766, 8.507059e+37
        %v4768 = vand.u32 %v4741, 2147483648
        %v4769 = vor.u32 1.1754944e-38, %v4768
        %v4770 = vsel %vm4767, %v4769, %v4765
        %v4771 = vmul.f32 1.0, %v4770
        %v4772 = vmul.f32 %v4678, %v4732
        %v4773 = vmul.f32 %v4693, %v4733
        %v4774 = vmul.f32 %v4716, %v4370
        %v4775 = vmul.f32 %v4731, %v4371
        %v4776 = vadd.f32 %v4772, %v4774
        %v4777 = vadd.f32 %v4773, %v4775
        %v4778 = vtanh.pop %v4776
        %v4779 = vtanh.pop %v4777
        %v4780 = vmul.f32 %v4756, %v4778
        %v4781 = vmul.f32 %v4771, %v4779
        %v4782 = vpack.c.bf16 %v4781, %v4780
        %4783 = vmatpush.bf16.msra.mxu0 %v2039
        %4784 = vmatpush.bf16.msra.mxu0 %v2038
        %4785 = vmatpush.bf16.msra.mxu0 %v2037
        %4786 = vmatpush.bf16.msra.mxu0 %v2036
        %4787 = vmatpush.bf16.msra.mxu0 %v2035
        %4788 = vmatpush.bf16.msra.mxu0 %v2034
        %4789 = vmatpush.bf16.msra.mxu0 %v2033
        %4790 = vmatpush.bf16.msra.mxu0 %v2032
        %4791 = vmatmul.bf16.gmra.mxu0 %v4782
        %v4792 = vpop.f32.mrf.mxu0
        %v4793 = vadd.f32 0.0, %v4792
        %v4794 = vpop.f32.mrf.mxu0
        %v4795 = vadd.f32 0.0, %v4794
        %4796 = vdwg.mxu0
        %v4797 = vsel %vm1352, 1, 0
        %v4798 = vsel %vm1353, 1, 0
        %4799 = vset.pattern.permute.xlu0 0
        %4800 = vperm.xlu0 %4799, %v4797
        %v4801 = vpop.permute.xlu0 %4800
        %4802 = vset.pattern.permute.xlu0 0
        %4803 = vperm.xlu0 %4802, %v4798
        %v4804 = vpop.permute.xlu0 %4803
        %vm4805 = vcmp.eq.s32.totalorder %v4801, 1
        %vm4806 = vcmp.eq.s32.totalorder %v4804, 1
        %v4807 = vsel %vm4805, %v4635, %v4351
        %v4808 = vsel %vm4806, %v4636, %v4352
        %v4809 = vsel %vm4805, %v4652, %v4353
        %v4810 = vsel %vm4806, %v4654, %v4354
        %v4811 = vsel %vm4805, %v4652, 0.0
        %v4812 = vsel %vm4806, %v4654, 0.0
        %s4813 = scalar_lea.vmem %s535, 96 [#allocation15]
        %4814 = vst.msk [vmem:[%s4813] sm:$0xff] %vm717, %v4811
        %4815 = vst.msk [vmem:[%s4813 + $0x8] sm:$0xff] %vm717, %v4812
        %v4816 = vsel %vm1366, 1, 0
        %v4817 = vsel %vm1367, 1, 0
        %4818 = vset.pattern.permute.xlu0 0
        %4819 = vperm.xlu0 %4818, %v4816
        %v4820 = vpop.permute.xlu0 %4819
        %4821 = vset.pattern.permute.xlu0 0
        %4822 = vperm.xlu0 %4821, %v4817
        %v4823 = vpop.permute.xlu0 %4822
        %vm4824 = vcmp.eq.s32.totalorder %v4820, 1
        %vm4825 = vcmp.eq.s32.totalorder %v4823, 1
        %v4826 = vsel %vm4824, %v4776, %v4370
        %v4827 = vsel %vm4825, %v4777, %v4371
        %v4828 = vsel %vm4824, %v4793, %v4372
        %v4829 = vsel %vm4825, %v4795, %v4373
        %v4830 = vsel %vm4824, %v4793, 0.0
        %v4831 = vsel %vm4825, %v4795, 0.0
        %s4832 = scalar_lea.vmem %s542, 16 [#allocation16]
        %4833 = vst.msk [vmem:[%s4832] sm:$0xff] %vm717, %v4830
        %4834 = vst.msk [vmem:[%s4832 + $0x8] sm:$0xff] %vm717, %v4831
        %v4835 = vpack.c.bf16 %v4810, %v4809
        %v4837 = vsel %vm717, %v4835, 0
        %4839 = vmatpush.bf16.msra.mxu0 0
        %4840 = vmatpush.bf16.msra.mxu0 0
        %4841 = vmatpush.bf16.msra.mxu0 0
        %4842 = vmatpush.bf16.msra.mxu0 0
        %4843 = vmatpush.bf16.msra.mxu0 %v1449
        %4844 = vmatpush.bf16.msra.mxu0 %v1445
        %4845 = vmatpush.bf16.msra.mxu0 %v1441
        %4846 = vmatpush.bf16.msra.mxu0 %v1437
        %4847 = vmatmul.bf16.gmra.mxu0 %v4837
        %v4848 = vpop.f32.mrf.mxu0
        %v4849 = vadd.f32 0.0, %v4848
        %v4850 = vpop.f32.mrf.mxu0
        %v4851 = vadd.f32 0.0, %v4850
        %4852 = vdwg.mxu0
        %4853 = vmatpush.bf16.msra.mxu0 0
        %4854 = vmatpush.bf16.msra.mxu0 0
        %4855 = vmatpush.bf16.msra.mxu0 0
        %4856 = vmatpush.bf16.msra.mxu0 0
        %4857 = vmatpush.bf16.msra.mxu0 %v1450
        %4858 = vmatpush.bf16.msra.mxu0 %v1446
        %4859 = vmatpush.bf16.msra.mxu0 %v1442
        %4860 = vmatpush.bf16.msra.mxu0 %v1438
        %4861 = vmatmul.bf16.gmra.mxu0 %v4837
        %v4862 = vpop.f32.mrf.mxu0
        %v4863 = vadd.f32 0.0, %v4862
        %v4864 = vpop.f32.mrf.mxu0
        %v4865 = vadd.f32 0.0, %v4864
        %4866 = vdwg.mxu0
        %4867 = vmatpush.bf16.msra.mxu0 0
        %4868 = vmatpush.bf16.msra.mxu0 0
        %4869 = vmatpush.bf16.msra.mxu0 0
        %4870 = vmatpush.bf16.msra.mxu0 0
        %4871 = vmatpush.bf16.msra.mxu0 %v1451
        %4872 = vmatpush.bf16.msra.mxu0 %v1447
        %4873 = vmatpush.bf16.msra.mxu0 %v1443
        %4874 = vmatpush.bf16.msra.mxu0 %v1439
        %4875 = vmatmul.bf16.gmra.mxu0 %v4837
        %v4876 = vpop.f32.mrf.mxu0
        %v4877 = vadd.f32 0.0, %v4876
        %v4878 = vpop.f32.mrf.mxu0
        %v4879 = vadd.f32 0.0, %v4878
        %4880 = vdwg.mxu0
        %4881 = vmatpush.bf16.msra.mxu0 0
        %4882 = vmatpush.bf16.msra.mxu0 0
        %4883 = vmatpush.bf16.msra.mxu0 0
        %4884 = vmatpush.bf16.msra.mxu0 0
        %4885 = vmatpush.bf16.msra.mxu0 %v1452
        %4886 = vmatpush.bf16.msra.mxu0 %v1448
        %4887 = vmatpush.bf16.msra.mxu0 %v1444
        %4888 = vmatpush.bf16.msra.mxu0 %v1440
        %4889 = vmatmul.bf16.gmra.mxu0 %v4837
        %v4890 = vpop.f32.mrf.mxu0
        %v4891 = vadd.f32 0.0, %v4890
        %v4892 = vpop.f32.mrf.mxu0
        %v4893 = vadd.f32 0.0, %v4892
        %4894 = vdwg.mxu0
        %v4895 = vadd.f32 %v787, %v4849
        %v4896 = vadd.f32 %v836, %v4863
        %v4897 = vadd.f32 %v885, %v4877
        %v4898 = vadd.f32 %v934, %v4891
        %v4899 = vadd.f32 %v789, %v4851
        %v4900 = vadd.f32 %v838, %v4865
        %v4901 = vadd.f32 %v887, %v4879
        %v4902 = vadd.f32 %v936, %v4893
        %v4903 = vpack.c.bf16 %v4829, %v4828
        %v4905 = vsel %vm717, %v4903, 0
        %4907 = vmatpush.bf16.msra.mxu0 0
        %4908 = vmatpush.bf16.msra.mxu0 0
        %4909 = vmatpush.bf16.msra.mxu0 0
        %4910 = vmatpush.bf16.msra.mxu0 0
        %4911 = vmatpush.bf16.msra.mxu0 %v1597
        %4912 = vmatpush.bf16.msra.mxu0 %v1593
        %4913 = vmatpush.bf16.msra.mxu0 %v1589
        %4914 = vmatpush.bf16.msra.mxu0 %v1585
        %4915 = vmatmul.bf16.gmra.mxu0 %v4905
        %v4916 = vpop.f32.mrf.mxu0
        %v4917 = vadd.f32 0.0, %v4916
        %v4918 = vpop.f32.mrf.mxu0
        %v4919 = vadd.f32 0.0, %v4918
        %4920 = vdwg.mxu0
        %4921 = vmatpush.bf16.msra.mxu0 0
        %4922 = vmatpush.bf16.msra.mxu0 0
        %4923 = vmatpush.bf16.msra.mxu0 0
        %4924 = vmatpush.bf16.msra.mxu0 0
        %4925 = vmatpush.bf16.msra.mxu0 %v1598
        %4926 = vmatpush.bf16.msra.mxu0 %v1594
        %4927 = vmatpush.bf16.msra.mxu0 %v1590
        %4928 = vmatpush.bf16.msra.mxu0 %v1586
        %4929 = vmatmul.bf16.gmra.mxu0 %v4905
        %v4930 = vpop.f32.mrf.mxu0
        %v4931 = vadd.f32 0.0, %v4930
        %v4932 = vpop.f32.mrf.mxu0
        %v4933 = vadd.f32 0.0, %v4932
        %4934 = vdwg.mxu0
        %4935 = vmatpush.bf16.msra.mxu0 0
        %4936 = vmatpush.bf16.msra.mxu0 0
        %4937 = vmatpush.bf16.msra.mxu0 0
        %4938 = vmatpush.bf16.msra.mxu0 0
        %4939 = vmatpush.bf16.msra.mxu0 %v1599
        %4940 = vmatpush.bf16.msra.mxu0 %v1595
        %4941 = vmatpush.bf16.msra.mxu0 %v1591
        %4942 = vmatpush.bf16.msra.mxu0 %v1587
        %4943 = vmatmul.bf16.gmra.mxu0 %v4905
        %v4944 = vpop.f32.mrf.mxu0
        %v4945 = vadd.f32 0.0, %v4944
        %v4946 = vpop.f32.mrf.mxu0
        %v4947 = vadd.f32 0.0, %v4946
        %4948 = vdwg.mxu0
        %4949 = vmatpush.bf16.msra.mxu0 0
        %4950 = vmatpush.bf16.msra.mxu0 0
        %4951 = vmatpush.bf16.msra.mxu0 0
        %4952 = vmatpush.bf16.msra.mxu0 0
        %4953 = vmatpush.bf16.msra.mxu0 %v1600
        %4954 = vmatpush.bf16.msra.mxu0 %v1596
        %4955 = vmatpush.bf16.msra.mxu0 %v1592
        %4956 = vmatpush.bf16.msra.mxu0 %v1588
        %4957 = vmatmul.bf16.gmra.mxu0 %v4905
        %v4958 = vpop.f32.mrf.mxu0
        %v4959 = vadd.f32 0.0, %v4958
        %v4960 = vpop.f32.mrf.mxu0
        %v4961 = vadd.f32 0.0, %v4960
        %4962 = vdwg.mxu0
        %v4963 = vadd.f32 %v1078, %v4917
        %v4964 = vadd.f32 %v1127, %v4931
        %v4965 = vadd.f32 %v1176, %v4945
        %v4966 = vadd.f32 %v1225, %v4959
        %v4967 = vadd.f32 %v1080, %v4919
        %v4968 = vadd.f32 %v1129, %v4933
        %v4969 = vadd.f32 %v1178, %v4947
        %v4970 = vadd.f32 %v1227, %v4961
        %v4971 = vxor.u32 %v4895, 2147483648
        %v4972 = vxor.u32 %v4899, 2147483648
        %v4973 = vmul.f32 %v4971, 1.442695
        %v4974 = vpow.pop %v4973
        %v4975 = vmul.f32 %v4972, 1.442695
        %v4976 = vpow.pop %v4975
        %v4977 = vadd.f32 %v4974, 1.0
        %v4978 = vadd.f32 %v4976, 1.0
        %v4979 = vrcp.pop %v4977
        %v4980 = vmul.f32 %v4977, %v4979
        %v4981 = vsub.f32 1.0, %v4980
        %v4982 = vmul.f32 %v4979, %v4981
        %v4983 = vadd.f32 %v4979, %v4982
        %vm4984 = vweird.f32 %v4977
        %vm4985 = vweird.f32 %v4979
        %vm4986 = vmor %vm4984, %vm4985
        %v4987 = vsel %vm4986, %v4979, %v4983
        %v4988 = vand.u32 2147483647, %v4977
        %vm4989 = vcmp.eq.f32.partialorder %v4988, 8.507059e+37
        %v4990 = vand.u32 %v4977, 2147483648
        %v4991 = vor.u32 1.1754944e-38, %v4990
        %v4992 = vsel %vm4989, %v4991, %v4987
        %v4993 = vmul.f32 1.0, %v4992
        %v4994 = vrcp.pop %v4978
        %v4995 = vmul.f32 %v4978, %v4994
        %v4996 = vsub.f32 1.0, %v4995
        %v4997 = vmul.f32 %v4994, %v4996
        %v4998 = vadd.f32 %v4994, %v4997
        %vm4999 = vweird.f32 %v4978
        %vm5000 = vweird.f32 %v4994
        %vm5001 = vmor %vm4999, %vm5000
        %v5002 = vsel %vm5001, %v4994, %v4998
        %v5003 = vand.u32 2147483647, %v4978
        %vm5004 = vcmp.eq.f32.partialorder %v5003, 8.507059e+37
        %v5005 = vand.u32 %v4978, 2147483648
        %v5006 = vor.u32 1.1754944e-38, %v5005
        %v5007 = vsel %vm5004, %v5006, %v5002
        %v5008 = vmul.f32 1.0, %v5007
        %v5009 = vxor.u32 %v4896, 2147483648
        %v5010 = vxor.u32 %v4900, 2147483648
        %v5011 = vmul.f32 %v5009, 1.442695
        %v5012 = vpow.pop %v5011
        %v5013 = vmul.f32 %v5010, 1.442695
        %v5014 = vpow.pop %v5013
        %v5015 = vadd.f32 %v5012, 1.0
        %v5016 = vadd.f32 %v5014, 1.0
        %v5017 = vrcp.pop %v5015
        %v5018 = vmul.f32 %v5015, %v5017
        %v5019 = vsub.f32 1.0, %v5018
        %v5020 = vmul.f32 %v5017, %v5019
        %v5021 = vadd.f32 %v5017, %v5020
        %vm5022 = vweird.f32 %v5015
        %vm5023 = vweird.f32 %v5017
        %vm5024 = vmor %vm5022, %vm5023
        %v5025 = vsel %vm5024, %v5017, %v5021
        %v5026 = vand.u32 2147483647, %v5015
        %vm5027 = vcmp.eq.f32.partialorder %v5026, 8.507059e+37
        %v5028 = vand.u32 %v5015, 2147483648
        %v5029 = vor.u32 1.1754944e-38, %v5028
        %v5030 = vsel %vm5027, %v5029, %v5025
        %v5031 = vmul.f32 1.0, %v5030
        %v5032 = vrcp.pop %v5016
        %v5033 = vmul.f32 %v5016, %v5032
        %v5034 = vsub.f32 1.0, %v5033
        %v5035 = vmul.f32 %v5032, %v5034
        %v5036 = vadd.f32 %v5032, %v5035
        %vm5037 = vweird.f32 %v5016
        %vm5038 = vweird.f32 %v5032
        %vm5039 = vmor %vm5037, %vm5038
        %v5040 = vsel %vm5039, %v5032, %v5036
        %v5041 = vand.u32 2147483647, %v5016
        %vm5042 = vcmp.eq.f32.partialorder %v5041, 8.507059e+37
        %v5043 = vand.u32 %v5016, 2147483648
        %v5044 = vor.u32 1.1754944e-38, %v5043
        %v5045 = vsel %vm5042, %v5044, %v5040
        %v5046 = vmul.f32 1.0, %v5045
        %v5047 = vtanh.pop %v4897
        %v5048 = vtanh.pop %v4901
        %v5049 = vxor.u32 %v4898, 2147483648
        %v5050 = vxor.u32 %v4902, 2147483648
        %v5051 = vmul.f32 %v5049, 1.442695
        %v5052 = vpow.pop %v5051
        %v5053 = vmul.f32 %v5050, 1.442695
        %v5054 = vpow.pop %v5053
        %v5055 = vadd.f32 %v5052, 1.0
        %v5056 = vadd.f32 %v5054, 1.0
        %v5057 = vrcp.pop %v5055
        %v5058 = vmul.f32 %v5055, %v5057
        %v5059 = vsub.f32 1.0, %v5058
        %v5060 = vmul.f32 %v5057, %v5059
        %v5061 = vadd.f32 %v5057, %v5060
        %vm5062 = vweird.f32 %v5055
        %vm5063 = vweird.f32 %v5057
        %vm5064 = vmor %vm5062, %vm5063
        %v5065 = vsel %vm5064, %v5057, %v5061
        %v5066 = vand.u32 2147483647, %v5055
        %vm5067 = vcmp.eq.f32.partialorder %v5066, 8.507059e+37
        %v5068 = vand.u32 %v5055, 2147483648
        %v5069 = vor.u32 1.1754944e-38, %v5068
        %v5070 = vsel %vm5067, %v5069, %v5065
        %v5071 = vmul.f32 1.0, %v5070
        %v5072 = vrcp.pop %v5056
        %v5073 = vmul.f32 %v5056, %v5072
        %v5074 = vsub.f32 1.0, %v5073
        %v5075 = vmul.f32 %v5072, %v5074
        %v5076 = vadd.f32 %v5072, %v5075
        %vm5077 = vweird.f32 %v5056
        %vm5078 = vweird.f32 %v5072
        %vm5079 = vmor %vm5077, %vm5078
        %v5080 = vsel %vm5079, %v5072, %v5076
        %v5081 = vand.u32 2147483647, %v5056
        %vm5082 = vcmp.eq.f32.partialorder %v5081, 8.507059e+37
        %v5083 = vand.u32 %v5056, 2147483648
        %v5084 = vor.u32 1.1754944e-38, %v5083
        %v5085 = vsel %vm5082, %v5084, %v5080
        %v5086 = vmul.f32 1.0, %v5085
        %v5087 = vmul.f32 %v4993, %v5047
        %v5088 = vmul.f32 %v5008, %v5048
        %v5089 = vmul.f32 %v5031, %v4807
        %v5090 = vmul.f32 %v5046, %v4808
        %v5091 = vadd.f32 %v5087, %v5089
        %v5092 = vadd.f32 %v5088, %v5090
        %v5093 = vtanh.pop %v5091
        %v5094 = vtanh.pop %v5092
        %v5095 = vmul.f32 %v5071, %v5093
        %v5096 = vmul.f32 %v5086, %v5094
        %v5097 = vpack.c.bf16 %v5096, %v5095
        %5098 = vmatpush.bf16.msra.mxu0 %v1850
        %5099 = vmatpush.bf16.msra.mxu0 %v1849
        %5100 = vmatpush.bf16.msra.mxu0 %v1848
        %5101 = vmatpush.bf16.msra.mxu0 %v1847
        %5102 = vmatpush.bf16.msra.mxu0 %v1846
        %5103 = vmatpush.bf16.msra.mxu0 %v1845
        %5104 = vmatpush.bf16.msra.mxu0 %v1844
        %5105 = vmatpush.bf16.msra.mxu0 %v1843
        %5106 = vmatmul.bf16.gmra.mxu0 %v5097
        %v5107 = vpop.f32.mrf.mxu0
        %v5108 = vadd.f32 0.0, %v5107
        %v5109 = vpop.f32.mrf.mxu0
        %v5110 = vadd.f32 0.0, %v5109
        %5111 = vdwg.mxu0
        %v5112 = vxor.u32 %v4963, 2147483648
        %v5113 = vxor.u32 %v4967, 2147483648
        %v5114 = vmul.f32 %v5112, 1.442695
        %v5115 = vpow.pop %v5114
        %v5116 = vmul.f32 %v5113, 1.442695
        %v5117 = vpow.pop %v5116
        %v5118 = vadd.f32 %v5115, 1.0
        %v5119 = vadd.f32 %v5117, 1.0
        %v5120 = vrcp.pop %v5118
        %v5121 = vmul.f32 %v5118, %v5120
        %v5122 = vsub.f32 1.0, %v5121
        %v5123 = vmul.f32 %v5120, %v5122
        %v5124 = vadd.f32 %v5120, %v5123
        %vm5125 = vweird.f32 %v5118
        %vm5126 = vweird.f32 %v5120
        %vm5127 = vmor %vm5125, %vm5126
        %v5128 = vsel %vm5127, %v5120, %v5124
        %v5129 = vand.u32 2147483647, %v5118
        %vm5130 = vcmp.eq.f32.partialorder %v5129, 8.507059e+37
        %v5131 = vand.u32 %v5118, 2147483648
        %v5132 = vor.u32 1.1754944e-38, %v5131
        %v5133 = vsel %vm5130, %v5132, %v5128
        %v5134 = vmul.f32 1.0, %v5133
        %v5135 = vrcp.pop %v5119
        %v5136 = vmul.f32 %v5119, %v5135
        %v5137 = vsub.f32 1.0, %v5136
        %v5138 = vmul.f32 %v5135, %v5137
        %v5139 = vadd.f32 %v5135, %v5138
        %vm5140 = vweird.f32 %v5119
        %vm5141 = vweird.f32 %v5135
        %vm5142 = vmor %vm5140, %vm5141
        %v5143 = vsel %vm5142, %v5135, %v5139
        %v5144 = vand.u32 2147483647, %v5119
        %vm5145 = vcmp.eq.f32.partialorder %v5144, 8.507059e+37
        %v5146 = vand.u32 %v5119, 2147483648
        %v5147 = vor.u32 1.1754944e-38, %v5146
        %v5148 = vsel %vm5145, %v5147, %v5143
        %v5149 = vmul.f32 1.0, %v5148
        %v5150 = vxor.u32 %v4964, 2147483648
        %v5151 = vxor.u32 %v4968, 2147483648
        %v5152 = vmul.f32 %v5150, 1.442695
        %v5153 = vpow.pop %v5152
        %v5154 = vmul.f32 %v5151, 1.442695
        %v5155 = vpow.pop %v5154
        %v5156 = vadd.f32 %v5153, 1.0
        %v5157 = vadd.f32 %v5155, 1.0
        %v5158 = vrcp.pop %v5156
        %v5159 = vmul.f32 %v5156, %v5158
        %v5160 = vsub.f32 1.0, %v5159
        %v5161 = vmul.f32 %v5158, %v5160
        %v5162 = vadd.f32 %v5158, %v5161
        %vm5163 = vweird.f32 %v5156
        %vm5164 = vweird.f32 %v5158
        %vm5165 = vmor %vm5163, %vm5164
        %v5166 = vsel %vm5165, %v5158, %v5162
        %v5167 = vand.u32 2147483647, %v5156
        %vm5168 = vcmp.eq.f32.partialorder %v5167, 8.507059e+37
        %v5169 = vand.u32 %v5156, 2147483648
        %v5170 = vor.u32 1.1754944e-38, %v5169
        %v5171 = vsel %vm5168, %v5170, %v5166
        %v5172 = vmul.f32 1.0, %v5171
        %v5173 = vrcp.pop %v5157
        %v5174 = vmul.f32 %v5157, %v5173
        %v5175 = vsub.f32 1.0, %v5174
        %v5176 = vmul.f32 %v5173, %v5175
        %v5177 = vadd.f32 %v5173, %v5176
        %vm5178 = vweird.f32 %v5157
        %vm5179 = vweird.f32 %v5173
        %vm5180 = vmor %vm5178, %vm5179
        %v5181 = vsel %vm5180, %v5173, %v5177
        %v5182 = vand.u32 2147483647, %v5157
        %vm5183 = vcmp.eq.f32.partialorder %v5182, 8.507059e+37
        %v5184 = vand.u32 %v5157, 2147483648
        %v5185 = vor.u32 1.1754944e-38, %v5184
        %v5186 = vsel %vm5183, %v5185, %v5181
        %v5187 = vmul.f32 1.0, %v5186
        %v5188 = vtanh.pop %v4965
        %v5189 = vtanh.pop %v4969
        %v5190 = vxor.u32 %v4966, 2147483648
        %v5191 = vxor.u32 %v4970, 2147483648
        %v5192 = vmul.f32 %v5190, 1.442695
        %v5193 = vpow.pop %v5192
        %v5194 = vmul.f32 %v5191, 1.442695
        %v5195 = vpow.pop %v5194
        %v5196 = vadd.f32 %v5193, 1.0
        %v5197 = vadd.f32 %v5195, 1.0
        %v5198 = vrcp.pop %v5196
        %v5199 = vmul.f32 %v5196, %v5198
        %v5200 = vsub.f32 1.0, %v5199
        %v5201 = vmul.f32 %v5198, %v5200
        %v5202 = vadd.f32 %v5198, %v5201
        %vm5203 = vweird.f32 %v5196
        %vm5204 = vweird.f32 %v5198
        %vm5205 = vmor %vm5203, %vm5204
        %v5206 = vsel %vm5205, %v5198, %v5202
        %v5207 = vand.u32 2147483647, %v5196
        %vm5208 = vcmp.eq.f32.partialorder %v5207, 8.507059e+37
        %v5209 = vand.u32 %v5196, 2147483648
        %v5210 = vor.u32 1.1754944e-38, %v5209
        %v5211 = vsel %vm5208, %v5210, %v5206
        %v5212 = vmul.f32 1.0, %v5211
        %v5213 = vrcp.pop %v5197
        %v5214 = vmul.f32 %v5197, %v5213
        %v5215 = vsub.f32 1.0, %v5214
        %v5216 = vmul.f32 %v5213, %v5215
        %v5217 = vadd.f32 %v5213, %v5216
        %vm5218 = vweird.f32 %v5197
        %vm5219 = vweird.f32 %v5213
        %vm5220 = vmor %vm5218, %vm5219
        %v5221 = vsel %vm5220, %v5213, %v5217
        %v5222 = vand.u32 2147483647, %v5197
        %vm5223 = vcmp.eq.f32.partialorder %v5222, 8.507059e+37
        %v5224 = vand.u32 %v5197, 2147483648
        %v5225 = vor.u32 1.1754944e-38, %v5224
        %v5226 = vsel %vm5223, %v5225, %v5221
        %v5227 = vmul.f32 1.0, %v5226
        %v5228 = vmul.f32 %v5134, %v5188
        %v5229 = vmul.f32 %v5149, %v5189
        %v5230 = vmul.f32 %v5172, %v4826
        %v5231 = vmul.f32 %v5187, %v4827
        %v5232 = vadd.f32 %v5228, %v5230
        %v5233 = vadd.f32 %v5229, %v5231
        %v5234 = vtanh.pop %v5232
        %v5235 = vtanh.pop %v5233
        %v5236 = vmul.f32 %v5212, %v5234
        %v5237 = vmul.f32 %v5227, %v5235
        %v5238 = vpack.c.bf16 %v5237, %v5236
        %5239 = vmatpush.bf16.msra.mxu0 %v2039
        %5240 = vmatpush.bf16.msra.mxu0 %v2038
        %5241 = vmatpush.bf16.msra.mxu0 %v2037
        %5242 = vmatpush.bf16.msra.mxu0 %v2036
        %5243 = vmatpush.bf16.msra.mxu0 %v2035
        %5244 = vmatpush.bf16.msra.mxu0 %v2034
        %5245 = vmatpush.bf16.msra.mxu0 %v2033
        %5246 = vmatpush.bf16.msra.mxu0 %v2032
        %5247 = vmatmul.bf16.gmra.mxu0 %v5238
        %v5248 = vpop.f32.mrf.mxu0
        %v5249 = vadd.f32 0.0, %v5248
        %v5250 = vpop.f32.mrf.mxu0
        %v5251 = vadd.f32 0.0, %v5250
        %5252 = vdwg.mxu0
        %v5253 = vsel %vm1354, 1, 0
        %v5254 = vsel %vm1355, 1, 0
        %5255 = vset.pattern.permute.xlu0 0
        %5256 = vperm.xlu0 %5255, %v5253
        %v5257 = vpop.permute.xlu0 %5256
        %5258 = vset.pattern.permute.xlu0 0
        %5259 = vperm.xlu0 %5258, %v5254
        %v5260 = vpop.permute.xlu0 %5259
        %vm5261 = vcmp.eq.s32.totalorder %v5257, 1
        %vm5262 = vcmp.eq.s32.totalorder %v5260, 1
        %v5263 = vsel %vm5261, %v5091, %v4807
        %v5264 = vsel %vm5262, %v5092, %v4808
        %v5265 = vsel %vm5261, %v5108, %v4809
        %v5266 = vsel %vm5262, %v5110, %v4810
        %v5267 = vsel %vm5261, %v5108, 0.0
        %v5268 = vsel %vm5262, %v5110, 0.0
        %s5269 = scalar_lea.vmem %s535, 112 [#allocation15]
        %5270 = vst.msk [vmem:[%s5269] sm:$0xff] %vm717, %v5267
        %5271 = vst.msk [vmem:[%s5269 + $0x8] sm:$0xff] %vm717, %v5268
        %v5272 = vsel %vm1364, 1, 0
        %v5273 = vsel %vm1365, 1, 0
        %5274 = vset.pattern.permute.xlu0 0
        %5275 = vperm.xlu0 %5274, %v5272
        %v5276 = vpop.permute.xlu0 %5275
        %5277 = vset.pattern.permute.xlu0 0
        %5278 = vperm.xlu0 %5277, %v5273
        %v5279 = vpop.permute.xlu0 %5278
        %vm5280 = vcmp.eq.s32.totalorder %v5276, 1
        %vm5281 = vcmp.eq.s32.totalorder %v5279, 1
        %v5282 = vsel %vm5280, %v5232, %v4826
        %v5283 = vsel %vm5281, %v5233, %v4827
        %v5284 = vsel %vm5280, %v5249, %v4828
        %v5285 = vsel %vm5281, %v5251, %v4829
        %v5286 = vsel %vm5280, %v5249, 0.0
        %v5287 = vsel %vm5281, %v5251, 0.0
        %5288 = vst.msk [vmem:[%s542] sm:$0xff] %vm717, %v5286
        %5289 = vst.msk [vmem:[%s542 + $0x8] sm:$0xff] %vm717, %v5287
        %5290 = vst.msk [vmem:[#allocation2] sm:$0xff] %vm717, %v5265
        %5291 = vst.msk [vmem:[#allocation2 + $0x8] sm:$0xff] %vm717, %v5266
        %5292 = vst [vmem:[#allocation3] sm:$0xff] %v5263
        %5293 = vst [vmem:[#allocation3 + $0x8] sm:$0xff] %v5264
        %5294 = vst.msk [vmem:[#allocation4] sm:$0xff] %vm717, %v5284
        %5295 = vst.msk [vmem:[#allocation4 + $0x8] sm:$0xff] %vm717, %v5285
        %5296 = vst [vmem:[#allocation5] sm:$0xff] %v5282
        %5297 = vst [vmem:[#allocation5 + $0x8] sm:$0xff] %v5283
        %s5298 = sand.u32 %s288, 1
        %s5299 = scalar_lea.sflag [#allocation8], %s5298
        %s5300 = sand.u32 %s288, 1
        %s5301 = smul.addr %s5300, 128
        %s5302 = scalar_lea.vmem [#allocation15], %s5301
        %s5303 = sand.u32 %s316, 1
        %s5304 = scalar_lea.sflag [#allocation17], %s5303
        %s5305 = sand.u32 %s316, 1
        %s5306 = smul.addr %s5305, 128
        %s5307 = scalar_lea.vmem [#allocation16], %s5306
        // Predicated region
        $region89: #{tpu_custom_call.1} parent=63 // pred_check
          %p5308 = pneg %p298
        $region90: #{tpu_custom_call.1} parent=63 // pred_check_branch
          %5310 = sbr.rel (%p5308) target = $region92
        $region91: #{tpu_custom_call.1} parent=63 // pred_region
          %s5311 = smul.u32 8, %s37
          %5313 = vsyncadd %s5299, 0
          %s5314 = smul.addr %s5311, 2
          %s5315 = smul.addr %s5314, 8
          %s5316 = scalar_lea.hbm %s11, %s5315
          %s5317 = sshll.u32 %s5302, 4
          %s5318 = int_to_ptr.vmem [resolvable:$true] %s5317
          %s5319 = sshll.u32 %s5316, 4
          %s5320 = int_to_ptr.hbm [resolvable:$true] %s5319
          %5325 = dma.vmem_to_hbm [thread:$0]  %s5318, 2048, %s5320, %s5299, 128, 128, 8
        $region92: #{tpu_custom_call.1} parent=63 // pred_fallthru
          _
        // Predicated region
        $region93: #{tpu_custom_call.1} parent=63 // pred_check
          %p5326 = pneg %p326
        $region94: #{tpu_custom_call.1} parent=63 // pred_check_branch
          %5328 = sbr.rel (%p5326) target = $region96
        $region95: #{tpu_custom_call.1} parent=63 // pred_region
          %s5329 = ssub.s32 1, %s37
          %s5330 = smul.u32 8, %s5329
          %5332 = vsyncadd %s5304, 0
          %s5333 = smul.addr %s5330, 2
          %s5334 = smul.addr %s5333, 8
          %s5335 = scalar_lea.hbm %s12, %s5334
          %s5336 = sshll.u32 %s5307, 4
          %s5337 = int_to_ptr.vmem [resolvable:$true] %s5336
          %s5338 = sshll.u32 %s5335, 4
          %s5339 = int_to_ptr.hbm [resolvable:$true] %s5338
          %5344 = dma.vmem_to_hbm [thread:$0]  %s5337, 2048, %s5339, %s5304, 128, 128, 8
        $region96: #{tpu_custom_call.1} parent=63 // pred_fallthru
          _
      $region64: #{tpu_custom_call.1} parent=5 // pred_fallthru
        _
      %p5345 = scmp.le.s32.totalorder 2, %s32
      // Predicated region
      $region97: #{tpu_custom_call.1} parent=5 // pred_check
        %p5346 = pneg %p5345
      $region98: #{tpu_custom_call.1} parent=5 // pred_check_branch
        %5348 = sbr.rel (%p5346) target = $region100
      $region99: #{tpu_custom_call.1} parent=5 // pred_region
        %s5349 = ssub.s32 %s32, 2
        // Predicated region
        $region101: #{tpu_custom_call.1} parent=99 // pred_check
          %p5350 = pneg %p304
        $region102: #{tpu_custom_call.1} parent=99 // pred_check_branch
          %5352 = sbr.rel (%p5350) target = $region104
        $region103: #{tpu_custom_call.1} parent=99 // pred_region
          %s5353 = sand.u32 %s289, 1
          %s5354 = scalar_lea.sflag [#allocation8], %s5353
          %s5355 = sand.u32 %s289, 1
          %s5356 = smul.addr %s5355, 128
          %s5357 = scalar_lea.vmem [#allocation15], %s5356
          %5359 = dma.done %s5354, 2048
        $region104: #{tpu_custom_call.1} parent=99 // pred_fallthru
          _
        // Predicated region
        $region105: #{tpu_custom_call.1} parent=99 // pred_check
          %p5360 = pneg %p332
        $region106: #{tpu_custom_call.1} parent=99 // pred_check_branch
          %5362 = sbr.rel (%p5360) target = $region108
        $region107: #{tpu_custom_call.1} parent=99 // pred_region
          %s5363 = sand.u32 %s317, 1
          %s5364 = scalar_lea.sflag [#allocation17], %s5363
          %s5365 = sand.u32 %s317, 1
          %s5366 = smul.addr %s5365, 128
          %s5367 = scalar_lea.vmem [#allocation16], %s5366
          %5369 = dma.done %s5364, 2048
        $region108: #{tpu_custom_call.1} parent=99 // pred_fallthru
          _
      $region100: #{tpu_custom_call.1} parent=5 // pred_fallthru
        _
    $region6: #{tpu_custom_call.1} parent=1 // loop_footer
      %s36 = sadd.s32 1, %s32
    $region7: #{tpu_custom_call.1} parent=1 // loop_footer_branch
      %31 = sbr.rel target = $region3
    $region8: #{tpu_custom_call.1} parent=1 // loop_exit
      _
    %5370 = vsyncpa [#allocation7], 1
    %s5371 = scalar_lea.sflag [#allocation7], 1
    %5372 = vsyncpa %s5371, 1
    %5373 = vsyncpa [#allocation10], 1
    %s5374 = scalar_lea.sflag [#allocation10], 1
    %5375 = vsyncpa %s5374, 1
    %5376 = vsyncpa [#allocation13], 1
    %5377 = vsyncpa [#allocation8], 1
    %s5378 = scalar_lea.sflag [#allocation8], 1
    %5379 = vsyncpa %s5378, 1
    %5380 = vsyncpa [#allocation17], 1
    %s5381 = scalar_lea.sflag [#allocation17], 1
    %5382 = vsyncpa %s5381, 1

</llo_original>
